<compile_context>
chip_gen: v5e
topology: v5e:2x2
jax: 0.10.0
libtpu: 0.0.40
codegen_flags: <defaults>
</compile_context>

<pallas_src>
from functools import partial

import jax
import jax.numpy as jnp
from jax.experimental import pallas as pl
from jax.experimental.pallas import tpu as pltpu


def _resblock_kernel(xpp_ref, w1_ref, b1_ref, w2_ref, b2_ref, o_ref,
                     *, ks, res_scale, block_h, img_h, img_w):
    p = ks // 2
    th = block_h                 # output rows produced by this grid step
    hh = th + 2 * p              # conv1 rows needed for this strip (with halo)
    wp = img_w + 2 * p           # conv1 cols (with halo)
    cp = o_ref.shape[-1]         # lane-padded channel count (multiple of 128)

    s = pl.program_id(1)
    r0 = pl.multiple_of(s * th, th)          # first output row of this strip

    # Rows [r0, r0 + th + 4p) of the 2p-padded input cover everything conv1
    # needs for this strip (incl. halo) AND the residual rows.  The padded
    # image block is resident across the strip axis, so this is a VMEM slice,
    # not an extra DMA.
    x_strip = xpp_ref[0, pl.ds(r0, th + 4 * p), :, :]     # (th+4p, W+4p, Cp)

    b1 = b1_ref[...].astype(jnp.float32)                  # (1, Cp)
    b2 = b2_ref[...].astype(jnp.float32)

    # ---- conv1 (+bias, ReLU) over strip + 1-tap halo ------------------------
    # Native-dtype operands to the MXU; f32 accumulation via
    # preferred_element_type (no per-tap upcasts / weight casts).
    acc1 = jnp.zeros((hh * wp, cp), jnp.float32)
    for kh in range(ks):
        for kw in range(ks):
            patch = x_strip[kh:kh + hh, kw:kw + wp, :].reshape(hh * wp, cp)
            acc1 += jnp.dot(patch, w1_ref[kh, kw],
                            preferred_element_type=jnp.float32)

    # ---- bias + ReLU fused with zeroing of the out-of-image halo ------------
    # The PyTorch module zero-pads relu(conv1(x)) before conv2; halo positions
    # computed above lie outside the image and must be exactly 0.
    # 3-D iota keeps the lane dim trivial (no relayout); the (hh, wp, 1) mask
    # then lane-broadcasts for free inside jnp.where.
    row_g = r0 - p + jax.lax.broadcasted_iota(jnp.int32, (hh, wp, 1), 0)
    col_g = jax.lax.broadcasted_iota(jnp.int32, (hh, wp, 1), 1) - p
    inside = (row_g >= 0) & (row_g < img_h) & (col_g >= 0) & (col_g < img_w)
    y1 = jnp.where(inside,
                   jnp.maximum(acc1.reshape(hh, wp, cp) + b1, 0.0),
                   0.0)

    # ---- conv2 over the masked intermediate ---------------------------------
    y1_in = y1.astype(w2_ref.dtype)          # native dtype feed (no-op for f32)
    acc2 = jnp.zeros((th * img_w, cp), jnp.float32)
    for kh in range(ks):
        for kw in range(ks):
            patch = y1_in[kh:kh + th, kw:kw + img_w, :].reshape(th * img_w, cp)
            acc2 += jnp.dot(patch, w2_ref[kh, kw],
                            preferred_element_type=jnp.float32)
    y2 = (acc2 + b2).reshape(th, img_w, cp)
    if res_scale != 1.0:                      # static: skip the mul when 1.0
        y2 = y2 * res_scale

    # ---- residual add (from the resident padded input; no second x DMA) -----
    x_res = x_strip[2 * p:2 * p + th, 2 * p:2 * p + img_w, :].astype(jnp.float32)
    o_ref[0] = (y2 + x_res).astype(o_ref.dtype)


def _pick_block_h(H, W, cp, p, n_batch, *, budget_bytes=6 * 1024 * 1024):
    """Largest divisor of H whose f32 strip intermediates fit the VMEM budget.

    Prefers >= 2 total grid steps so both v7x TensorCores get work.
    """
    best = 1
    for bh in range(H, 0, -1):
        if H % bh:
            continue
        # acc1 + y1 + acc2 (all f32) dominate the per-strip live values.
        need = 4 * ((2 * (bh + 2 * p) * (W + 2 * p)) + bh * W) * cp
        if need <= budget_bytes:
            best = bh
            break
    if n_batch * (H // best) < 2 and best > 1:
        for bh in range(best - 1, 0, -1):
            if H % bh == 0:
                best = bh
                break
    return best


def resblock_pallas(x_nchw, w1_hwio, b1, w2_hwio, b2, *, res_scale=1.0,
                    block_h=None):
    """x_nchw: (N, C, H, W); conv weights in HWIO: (ks, ks, C_in, C_out)."""
    ks = w1_hwio.shape[0]
    p = ks // 2
    N, C, H, W = x_nchw.shape

    # Lane-dense channel padding (multiple of 128): dense vregs, unmasked
    # stores, full-width MXU contraction.  For real EDSR widths (64 / 256) this
    # is <=2x / 0 overhead; padded channels stay exactly zero end to end.
    cp = ((C + 127) // 128) * 128
    dt = x_nchw.dtype

    if block_h is None or H % block_h != 0:
        block_h = _pick_block_h(H, W, cp, p, N)
    n_strips = H // block_h

    x = jnp.transpose(x_nchw, (0, 2, 3, 1))                    # NCHW -> NHWC
    # One pad op: 2p spatial halo (two chained SAME convs) + channel padding.
    # If the producer already emits NHWC with C % 128 == 0, both wrapper passes
    # (transpose + pad) disappear.
    xpp = jnp.pad(x, ((0, 0), (2 * p, 2 * p), (2 * p, 2 * p), (0, cp - C)))

    w1p = jnp.pad(w1_hwio.astype(dt), ((0, 0), (0, 0), (0, cp - C), (0, cp - C)))
    w2p = jnp.pad(w2_hwio.astype(dt), ((0, 0), (0, 0), (0, cp - C), (0, cp - C)))
    b1p = jnp.pad(b1.astype(dt), (0, cp - C)).reshape(1, cp)
    b2p = jnp.pad(b2.astype(dt), (0, cp - C)).reshape(1, cp)

    kernel = partial(_resblock_kernel, ks=ks, res_scale=float(res_scale),
                     block_h=block_h, img_h=H, img_w=W)

    out_nhwc = pl.pallas_call(
        kernel,
        out_shape=jax.ShapeDtypeStruct((N, H, W, cp), dt),
        grid_spec=pltpu.PrefetchScalarGridSpec(
            num_scalar_prefetch=0,
            grid=(N, n_strips),
            in_specs=[
                # Padded image: one block per batch element; constant along the
                # strip axis, so it is DMA'd once per image and stays resident.
                pl.BlockSpec((1, H + 4 * p, W + 4 * p, cp),
                             lambda b, s: (b, 0, 0, 0)),
                # Weights / biases: constant index_map -> resident across grid.
                pl.BlockSpec((ks, ks, cp, cp), lambda b, s: (0, 0, 0, 0)),
                pl.BlockSpec((1, cp), lambda b, s: (0, 0)),
                pl.BlockSpec((ks, ks, cp, cp), lambda b, s: (0, 0, 0, 0)),
                pl.BlockSpec((1, cp), lambda b, s: (0, 0)),
            ],
            out_specs=pl.BlockSpec((1, block_h, W, cp),
                                   lambda b, s: (b, s, 0, 0)),
        ),
        compiler_params=pltpu.CompilerParams(
            # Batch and row-strip axes are independent -> both TensorCores get
            # work on v7x even when N is 1 or odd.
            dimension_semantics=("parallel", "parallel"),
            vmem_limit_bytes=32 * 1024 * 1024,
        ),
    )(xpp, w1p, b1p, w2p, b2p)

    return jnp.transpose(out_nhwc[..., :C], (0, 3, 1, 2))      # back to NCHW


def _reference(x_nchw, w1_hwio, b1, w2_hwio, b2, res_scale):
    """Pure-JAX reference (NCHW conv, 'same' padding) mirroring the PyTorch module."""
    dn = jax.lax.conv_dimension_numbers(x_nchw.shape, w1_hwio.shape,
                                        ("NCHW", "HWIO", "NCHW"))
    y = jax.lax.conv_general_dilated(x_nchw, w1_hwio, (1, 1), "SAME",
                                     dimension_numbers=dn)
    y = jax.nn.relu(y + b1.reshape(1, -1, 1, 1))
    y = jax.lax.conv_general_dilated(y, w2_hwio, (1, 1), "SAME",
                                     dimension_numbers=dn)
    y = y + b2.reshape(1, -1, 1, 1)
    return y * res_scale + x_nchw


if __name__ == "__main__":
    # Small shapes consistent with ResBlock(n_feat=4, kernel_size=3).
    N, C, H, W = 2, 4, 16, 16
    KS = 3
    RES_SCALE = 1.0

    key = jax.random.PRNGKey(0)
    kx, kw1, kb1, kw2, kb2 = jax.random.split(key, 5)

    x = jax.random.normal(kx, (N, C, H, W), dtype=jnp.float32)
    # Deterministic synthetic parameters (HWIO layout for the conv weights).
    w1 = jax.random.normal(kw1, (KS, KS, C, C), dtype=jnp.float32) * 0.1
    b1 = jax.random.normal(kb1, (C,), dtype=jnp.float32) * 0.1
    w2 = jax.random.normal(kw2, (KS, KS, C, C), dtype=jnp.float32) * 0.1
    b2 = jax.random.normal(kb2, (C,), dtype=jnp.float32) * 0.1

    out = resblock_pallas(x, w1, b1, w2, b2, res_scale=RES_SCALE)
    out = jax.block_until_ready(out)

    ref = _reference(x, w1, b1, w2, b2, RES_SCALE)
    assert out.shape == (N, C, H, W)
    max_err = float(jnp.max(jnp.abs(out - ref)))
    # Tolerance covers MXU bf16-pass rounding at default matmul precision,
    # which differs in reduction order between the Pallas dots and XLA's conv.
    assert jnp.allclose(out, ref, atol=1e-2, rtol=1e-2), (
        f"mismatch vs reference (max abs err {max_err:.3e})")

    print("KERNEL_OK")
</pallas_src>

<mosaic_0001>
module attributes {stable_mosaic.version = 11 : i64} {
  func.func @_resblock_kernel(%arg0: i32, %arg1: i32, %arg2: memref<1x20x20x128xf32, #tpu.memory_space<vmem>>, %arg3: memref<3x3x128x128xf32, #tpu.memory_space<vmem>>, %arg4: memref<1x128xf32, #tpu.memory_space<vmem>>, %arg5: memref<3x3x128x128xf32, #tpu.memory_space<vmem>>, %arg6: memref<1x128xf32, #tpu.memory_space<vmem>>, %arg7: memref<1x16x16x128xf32, #tpu.memory_space<vmem>>) attributes {dimension_semantics = [#tpu.dimension_semantics<parallel>, #tpu.dimension_semantics<parallel>], iteration_bounds = array<i64: 2, 1>, scalar_prefetch = 0 : i64, scratch_operands = 0 : i64, tpu.core_type = #tpu.core_type<tc>, window_params = [{transform_indices = @transform_0, window_bounds = array<i64: 1, 20, 20, 128>}, {pipeline_mode = #tpu.pipeline_mode<synchronous>, transform_indices = @transform_1, window_bounds = array<i64: 3, 3, 128, 128>}, {pipeline_mode = #tpu.pipeline_mode<synchronous>, transform_indices = @transform_2, window_bounds = array<i64: 1, 128>}, {pipeline_mode = #tpu.pipeline_mode<synchronous>, transform_indices = @transform_3, window_bounds = array<i64: 3, 3, 128, 128>}, {pipeline_mode = #tpu.pipeline_mode<synchronous>, transform_indices = @transform_4, window_bounds = array<i64: 1, 128>}, {transform_indices = @transform_5, window_bounds = array<i64: 1, 16, 16, 128>}]} {
    %c16_i32 = arith.constant 16 : i32
    %0 = arith.muli %arg1, %c16_i32 : i32
    %1 = tpu.assume_multiple %0, 16 : i32
    %c0 = arith.constant 0 : index
    %2 = arith.index_cast %1 : i32 to index
    %c0_0 = arith.constant 0 : index
    %c0_1 = arith.constant 0 : index
    %3 = vector.load %arg2[%c0, %2, %c0_0, %c0_1] : memref<1x20x20x128xf32, #tpu.memory_space<vmem>>, vector<1x20x20x128xf32>
    %4 = vector.shape_cast %3 : vector<1x20x20x128xf32> to vector<20x20x128xf32>
    %c0_2 = arith.constant 0 : index
    %c0_3 = arith.constant 0 : index
    %5 = vector.load %arg4[%c0_2, %c0_3] : memref<1x128xf32, #tpu.memory_space<vmem>>, vector<1x128xf32>
    %c0_4 = arith.constant 0 : index
    %c0_5 = arith.constant 0 : index
    %6 = vector.load %arg6[%c0_4, %c0_5] : memref<1x128xf32, #tpu.memory_space<vmem>>, vector<1x128xf32>
    %cst = arith.constant 0.000000e+00 : f32
    %7 = vector.broadcast %cst : f32 to vector<324x128xf32>
    %8 = vector.extract_strided_slice %4 {offsets = [0, 0, 0], sizes = [18, 18, 128], strides = [1, 1, 1]} : vector<20x20x128xf32> to vector<18x18x128xf32>
    %9 = vector.shape_cast %8 : vector<18x18x128xf32> to vector<324x128xf32>
    %c0_6 = arith.constant 0 : index
    %c0_7 = arith.constant 0 : index
    %c0_8 = arith.constant 0 : index
    %c0_9 = arith.constant 0 : index
    %10 = vector.load %arg3[%c0_6, %c0_7, %c0_8, %c0_9] : memref<3x3x128x128xf32, #tpu.memory_space<vmem>>, vector<1x1x128x128xf32>
    %11 = vector.shape_cast %10 : vector<1x1x128x128xf32> to vector<128x128xf32>
    %cst_10 = arith.constant dense<0.000000e+00> : vector<324x128xf32>
    %12 = tpu.matmul %9, %11, %cst_10 {dimension_numbers = #tpu.dot_dimension_numbers<[1], [0], [0], [1], [0, 0, 1, 1], [], []>} : vector<324x128xf32>, vector<128x128xf32>, vector<324x128xf32> -> vector<324x128xf32>
    %13 = arith.addf %7, %12 : vector<324x128xf32>
    %14 = vector.extract_strided_slice %4 {offsets = [0, 1, 0], sizes = [18, 18, 128], strides = [1, 1, 1]} : vector<20x20x128xf32> to vector<18x18x128xf32>
    %15 = vector.shape_cast %14 : vector<18x18x128xf32> to vector<324x128xf32>
    %c0_11 = arith.constant 0 : index
    %c1 = arith.constant 1 : index
    %c0_12 = arith.constant 0 : index
    %c0_13 = arith.constant 0 : index
    %16 = vector.load %arg3[%c0_11, %c1, %c0_12, %c0_13] : memref<3x3x128x128xf32, #tpu.memory_space<vmem>>, vector<1x1x128x128xf32>
    %17 = vector.shape_cast %16 : vector<1x1x128x128xf32> to vector<128x128xf32>
    %cst_14 = arith.constant dense<0.000000e+00> : vector<324x128xf32>
    %18 = tpu.matmul %15, %17, %cst_14 {dimension_numbers = #tpu.dot_dimension_numbers<[1], [0], [0], [1], [0, 0, 1, 1], [], []>} : vector<324x128xf32>, vector<128x128xf32>, vector<324x128xf32> -> vector<324x128xf32>
    %19 = arith.addf %13, %18 : vector<324x128xf32>
    %20 = vector.extract_strided_slice %4 {offsets = [0, 2, 0], sizes = [18, 18, 128], strides = [1, 1, 1]} : vector<20x20x128xf32> to vector<18x18x128xf32>
    %21 = vector.shape_cast %20 : vector<18x18x128xf32> to vector<324x128xf32>
    %c0_15 = arith.constant 0 : index
    %c2 = arith.constant 2 : index
    %c0_16 = arith.constant 0 : index
    %c0_17 = arith.constant 0 : index
    %22 = vector.load %arg3[%c0_15, %c2, %c0_16, %c0_17] : memref<3x3x128x128xf32, #tpu.memory_space<vmem>>, vector<1x1x128x128xf32>
    %23 = vector.shape_cast %22 : vector<1x1x128x128xf32> to vector<128x128xf32>
    %cst_18 = arith.constant dense<0.000000e+00> : vector<324x128xf32>
    %24 = tpu.matmul %21, %23, %cst_18 {dimension_numbers = #tpu.dot_dimension_numbers<[1], [0], [0], [1], [0, 0, 1, 1], [], []>} : vector<324x128xf32>, vector<128x128xf32>, vector<324x128xf32> -> vector<324x128xf32>
    %25 = arith.addf %19, %24 : vector<324x128xf32>
    %26 = vector.extract_strided_slice %4 {offsets = [1, 0, 0], sizes = [18, 18, 128], strides = [1, 1, 1]} : vector<20x20x128xf32> to vector<18x18x128xf32>
    %27 = vector.shape_cast %26 : vector<18x18x128xf32> to vector<324x128xf32>
    %c1_19 = arith.constant 1 : index
    %c0_20 = arith.constant 0 : index
    %c0_21 = arith.constant 0 : index
    %c0_22 = arith.constant 0 : index
    %28 = vector.load %arg3[%c1_19, %c0_20, %c0_21, %c0_22] : memref<3x3x128x128xf32, #tpu.memory_space<vmem>>, vector<1x1x128x128xf32>
    %29 = vector.shape_cast %28 : vector<1x1x128x128xf32> to vector<128x128xf32>
    %cst_23 = arith.constant dense<0.000000e+00> : vector<324x128xf32>
    %30 = tpu.matmul %27, %29, %cst_23 {dimension_numbers = #tpu.dot_dimension_numbers<[1], [0], [0], [1], [0, 0, 1, 1], [], []>} : vector<324x128xf32>, vector<128x128xf32>, vector<324x128xf32> -> vector<324x128xf32>
    %31 = arith.addf %25, %30 : vector<324x128xf32>
    %32 = vector.extract_strided_slice %4 {offsets = [1, 1, 0], sizes = [18, 18, 128], strides = [1, 1, 1]} : vector<20x20x128xf32> to vector<18x18x128xf32>
    %33 = vector.shape_cast %32 : vector<18x18x128xf32> to vector<324x128xf32>
    %c1_24 = arith.constant 1 : index
    %c1_25 = arith.constant 1 : index
    %c0_26 = arith.constant 0 : index
    %c0_27 = arith.constant 0 : index
    %34 = vector.load %arg3[%c1_24, %c1_25, %c0_26, %c0_27] : memref<3x3x128x128xf32, #tpu.memory_space<vmem>>, vector<1x1x128x128xf32>
    %35 = vector.shape_cast %34 : vector<1x1x128x128xf32> to vector<128x128xf32>
    %cst_28 = arith.constant dense<0.000000e+00> : vector<324x128xf32>
    %36 = tpu.matmul %33, %35, %cst_28 {dimension_numbers = #tpu.dot_dimension_numbers<[1], [0], [0], [1], [0, 0, 1, 1], [], []>} : vector<324x128xf32>, vector<128x128xf32>, vector<324x128xf32> -> vector<324x128xf32>
    %37 = arith.addf %31, %36 : vector<324x128xf32>
    %38 = vector.extract_strided_slice %4 {offsets = [1, 2, 0], sizes = [18, 18, 128], strides = [1, 1, 1]} : vector<20x20x128xf32> to vector<18x18x128xf32>
    %39 = vector.shape_cast %38 : vector<18x18x128xf32> to vector<324x128xf32>
    %c1_29 = arith.constant 1 : index
    %c2_30 = arith.constant 2 : index
    %c0_31 = arith.constant 0 : index
    %c0_32 = arith.constant 0 : index
    %40 = vector.load %arg3[%c1_29, %c2_30, %c0_31, %c0_32] : memref<3x3x128x128xf32, #tpu.memory_space<vmem>>, vector<1x1x128x128xf32>
    %41 = vector.shape_cast %40 : vector<1x1x128x128xf32> to vector<128x128xf32>
    %cst_33 = arith.constant dense<0.000000e+00> : vector<324x128xf32>
    %42 = tpu.matmul %39, %41, %cst_33 {dimension_numbers = #tpu.dot_dimension_numbers<[1], [0], [0], [1], [0, 0, 1, 1], [], []>} : vector<324x128xf32>, vector<128x128xf32>, vector<324x128xf32> -> vector<324x128xf32>
    %43 = arith.addf %37, %42 : vector<324x128xf32>
    %44 = vector.extract_strided_slice %4 {offsets = [2, 0, 0], sizes = [18, 18, 128], strides = [1, 1, 1]} : vector<20x20x128xf32> to vector<18x18x128xf32>
    %45 = vector.shape_cast %44 : vector<18x18x128xf32> to vector<324x128xf32>
    %c2_34 = arith.constant 2 : index
    %c0_35 = arith.constant 0 : index
    %c0_36 = arith.constant 0 : index
    %c0_37 = arith.constant 0 : index
    %46 = vector.load %arg3[%c2_34, %c0_35, %c0_36, %c0_37] : memref<3x3x128x128xf32, #tpu.memory_space<vmem>>, vector<1x1x128x128xf32>
    %47 = vector.shape_cast %46 : vector<1x1x128x128xf32> to vector<128x128xf32>
    %cst_38 = arith.constant dense<0.000000e+00> : vector<324x128xf32>
    %48 = tpu.matmul %45, %47, %cst_38 {dimension_numbers = #tpu.dot_dimension_numbers<[1], [0], [0], [1], [0, 0, 1, 1], [], []>} : vector<324x128xf32>, vector<128x128xf32>, vector<324x128xf32> -> vector<324x128xf32>
    %49 = arith.addf %43, %48 : vector<324x128xf32>
    %50 = vector.extract_strided_slice %4 {offsets = [2, 1, 0], sizes = [18, 18, 128], strides = [1, 1, 1]} : vector<20x20x128xf32> to vector<18x18x128xf32>
    %51 = vector.shape_cast %50 : vector<18x18x128xf32> to vector<324x128xf32>
    %c2_39 = arith.constant 2 : index
    %c1_40 = arith.constant 1 : index
    %c0_41 = arith.constant 0 : index
    %c0_42 = arith.constant 0 : index
    %52 = vector.load %arg3[%c2_39, %c1_40, %c0_41, %c0_42] : memref<3x3x128x128xf32, #tpu.memory_space<vmem>>, vector<1x1x128x128xf32>
    %53 = vector.shape_cast %52 : vector<1x1x128x128xf32> to vector<128x128xf32>
    %cst_43 = arith.constant dense<0.000000e+00> : vector<324x128xf32>
    %54 = tpu.matmul %51, %53, %cst_43 {dimension_numbers = #tpu.dot_dimension_numbers<[1], [0], [0], [1], [0, 0, 1, 1], [], []>} : vector<324x128xf32>, vector<128x128xf32>, vector<324x128xf32> -> vector<324x128xf32>
    %55 = arith.addf %49, %54 : vector<324x128xf32>
    %56 = vector.extract_strided_slice %4 {offsets = [2, 2, 0], sizes = [18, 18, 128], strides = [1, 1, 1]} : vector<20x20x128xf32> to vector<18x18x128xf32>
    %57 = vector.shape_cast %56 : vector<18x18x128xf32> to vector<324x128xf32>
    %c2_44 = arith.constant 2 : index
    %c2_45 = arith.constant 2 : index
    %c0_46 = arith.constant 0 : index
    %c0_47 = arith.constant 0 : index
    %58 = vector.load %arg3[%c2_44, %c2_45, %c0_46, %c0_47] : memref<3x3x128x128xf32, #tpu.memory_space<vmem>>, vector<1x1x128x128xf32>
    %59 = vector.shape_cast %58 : vector<1x1x128x128xf32> to vector<128x128xf32>
    %cst_48 = arith.constant dense<0.000000e+00> : vector<324x128xf32>
    %60 = tpu.matmul %57, %59, %cst_48 {dimension_numbers = #tpu.dot_dimension_numbers<[1], [0], [0], [1], [0, 0, 1, 1], [], []>} : vector<324x128xf32>, vector<128x128xf32>, vector<324x128xf32> -> vector<324x128xf32>
    %61 = arith.addf %55, %60 : vector<324x128xf32>
    %c1_i32 = arith.constant 1 : i32
    %62 = arith.subi %1, %c1_i32 : i32
    %63 = tpu.iota {dimensions = array<i32: 0>} : vector<18x18x1xi32>
    %64 = vector.broadcast %62 : i32 to vector<18x18x1xi32>
    %65 = arith.addi %64, %63 : vector<18x18x1xi32>
    %66 = tpu.iota {dimensions = array<i32: 1>} : vector<18x18x1xi32>
    %c1_i32_49 = arith.constant 1 : i32
    %67 = vector.broadcast %c1_i32_49 : i32 to vector<18x18x1xi32>
    %68 = arith.subi %66, %67 : vector<18x18x1xi32>
    %c0_i32 = arith.constant 0 : i32
    %69 = vector.broadcast %c0_i32 : i32 to vector<18x18x1xi32>
    %70 = arith.cmpi sge, %65, %69 : vector<18x18x1xi32>
    %c16_i32_50 = arith.constant 16 : i32
    %71 = vector.broadcast %c16_i32_50 : i32 to vector<18x18x1xi32>
    %72 = arith.cmpi slt, %65, %71 : vector<18x18x1xi32>
    %73 = arith.andi %70, %72 : vector<18x18x1xi1>
    %c0_i32_51 = arith.constant 0 : i32
    %74 = vector.broadcast %c0_i32_51 : i32 to vector<18x18x1xi32>
    %75 = arith.cmpi sge, %68, %74 : vector<18x18x1xi32>
    %76 = arith.andi %73, %75 : vector<18x18x1xi1>
    %c16_i32_52 = arith.constant 16 : i32
    %77 = vector.broadcast %c16_i32_52 : i32 to vector<18x18x1xi32>
    %78 = arith.cmpi slt, %68, %77 : vector<18x18x1xi32>
    %79 = arith.andi %76, %78 : vector<18x18x1xi1>
    %80 = vector.shape_cast %61 : vector<324x128xf32> to vector<18x18x128xf32>
    %81 = vector.shape_cast %5 : vector<1x128xf32> to vector<1x1x128xf32>
    %82 = vector.broadcast %81 : vector<1x1x128xf32> to vector<18x18x128xf32>
    %83 = arith.addf %80, %82 : vector<18x18x128xf32>
    %cst_53 = arith.constant 0.000000e+00 : f32
    %84 = vector.broadcast %cst_53 : f32 to vector<18x18x128xf32>
    %85 = arith.maximumf %83, %84 : vector<18x18x128xf32>
    %cst_54 = arith.constant 0.000000e+00 : f32
    %86 = vector.shape_cast %79 : vector<18x18x1xi1> to vector<18x18x1xi1>
    %87 = vector.broadcast %86 : vector<18x18x1xi1> to vector<18x18x128xi1>
    %88 = vector.broadcast %cst_54 : f32 to vector<18x18x128xf32>
    %89 = arith.select %87, %85, %88 : vector<18x18x128xi1>, vector<18x18x128xf32>
    %cst_55 = arith.constant 0.000000e+00 : f32
    %90 = vector.broadcast %cst_55 : f32 to vector<256x128xf32>
    %91 = vector.extract_strided_slice %89 {offsets = [0, 0, 0], sizes = [16, 16, 128], strides = [1, 1, 1]} : vector<18x18x128xf32> to vector<16x16x128xf32>
    %92 = vector.shape_cast %91 : vector<16x16x128xf32> to vector<256x128xf32>
    %c0_56 = arith.constant 0 : index
    %c0_57 = arith.constant 0 : index
    %c0_58 = arith.constant 0 : index
    %c0_59 = arith.constant 0 : index
    %93 = vector.load %arg5[%c0_56, %c0_57, %c0_58, %c0_59] : memref<3x3x128x128xf32, #tpu.memory_space<vmem>>, vector<1x1x128x128xf32>
    %94 = vector.shape_cast %93 : vector<1x1x128x128xf32> to vector<128x128xf32>
    %cst_60 = arith.constant dense<0.000000e+00> : vector<256x128xf32>
    %95 = tpu.matmul %92, %94, %cst_60 {dimension_numbers = #tpu.dot_dimension_numbers<[1], [0], [0], [1], [0, 0, 1, 1], [], []>} : vector<256x128xf32>, vector<128x128xf32>, vector<256x128xf32> -> vector<256x128xf32>
    %96 = arith.addf %90, %95 : vector<256x128xf32>
    %97 = vector.extract_strided_slice %89 {offsets = [0, 1, 0], sizes = [16, 16, 128], strides = [1, 1, 1]} : vector<18x18x128xf32> to vector<16x16x128xf32>
    %98 = vector.shape_cast %97 : vector<16x16x128xf32> to vector<256x128xf32>
    %c0_61 = arith.constant 0 : index
    %c1_62 = arith.constant 1 : index
    %c0_63 = arith.constant 0 : index
    %c0_64 = arith.constant 0 : index
    %99 = vector.load %arg5[%c0_61, %c1_62, %c0_63, %c0_64] : memref<3x3x128x128xf32, #tpu.memory_space<vmem>>, vector<1x1x128x128xf32>
    %100 = vector.shape_cast %99 : vector<1x1x128x128xf32> to vector<128x128xf32>
    %cst_65 = arith.constant dense<0.000000e+00> : vector<256x128xf32>
    %101 = tpu.matmul %98, %100, %cst_65 {dimension_numbers = #tpu.dot_dimension_numbers<[1], [0], [0], [1], [0, 0, 1, 1], [], []>} : vector<256x128xf32>, vector<128x128xf32>, vector<256x128xf32> -> vector<256x128xf32>
    %102 = arith.addf %96, %101 : vector<256x128xf32>
    %103 = vector.extract_strided_slice %89 {offsets = [0, 2, 0], sizes = [16, 16, 128], strides = [1, 1, 1]} : vector<18x18x128xf32> to vector<16x16x128xf32>
    %104 = vector.shape_cast %103 : vector<16x16x128xf32> to vector<256x128xf32>
    %c0_66 = arith.constant 0 : index
    %c2_67 = arith.constant 2 : index
    %c0_68 = arith.constant 0 : index
    %c0_69 = arith.constant 0 : index
    %105 = vector.load %arg5[%c0_66, %c2_67, %c0_68, %c0_69] : memref<3x3x128x128xf32, #tpu.memory_space<vmem>>, vector<1x1x128x128xf32>
    %106 = vector.shape_cast %105 : vector<1x1x128x128xf32> to vector<128x128xf32>
    %cst_70 = arith.constant dense<0.000000e+00> : vector<256x128xf32>
    %107 = tpu.matmul %104, %106, %cst_70 {dimension_numbers = #tpu.dot_dimension_numbers<[1], [0], [0], [1], [0, 0, 1, 1], [], []>} : vector<256x128xf32>, vector<128x128xf32>, vector<256x128xf32> -> vector<256x128xf32>
    %108 = arith.addf %102, %107 : vector<256x128xf32>
    %109 = vector.extract_strided_slice %89 {offsets = [1, 0, 0], sizes = [16, 16, 128], strides = [1, 1, 1]} : vector<18x18x128xf32> to vector<16x16x128xf32>
    %110 = vector.shape_cast %109 : vector<16x16x128xf32> to vector<256x128xf32>
    %c1_71 = arith.constant 1 : index
    %c0_72 = arith.constant 0 : index
    %c0_73 = arith.constant 0 : index
    %c0_74 = arith.constant 0 : index
    %111 = vector.load %arg5[%c1_71, %c0_72, %c0_73, %c0_74] : memref<3x3x128x128xf32, #tpu.memory_space<vmem>>, vector<1x1x128x128xf32>
    %112 = vector.shape_cast %111 : vector<1x1x128x128xf32> to vector<128x128xf32>
    %cst_75 = arith.constant dense<0.000000e+00> : vector<256x128xf32>
    %113 = tpu.matmul %110, %112, %cst_75 {dimension_numbers = #tpu.dot_dimension_numbers<[1], [0], [0], [1], [0, 0, 1, 1], [], []>} : vector<256x128xf32>, vector<128x128xf32>, vector<256x128xf32> -> vector<256x128xf32>
    %114 = arith.addf %108, %113 : vector<256x128xf32>
    %115 = vector.extract_strided_slice %89 {offsets = [1, 1, 0], sizes = [16, 16, 128], strides = [1, 1, 1]} : vector<18x18x128xf32> to vector<16x16x128xf32>
    %116 = vector.shape_cast %115 : vector<16x16x128xf32> to vector<256x128xf32>
    %c1_76 = arith.constant 1 : index
    %c1_77 = arith.constant 1 : index
    %c0_78 = arith.constant 0 : index
    %c0_79 = arith.constant 0 : index
    %117 = vector.load %arg5[%c1_76, %c1_77, %c0_78, %c0_79] : memref<3x3x128x128xf32, #tpu.memory_space<vmem>>, vector<1x1x128x128xf32>
    %118 = vector.shape_cast %117 : vector<1x1x128x128xf32> to vector<128x128xf32>
    %cst_80 = arith.constant dense<0.000000e+00> : vector<256x128xf32>
    %119 = tpu.matmul %116, %118, %cst_80 {dimension_numbers = #tpu.dot_dimension_numbers<[1], [0], [0], [1], [0, 0, 1, 1], [], []>} : vector<256x128xf32>, vector<128x128xf32>, vector<256x128xf32> -> vector<256x128xf32>
    %120 = arith.addf %114, %119 : vector<256x128xf32>
    %121 = vector.extract_strided_slice %89 {offsets = [1, 2, 0], sizes = [16, 16, 128], strides = [1, 1, 1]} : vector<18x18x128xf32> to vector<16x16x128xf32>
    %122 = vector.shape_cast %121 : vector<16x16x128xf32> to vector<256x128xf32>
    %c1_81 = arith.constant 1 : index
    %c2_82 = arith.constant 2 : index
    %c0_83 = arith.constant 0 : index
    %c0_84 = arith.constant 0 : index
    %123 = vector.load %arg5[%c1_81, %c2_82, %c0_83, %c0_84] : memref<3x3x128x128xf32, #tpu.memory_space<vmem>>, vector<1x1x128x128xf32>
    %124 = vector.shape_cast %123 : vector<1x1x128x128xf32> to vector<128x128xf32>
    %cst_85 = arith.constant dense<0.000000e+00> : vector<256x128xf32>
    %125 = tpu.matmul %122, %124, %cst_85 {dimension_numbers = #tpu.dot_dimension_numbers<[1], [0], [0], [1], [0, 0, 1, 1], [], []>} : vector<256x128xf32>, vector<128x128xf32>, vector<256x128xf32> -> vector<256x128xf32>
    %126 = arith.addf %120, %125 : vector<256x128xf32>
    %127 = vector.extract_strided_slice %89 {offsets = [2, 0, 0], sizes = [16, 16, 128], strides = [1, 1, 1]} : vector<18x18x128xf32> to vector<16x16x128xf32>
    %128 = vector.shape_cast %127 : vector<16x16x128xf32> to vector<256x128xf32>
    %c2_86 = arith.constant 2 : index
    %c0_87 = arith.constant 0 : index
    %c0_88 = arith.constant 0 : index
    %c0_89 = arith.constant 0 : index
    %129 = vector.load %arg5[%c2_86, %c0_87, %c0_88, %c0_89] : memref<3x3x128x128xf32, #tpu.memory_space<vmem>>, vector<1x1x128x128xf32>
    %130 = vector.shape_cast %129 : vector<1x1x128x128xf32> to vector<128x128xf32>
    %cst_90 = arith.constant dense<0.000000e+00> : vector<256x128xf32>
    %131 = tpu.matmul %128, %130, %cst_90 {dimension_numbers = #tpu.dot_dimension_numbers<[1], [0], [0], [1], [0, 0, 1, 1], [], []>} : vector<256x128xf32>, vector<128x128xf32>, vector<256x128xf32> -> vector<256x128xf32>
    %132 = arith.addf %126, %131 : vector<256x128xf32>
    %133 = vector.extract_strided_slice %89 {offsets = [2, 1, 0], sizes = [16, 16, 128], strides = [1, 1, 1]} : vector<18x18x128xf32> to vector<16x16x128xf32>
    %134 = vector.shape_cast %133 : vector<16x16x128xf32> to vector<256x128xf32>
    %c2_91 = arith.constant 2 : index
    %c1_92 = arith.constant 1 : index
    %c0_93 = arith.constant 0 : index
    %c0_94 = arith.constant 0 : index
    %135 = vector.load %arg5[%c2_91, %c1_92, %c0_93, %c0_94] : memref<3x3x128x128xf32, #tpu.memory_space<vmem>>, vector<1x1x128x128xf32>
    %136 = vector.shape_cast %135 : vector<1x1x128x128xf32> to vector<128x128xf32>
    %cst_95 = arith.constant dense<0.000000e+00> : vector<256x128xf32>
    %137 = tpu.matmul %134, %136, %cst_95 {dimension_numbers = #tpu.dot_dimension_numbers<[1], [0], [0], [1], [0, 0, 1, 1], [], []>} : vector<256x128xf32>, vector<128x128xf32>, vector<256x128xf32> -> vector<256x128xf32>
    %138 = arith.addf %132, %137 : vector<256x128xf32>
    %139 = vector.extract_strided_slice %89 {offsets = [2, 2, 0], sizes = [16, 16, 128], strides = [1, 1, 1]} : vector<18x18x128xf32> to vector<16x16x128xf32>
    %140 = vector.shape_cast %139 : vector<16x16x128xf32> to vector<256x128xf32>
    %c2_96 = arith.constant 2 : index
    %c2_97 = arith.constant 2 : index
    %c0_98 = arith.constant 0 : index
    %c0_99 = arith.constant 0 : index
    %141 = vector.load %arg5[%c2_96, %c2_97, %c0_98, %c0_99] : memref<3x3x128x128xf32, #tpu.memory_space<vmem>>, vector<1x1x128x128xf32>
    %142 = vector.shape_cast %141 : vector<1x1x128x128xf32> to vector<128x128xf32>
    %cst_100 = arith.constant dense<0.000000e+00> : vector<256x128xf32>
    %143 = tpu.matmul %140, %142, %cst_100 {dimension_numbers = #tpu.dot_dimension_numbers<[1], [0], [0], [1], [0, 0, 1, 1], [], []>} : vector<256x128xf32>, vector<128x128xf32>, vector<256x128xf32> -> vector<256x128xf32>
    %144 = arith.addf %138, %143 : vector<256x128xf32>
    %145 = vector.broadcast %6 : vector<1x128xf32> to vector<256x128xf32>
    %146 = arith.addf %144, %145 : vector<256x128xf32>
    %147 = vector.shape_cast %146 : vector<256x128xf32> to vector<16x16x128xf32>
    %148 = vector.extract_strided_slice %4 {offsets = [2, 2, 0], sizes = [16, 16, 128], strides = [1, 1, 1]} : vector<20x20x128xf32> to vector<16x16x128xf32>
    %149 = arith.addf %147, %148 : vector<16x16x128xf32>
    %c0_101 = arith.constant 0 : index
    %c0_102 = arith.constant 0 : index
    %c0_103 = arith.constant 0 : index
    %c0_104 = arith.constant 0 : index
    %150 = vector.load %arg7[%c0_101, %c0_102, %c0_103, %c0_104] : memref<1x16x16x128xf32, #tpu.memory_space<vmem>>, vector<1x16x16x128xf32>
    %151 = vector.shape_cast %150 : vector<1x16x16x128xf32> to vector<16x16x128xf32>
    %152 = vector.shape_cast %149 : vector<16x16x128xf32> to vector<1x16x16x128xf32>
    tpu.vector_store %arg7[%c0_101, %c0_102, %c0_103, %c0_104], %152 {strides = array<i32>} : memref<1x16x16x128xf32, #tpu.memory_space<vmem>>, vector<1x16x16x128xf32>,
    return
  }
  func.func @transform_0(%arg0: i32, %arg1: i32) -> (i32, i32, i32, i32) {
    %c0_i32 = arith.constant 0 : i32
    %c0_i32_0 = arith.constant 0 : i32
    %c0_i32_1 = arith.constant 0 : i32
    %c0_i32_2 = arith.constant 0 : i32
    return %arg0, %c0_i32, %c0_i32_0, %c0_i32_1 : i32, i32, i32, i32
  }
  func.func @transform_1(%arg0: i32, %arg1: i32) -> (i32, i32, i32, i32) {
    %c0_i32 = arith.constant 0 : i32
    %c0_i32_0 = arith.constant 0 : i32
    %c0_i32_1 = arith.constant 0 : i32
    %c0_i32_2 = arith.constant 0 : i32
    %c0_i32_3 = arith.constant 0 : i32
    return %c0_i32, %c0_i32_0, %c0_i32_1, %c0_i32_2 : i32, i32, i32, i32
  }
  func.func @transform_2(%arg0: i32, %arg1: i32) -> (i32, i32) {
    %c0_i32 = arith.constant 0 : i32
    %c0_i32_0 = arith.constant 0 : i32
    %c0_i32_1 = arith.constant 0 : i32
    return %c0_i32, %c0_i32_0 : i32, i32
  }
  func.func @transform_3(%arg0: i32, %arg1: i32) -> (i32, i32, i32, i32) {
    %c0_i32 = arith.constant 0 : i32
    %c0_i32_0 = arith.constant 0 : i32
    %c0_i32_1 = arith.constant 0 : i32
    %c0_i32_2 = arith.constant 0 : i32
    %c0_i32_3 = arith.constant 0 : i32
    return %c0_i32, %c0_i32_0, %c0_i32_1, %c0_i32_2 : i32, i32, i32, i32
  }
  func.func @transform_4(%arg0: i32, %arg1: i32) -> (i32, i32) {
    %c0_i32 = arith.constant 0 : i32
    %c0_i32_0 = arith.constant 0 : i32
    %c0_i32_1 = arith.constant 0 : i32
    return %c0_i32, %c0_i32_0 : i32, i32
  }
  func.func @transform_5(%arg0: i32, %arg1: i32) -> (i32, i32, i32, i32) {
    %c0_i32 = arith.constant 0 : i32
    %c0_i32_0 = arith.constant 0 : i32
    %c0_i32_1 = arith.constant 0 : i32
    return %arg0, %arg1, %c0_i32, %c0_i32_0 : i32, i32, i32, i32
  }
}

</mosaic_0001>

<llo_original>
// kernel: tpu_custom_call.1
$region0: #{tpu_custom_call.1}
  #allocation0 [shape = 'u32[]', space=smem, size = 0x4, offset = 0x4, fixed_abs, tag = 'smem constant byte address 0x4 - core index']
  #allocation1 [shape = 'u32[72,128]{1,0:T(1,128)}', space=vmem, size = 0x9000, scoped, tag = 'internal scratch']
  %s0 = inlined_call_operand.vmem [shape: f32[2,20,20,128], index: 0, kind: input, shape index: {}]
  %s1 = inlined_call_operand.vmem [shape: f32[3,3,128,128], index: 1, kind: input, shape index: {}]
  %s2 = inlined_call_operand.vmem [shape: f32[1,128], index: 2, kind: input, shape index: {}]
  %s3 = inlined_call_operand.hbm [shape: f32[3,3,128,128], index: 3, kind: input, shape index: {}]
  %s4 = inlined_call_operand.vmem [shape: f32[1,128], index: 4, kind: input, shape index: {}]
  %s5 = inlined_call_operand.hbm [shape: f32[2,16,16,128], index: 5, kind: output, shape index: {}]
  %s6 = sld [smem:[#allocation0]]
  $region57: #{tpu_custom_call.1} parent=0
    _
  %s8 = ssub.s32 1, %s6
  %s9 = scalar_select 0, %s8, %s6
  $region1: #{tpu_custom_call.1} parent=0
    #allocation2 [shape = 'u8[589824]{0}', space=vmem, size = 0x90000, scoped, tag = 'input window, operand 3, single buffered']
    #allocation3 [shape = 's32[2]{0}', space=sflag, size = 0x8, scoped, tag = 'scoped memory for tpu_custom_call.1']
    #allocation4 [shape = 's32[2]{0}', space=sflag, size = 0x8, scoped, tag = 'scoped memory for tpu_custom_call.1']
    #allocation5 [shape = 'u8[262144]{0}', space=vmem, size = 0x40000, scoped, tag = 'output window, operand 0']
    %10 = vsyncpa [#allocation3], 0
    %11 = vsyncpa [#allocation4], 0
    %s12 = scalar_lea.sflag [#allocation4], 1
    %13 = vsyncpa %s12, 0
    loop: start=0, step=1, limit=4
    $region2: #{tpu_custom_call.1} parent=1 // loop_pre_header
      _
    $region3: #{tpu_custom_call.1} parent=1 // loop_header
      %s15 = sphi 0, %s19
      %p16 = scmp.ge.s32.totalorder %s15, 4
      %s22 = sphi 0, %s34
      %s23 = sphi 0, %s30
      %s24 = sphi 0, %s22
      %s25 = sphi 0, %s23
      %s26 = sphi 0, %s24
      %s27 = sphi 0, %s25
      %s37 = sphi 0, %s39
      %s40 = sphi 0, %s37
      %s41 = sphi 0, %s40
      %s57 = sphi 0, %s41
      %s61 = sphi 0, %s61
      %s63 = sphi 0, %s61
      %s64 = sphi 0, %s63
      %s78 = sphi 0, %s64
      %s82 = sphi 0, %s82
      %s84 = sphi 0, %s82
      %s85 = sphi 0, %s84
      %s99 = sphi 0, %s85
      %s103 = sphi 0, %s103
      %s105 = sphi 0, %s103
      %s106 = sphi 0, %s105
      %s120 = sphi 0, %s106
      %s124 = sphi 0, %s124
      %s126 = sphi 0, %s124
      %s127 = sphi 0, %s126
      %s141 = sphi 0, %s127
      %s149 = sphi 0, %s151
      %s152 = sphi 0, %s149
      %s153 = sphi 0, %s152
      %s169 = sphi 0, %s153
    $region4: #{tpu_custom_call.1} parent=1 // loop_header_branch
      %18 = sbr.rel (%p16) target = $region8
    $region5: #{tpu_custom_call.1} parent=1 // loop_body
      %s20 = ssub.s32 %s15, 1
      %s21 = ssub.s32 %s15, 2
      %s28 = sadd.s32 1, %s23
      %p29 = scmp.ge.s32.totalorder %s28, 1
      %s30 = scalar_select %p29, 0, %s28
      %s31 = sadd.s32 1, %s22
      %s32 = scalar_select %p29, %s31, %s22
      %p33 = scmp.ge.s32.totalorder %s32, 2
      %s34 = scalar_select %p33, 0, %s32
      %s35 = ssub.s32 %s22, %s34
      %p36 = scmp.eq.s32.totalorder %s35, 0
      %s38 = sadd.s32 %s37, 1
      %s39 = scalar_select %p36, %s37, %s38
      %p42 = pneg %p36
      %p43 = scmp.eq.s32.totalorder %s15, 1
      %p44 = por %p42, %p43
      %p45 = scmp.ne.s32.totalorder %s37, %s40
      %p46 = scmp.eq.s32.totalorder %s15, 0
      %p47 = por %p45, %p46
      %p48 = scmp.ne.s32.totalorder %s37, %s40
      %p49 = scmp.eq.s32.totalorder %s20, 1
      %p50 = por %p48, %p49
      %p51 = scmp.ne.s32.totalorder %s40, %s41
      %p52 = scmp.eq.s32.totalorder %s20, 0
      %p53 = por %p51, %p52
      %p54 = scmp.ne.s32.totalorder %s40, %s41
      %p55 = scmp.eq.s32.totalorder %s21, 1
      %p56 = por %p54, %p55
      %p58 = scmp.ne.s32.totalorder %s41, %s57
      %p59 = scmp.eq.s32.totalorder %s21, 0
      %p60 = por %p58, %p59
      %s62 = sadd.s32 %s61, 1
      %p65 = scmp.eq.s32.totalorder %s15, 1
      %p66 = scmp.ne.s32.totalorder %s61, %s63
      %p67 = scmp.eq.s32.totalorder %s15, 0
      %p68 = por %p66, %p67
      %p69 = scmp.ne.s32.totalorder %s61, %s63
      %p70 = scmp.eq.s32.totalorder %s20, 1
      %p71 = por %p69, %p70
      %p72 = scmp.ne.s32.totalorder %s63, %s64
      %p73 = scmp.eq.s32.totalorder %s20, 0
      %p74 = por %p72, %p73
      %p75 = scmp.ne.s32.totalorder %s63, %s64
      %p76 = scmp.eq.s32.totalorder %s21, 1
      %p77 = por %p75, %p76
      %p79 = scmp.ne.s32.totalorder %s64, %s78
      %p80 = scmp.eq.s32.totalorder %s21, 0
      %p81 = por %p79, %p80
      %s83 = sadd.s32 %s82, 1
      %p86 = scmp.eq.s32.totalorder %s15, 1
      %p87 = scmp.ne.s32.totalorder %s82, %s84
      %p88 = scmp.eq.s32.totalorder %s15, 0
      %p89 = por %p87, %p88
      %p90 = scmp.ne.s32.totalorder %s82, %s84
      %p91 = scmp.eq.s32.totalorder %s20, 1
      %p92 = por %p90, %p91
      %p93 = scmp.ne.s32.totalorder %s84, %s85
      %p94 = scmp.eq.s32.totalorder %s20, 0
      %p95 = por %p93, %p94
      %p96 = scmp.ne.s32.totalorder %s84, %s85
      %p97 = scmp.eq.s32.totalorder %s21, 1
      %p98 = por %p96, %p97
      %p100 = scmp.ne.s32.totalorder %s85, %s99
      %p101 = scmp.eq.s32.totalorder %s21, 0
      %p102 = por %p100, %p101
      %s104 = sadd.s32 %s103, 1
      %p107 = scmp.eq.s32.totalorder %s15, 1
      %p108 = scmp.ne.s32.totalorder %s103, %s105
      %p109 = scmp.eq.s32.totalorder %s15, 0
      %p110 = por %p108, %p109
      %p111 = scmp.ne.s32.totalorder %s103, %s105
      %p112 = scmp.eq.s32.totalorder %s20, 1
      %p113 = por %p111, %p112
      %p114 = scmp.ne.s32.totalorder %s105, %s106
      %p115 = scmp.eq.s32.totalorder %s20, 0
      %p116 = por %p114, %p115
      %p117 = scmp.ne.s32.totalorder %s105, %s106
      %p118 = scmp.eq.s32.totalorder %s21, 1
      %p119 = por %p117, %p118
      %p121 = scmp.ne.s32.totalorder %s106, %s120
      %p122 = scmp.eq.s32.totalorder %s21, 0
      %p123 = por %p121, %p122
      %s125 = sadd.s32 %s124, 1
      %p128 = scmp.eq.s32.totalorder %s15, 1
      %p129 = scmp.ne.s32.totalorder %s124, %s126
      %p130 = scmp.eq.s32.totalorder %s15, 0
      %p131 = por %p129, %p130
      %p132 = scmp.ne.s32.totalorder %s124, %s126
      %p133 = scmp.eq.s32.totalorder %s20, 1
      %p134 = por %p132, %p133
      %p135 = scmp.ne.s32.totalorder %s126, %s127
      %p136 = scmp.eq.s32.totalorder %s20, 0
      %p137 = por %p135, %p136
      %p138 = scmp.ne.s32.totalorder %s126, %s127
      %p139 = scmp.eq.s32.totalorder %s21, 1
      %p140 = por %p138, %p139
      %p142 = scmp.ne.s32.totalorder %s127, %s141
      %p143 = scmp.eq.s32.totalorder %s21, 0
      %p144 = por %p142, %p143
      %s145 = ssub.s32 %s22, %s34
      %s146 = ssub.s32 %s23, %s30
      %s147 = sor.u32 %s145, %s146
      %p148 = scmp.eq.s32.totalorder %s147, 0
      %s150 = sadd.s32 %s149, 1
      %s151 = scalar_select %p148, %s149, %s150
      %p154 = pneg %p148
      %p155 = scmp.eq.s32.totalorder %s15, 1
      %p156 = por %p154, %p155
      %p157 = scmp.ne.s32.totalorder %s149, %s152
      %p158 = scmp.eq.s32.totalorder %s15, 0
      %p159 = por %p157, %p158
      %p160 = scmp.ne.s32.totalorder %s149, %s152
      %p161 = scmp.eq.s32.totalorder %s20, 1
      %p162 = por %p160, %p161
      %p163 = scmp.ne.s32.totalorder %s152, %s153
      %p164 = scmp.eq.s32.totalorder %s20, 0
      %p165 = por %p163, %p164
      %p166 = scmp.ne.s32.totalorder %s152, %s153
      %p167 = scmp.eq.s32.totalorder %s21, 1
      %p168 = por %p166, %p167
      %p170 = scmp.ne.s32.totalorder %s153, %s169
      %p171 = scmp.eq.s32.totalorder %s21, 0
      %p172 = por %p170, %p171
      %p173 = scmp.le.s32.totalorder 1, %s15
      %p174 = scmp.lt.s32.totalorder %s15, 3
      %p175 = pnand %p173, %p174
      %p176 = pneg %p175
      // Predicated region
      $region9: #{tpu_custom_call.1} parent=5 // pred_check
        _
      $region10: #{tpu_custom_call.1} parent=5 // pred_check_branch
        %178 = sbr.rel (%p175) target = $region12
      $region11: #{tpu_custom_call.1} parent=5 // pred_region
        %s179 = ssub.s32 %s15, 1
        // Predicated region
        $region13: #{tpu_custom_call.1} parent=11 // pred_check
          %p180 = pneg %p74
        $region14: #{tpu_custom_call.1} parent=11 // pred_check_branch
          %182 = sbr.rel (%p180) target = $region16
        $region15: #{tpu_custom_call.1} parent=11 // pred_region
          _
        $region16: #{tpu_custom_call.1} parent=11 // pred_fallthru
          _
        // Predicated region
        $region17: #{tpu_custom_call.1} parent=11 // pred_check
          %p183 = pneg %p95
        $region18: #{tpu_custom_call.1} parent=11 // pred_check_branch
          %185 = sbr.rel (%p183) target = $region20
        $region19: #{tpu_custom_call.1} parent=11 // pred_region
          _
        $region20: #{tpu_custom_call.1} parent=11 // pred_fallthru
          _
        // Predicated region
        $region21: #{tpu_custom_call.1} parent=11 // pred_check
          %p186 = pneg %p116
        $region22: #{tpu_custom_call.1} parent=11 // pred_check_branch
          %188 = sbr.rel (%p186) target = $region24
        $region23: #{tpu_custom_call.1} parent=11 // pred_region
          %190 = vsyncadd [#allocation3], 0
          %s191 = sshll.u32 %s3, 4
          %s192 = int_to_ptr.hbm [resolvable:$true] %s191
          %s193 = sshll.u32 [#allocation2], 4
          %s194 = int_to_ptr.vmem [resolvable:$true] %s193
          %199 = dma.hbm_to_vmem [thread:$0]  %s192, 18432, %s194, [#allocation3], 128, 128, 8
        $region24: #{tpu_custom_call.1} parent=11 // pred_fallthru
          _
        // Predicated region
        $region25: #{tpu_custom_call.1} parent=11 // pred_check
          %p200 = pneg %p137
        $region26: #{tpu_custom_call.1} parent=11 // pred_check_branch
          %202 = sbr.rel (%p200) target = $region28
        $region27: #{tpu_custom_call.1} parent=11 // pred_region
          _
        $region28: #{tpu_custom_call.1} parent=11 // pred_fallthru
          _
      $region12: #{tpu_custom_call.1} parent=5 // pred_fallthru
        _
      %p203 = scmp.lt.s32.totalorder %s15, 2
      // Predicated region
      $region29: #{tpu_custom_call.1} parent=5 // pred_check
        %p204 = pneg %p203
      $region30: #{tpu_custom_call.1} parent=5 // pred_check_branch
        %206 = sbr.rel (%p204) target = $region32
      $region31: #{tpu_custom_call.1} parent=5 // pred_region
        // Predicated region
        $region33: #{tpu_custom_call.1} parent=31 // pred_check
          %p207 = pneg %p47
        $region34: #{tpu_custom_call.1} parent=31 // pred_check_branch
          %209 = sbr.rel (%p207) target = $region36
        $region35: #{tpu_custom_call.1} parent=31 // pred_region
          %p210 = scmp.lt.s32.totalorder %s22, 1
          %s211 = scalar_select %p210, %s22, 1
          %s212 = smul.addr %s211, 60
          %s213 = smul.addr %s212, 8
          %s214 = scalar_lea.vmem %s0, %s213
        $region36: #{tpu_custom_call.1} parent=31 // pred_fallthru
          _
      $region32: #{tpu_custom_call.1} parent=5 // pred_fallthru
        _
      %p215 = scmp.le.s32.totalorder 1, %s15
      %p216 = scmp.lt.s32.totalorder %s15, 3
      %p217 = pnand %p215, %p216
      %p218 = pneg %p217
      // Predicated region
      $region37: #{tpu_custom_call.1} parent=5 // pred_check
        _
      $region38: #{tpu_custom_call.1} parent=5 // pred_check_branch
        %220 = sbr.rel (%p217) target = $region40
      $region39: #{tpu_custom_call.1} parent=5 // pred_region
        %s221 = ssub.s32 %s15, 1
        // Predicated region
        $region41: #{tpu_custom_call.1} parent=39 // pred_check
          %p222 = pneg %p116
        $region42: #{tpu_custom_call.1} parent=39 // pred_check_branch
          %224 = sbr.rel (%p222) target = $region44
        $region43: #{tpu_custom_call.1} parent=39 // pred_region
          %226 = dma.done [#allocation3], 18432
        $region44: #{tpu_custom_call.1} parent=39 // pred_fallthru
          _
        %p227 = scmp.lt.s32.totalorder %s24, 1
        %s228 = scalar_select %p227, %s24, 1
        %s229 = smul.addr %s228, 60
        %s230 = smul.addr %s229, 8
        %s231 = scalar_lea.vmem %s0, %s230
        %p232 = pneg %p53
        %p233 = pneg %p50
        %p234 = pneg %p74
        %p235 = pneg %p71
        %p236 = pneg %p95
        %p237 = pneg %p92
        %p238 = pneg %p116
        %p239 = pneg %p113
        %p240 = pneg %p137
        %p241 = pneg %p134
        %p242 = pneg %p165
        %p243 = pneg %p162
        %s244 = sand.u32 %s152, 1
        %s245 = scalar_lea.sflag [#allocation4], %s244
        %s246 = sand.u32 %s152, 1
        %s247 = smul.addr %s246, 256
        %s248 = scalar_lea.vmem [#allocation5], %s247
        %p249 = scmp.lt.s32.totalorder %s24, 1
        %s250 = scalar_select %p249, %s24, 1
        %s251 = smul.addr %s250, 60
        %s252 = smul.addr %s251, 8
        %s253 = scalar_lea.vmem %s0, %s252
        %s254 = smul.u32 16, %s25
        %s255 = smul.u32 %s25, 16
        %s256 = smul.u32 %s255, 24
        %s257 = scalar_lea.vmem %s253, %s256
        %v258 = vld [vmem:[%s257] sm:$0xff]
        %v259 = vld [vmem:[%s257 + $0x8] sm:$0xff]
        %v260 = vld [vmem:[%s257 + $0x10] sm:$0xf]
        %v261 = vld [vmem:[%s257 + $0x18] sm:$0xff]
        %v262 = vld [vmem:[%s257 + $0x20] sm:$0xff]
        %v263 = vld [vmem:[%s257 + $0x28] sm:$0xf]
        %v264 = vld [vmem:[%s257 + $0x30] sm:$0xff]
        %v265 = vld [vmem:[%s257 + $0x38] sm:$0xff]
        %v266 = vld [vmem:[%s257 + $0x40] sm:$0xf]
        %v267 = vld [vmem:[%s257 + $0x48] sm:$0xff]
        %v268 = vld [vmem:[%s257 + $0x50] sm:$0xff]
        %v269 = vld [vmem:[%s257 + $0x58] sm:$0xf]
        %v270 = vld [vmem:[%s257 + $0x60] sm:$0xff]
        %v271 = vld [vmem:[%s257 + $0x68] sm:$0xff]
        %v272 = vld [vmem:[%s257 + $0x70] sm:$0xf]
        %v273 = vld [vmem:[%s257 + $0x78] sm:$0xff]
        %v274 = vld [vmem:[%s257 + $0x80] sm:$0xff]
        %v275 = vld [vmem:[%s257 + $0x88] sm:$0xf]
        %v276 = vld [vmem:[%s257 + $0x90] sm:$0xff]
        %v277 = vld [vmem:[%s257 + $0x98] sm:$0xff]
        %v278 = vld [vmem:[%s257 + $0xa0] sm:$0xf]
        %v279 = vld [vmem:[%s257 + $0xa8] sm:$0xff]
        %v280 = vld [vmem:[%s257 + $0xb0] sm:$0xff]
        %v281 = vld [vmem:[%s257 + $0xb8] sm:$0xf]
        %v282 = vld [vmem:[%s257 + $0xc0] sm:$0xff]
        %v283 = vld [vmem:[%s257 + $0xc8] sm:$0xff]
        %v284 = vld [vmem:[%s257 + $0xd0] sm:$0xf]
        %v285 = vld [vmem:[%s257 + $0xd8] sm:$0xff]
        %v286 = vld [vmem:[%s257 + $0xe0] sm:$0xff]
        %v287 = vld [vmem:[%s257 + $0xe8] sm:$0xf]
        %v288 = vld [vmem:[%s257 + $0xf0] sm:$0xff]
        %v289 = vld [vmem:[%s257 + $0xf8] sm:$0xff]
        %v290 = vld [vmem:[%s257 + $0x100] sm:$0xf]
        %v291 = vld [vmem:[%s257 + $0x108] sm:$0xff]
        %v292 = vld [vmem:[%s257 + $0x110] sm:$0xff]
        %v293 = vld [vmem:[%s257 + $0x118] sm:$0xf]
        %v294 = vld [vmem:[%s257 + $0x120] sm:$0xff]
        %v295 = vld [vmem:[%s257 + $0x128] sm:$0xff]
        %v296 = vld [vmem:[%s257 + $0x130] sm:$0xf]
        %v297 = vld [vmem:[%s257 + $0x138] sm:$0xff]
        %v298 = vld [vmem:[%s257 + $0x140] sm:$0xff]
        %v299 = vld [vmem:[%s257 + $0x148] sm:$0xf]
        %v300 = vld [vmem:[%s257 + $0x150] sm:$0xff]
        %v301 = vld [vmem:[%s257 + $0x158] sm:$0xff]
        %v302 = vld [vmem:[%s257 + $0x160] sm:$0xf]
        %v303 = vld [vmem:[%s257 + $0x168] sm:$0xff]
        %v304 = vld [vmem:[%s257 + $0x170] sm:$0xff]
        %v305 = vld [vmem:[%s257 + $0x178] sm:$0xf]
        %v306 = vld [vmem:[%s257 + $0x180] sm:$0xff]
        %v307 = vld [vmem:[%s257 + $0x188] sm:$0xff]
        %v308 = vld [vmem:[%s257 + $0x190] sm:$0xf]
        %v309 = vld [vmem:[%s257 + $0x198] sm:$0xff]
        %v310 = vld [vmem:[%s257 + $0x1a0] sm:$0xff]
        %v311 = vld [vmem:[%s257 + $0x1a8] sm:$0xf]
        %v312 = vld [vmem:[%s257 + $0x1b0] sm:$0xff]
        %v313 = vld [vmem:[%s257 + $0x1b8] sm:$0xff]
        %v314 = vld [vmem:[%s257 + $0x1c0] sm:$0xf]
        %v315 = vld [vmem:[%s257 + $0x1c8] sm:$0xff]
        %v316 = vld [vmem:[%s257 + $0x1d0] sm:$0xff]
        %v317 = vld [vmem:[%s257 + $0x1d8] sm:$0xf]
        %v318 = vld [vmem:[%s2] sm:$0x1]
        %v319 = vld [vmem:[%s4] sm:$0x1]
        %v374 = vrot.slane %v258, 2
        %v375 = vrot.slane %v258, 4
        %v376 = vrot.slane %v258, 6
        %v377 = vrot.slane %v259, 2
        %v378 = vrot.slane %v259, 4
        %v379 = vrot.slane %v259, 6
        %v380 = vrot.slane %v261, 2
        %v381 = vrot.slane %v261, 4
        %v382 = vrot.slane %v261, 6
        %v383 = vrot.slane %v262, 2
        %v384 = vrot.slane %v262, 4
        %v385 = vrot.slane %v262, 6
        %v386 = vrot.slane %v264, 2
        %v387 = vrot.slane %v264, 4
        %v388 = vrot.slane %v264, 6
        %v389 = vrot.slane %v265, 2
        %v390 = vrot.slane %v265, 4
        %v391 = vrot.slane %v265, 6
        %v392 = vrot.slane %v267, 2
        %v393 = vrot.slane %v267, 4
        %v394 = vrot.slane %v267, 6
        %v395 = vrot.slane %v268, 2
        %v396 = vrot.slane %v268, 4
        %v397 = vrot.slane %v268, 6
        %v398 = vrot.slane %v270, 2
        %v399 = vrot.slane %v270, 4
        %v400 = vrot.slane %v270, 6
        %v401 = vrot.slane %v271, 2
        %v402 = vrot.slane %v271, 4
        %v403 = vrot.slane %v271, 6
        %v404 = vrot.slane %v273, 2
        %v405 = vrot.slane %v273, 4
        %v406 = vrot.slane %v273, 6
        %v407 = vrot.slane %v274, 2
        %v408 = vrot.slane %v274, 4
        %v409 = vrot.slane %v274, 6
        %v410 = vrot.slane %v276, 2
        %v411 = vrot.slane %v276, 4
        %v412 = vrot.slane %v276, 6
        %v413 = vrot.slane %v277, 2
        %v414 = vrot.slane %v277, 4
        %v415 = vrot.slane %v277, 6
        %v416 = vrot.slane %v279, 2
        %v417 = vrot.slane %v279, 4
        %v418 = vrot.slane %v279, 6
        %v419 = vrot.slane %v280, 2
        %v420 = vrot.slane %v280, 4
        %v421 = vrot.slane %v280, 6
        %v422 = vrot.slane %v282, 2
        %v423 = vrot.slane %v282, 4
        %v424 = vrot.slane %v282, 6
        %v425 = vrot.slane %v283, 2
        %v426 = vrot.slane %v283, 4
        %v427 = vrot.slane %v283, 6
        %v428 = vrot.slane %v285, 2
        %v429 = vrot.slane %v285, 4
        %v430 = vrot.slane %v285, 6
        %v431 = vrot.slane %v286, 2
        %v432 = vrot.slane %v286, 4
        %v433 = vrot.slane %v286, 6
        %v434 = vrot.slane %v288, 2
        %v435 = vrot.slane %v288, 4
        %v436 = vrot.slane %v288, 6
        %v437 = vrot.slane %v289, 2
        %v438 = vrot.slane %v289, 4
        %v439 = vrot.slane %v289, 6
        %v440 = vrot.slane %v291, 2
        %v441 = vrot.slane %v291, 4
        %v442 = vrot.slane %v291, 6
        %v443 = vrot.slane %v292, 2
        %v444 = vrot.slane %v292, 4
        %v445 = vrot.slane %v292, 6
        %v446 = vrot.slane %v294, 2
        %v447 = vrot.slane %v294, 4
        %v448 = vrot.slane %v294, 6
        %v449 = vrot.slane %v295, 2
        %v450 = vrot.slane %v295, 4
        %v451 = vrot.slane %v295, 6
        %v452 = vrot.slane %v297, 2
        %v453 = vrot.slane %v297, 4
        %v454 = vrot.slane %v297, 6
        %v455 = vrot.slane %v298, 2
        %v456 = vrot.slane %v298, 4
        %v457 = vrot.slane %v298, 6
        %v458 = vrot.slane %v300, 2
        %v459 = vrot.slane %v300, 4
        %v460 = vrot.slane %v300, 6
        %v461 = vrot.slane %v301, 2
        %v462 = vrot.slane %v301, 4
        %v463 = vrot.slane %v301, 6
        %v464 = vrot.slane %v303, 2
        %v465 = vrot.slane %v303, 4
        %v466 = vrot.slane %v303, 6
        %v467 = vrot.slane %v304, 2
        %v468 = vrot.slane %v304, 4
        %v469 = vrot.slane %v304, 6
        %v470 = vrot.slane %v306, 2
        %v471 = vrot.slane %v306, 4
        %v472 = vrot.slane %v306, 6
        %v473 = vrot.slane %v307, 2
        %v474 = vrot.slane %v307, 4
        %v475 = vrot.slane %v307, 6
        %v476 = vrot.slane %v309, 2
        %v477 = vrot.slane %v309, 4
        %v478 = vrot.slane %v309, 6
        %v479 = vrot.slane %v310, 2
        %v480 = vrot.slane %v310, 4
        %v481 = vrot.slane %v310, 6
        %v482 = vld [vmem:[%s1] sm:$0xff]
        %v483 = vld [vmem:[%s1 + $0x8] sm:$0xff]
        %v484 = vld [vmem:[%s1 + $0x10] sm:$0xff]
        %v485 = vld [vmem:[%s1 + $0x18] sm:$0xff]
        %v486 = vld [vmem:[%s1 + $0x20] sm:$0xff]
        %v487 = vld [vmem:[%s1 + $0x28] sm:$0xff]
        %v488 = vld [vmem:[%s1 + $0x30] sm:$0xff]
        %v489 = vld [vmem:[%s1 + $0x38] sm:$0xff]
        %v490 = vld [vmem:[%s1 + $0x40] sm:$0xff]
        %v491 = vld [vmem:[%s1 + $0x48] sm:$0xff]
        %v492 = vld [vmem:[%s1 + $0x50] sm:$0xff]
        %v493 = vld [vmem:[%s1 + $0x58] sm:$0xff]
        %v494 = vld [vmem:[%s1 + $0x60] sm:$0xff]
        %v495 = vld [vmem:[%s1 + $0x68] sm:$0xff]
        %v496 = vld [vmem:[%s1 + $0x70] sm:$0xff]
        %v497 = vld [vmem:[%s1 + $0x78] sm:$0xff]
        %v498 = vrot.slane %v260, 2
        %v499 = vrot.slane %v263, 2
        %v500 = vrot.slane %v266, 2
        %v501 = vrot.slane %v269, 2
        %v502 = vrot.slane %v272, 2
        %v503 = vrot.slane %v275, 2
        %v504 = vrot.slane %v278, 2
        %v505 = vrot.slane %v281, 2
        %v506 = vrot.slane %v284, 2
        %v507 = vrot.slane %v287, 2
        %v508 = vrot.slane %v290, 2
        %v509 = vrot.slane %v293, 2
        %v510 = vrot.slane %v296, 2
        %v511 = vrot.slane %v299, 2
        %v512 = vrot.slane %v302, 2
        %v513 = vrot.slane %v305, 2
        %v514 = vrot.slane %v308, 2
        %v515 = vrot.slane %v311, 2
        %vm516 = vcmask 1040384
        %vm517 = vcmask 1042434
        %vm518 = vmor %vm516, %vm517
        %vm519 = vcmask 1044484
        %vm520 = vmor %vm518, %vm519
        %vm521 = vcmask 1046534
        %vm522 = vmor %vm520, %vm521
        %v523 = vrot.slane %v258, 7
        %v524 = vrot.slane %v523, 2
        %v525 = vrot.slane %v374, 7
        %v526 = vsel %vm522, %v524, %v525
        %v527 = vrot.slane %v525, 2
        %v528 = vrot.slane %v375, 7
        %v529 = vsel %vm522, %v527, %v528
        %v530 = vrot.slane %v528, 2
        %v531 = vrot.slane %v376, 7
        %v532 = vsel %vm522, %v530, %v531
        %v533 = vrot.slane %v531, 2
        %v534 = vrot.slane %v259, 7
        %v535 = vsel %vm522, %v533, %v534
        %v536 = vrot.slane %v534, 2
        %v537 = vrot.slane %v377, 7
        %v538 = vsel %vm522, %v536, %v537
        %v539 = vrot.slane %v537, 2
        %v540 = vrot.slane %v378, 7
        %v541 = vsel %vm522, %v539, %v540
        %v542 = vrot.slane %v540, 2
        %v543 = vrot.slane %v379, 7
        %v544 = vsel %vm522, %v542, %v543
        %v545 = vrot.slane %v543, 2
        %v546 = vrot.slane %v260, 7
        %v547 = vsel %vm522, %v545, %v546
        %v548 = vrot.slane %v546, 2
        %v549 = vrot.slane %v498, 7
        %v550 = vsel %vm522, %v548, %v549
        %v551 = vrot.slane %v261, 7
        %v552 = vrot.slane %v551, 2
        %v553 = vrot.slane %v380, 7
        %v554 = vsel %vm522, %v552, %v553
        %v555 = vrot.slane %v553, 2
        %v556 = vrot.slane %v381, 7
        %v557 = vsel %vm522, %v555, %v556
        %v558 = vrot.slane %v556, 2
        %v559 = vrot.slane %v382, 7
        %v560 = vsel %vm522, %v558, %v559
        %v561 = vrot.slane %v559, 2
        %v562 = vrot.slane %v262, 7
        %v563 = vsel %vm522, %v561, %v562
        %v564 = vrot.slane %v562, 2
        %v565 = vrot.slane %v383, 7
        %v566 = vsel %vm522, %v564, %v565
        %v567 = vrot.slane %v565, 2
        %v568 = vrot.slane %v384, 7
        %v569 = vsel %vm522, %v567, %v568
        %v570 = vrot.slane %v568, 2
        %v571 = vrot.slane %v385, 7
        %v572 = vsel %vm522, %v570, %v571
        %v573 = vrot.slane %v571, 2
        %v574 = vrot.slane %v263, 7
        %v575 = vsel %vm522, %v573, %v574
        %v576 = vrot.slane %v574, 2
        %v577 = vrot.slane %v499, 7
        %v578 = vsel %vm522, %v576, %v577
        %v579 = vrot.slane %v264, 7
        %v580 = vrot.slane %v579, 2
        %v581 = vrot.slane %v386, 7
        %v582 = vsel %vm522, %v580, %v581
        %v583 = vrot.slane %v581, 2
        %v584 = vrot.slane %v387, 7
        %v585 = vsel %vm522, %v583, %v584
        %v586 = vrot.slane %v584, 2
        %v587 = vrot.slane %v388, 7
        %v588 = vsel %vm522, %v586, %v587
        %v589 = vrot.slane %v587, 2
        %v590 = vrot.slane %v265, 7
        %v591 = vsel %vm522, %v589, %v590
        %v592 = vrot.slane %v590, 2
        %v593 = vrot.slane %v389, 7
        %v594 = vsel %vm522, %v592, %v593
        %v595 = vrot.slane %v593, 2
        %v596 = vrot.slane %v390, 7
        %v597 = vsel %vm522, %v595, %v596
        %v598 = vrot.slane %v596, 2
        %v599 = vrot.slane %v391, 7
        %v600 = vsel %vm522, %v598, %v599
        %v601 = vrot.slane %v599, 2
        %v602 = vrot.slane %v266, 7
        %v603 = vsel %vm522, %v601, %v602
        %v604 = vrot.slane %v602, 2
        %v605 = vrot.slane %v500, 7
        %v606 = vsel %vm522, %v604, %v605
        %v607 = vrot.slane %v267, 7
        %v608 = vrot.slane %v607, 2
        %v609 = vrot.slane %v392, 7
        %v610 = vsel %vm522, %v608, %v609
        %v611 = vrot.slane %v609, 2
        %v612 = vrot.slane %v393, 7
        %v613 = vsel %vm522, %v611, %v612
        %v614 = vrot.slane %v612, 2
        %v615 = vrot.slane %v394, 7
        %v616 = vsel %vm522, %v614, %v615
        %v617 = vrot.slane %v615, 2
        %v618 = vrot.slane %v268, 7
        %v619 = vsel %vm522, %v617, %v618
        %v620 = vrot.slane %v618, 2
        %v621 = vrot.slane %v395, 7
        %v622 = vsel %vm522, %v620, %v621
        %v623 = vrot.slane %v621, 2
        %v624 = vrot.slane %v396, 7
        %v625 = vsel %vm522, %v623, %v624
        %v626 = vrot.slane %v624, 2
        %v627 = vrot.slane %v397, 7
        %v628 = vsel %vm522, %v626, %v627
        %v629 = vrot.slane %v627, 2
        %v630 = vrot.slane %v269, 7
        %v631 = vsel %vm522, %v629, %v630
        %v632 = vrot.slane %v630, 2
        %v633 = vrot.slane %v501, 7
        %v634 = vsel %vm522, %v632, %v633
        %v635 = vrot.slane %v270, 7
        %v636 = vrot.slane %v635, 2
        %v637 = vrot.slane %v398, 7
        %v638 = vsel %vm522, %v636, %v637
        %v639 = vrot.slane %v637, 2
        %v640 = vrot.slane %v399, 7
        %v641 = vsel %vm522, %v639, %v640
        %v642 = vrot.slane %v640, 2
        %v643 = vrot.slane %v400, 7
        %v644 = vsel %vm522, %v642, %v643
        %v645 = vrot.slane %v643, 2
        %v646 = vrot.slane %v271, 7
        %v647 = vsel %vm522, %v645, %v646
        %v648 = vrot.slane %v646, 2
        %v649 = vrot.slane %v401, 7
        %v650 = vsel %vm522, %v648, %v649
        %v651 = vrot.slane %v649, 2
        %v652 = vrot.slane %v402, 7
        %v653 = vsel %vm522, %v651, %v652
        %v654 = vrot.slane %v652, 2
        %v655 = vrot.slane %v403, 7
        %v656 = vsel %vm522, %v654, %v655
        %v657 = vrot.slane %v655, 2
        %v658 = vrot.slane %v272, 7
        %v659 = vsel %vm522, %v657, %v658
        %v660 = vrot.slane %v658, 2
        %v661 = vrot.slane %v502, 7
        %v662 = vsel %vm522, %v660, %v661
        %v663 = vrot.slane %v273, 7
        %v664 = vrot.slane %v663, 2
        %v665 = vrot.slane %v404, 7
        %v666 = vsel %vm522, %v664, %v665
        %v667 = vrot.slane %v665, 2
        %v668 = vrot.slane %v405, 7
        %v669 = vsel %vm522, %v667, %v668
        %v670 = vrot.slane %v668, 2
        %v671 = vrot.slane %v406, 7
        %v672 = vsel %vm522, %v670, %v671
        %v673 = vrot.slane %v671, 2
        %v674 = vrot.slane %v274, 7
        %v675 = vsel %vm522, %v673, %v674
        %v676 = vrot.slane %v674, 2
        %v677 = vrot.slane %v407, 7
        %v678 = vsel %vm522, %v676, %v677
        %v679 = vrot.slane %v677, 2
        %v680 = vrot.slane %v408, 7
        %v681 = vsel %vm522, %v679, %v680
        %v682 = vrot.slane %v680, 2
        %v683 = vrot.slane %v409, 7
        %v684 = vsel %vm522, %v682, %v683
        %v685 = vrot.slane %v683, 2
        %v686 = vrot.slane %v275, 7
        %v687 = vsel %vm522, %v685, %v686
        %v688 = vrot.slane %v686, 2
        %v689 = vrot.slane %v503, 7
        %v690 = vsel %vm522, %v688, %v689
        %v691 = vrot.slane %v276, 7
        %v692 = vrot.slane %v691, 2
        %v693 = vrot.slane %v410, 7
        %v694 = vsel %vm522, %v692, %v693
        %v695 = vrot.slane %v693, 2
        %v696 = vrot.slane %v411, 7
        %v697 = vsel %vm522, %v695, %v696
        %v698 = vrot.slane %v696, 2
        %v699 = vrot.slane %v412, 7
        %v700 = vsel %vm522, %v698, %v699
        %v701 = vrot.slane %v699, 2
        %v702 = vrot.slane %v277, 7
        %v703 = vsel %vm522, %v701, %v702
        %v704 = vrot.slane %v702, 2
        %v705 = vrot.slane %v413, 7
        %v706 = vsel %vm522, %v704, %v705
        %v707 = vrot.slane %v705, 2
        %v708 = vrot.slane %v414, 7
        %v709 = vsel %vm522, %v707, %v708
        %v710 = vrot.slane %v708, 2
        %v711 = vrot.slane %v415, 7
        %v712 = vsel %vm522, %v710, %v711
        %v713 = vrot.slane %v711, 2
        %v714 = vrot.slane %v278, 7
        %v715 = vsel %vm522, %v713, %v714
        %v716 = vrot.slane %v714, 2
        %v717 = vrot.slane %v504, 7
        %v718 = vsel %vm522, %v716, %v717
        %v719 = vrot.slane %v279, 7
        %v720 = vrot.slane %v719, 2
        %v721 = vrot.slane %v416, 7
        %v722 = vsel %vm522, %v720, %v721
        %v723 = vrot.slane %v721, 2
        %v724 = vrot.slane %v417, 7
        %v725 = vsel %vm522, %v723, %v724
        %v726 = vrot.slane %v724, 2
        %v727 = vrot.slane %v418, 7
        %v728 = vsel %vm522, %v726, %v727
        %v729 = vrot.slane %v727, 2
        %v730 = vrot.slane %v280, 7
        %v731 = vsel %vm522, %v729, %v730
        %v732 = vrot.slane %v730, 2
        %v733 = vrot.slane %v419, 7
        %v734 = vsel %vm522, %v732, %v733
        %v735 = vrot.slane %v733, 2
        %v736 = vrot.slane %v420, 7
        %v737 = vsel %vm522, %v735, %v736
        %v738 = vrot.slane %v736, 2
        %v739 = vrot.slane %v421, 7
        %v740 = vsel %vm522, %v738, %v739
        %v741 = vrot.slane %v739, 2
        %v742 = vrot.slane %v281, 7
        %v743 = vsel %vm522, %v741, %v742
        %v744 = vrot.slane %v742, 2
        %v745 = vrot.slane %v505, 7
        %v746 = vsel %vm522, %v744, %v745
        %v747 = vrot.slane %v282, 7
        %v748 = vrot.slane %v747, 2
        %v749 = vrot.slane %v422, 7
        %v750 = vsel %vm522, %v748, %v749
        %v751 = vrot.slane %v749, 2
        %v752 = vrot.slane %v423, 7
        %v753 = vsel %vm522, %v751, %v752
        %v754 = vrot.slane %v752, 2
        %v755 = vrot.slane %v424, 7
        %v756 = vsel %vm522, %v754, %v755
        %v757 = vrot.slane %v755, 2
        %v758 = vrot.slane %v283, 7
        %v759 = vsel %vm522, %v757, %v758
        %v760 = vrot.slane %v758, 2
        %v761 = vrot.slane %v425, 7
        %v762 = vsel %vm522, %v760, %v761
        %v763 = vrot.slane %v761, 2
        %v764 = vrot.slane %v426, 7
        %v765 = vsel %vm522, %v763, %v764
        %v766 = vrot.slane %v764, 2
        %v767 = vrot.slane %v427, 7
        %v768 = vsel %vm522, %v766, %v767
        %v769 = vrot.slane %v767, 2
        %v770 = vrot.slane %v284, 7
        %v771 = vsel %vm522, %v769, %v770
        %v772 = vrot.slane %v770, 2
        %v773 = vrot.slane %v506, 7
        %v774 = vsel %vm522, %v772, %v773
        %v775 = vrot.slane %v285, 7
        %v776 = vrot.slane %v775, 2
        %v777 = vrot.slane %v428, 7
        %v778 = vsel %vm522, %v776, %v777
        %v779 = vrot.slane %v777, 2
        %v780 = vrot.slane %v429, 7
        %v781 = vsel %vm522, %v779, %v780
        %v782 = vrot.slane %v780, 2
        %v783 = vrot.slane %v430, 7
        %v784 = vsel %vm522, %v782, %v783
        %v785 = vrot.slane %v783, 2
        %v786 = vrot.slane %v286, 7
        %v787 = vsel %vm522, %v785, %v786
        %v788 = vrot.slane %v786, 2
        %v789 = vrot.slane %v431, 7
        %v790 = vsel %vm522, %v788, %v789
        %v791 = vrot.slane %v789, 2
        %v792 = vrot.slane %v432, 7
        %v793 = vsel %vm522, %v791, %v792
        %v794 = vrot.slane %v792, 2
        %v795 = vrot.slane %v433, 7
        %v796 = vsel %vm522, %v794, %v795
        %v797 = vrot.slane %v795, 2
        %v798 = vrot.slane %v287, 7
        %v799 = vsel %vm522, %v797, %v798
        %v800 = vrot.slane %v798, 2
        %v801 = vrot.slane %v507, 7
        %v802 = vsel %vm522, %v800, %v801
        %v803 = vrot.slane %v288, 7
        %v804 = vrot.slane %v803, 2
        %v805 = vrot.slane %v434, 7
        %v806 = vsel %vm522, %v804, %v805
        %v807 = vrot.slane %v805, 2
        %v808 = vrot.slane %v435, 7
        %v809 = vsel %vm522, %v807, %v808
        %v810 = vrot.slane %v808, 2
        %v811 = vrot.slane %v436, 7
        %v812 = vsel %vm522, %v810, %v811
        %v813 = vrot.slane %v811, 2
        %v814 = vrot.slane %v289, 7
        %v815 = vsel %vm522, %v813, %v814
        %v816 = vrot.slane %v814, 2
        %v817 = vrot.slane %v437, 7
        %v818 = vsel %vm522, %v816, %v817
        %v819 = vrot.slane %v817, 2
        %v820 = vrot.slane %v438, 7
        %v821 = vsel %vm522, %v819, %v820
        %v822 = vrot.slane %v820, 2
        %v823 = vrot.slane %v439, 7
        %v824 = vsel %vm522, %v822, %v823
        %v825 = vrot.slane %v823, 2
        %v826 = vrot.slane %v290, 7
        %v827 = vsel %vm522, %v825, %v826
        %v828 = vrot.slane %v826, 2
        %v829 = vrot.slane %v508, 7
        %v830 = vsel %vm522, %v828, %v829
        %v831 = vrot.slane %v291, 7
        %v832 = vrot.slane %v831, 2
        %v833 = vrot.slane %v440, 7
        %v834 = vsel %vm522, %v832, %v833
        %v835 = vrot.slane %v833, 2
        %v836 = vrot.slane %v441, 7
        %v837 = vsel %vm522, %v835, %v836
        %v838 = vrot.slane %v836, 2
        %v839 = vrot.slane %v442, 7
        %v840 = vsel %vm522, %v838, %v839
        %v841 = vrot.slane %v839, 2
        %v842 = vrot.slane %v292, 7
        %v843 = vsel %vm522, %v841, %v842
        %v844 = vrot.slane %v842, 2
        %v845 = vrot.slane %v443, 7
        %v846 = vsel %vm522, %v844, %v845
        %v847 = vrot.slane %v845, 2
        %v848 = vrot.slane %v444, 7
        %v849 = vsel %vm522, %v847, %v848
        %v850 = vrot.slane %v848, 2
        %v851 = vrot.slane %v445, 7
        %v852 = vsel %vm522, %v850, %v851
        %v853 = vrot.slane %v851, 2
        %v854 = vrot.slane %v293, 7
        %v855 = vsel %vm522, %v853, %v854
        %v856 = vrot.slane %v854, 2
        %v857 = vrot.slane %v509, 7
        %v858 = vsel %vm522, %v856, %v857
        %v859 = vrot.slane %v294, 7
        %v860 = vrot.slane %v859, 2
        %v861 = vrot.slane %v446, 7
        %v862 = vsel %vm522, %v860, %v861
        %v863 = vrot.slane %v861, 2
        %v864 = vrot.slane %v447, 7
        %v865 = vsel %vm522, %v863, %v864
        %v866 = vrot.slane %v864, 2
        %v867 = vrot.slane %v448, 7
        %v868 = vsel %vm522, %v866, %v867
        %v869 = vrot.slane %v867, 2
        %v870 = vrot.slane %v295, 7
        %v871 = vsel %vm522, %v869, %v870
        %v872 = vrot.slane %v870, 2
        %v873 = vrot.slane %v449, 7
        %v874 = vsel %vm522, %v872, %v873
        %v875 = vrot.slane %v873, 2
        %v876 = vrot.slane %v450, 7
        %v877 = vsel %vm522, %v875, %v876
        %v878 = vrot.slane %v876, 2
        %v879 = vrot.slane %v451, 7
        %v880 = vsel %vm522, %v878, %v879
        %v881 = vrot.slane %v879, 2
        %v882 = vrot.slane %v296, 7
        %v883 = vsel %vm522, %v881, %v882
        %v884 = vrot.slane %v882, 2
        %v885 = vrot.slane %v510, 7
        %v886 = vsel %vm522, %v884, %v885
        %v887 = vrot.slane %v297, 7
        %v888 = vrot.slane %v887, 2
        %v889 = vrot.slane %v452, 7
        %v890 = vsel %vm522, %v888, %v889
        %v891 = vrot.slane %v889, 2
        %v892 = vrot.slane %v453, 7
        %v893 = vsel %vm522, %v891, %v892
        %v894 = vrot.slane %v892, 2
        %v895 = vrot.slane %v454, 7
        %v896 = vsel %vm522, %v894, %v895
        %v897 = vrot.slane %v895, 2
        %v898 = vrot.slane %v298, 7
        %v899 = vsel %vm522, %v897, %v898
        %v900 = vrot.slane %v898, 2
        %v901 = vrot.slane %v455, 7
        %v902 = vsel %vm522, %v900, %v901
        %v903 = vrot.slane %v901, 2
        %v904 = vrot.slane %v456, 7
        %v905 = vsel %vm522, %v903, %v904
        %v906 = vrot.slane %v904, 2
        %v907 = vrot.slane %v457, 7
        %v908 = vsel %vm522, %v906, %v907
        %v909 = vrot.slane %v907, 2
        %v910 = vrot.slane %v299, 7
        %v911 = vsel %vm522, %v909, %v910
        %v912 = vrot.slane %v910, 2
        %v913 = vrot.slane %v511, 7
        %v914 = vsel %vm522, %v912, %v913
        %v915 = vrot.slane %v300, 7
        %v916 = vrot.slane %v915, 2
        %v917 = vrot.slane %v458, 7
        %v918 = vsel %vm522, %v916, %v917
        %v919 = vrot.slane %v917, 2
        %v920 = vrot.slane %v459, 7
        %v921 = vsel %vm522, %v919, %v920
        %v922 = vrot.slane %v920, 2
        %v923 = vrot.slane %v460, 7
        %v924 = vsel %vm522, %v922, %v923
        %v925 = vrot.slane %v923, 2
        %v926 = vrot.slane %v301, 7
        %v927 = vsel %vm522, %v925, %v926
        %v928 = vrot.slane %v926, 2
        %v929 = vrot.slane %v461, 7
        %v930 = vsel %vm522, %v928, %v929
        %v931 = vrot.slane %v929, 2
        %v932 = vrot.slane %v462, 7
        %v933 = vsel %vm522, %v931, %v932
        %v934 = vrot.slane %v932, 2
        %v935 = vrot.slane %v463, 7
        %v936 = vsel %vm522, %v934, %v935
        %v937 = vrot.slane %v935, 2
        %v938 = vrot.slane %v302, 7
        %v939 = vsel %vm522, %v937, %v938
        %v940 = vrot.slane %v938, 2
        %v941 = vrot.slane %v512, 7
        %v942 = vsel %vm522, %v940, %v941
        %v943 = vrot.slane %v303, 7
        %v944 = vrot.slane %v943, 2
        %v945 = vrot.slane %v464, 7
        %v946 = vsel %vm522, %v944, %v945
        %v947 = vrot.slane %v945, 2
        %v948 = vrot.slane %v465, 7
        %v949 = vsel %vm522, %v947, %v948
        %v950 = vrot.slane %v948, 2
        %v951 = vrot.slane %v466, 7
        %v952 = vsel %vm522, %v950, %v951
        %v953 = vrot.slane %v951, 2
        %v954 = vrot.slane %v304, 7
        %v955 = vsel %vm522, %v953, %v954
        %v956 = vrot.slane %v954, 2
        %v957 = vrot.slane %v467, 7
        %v958 = vsel %vm522, %v956, %v957
        %v959 = vrot.slane %v957, 2
        %v960 = vrot.slane %v468, 7
        %v961 = vsel %vm522, %v959, %v960
        %v962 = vrot.slane %v960, 2
        %v963 = vrot.slane %v469, 7
        %v964 = vsel %vm522, %v962, %v963
        %v965 = vrot.slane %v963, 2
        %v966 = vrot.slane %v305, 7
        %v967 = vsel %vm522, %v965, %v966
        %v968 = vrot.slane %v966, 2
        %v969 = vrot.slane %v513, 7
        %v970 = vsel %vm522, %v968, %v969
        %v971 = vrot.slane %v306, 7
        %v972 = vrot.slane %v971, 2
        %v973 = vrot.slane %v470, 7
        %v974 = vsel %vm522, %v972, %v973
        %v975 = vrot.slane %v973, 2
        %v976 = vrot.slane %v471, 7
        %v977 = vsel %vm522, %v975, %v976
        %v978 = vrot.slane %v976, 2
        %v979 = vrot.slane %v472, 7
        %v980 = vsel %vm522, %v978, %v979
        %v981 = vrot.slane %v979, 2
        %v982 = vrot.slane %v307, 7
        %v983 = vsel %vm522, %v981, %v982
        %v984 = vrot.slane %v982, 2
        %v985 = vrot.slane %v473, 7
        %v986 = vsel %vm522, %v984, %v985
        %v987 = vrot.slane %v985, 2
        %v988 = vrot.slane %v474, 7
        %v989 = vsel %vm522, %v987, %v988
        %v990 = vrot.slane %v988, 2
        %v991 = vrot.slane %v475, 7
        %v992 = vsel %vm522, %v990, %v991
        %v993 = vrot.slane %v991, 2
        %v994 = vrot.slane %v308, 7
        %v995 = vsel %vm522, %v993, %v994
        %v996 = vrot.slane %v994, 2
        %v997 = vrot.slane %v514, 7
        %v998 = vsel %vm522, %v996, %v997
        %v999 = vrot.slane %v309, 7
        %v1000 = vrot.slane %v999, 2
        %v1001 = vrot.slane %v476, 7
        %v1002 = vsel %vm522, %v1000, %v1001
        %v1003 = vrot.slane %v1001, 2
        %v1004 = vrot.slane %v477, 7
        %v1005 = vsel %vm522, %v1003, %v1004
        %v1006 = vrot.slane %v1004, 2
        %v1007 = vrot.slane %v478, 7
        %v1008 = vsel %vm522, %v1006, %v1007
        %v1009 = vrot.slane %v1007, 2
        %v1010 = vrot.slane %v310, 7
        %v1011 = vsel %vm522, %v1009, %v1010
        %v1012 = vrot.slane %v1010, 2
        %v1013 = vrot.slane %v479, 7
        %v1014 = vsel %vm522, %v1012, %v1013
        %v1015 = vrot.slane %v1013, 2
        %v1016 = vrot.slane %v480, 7
        %v1017 = vsel %vm522, %v1015, %v1016
        %v1018 = vrot.slane %v1016, 2
        %v1019 = vrot.slane %v481, 7
        %v1020 = vsel %vm522, %v1018, %v1019
        %v1021 = vrot.slane %v1019, 2
        %v1022 = vrot.slane %v311, 7
        %v1023 = vsel %vm522, %v1021, %v1022
        %v1024 = vrot.slane %v1022, 2
        %v1025 = vrot.slane %v515, 7
        %v1026 = vsel %vm522, %v1024, %v1025
        %s1027 = scalar_lea.vmem %s1, 128
        %v1028 = vld [vmem:[%s1027] sm:$0xff]
        %v1029 = vld [vmem:[%s1027 + $0x8] sm:$0xff]
        %v1030 = vld [vmem:[%s1027 + $0x10] sm:$0xff]
        %v1031 = vld [vmem:[%s1027 + $0x18] sm:$0xff]
        %v1032 = vld [vmem:[%s1027 + $0x20] sm:$0xff]
        %v1033 = vld [vmem:[%s1027 + $0x28] sm:$0xff]
        %v1034 = vld [vmem:[%s1027 + $0x30] sm:$0xff]
        %v1035 = vld [vmem:[%s1027 + $0x38] sm:$0xff]
        %v1036 = vld [vmem:[%s1027 + $0x40] sm:$0xff]
        %v1037 = vld [vmem:[%s1027 + $0x48] sm:$0xff]
        %v1038 = vld [vmem:[%s1027 + $0x50] sm:$0xff]
        %v1039 = vld [vmem:[%s1027 + $0x58] sm:$0xff]
        %v1040 = vld [vmem:[%s1027 + $0x60] sm:$0xff]
        %v1041 = vld [vmem:[%s1027 + $0x68] sm:$0xff]
        %v1042 = vld [vmem:[%s1027 + $0x70] sm:$0xff]
        %v1043 = vld [vmem:[%s1027 + $0x78] sm:$0xff]
        %1044 = vst [vmem:[#allocation1] ss:$4 sm:$0xff] %v526
        %s1045 = scalar_lea.vmem [#allocation1], 1
        %1046 = vst [vmem:[%s1045] ss:$4 sm:$0xff] %v529
        %s1047 = scalar_lea.vmem [#allocation1], 2
        %1048 = vst [vmem:[%s1047] ss:$4 sm:$0xff] %v532
        %s1049 = scalar_lea.vmem [#allocation1], 3
        %1050 = vst [vmem:[%s1049] ss:$4 sm:$0xff] %v535
        %s1051 = scalar_lea.vmem [#allocation1], 32
        %1052 = vst [vmem:[%s1051] ss:$4 sm:$0xff] %v538
        %s1053 = scalar_lea.vmem [#allocation1], 33
        %1054 = vst [vmem:[%s1053] ss:$4 sm:$0xff] %v541
        %s1055 = scalar_lea.vmem [#allocation1], 34
        %1056 = vst [vmem:[%s1055] ss:$4 sm:$0xff] %v544
        %s1057 = scalar_lea.vmem [#allocation1], 35
        %1058 = vst [vmem:[%s1057] ss:$4 sm:$0xff] %v547
        %v1059 = vld.sshfl [vmem:[#allocation1] sm:$0xff pattern:$0x73625140]
        %v1060 = vld.sshfl [vmem:[#allocation1 + $0x20] sm:$0xff pattern:$0x73625140]
        %1061 = vst [vmem:[#allocation1] ss:$4 sm:$0xff] %v550
        %1062 = vst [vmem:[%s1045] ss:$4 sm:$0xff] %v554
        %1063 = vst [vmem:[%s1047] ss:$4 sm:$0xff] %v557
        %1064 = vst [vmem:[%s1049] ss:$4 sm:$0xff] %v560
        %1065 = vst [vmem:[%s1051] ss:$4 sm:$0xff] %v563
        %1066 = vst [vmem:[%s1053] ss:$4 sm:$0xff] %v566
        %1067 = vst [vmem:[%s1055] ss:$4 sm:$0xff] %v569
        %1068 = vst [vmem:[%s1057] ss:$4 sm:$0xff] %v572
        %v1069 = vld.sshfl [vmem:[#allocation1] sm:$0xff pattern:$0x73625140]
        %v1070 = vld.sshfl [vmem:[#allocation1 + $0x20] sm:$0xff pattern:$0x73625140]
        %1071 = vst [vmem:[#allocation1] ss:$4 sm:$0xff] %v575
        %1072 = vst [vmem:[%s1045] ss:$4 sm:$0xff] %v578
        %1073 = vst [vmem:[%s1047] ss:$4 sm:$0xff] %v582
        %1074 = vst [vmem:[%s1049] ss:$4 sm:$0xff] %v585
        %1075 = vst [vmem:[%s1051] ss:$4 sm:$0xff] %v588
        %1076 = vst [vmem:[%s1053] ss:$4 sm:$0xff] %v591
        %1077 = vst [vmem:[%s1055] ss:$4 sm:$0xff] %v594
        %1078 = vst [vmem:[%s1057] ss:$4 sm:$0xff] %v597
        %v1079 = vld.sshfl [vmem:[#allocation1] sm:$0xff pattern:$0x73625140]
        %v1080 = vld.sshfl [vmem:[#allocation1 + $0x20] sm:$0xff pattern:$0x73625140]
        %1081 = vst [vmem:[#allocation1] ss:$4 sm:$0xff] %v600
        %1082 = vst [vmem:[%s1045] ss:$4 sm:$0xff] %v603
        %1083 = vst [vmem:[%s1047] ss:$4 sm:$0xff] %v606
        %1084 = vst [vmem:[%s1049] ss:$4 sm:$0xff] %v610
        %1085 = vst [vmem:[%s1051] ss:$4 sm:$0xff] %v613
        %1086 = vst [vmem:[%s1053] ss:$4 sm:$0xff] %v616
        %1087 = vst [vmem:[%s1055] ss:$4 sm:$0xff] %v619
        %1088 = vst [vmem:[%s1057] ss:$4 sm:$0xff] %v622
        %v1089 = vld.sshfl [vmem:[#allocation1] sm:$0xff pattern:$0x73625140]
        %v1090 = vld.sshfl [vmem:[#allocation1 + $0x20] sm:$0xff pattern:$0x73625140]
        %1091 = vst [vmem:[#allocation1] ss:$4 sm:$0xff] %v625
        %1092 = vst [vmem:[%s1045] ss:$4 sm:$0xff] %v628
        %1093 = vst [vmem:[%s1047] ss:$4 sm:$0xff] %v631
        %1094 = vst [vmem:[%s1049] ss:$4 sm:$0xff] %v634
        %1095 = vst [vmem:[%s1051] ss:$4 sm:$0xff] %v638
        %1096 = vst [vmem:[%s1053] ss:$4 sm:$0xff] %v641
        %1097 = vst [vmem:[%s1055] ss:$4 sm:$0xff] %v644
        %1098 = vst [vmem:[%s1057] ss:$4 sm:$0xff] %v647
        %v1099 = vld.sshfl [vmem:[#allocation1] sm:$0xff pattern:$0x73625140]
        %v1100 = vld.sshfl [vmem:[#allocation1 + $0x20] sm:$0xff pattern:$0x73625140]
        %1101 = vst [vmem:[#allocation1] ss:$4 sm:$0xff] %v650
        %1102 = vst [vmem:[%s1045] ss:$4 sm:$0xff] %v653
        %1103 = vst [vmem:[%s1047] ss:$4 sm:$0xff] %v656
        %1104 = vst [vmem:[%s1049] ss:$4 sm:$0xff] %v659
        %1105 = vst [vmem:[%s1051] ss:$4 sm:$0xff] %v662
        %1106 = vst [vmem:[%s1053] ss:$4 sm:$0xff] %v666
        %1107 = vst [vmem:[%s1055] ss:$4 sm:$0xff] %v669
        %1108 = vst [vmem:[%s1057] ss:$4 sm:$0xff] %v672
        %v1109 = vld.sshfl [vmem:[#allocation1] sm:$0xff pattern:$0x73625140]
        %v1110 = vld.sshfl [vmem:[#allocation1 + $0x20] sm:$0xff pattern:$0x73625140]
        %1111 = vst [vmem:[#allocation1] ss:$4 sm:$0xff] %v675
        %1112 = vst [vmem:[%s1045] ss:$4 sm:$0xff] %v678
        %1113 = vst [vmem:[%s1047] ss:$4 sm:$0xff] %v681
        %1114 = vst [vmem:[%s1049] ss:$4 sm:$0xff] %v684
        %1115 = vst [vmem:[%s1051] ss:$4 sm:$0xff] %v687
        %1116 = vst [vmem:[%s1053] ss:$4 sm:$0xff] %v690
        %1117 = vst [vmem:[%s1055] ss:$4 sm:$0xff] %v694
        %1118 = vst [vmem:[%s1057] ss:$4 sm:$0xff] %v697
        %v1119 = vld.sshfl [vmem:[#allocation1] sm:$0xff pattern:$0x73625140]
        %v1120 = vld.sshfl [vmem:[#allocation1 + $0x20] sm:$0xff pattern:$0x73625140]
        %1121 = vst [vmem:[#allocation1] ss:$4 sm:$0xff] %v700
        %1122 = vst [vmem:[%s1045] ss:$4 sm:$0xff] %v703
        %1123 = vst [vmem:[%s1047] ss:$4 sm:$0xff] %v706
        %1124 = vst [vmem:[%s1049] ss:$4 sm:$0xff] %v709
        %1125 = vst [vmem:[%s1051] ss:$4 sm:$0xff] %v712
        %1126 = vst [vmem:[%s1053] ss:$4 sm:$0xff] %v715
        %1127 = vst [vmem:[%s1055] ss:$4 sm:$0xff] %v718
        %1128 = vst [vmem:[%s1057] ss:$4 sm:$0xff] %v722
        %v1129 = vld.sshfl [vmem:[#allocation1] sm:$0xff pattern:$0x73625140]
        %v1130 = vld.sshfl [vmem:[#allocation1 + $0x20] sm:$0xff pattern:$0x73625140]
        %1131 = vst [vmem:[#allocation1] ss:$4 sm:$0xff] %v725
        %1132 = vst [vmem:[%s1045] ss:$4 sm:$0xff] %v728
        %1133 = vst [vmem:[%s1047] ss:$4 sm:$0xff] %v731
        %1134 = vst [vmem:[%s1049] ss:$4 sm:$0xff] %v734
        %1135 = vst [vmem:[%s1051] ss:$4 sm:$0xff] %v737
        %1136 = vst [vmem:[%s1053] ss:$4 sm:$0xff] %v740
        %1137 = vst [vmem:[%s1055] ss:$4 sm:$0xff] %v743
        %1138 = vst [vmem:[%s1057] ss:$4 sm:$0xff] %v746
        %v1139 = vld.sshfl [vmem:[#allocation1] sm:$0xff pattern:$0x73625140]
        %v1140 = vld.sshfl [vmem:[#allocation1 + $0x20] sm:$0xff pattern:$0x73625140]
        %1141 = vst [vmem:[#allocation1] ss:$4 sm:$0xff] %v750
        %1142 = vst [vmem:[%s1045] ss:$4 sm:$0xff] %v753
        %1143 = vst [vmem:[%s1047] ss:$4 sm:$0xff] %v756
        %1144 = vst [vmem:[%s1049] ss:$4 sm:$0xff] %v759
        %1145 = vst [vmem:[%s1051] ss:$4 sm:$0xff] %v762
        %1146 = vst [vmem:[%s1053] ss:$4 sm:$0xff] %v765
        %1147 = vst [vmem:[%s1055] ss:$4 sm:$0xff] %v768
        %1148 = vst [vmem:[%s1057] ss:$4 sm:$0xff] %v771
        %v1149 = vld.sshfl [vmem:[#allocation1] sm:$0xff pattern:$0x73625140]
        %v1150 = vld.sshfl [vmem:[#allocation1 + $0x20] sm:$0xff pattern:$0x73625140]
        %1151 = vst [vmem:[#allocation1] ss:$4 sm:$0xff] %v774
        %1152 = vst [vmem:[%s1045] ss:$4 sm:$0xff] %v778
        %1153 = vst [vmem:[%s1047] ss:$4 sm:$0xff] %v781
        %1154 = vst [vmem:[%s1049] ss:$4 sm:$0xff] %v784
        %1155 = vst [vmem:[%s1051] ss:$4 sm:$0xff] %v787
        %1156 = vst [vmem:[%s1053] ss:$4 sm:$0xff] %v790
        %1157 = vst [vmem:[%s1055] ss:$4 sm:$0xff] %v793
        %1158 = vst [vmem:[%s1057] ss:$4 sm:$0xff] %v796
        %v1159 = vld.sshfl [vmem:[#allocation1] sm:$0xff pattern:$0x73625140]
        %v1160 = vld.sshfl [vmem:[#allocation1 + $0x20] sm:$0xff pattern:$0x73625140]
        %1161 = vst [vmem:[#allocation1] ss:$4 sm:$0xff] %v799
        %1162 = vst [vmem:[%s1045] ss:$4 sm:$0xff] %v802
        %1163 = vst [vmem:[%s1047] ss:$4 sm:$0xff] %v806
        %1164 = vst [vmem:[%s1049] ss:$4 sm:$0xff] %v809
        %1165 = vst [vmem:[%s1051] ss:$4 sm:$0xff] %v812
        %1166 = vst [vmem:[%s1053] ss:$4 sm:$0xff] %v815
        %1167 = vst [vmem:[%s1055] ss:$4 sm:$0xff] %v818
        %1168 = vst [vmem:[%s1057] ss:$4 sm:$0xff] %v821
        %v1169 = vld.sshfl [vmem:[#allocation1] sm:$0xff pattern:$0x73625140]
        %v1170 = vld.sshfl [vmem:[#allocation1 + $0x20] sm:$0xff pattern:$0x73625140]
        %1171 = vst [vmem:[#allocation1] ss:$4 sm:$0xff] %v824
        %1172 = vst [vmem:[%s1045] ss:$4 sm:$0xff] %v827
        %1173 = vst [vmem:[%s1047] ss:$4 sm:$0xff] %v830
        %1174 = vst [vmem:[%s1049] ss:$4 sm:$0xff] %v834
        %1175 = vst [vmem:[%s1051] ss:$4 sm:$0xff] %v837
        %1176 = vst [vmem:[%s1053] ss:$4 sm:$0xff] %v840
        %1177 = vst [vmem:[%s1055] ss:$4 sm:$0xff] %v843
        %1178 = vst [vmem:[%s1057] ss:$4 sm:$0xff] %v846
        %v1179 = vld.sshfl [vmem:[#allocation1] sm:$0xff pattern:$0x73625140]
        %v1180 = vld.sshfl [vmem:[#allocation1 + $0x20] sm:$0xff pattern:$0x73625140]
        %1181 = vst [vmem:[#allocation1] ss:$4 sm:$0xff] %v849
        %1182 = vst [vmem:[%s1045] ss:$4 sm:$0xff] %v852
        %1183 = vst [vmem:[%s1047] ss:$4 sm:$0xff] %v855
        %1184 = vst [vmem:[%s1049] ss:$4 sm:$0xff] %v858
        %1185 = vst [vmem:[%s1051] ss:$4 sm:$0xff] %v862
        %1186 = vst [vmem:[%s1053] ss:$4 sm:$0xff] %v865
        %1187 = vst [vmem:[%s1055] ss:$4 sm:$0xff] %v868
        %1188 = vst [vmem:[%s1057] ss:$4 sm:$0xff] %v871
        %v1189 = vld.sshfl [vmem:[#allocation1] sm:$0xff pattern:$0x73625140]
        %v1190 = vld.sshfl [vmem:[#allocation1 + $0x20] sm:$0xff pattern:$0x73625140]
        %1191 = vst [vmem:[#allocation1] ss:$4 sm:$0xff] %v874
        %1192 = vst [vmem:[%s1045] ss:$4 sm:$0xff] %v877
        %1193 = vst [vmem:[%s1047] ss:$4 sm:$0xff] %v880
        %1194 = vst [vmem:[%s1049] ss:$4 sm:$0xff] %v883
        %1195 = vst [vmem:[%s1051] ss:$4 sm:$0xff] %v886
        %1196 = vst [vmem:[%s1053] ss:$4 sm:$0xff] %v890
        %1197 = vst [vmem:[%s1055] ss:$4 sm:$0xff] %v893
        %1198 = vst [vmem:[%s1057] ss:$4 sm:$0xff] %v896
        %v1199 = vld.sshfl [vmem:[#allocation1] sm:$0xff pattern:$0x73625140]
        %v1200 = vld.sshfl [vmem:[#allocation1 + $0x20] sm:$0xff pattern:$0x73625140]
        %1201 = vst [vmem:[#allocation1] ss:$4 sm:$0xff] %v899
        %1202 = vst [vmem:[%s1045] ss:$4 sm:$0xff] %v902
        %1203 = vst [vmem:[%s1047] ss:$4 sm:$0xff] %v905
        %1204 = vst [vmem:[%s1049] ss:$4 sm:$0xff] %v908
        %1205 = vst [vmem:[%s1051] ss:$4 sm:$0xff] %v911
        %1206 = vst [vmem:[%s1053] ss:$4 sm:$0xff] %v914
        %1207 = vst [vmem:[%s1055] ss:$4 sm:$0xff] %v918
        %1208 = vst [vmem:[%s1057] ss:$4 sm:$0xff] %v921
        %v1209 = vld.sshfl [vmem:[#allocation1] sm:$0xff pattern:$0x73625140]
        %v1210 = vld.sshfl [vmem:[#allocation1 + $0x20] sm:$0xff pattern:$0x73625140]
        %1211 = vst [vmem:[#allocation1] ss:$4 sm:$0xff] %v924
        %1212 = vst [vmem:[%s1045] ss:$4 sm:$0xff] %v927
        %1213 = vst [vmem:[%s1047] ss:$4 sm:$0xff] %v930
        %1214 = vst [vmem:[%s1049] ss:$4 sm:$0xff] %v933
        %1215 = vst [vmem:[%s1051] ss:$4 sm:$0xff] %v936
        %1216 = vst [vmem:[%s1053] ss:$4 sm:$0xff] %v939
        %1217 = vst [vmem:[%s1055] ss:$4 sm:$0xff] %v942
        %1218 = vst [vmem:[%s1057] ss:$4 sm:$0xff] %v946
        %v1219 = vld.sshfl [vmem:[#allocation1] sm:$0xff pattern:$0x73625140]
        %v1220 = vld.sshfl [vmem:[#allocation1 + $0x20] sm:$0xff pattern:$0x73625140]
        %1221 = vst [vmem:[#allocation1] ss:$4 sm:$0xff] %v949
        %1222 = vst [vmem:[%s1045] ss:$4 sm:$0xff] %v952
        %1223 = vst [vmem:[%s1047] ss:$4 sm:$0xff] %v955
        %1224 = vst [vmem:[%s1049] ss:$4 sm:$0xff] %v958
        %1225 = vst [vmem:[%s1051] ss:$4 sm:$0xff] %v961
        %1226 = vst [vmem:[%s1053] ss:$4 sm:$0xff] %v964
        %1227 = vst [vmem:[%s1055] ss:$4 sm:$0xff] %v967
        %1228 = vst [vmem:[%s1057] ss:$4 sm:$0xff] %v970
        %v1229 = vld.sshfl [vmem:[#allocation1] sm:$0xff pattern:$0x73625140]
        %v1230 = vld.sshfl [vmem:[#allocation1 + $0x20] sm:$0xff pattern:$0x73625140]
        %1231 = vst [vmem:[#allocation1] ss:$4 sm:$0xff] %v974
        %1232 = vst [vmem:[%s1045] ss:$4 sm:$0xff] %v977
        %1233 = vst [vmem:[%s1047] ss:$4 sm:$0xff] %v980
        %1234 = vst [vmem:[%s1049] ss:$4 sm:$0xff] %v983
        %1235 = vst [vmem:[%s1051] ss:$4 sm:$0xff] %v986
        %1236 = vst [vmem:[%s1053] ss:$4 sm:$0xff] %v989
        %1237 = vst [vmem:[%s1055] ss:$4 sm:$0xff] %v992
        %1238 = vst [vmem:[%s1057] ss:$4 sm:$0xff] %v995
        %v1239 = vld.sshfl [vmem:[#allocation1] sm:$0xff pattern:$0x73625140]
        %v1240 = vld.sshfl [vmem:[#allocation1 + $0x20] sm:$0xff pattern:$0x73625140]
        %1241 = vst [vmem:[#allocation1] ss:$4 sm:$0xff] %v998
        %1242 = vst [vmem:[%s1045] ss:$4 sm:$0xff] %v1002
        %1243 = vst [vmem:[%s1047] ss:$4 sm:$0xff] %v1005
        %1244 = vst [vmem:[%s1049] ss:$4 sm:$0xff] %v1008
        %1245 = vst [vmem:[%s1051] ss:$4 sm:$0xff] %v1011
        %1246 = vst [vmem:[%s1053] ss:$4 sm:$0xff] %v1014
        %1247 = vst [vmem:[%s1055] ss:$4 sm:$0xff] %v1017
        %1248 = vst [vmem:[%s1057] ss:$4 sm:$0xff] %v1020
        %v1249 = vld.sshfl [vmem:[#allocation1] sm:$0xff pattern:$0x73625140]
        %v1250 = vld.sshfl [vmem:[#allocation1 + $0x20] sm:$0xff pattern:$0x73625140]
        %1251 = vst [vmem:[#allocation1] ss:$4 sm:$0xff] %v1023
        %1252 = vst [vmem:[%s1045] ss:$4 sm:$0xff] %v1026
        %v1253 = vld.sshfl [vmem:[#allocation1] sm:$0xff pattern:$0x73625140]
        %1295 = vmatpush.msra.mxu0 %v1043
        %1296 = vmatpush.msra.mxu0 %v1042
        %1297 = vmatpush.msra.mxu0 %v1041
        %1298 = vmatpush.msra.mxu0 %v1040
        %1299 = vmatpush.msra.mxu0 %v1039
        %1300 = vmatpush.msra.mxu0 %v1038
        %1301 = vmatpush.msra.mxu0 %v1037
        %1302 = vmatpush.msra.mxu0 %v1036
        %1303 = vmatpush.msra.mxu0 %v1035
        %1304 = vmatpush.msra.mxu0 %v1034
        %1305 = vmatpush.msra.mxu0 %v1033
        %1306 = vmatpush.msra.mxu0 %v1032
        %1307 = vmatpush.msra.mxu0 %v1031
        %1308 = vmatpush.msra.mxu0 %v1030
        %1309 = vmatpush.msra.mxu0 %v1029
        %1310 = vmatpush.msra.mxu0 %v1028
        %1311 = vmatmul.f32.gmra.mxu0 %v1059
        %v1312 = vpop.f32.mrf.mxu0
        %v1313 = vadd.f32 0.0, %v1312
        %1314 = vmatmul.f32.gmra.mxu0 %v1060
        %v1315 = vpop.f32.mrf.mxu0
        %v1316 = vadd.f32 0.0, %v1315
        %1317 = vmatmul.f32.gmra.mxu0 %v1069
        %v1318 = vpop.f32.mrf.mxu0
        %v1319 = vadd.f32 0.0, %v1318
        %1320 = vmatmul.f32.gmra.mxu0 %v1070
        %v1321 = vpop.f32.mrf.mxu0
        %v1322 = vadd.f32 0.0, %v1321
        %1323 = vmatmul.f32.gmra.mxu0 %v1079
        %v1324 = vpop.f32.mrf.mxu0
        %v1325 = vadd.f32 0.0, %v1324
        %1326 = vmatmul.f32.gmra.mxu0 %v1080
        %v1327 = vpop.f32.mrf.mxu0
        %v1328 = vadd.f32 0.0, %v1327
        %1329 = vmatmul.f32.gmra.mxu0 %v1089
        %v1330 = vpop.f32.mrf.mxu0
        %v1331 = vadd.f32 0.0, %v1330
        %1332 = vmatmul.f32.gmra.mxu0 %v1090
        %v1333 = vpop.f32.mrf.mxu0
        %v1334 = vadd.f32 0.0, %v1333
        %1335 = vmatmul.f32.gmra.mxu0 %v1099
        %v1336 = vpop.f32.mrf.mxu0
        %v1337 = vadd.f32 0.0, %v1336
        %1338 = vmatmul.f32.gmra.mxu0 %v1100
        %v1339 = vpop.f32.mrf.mxu0
        %v1340 = vadd.f32 0.0, %v1339
        %1341 = vmatmul.f32.gmra.mxu0 %v1109
        %v1342 = vpop.f32.mrf.mxu0
        %v1343 = vadd.f32 0.0, %v1342
        %1344 = vmatmul.f32.gmra.mxu0 %v1110
        %v1345 = vpop.f32.mrf.mxu0
        %v1346 = vadd.f32 0.0, %v1345
        %1347 = vmatmul.f32.gmra.mxu0 %v1119
        %v1348 = vpop.f32.mrf.mxu0
        %v1349 = vadd.f32 0.0, %v1348
        %1350 = vmatmul.f32.gmra.mxu0 %v1120
        %v1351 = vpop.f32.mrf.mxu0
        %v1352 = vadd.f32 0.0, %v1351
        %1353 = vmatmul.f32.gmra.mxu0 %v1129
        %v1354 = vpop.f32.mrf.mxu0
        %v1355 = vadd.f32 0.0, %v1354
        %1356 = vmatmul.f32.gmra.mxu0 %v1130
        %v1357 = vpop.f32.mrf.mxu0
        %v1358 = vadd.f32 0.0, %v1357
        %1359 = vmatmul.f32.gmra.mxu0 %v1139
        %v1360 = vpop.f32.mrf.mxu0
        %v1361 = vadd.f32 0.0, %v1360
        %1362 = vmatmul.f32.gmra.mxu0 %v1140
        %v1363 = vpop.f32.mrf.mxu0
        %v1364 = vadd.f32 0.0, %v1363
        %1365 = vmatmul.f32.gmra.mxu0 %v1149
        %v1366 = vpop.f32.mrf.mxu0
        %v1367 = vadd.f32 0.0, %v1366
        %1368 = vmatmul.f32.gmra.mxu0 %v1150
        %v1369 = vpop.f32.mrf.mxu0
        %v1370 = vadd.f32 0.0, %v1369
        %1371 = vmatmul.f32.gmra.mxu0 %v1159
        %v1372 = vpop.f32.mrf.mxu0
        %v1373 = vadd.f32 0.0, %v1372
        %1374 = vmatmul.f32.gmra.mxu0 %v1160
        %v1375 = vpop.f32.mrf.mxu0
        %v1376 = vadd.f32 0.0, %v1375
        %1377 = vmatmul.f32.gmra.mxu0 %v1169
        %v1378 = vpop.f32.mrf.mxu0
        %v1379 = vadd.f32 0.0, %v1378
        %1380 = vmatmul.f32.gmra.mxu0 %v1170
        %v1381 = vpop.f32.mrf.mxu0
        %v1382 = vadd.f32 0.0, %v1381
        %1383 = vmatmul.f32.gmra.mxu0 %v1179
        %v1384 = vpop.f32.mrf.mxu0
        %v1385 = vadd.f32 0.0, %v1384
        %1386 = vmatmul.f32.gmra.mxu0 %v1180
        %v1387 = vpop.f32.mrf.mxu0
        %v1388 = vadd.f32 0.0, %v1387
        %1389 = vmatmul.f32.gmra.mxu0 %v1189
        %v1390 = vpop.f32.mrf.mxu0
        %v1391 = vadd.f32 0.0, %v1390
        %1392 = vmatmul.f32.gmra.mxu0 %v1190
        %v1393 = vpop.f32.mrf.mxu0
        %v1394 = vadd.f32 0.0, %v1393
        %1395 = vmatmul.f32.gmra.mxu0 %v1199
        %v1396 = vpop.f32.mrf.mxu0
        %v1397 = vadd.f32 0.0, %v1396
        %1398 = vmatmul.f32.gmra.mxu0 %v1200
        %v1399 = vpop.f32.mrf.mxu0
        %v1400 = vadd.f32 0.0, %v1399
        %1401 = vmatmul.f32.gmra.mxu0 %v1209
        %v1402 = vpop.f32.mrf.mxu0
        %v1403 = vadd.f32 0.0, %v1402
        %1404 = vmatmul.f32.gmra.mxu0 %v1210
        %v1405 = vpop.f32.mrf.mxu0
        %v1406 = vadd.f32 0.0, %v1405
        %1407 = vmatmul.f32.gmra.mxu0 %v1219
        %v1408 = vpop.f32.mrf.mxu0
        %v1409 = vadd.f32 0.0, %v1408
        %1410 = vmatmul.f32.gmra.mxu0 %v1220
        %v1411 = vpop.f32.mrf.mxu0
        %v1412 = vadd.f32 0.0, %v1411
        %1413 = vmatmul.f32.gmra.mxu0 %v1229
        %v1414 = vpop.f32.mrf.mxu0
        %v1415 = vadd.f32 0.0, %v1414
        %1416 = vmatmul.f32.gmra.mxu0 %v1230
        %v1417 = vpop.f32.mrf.mxu0
        %v1418 = vadd.f32 0.0, %v1417
        %1419 = vmatmul.f32.gmra.mxu0 %v1239
        %v1420 = vpop.f32.mrf.mxu0
        %v1421 = vadd.f32 0.0, %v1420
        %1422 = vmatmul.f32.gmra.mxu0 %v1240
        %v1423 = vpop.f32.mrf.mxu0
        %v1424 = vadd.f32 0.0, %v1423
        %1425 = vmatmul.f32.gmra.mxu0 %v1249
        %v1426 = vpop.f32.mrf.mxu0
        %v1427 = vadd.f32 0.0, %v1426
        %1428 = vmatmul.f32.gmra.mxu0 %v1250
        %v1429 = vpop.f32.mrf.mxu0
        %v1430 = vadd.f32 0.0, %v1429
        %1431 = vmatmul.f32.gmra.mxu0 %v1253
        %v1432 = vpop.f32.mrf.mxu0
        %v1433 = vadd.f32 0.0, %v1432
        %1434 = vdwg.mxu0
        %1435 = vst [vmem:[#allocation1] ss:$4 sm:$0xff] %v258
        %s1436 = scalar_lea.vmem [#allocation1], 1
        %1437 = vst [vmem:[%s1436] ss:$4 sm:$0xff] %v374
        %s1438 = scalar_lea.vmem [#allocation1], 2
        %1439 = vst [vmem:[%s1438] ss:$4 sm:$0xff] %v375
        %s1440 = scalar_lea.vmem [#allocation1], 3
        %1441 = vst [vmem:[%s1440] ss:$4 sm:$0xff] %v376
        %s1442 = scalar_lea.vmem [#allocation1], 32
        %1443 = vst [vmem:[%s1442] ss:$4 sm:$0xff] %v259
        %s1444 = scalar_lea.vmem [#allocation1], 33
        %1445 = vst [vmem:[%s1444] ss:$4 sm:$0xff] %v377
        %s1446 = scalar_lea.vmem [#allocation1], 34
        %1447 = vst [vmem:[%s1446] ss:$4 sm:$0xff] %v378
        %s1448 = scalar_lea.vmem [#allocation1], 35
        %1449 = vst [vmem:[%s1448] ss:$4 sm:$0xff] %v379
        %v1450 = vld.sshfl [vmem:[#allocation1] sm:$0xff pattern:$0x73625140]
        %v1451 = vld.sshfl [vmem:[#allocation1 + $0x20] sm:$0xff pattern:$0x73625140]
        %1452 = vst [vmem:[#allocation1] ss:$4 sm:$0xff] %v260
        %1453 = vst [vmem:[%s1436] ss:$4 sm:$0xff] %v261
        %1454 = vst [vmem:[%s1438] ss:$4 sm:$0xff] %v380
        %1455 = vst [vmem:[%s1440] ss:$4 sm:$0xff] %v381
        %1456 = vst [vmem:[%s1442] ss:$4 sm:$0xff] %v382
        %1457 = vst [vmem:[%s1444] ss:$4 sm:$0xff] %v262
        %1458 = vst [vmem:[%s1446] ss:$4 sm:$0xff] %v383
        %1459 = vst [vmem:[%s1448] ss:$4 sm:$0xff] %v384
        %v1460 = vld.sshfl [vmem:[#allocation1] sm:$0xff pattern:$0x73625140]
        %v1461 = vld.sshfl [vmem:[#allocation1 + $0x20] sm:$0xff pattern:$0x73625140]
        %1462 = vst [vmem:[#allocation1] ss:$4 sm:$0xff] %v385
        %1463 = vst [vmem:[%s1436] ss:$4 sm:$0xff] %v263
        %1464 = vst [vmem:[%s1438] ss:$4 sm:$0xff] %v264
        %1465 = vst [vmem:[%s1440] ss:$4 sm:$0xff] %v386
        %1466 = vst [vmem:[%s1442] ss:$4 sm:$0xff] %v387
        %1467 = vst [vmem:[%s1444] ss:$4 sm:$0xff] %v388
        %1468 = vst [vmem:[%s1446] ss:$4 sm:$0xff] %v265
        %1469 = vst [vmem:[%s1448] ss:$4 sm:$0xff] %v389
        %v1470 = vld.sshfl [vmem:[#allocation1] sm:$0xff pattern:$0x73625140]
        %v1471 = vld.sshfl [vmem:[#allocation1 + $0x20] sm:$0xff pattern:$0x73625140]
        %1472 = vst [vmem:[#allocation1] ss:$4 sm:$0xff] %v390
        %1473 = vst [vmem:[%s1436] ss:$4 sm:$0xff] %v391
        %1474 = vst [vmem:[%s1438] ss:$4 sm:$0xff] %v266
        %1475 = vst [vmem:[%s1440] ss:$4 sm:$0xff] %v267
        %1476 = vst [vmem:[%s1442] ss:$4 sm:$0xff] %v392
        %1477 = vst [vmem:[%s1444] ss:$4 sm:$0xff] %v393
        %1478 = vst [vmem:[%s1446] ss:$4 sm:$0xff] %v394
        %1479 = vst [vmem:[%s1448] ss:$4 sm:$0xff] %v268
        %v1480 = vld.sshfl [vmem:[#allocation1] sm:$0xff pattern:$0x73625140]
        %v1481 = vld.sshfl [vmem:[#allocation1 + $0x20] sm:$0xff pattern:$0x73625140]
        %1482 = vst [vmem:[#allocation1] ss:$4 sm:$0xff] %v395
        %1483 = vst [vmem:[%s1436] ss:$4 sm:$0xff] %v396
        %1484 = vst [vmem:[%s1438] ss:$4 sm:$0xff] %v397
        %1485 = vst [vmem:[%s1440] ss:$4 sm:$0xff] %v269
        %1486 = vst [vmem:[%s1442] ss:$4 sm:$0xff] %v270
        %1487 = vst [vmem:[%s1444] ss:$4 sm:$0xff] %v398
        %1488 = vst [vmem:[%s1446] ss:$4 sm:$0xff] %v399
        %1489 = vst [vmem:[%s1448] ss:$4 sm:$0xff] %v400
        %v1490 = vld.sshfl [vmem:[#allocation1] sm:$0xff pattern:$0x73625140]
        %v1491 = vld.sshfl [vmem:[#allocation1 + $0x20] sm:$0xff pattern:$0x73625140]
        %1492 = vst [vmem:[#allocation1] ss:$4 sm:$0xff] %v271
        %1493 = vst [vmem:[%s1436] ss:$4 sm:$0xff] %v401
        %1494 = vst [vmem:[%s1438] ss:$4 sm:$0xff] %v402
        %1495 = vst [vmem:[%s1440] ss:$4 sm:$0xff] %v403
        %1496 = vst [vmem:[%s1442] ss:$4 sm:$0xff] %v272
        %1497 = vst [vmem:[%s1444] ss:$4 sm:$0xff] %v273
        %1498 = vst [vmem:[%s1446] ss:$4 sm:$0xff] %v404
        %1499 = vst [vmem:[%s1448] ss:$4 sm:$0xff] %v405
        %v1500 = vld.sshfl [vmem:[#allocation1] sm:$0xff pattern:$0x73625140]
        %v1501 = vld.sshfl [vmem:[#allocation1 + $0x20] sm:$0xff pattern:$0x73625140]
        %1502 = vst [vmem:[#allocation1] ss:$4 sm:$0xff] %v406
        %1503 = vst [vmem:[%s1436] ss:$4 sm:$0xff] %v274
        %1504 = vst [vmem:[%s1438] ss:$4 sm:$0xff] %v407
        %1505 = vst [vmem:[%s1440] ss:$4 sm:$0xff] %v408
        %1506 = vst [vmem:[%s1442] ss:$4 sm:$0xff] %v409
        %1507 = vst [vmem:[%s1444] ss:$4 sm:$0xff] %v275
        %1508 = vst [vmem:[%s1446] ss:$4 sm:$0xff] %v276
        %1509 = vst [vmem:[%s1448] ss:$4 sm:$0xff] %v410
        %v1510 = vld.sshfl [vmem:[#allocation1] sm:$0xff pattern:$0x73625140]
        %v1511 = vld.sshfl [vmem:[#allocation1 + $0x20] sm:$0xff pattern:$0x73625140]
        %1512 = vst [vmem:[#allocation1] ss:$4 sm:$0xff] %v411
        %1513 = vst [vmem:[%s1436] ss:$4 sm:$0xff] %v412
        %1514 = vst [vmem:[%s1438] ss:$4 sm:$0xff] %v277
        %1515 = vst [vmem:[%s1440] ss:$4 sm:$0xff] %v413
        %1516 = vst [vmem:[%s1442] ss:$4 sm:$0xff] %v414
        %1517 = vst [vmem:[%s1444] ss:$4 sm:$0xff] %v415
        %1518 = vst [vmem:[%s1446] ss:$4 sm:$0xff] %v278
        %1519 = vst [vmem:[%s1448] ss:$4 sm:$0xff] %v279
        %v1520 = vld.sshfl [vmem:[#allocation1] sm:$0xff pattern:$0x73625140]
        %v1521 = vld.sshfl [vmem:[#allocation1 + $0x20] sm:$0xff pattern:$0x73625140]
        %1522 = vst [vmem:[#allocation1] ss:$4 sm:$0xff] %v416
        %1523 = vst [vmem:[%s1436] ss:$4 sm:$0xff] %v417
        %1524 = vst [vmem:[%s1438] ss:$4 sm:$0xff] %v418
        %1525 = vst [vmem:[%s1440] ss:$4 sm:$0xff] %v280
        %1526 = vst [vmem:[%s1442] ss:$4 sm:$0xff] %v419
        %1527 = vst [vmem:[%s1444] ss:$4 sm:$0xff] %v420
        %1528 = vst [vmem:[%s1446] ss:$4 sm:$0xff] %v421
        %1529 = vst [vmem:[%s1448] ss:$4 sm:$0xff] %v281
        %v1530 = vld.sshfl [vmem:[#allocation1] sm:$0xff pattern:$0x73625140]
        %v1531 = vld.sshfl [vmem:[#allocation1 + $0x20] sm:$0xff pattern:$0x73625140]
        %1532 = vst [vmem:[#allocation1] ss:$4 sm:$0xff] %v282
        %1533 = vst [vmem:[%s1436] ss:$4 sm:$0xff] %v422
        %1534 = vst [vmem:[%s1438] ss:$4 sm:$0xff] %v423
        %1535 = vst [vmem:[%s1440] ss:$4 sm:$0xff] %v424
        %1536 = vst [vmem:[%s1442] ss:$4 sm:$0xff] %v283
        %1537 = vst [vmem:[%s1444] ss:$4 sm:$0xff] %v425
        %1538 = vst [vmem:[%s1446] ss:$4 sm:$0xff] %v426
        %1539 = vst [vmem:[%s1448] ss:$4 sm:$0xff] %v427
        %v1540 = vld.sshfl [vmem:[#allocation1] sm:$0xff pattern:$0x73625140]
        %v1541 = vld.sshfl [vmem:[#allocation1 + $0x20] sm:$0xff pattern:$0x73625140]
        %1542 = vst [vmem:[#allocation1] ss:$4 sm:$0xff] %v284
        %1543 = vst [vmem:[%s1436] ss:$4 sm:$0xff] %v285
        %1544 = vst [vmem:[%s1438] ss:$4 sm:$0xff] %v428
        %1545 = vst [vmem:[%s1440] ss:$4 sm:$0xff] %v429
        %1546 = vst [vmem:[%s1442] ss:$4 sm:$0xff] %v430
        %1547 = vst [vmem:[%s1444] ss:$4 sm:$0xff] %v286
        %1548 = vst [vmem:[%s1446] ss:$4 sm:$0xff] %v431
        %1549 = vst [vmem:[%s1448] ss:$4 sm:$0xff] %v432
        %v1550 = vld.sshfl [vmem:[#allocation1] sm:$0xff pattern:$0x73625140]
        %v1551 = vld.sshfl [vmem:[#allocation1 + $0x20] sm:$0xff pattern:$0x73625140]
        %1552 = vst [vmem:[#allocation1] ss:$4 sm:$0xff] %v433
        %1553 = vst [vmem:[%s1436] ss:$4 sm:$0xff] %v287
        %1554 = vst [vmem:[%s1438] ss:$4 sm:$0xff] %v288
        %1555 = vst [vmem:[%s1440] ss:$4 sm:$0xff] %v434
        %1556 = vst [vmem:[%s1442] ss:$4 sm:$0xff] %v435
        %1557 = vst [vmem:[%s1444] ss:$4 sm:$0xff] %v436
        %1558 = vst [vmem:[%s1446] ss:$4 sm:$0xff] %v289
        %1559 = vst [vmem:[%s1448] ss:$4 sm:$0xff] %v437
        %v1560 = vld.sshfl [vmem:[#allocation1] sm:$0xff pattern:$0x73625140]
        %v1561 = vld.sshfl [vmem:[#allocation1 + $0x20] sm:$0xff pattern:$0x73625140]
        %1562 = vst [vmem:[#allocation1] ss:$4 sm:$0xff] %v438
        %1563 = vst [vmem:[%s1436] ss:$4 sm:$0xff] %v439
        %1564 = vst [vmem:[%s1438] ss:$4 sm:$0xff] %v290
        %1565 = vst [vmem:[%s1440] ss:$4 sm:$0xff] %v291
        %1566 = vst [vmem:[%s1442] ss:$4 sm:$0xff] %v440
        %1567 = vst [vmem:[%s1444] ss:$4 sm:$0xff] %v441
        %1568 = vst [vmem:[%s1446] ss:$4 sm:$0xff] %v442
        %1569 = vst [vmem:[%s1448] ss:$4 sm:$0xff] %v292
        %v1570 = vld.sshfl [vmem:[#allocation1] sm:$0xff pattern:$0x73625140]
        %v1571 = vld.sshfl [vmem:[#allocation1 + $0x20] sm:$0xff pattern:$0x73625140]
        %1572 = vst [vmem:[#allocation1] ss:$4 sm:$0xff] %v443
        %1573 = vst [vmem:[%s1436] ss:$4 sm:$0xff] %v444
        %1574 = vst [vmem:[%s1438] ss:$4 sm:$0xff] %v445
        %1575 = vst [vmem:[%s1440] ss:$4 sm:$0xff] %v293
        %1576 = vst [vmem:[%s1442] ss:$4 sm:$0xff] %v294
        %1577 = vst [vmem:[%s1444] ss:$4 sm:$0xff] %v446
        %1578 = vst [vmem:[%s1446] ss:$4 sm:$0xff] %v447
        %1579 = vst [vmem:[%s1448] ss:$4 sm:$0xff] %v448
        %v1580 = vld.sshfl [vmem:[#allocation1] sm:$0xff pattern:$0x73625140]
        %v1581 = vld.sshfl [vmem:[#allocation1 + $0x20] sm:$0xff pattern:$0x73625140]
        %1582 = vst [vmem:[#allocation1] ss:$4 sm:$0xff] %v295
        %1583 = vst [vmem:[%s1436] ss:$4 sm:$0xff] %v449
        %1584 = vst [vmem:[%s1438] ss:$4 sm:$0xff] %v450
        %1585 = vst [vmem:[%s1440] ss:$4 sm:$0xff] %v451
        %1586 = vst [vmem:[%s1442] ss:$4 sm:$0xff] %v296
        %1587 = vst [vmem:[%s1444] ss:$4 sm:$0xff] %v297
        %1588 = vst [vmem:[%s1446] ss:$4 sm:$0xff] %v452
        %1589 = vst [vmem:[%s1448] ss:$4 sm:$0xff] %v453
        %v1590 = vld.sshfl [vmem:[#allocation1] sm:$0xff pattern:$0x73625140]
        %v1591 = vld.sshfl [vmem:[#allocation1 + $0x20] sm:$0xff pattern:$0x73625140]
        %1592 = vst [vmem:[#allocation1] ss:$4 sm:$0xff] %v454
        %1593 = vst [vmem:[%s1436] ss:$4 sm:$0xff] %v298
        %1594 = vst [vmem:[%s1438] ss:$4 sm:$0xff] %v455
        %1595 = vst [vmem:[%s1440] ss:$4 sm:$0xff] %v456
        %1596 = vst [vmem:[%s1442] ss:$4 sm:$0xff] %v457
        %1597 = vst [vmem:[%s1444] ss:$4 sm:$0xff] %v299
        %1598 = vst [vmem:[%s1446] ss:$4 sm:$0xff] %v300
        %1599 = vst [vmem:[%s1448] ss:$4 sm:$0xff] %v458
        %v1600 = vld.sshfl [vmem:[#allocation1] sm:$0xff pattern:$0x73625140]
        %v1601 = vld.sshfl [vmem:[#allocation1 + $0x20] sm:$0xff pattern:$0x73625140]
        %1602 = vst [vmem:[#allocation1] ss:$4 sm:$0xff] %v459
        %1603 = vst [vmem:[%s1436] ss:$4 sm:$0xff] %v460
        %1604 = vst [vmem:[%s1438] ss:$4 sm:$0xff] %v301
        %1605 = vst [vmem:[%s1440] ss:$4 sm:$0xff] %v461
        %1606 = vst [vmem:[%s1442] ss:$4 sm:$0xff] %v462
        %1607 = vst [vmem:[%s1444] ss:$4 sm:$0xff] %v463
        %1608 = vst [vmem:[%s1446] ss:$4 sm:$0xff] %v302
        %1609 = vst [vmem:[%s1448] ss:$4 sm:$0xff] %v303
        %v1610 = vld.sshfl [vmem:[#allocation1] sm:$0xff pattern:$0x73625140]
        %v1611 = vld.sshfl [vmem:[#allocation1 + $0x20] sm:$0xff pattern:$0x73625140]
        %1612 = vst [vmem:[#allocation1] ss:$4 sm:$0xff] %v464
        %1613 = vst [vmem:[%s1436] ss:$4 sm:$0xff] %v465
        %1614 = vst [vmem:[%s1438] ss:$4 sm:$0xff] %v466
        %1615 = vst [vmem:[%s1440] ss:$4 sm:$0xff] %v304
        %1616 = vst [vmem:[%s1442] ss:$4 sm:$0xff] %v467
        %1617 = vst [vmem:[%s1444] ss:$4 sm:$0xff] %v468
        %1618 = vst [vmem:[%s1446] ss:$4 sm:$0xff] %v469
        %1619 = vst [vmem:[%s1448] ss:$4 sm:$0xff] %v305
        %v1620 = vld.sshfl [vmem:[#allocation1] sm:$0xff pattern:$0x73625140]
        %v1621 = vld.sshfl [vmem:[#allocation1 + $0x20] sm:$0xff pattern:$0x73625140]
        %1622 = vst [vmem:[#allocation1] ss:$4 sm:$0xff] %v306
        %1623 = vst [vmem:[%s1436] ss:$4 sm:$0xff] %v470
        %1624 = vst [vmem:[%s1438] ss:$4 sm:$0xff] %v471
        %1625 = vst [vmem:[%s1440] ss:$4 sm:$0xff] %v472
        %1626 = vst [vmem:[%s1442] ss:$4 sm:$0xff] %v307
        %1627 = vst [vmem:[%s1444] ss:$4 sm:$0xff] %v473
        %1628 = vst [vmem:[%s1446] ss:$4 sm:$0xff] %v474
        %1629 = vst [vmem:[%s1448] ss:$4 sm:$0xff] %v475
        %v1630 = vld.sshfl [vmem:[#allocation1] sm:$0xff pattern:$0x73625140]
        %v1631 = vld.sshfl [vmem:[#allocation1 + $0x20] sm:$0xff pattern:$0x73625140]
        %1632 = vst [vmem:[#allocation1] ss:$4 sm:$0xff] %v308
        %1633 = vst [vmem:[%s1436] ss:$4 sm:$0xff] %v309
        %1634 = vst [vmem:[%s1438] ss:$4 sm:$0xff] %v476
        %1635 = vst [vmem:[%s1440] ss:$4 sm:$0xff] %v477
        %1636 = vst [vmem:[%s1442] ss:$4 sm:$0xff] %v478
        %1637 = vst [vmem:[%s1444] ss:$4 sm:$0xff] %v310
        %1638 = vst [vmem:[%s1446] ss:$4 sm:$0xff] %v479
        %1639 = vst [vmem:[%s1448] ss:$4 sm:$0xff] %v480
        %v1640 = vld.sshfl [vmem:[#allocation1] sm:$0xff pattern:$0x73625140]
        %v1641 = vld.sshfl [vmem:[#allocation1 + $0x20] sm:$0xff pattern:$0x73625140]
        %1642 = vst [vmem:[#allocation1] ss:$4 sm:$0xff] %v481
        %1643 = vst [vmem:[%s1436] ss:$4 sm:$0xff] %v311
        %v1644 = vld.sshfl [vmem:[#allocation1] sm:$0xff pattern:$0x73625140]
        %1686 = vmatpush.msra.mxu0 %v497
        %1687 = vmatpush.msra.mxu0 %v496
        %1688 = vmatpush.msra.mxu0 %v495
        %1689 = vmatpush.msra.mxu0 %v494
        %1690 = vmatpush.msra.mxu0 %v493
        %1691 = vmatpush.msra.mxu0 %v492
        %1692 = vmatpush.msra.mxu0 %v491
        %1693 = vmatpush.msra.mxu0 %v490
        %1694 = vmatpush.msra.mxu0 %v489
        %1695 = vmatpush.msra.mxu0 %v488
        %1696 = vmatpush.msra.mxu0 %v487
        %1697 = vmatpush.msra.mxu0 %v486
        %1698 = vmatpush.msra.mxu0 %v485
        %1699 = vmatpush.msra.mxu0 %v484
        %1700 = vmatpush.msra.mxu0 %v483
        %1701 = vmatpush.msra.mxu0 %v482
        %1702 = vmatmul.f32.gmra.mxu0 %v1450
        %v1703 = vpop.f32.mrf.mxu0
        %v1704 = vadd.f32 %v1313, %v1703
        %1705 = vmatmul.f32.gmra.mxu0 %v1451
        %v1706 = vpop.f32.mrf.mxu0
        %v1707 = vadd.f32 %v1316, %v1706
        %1708 = vmatmul.f32.gmra.mxu0 %v1460
        %v1709 = vpop.f32.mrf.mxu0
        %v1710 = vadd.f32 %v1319, %v1709
        %1711 = vmatmul.f32.gmra.mxu0 %v1461
        %v1712 = vpop.f32.mrf.mxu0
        %v1713 = vadd.f32 %v1322, %v1712
        %1714 = vmatmul.f32.gmra.mxu0 %v1470
        %v1715 = vpop.f32.mrf.mxu0
        %v1716 = vadd.f32 %v1325, %v1715
        %1717 = vmatmul.f32.gmra.mxu0 %v1471
        %v1718 = vpop.f32.mrf.mxu0
        %v1719 = vadd.f32 %v1328, %v1718
        %1720 = vmatmul.f32.gmra.mxu0 %v1480
        %v1721 = vpop.f32.mrf.mxu0
        %v1722 = vadd.f32 %v1331, %v1721
        %1723 = vmatmul.f32.gmra.mxu0 %v1481
        %v1724 = vpop.f32.mrf.mxu0
        %v1725 = vadd.f32 %v1334, %v1724
        %1726 = vmatmul.f32.gmra.mxu0 %v1490
        %v1727 = vpop.f32.mrf.mxu0
        %v1728 = vadd.f32 %v1337, %v1727
        %1729 = vmatmul.f32.gmra.mxu0 %v1491
        %v1730 = vpop.f32.mrf.mxu0
        %v1731 = vadd.f32 %v1340, %v1730
        %1732 = vmatmul.f32.gmra.mxu0 %v1500
        %v1733 = vpop.f32.mrf.mxu0
        %v1734 = vadd.f32 %v1343, %v1733
        %1735 = vmatmul.f32.gmra.mxu0 %v1501
        %v1736 = vpop.f32.mrf.mxu0
        %v1737 = vadd.f32 %v1346, %v1736
        %1738 = vmatmul.f32.gmra.mxu0 %v1510
        %v1739 = vpop.f32.mrf.mxu0
        %v1740 = vadd.f32 %v1349, %v1739
        %1741 = vmatmul.f32.gmra.mxu0 %v1511
        %v1742 = vpop.f32.mrf.mxu0
        %v1743 = vadd.f32 %v1352, %v1742
        %1744 = vmatmul.f32.gmra.mxu0 %v1520
        %v1745 = vpop.f32.mrf.mxu0
        %v1746 = vadd.f32 %v1355, %v1745
        %1747 = vmatmul.f32.gmra.mxu0 %v1521
        %v1748 = vpop.f32.mrf.mxu0
        %v1749 = vadd.f32 %v1358, %v1748
        %1750 = vmatmul.f32.gmra.mxu0 %v1530
        %v1751 = vpop.f32.mrf.mxu0
        %v1752 = vadd.f32 %v1361, %v1751
        %1753 = vmatmul.f32.gmra.mxu0 %v1531
        %v1754 = vpop.f32.mrf.mxu0
        %v1755 = vadd.f32 %v1364, %v1754
        %1756 = vmatmul.f32.gmra.mxu0 %v1540
        %v1757 = vpop.f32.mrf.mxu0
        %v1758 = vadd.f32 %v1367, %v1757
        %1759 = vmatmul.f32.gmra.mxu0 %v1541
        %v1760 = vpop.f32.mrf.mxu0
        %v1761 = vadd.f32 %v1370, %v1760
        %1762 = vmatmul.f32.gmra.mxu0 %v1550
        %v1763 = vpop.f32.mrf.mxu0
        %v1764 = vadd.f32 %v1373, %v1763
        %1765 = vmatmul.f32.gmra.mxu0 %v1551
        %v1766 = vpop.f32.mrf.mxu0
        %v1767 = vadd.f32 %v1376, %v1766
        %1768 = vmatmul.f32.gmra.mxu0 %v1560
        %v1769 = vpop.f32.mrf.mxu0
        %v1770 = vadd.f32 %v1379, %v1769
        %1771 = vmatmul.f32.gmra.mxu0 %v1561
        %v1772 = vpop.f32.mrf.mxu0
        %v1773 = vadd.f32 %v1382, %v1772
        %1774 = vmatmul.f32.gmra.mxu0 %v1570
        %v1775 = vpop.f32.mrf.mxu0
        %v1776 = vadd.f32 %v1385, %v1775
        %1777 = vmatmul.f32.gmra.mxu0 %v1571
        %v1778 = vpop.f32.mrf.mxu0
        %v1779 = vadd.f32 %v1388, %v1778
        %1780 = vmatmul.f32.gmra.mxu0 %v1580
        %v1781 = vpop.f32.mrf.mxu0
        %v1782 = vadd.f32 %v1391, %v1781
        %1783 = vmatmul.f32.gmra.mxu0 %v1581
        %v1784 = vpop.f32.mrf.mxu0
        %v1785 = vadd.f32 %v1394, %v1784
        %1786 = vmatmul.f32.gmra.mxu0 %v1590
        %v1787 = vpop.f32.mrf.mxu0
        %v1788 = vadd.f32 %v1397, %v1787
        %1789 = vmatmul.f32.gmra.mxu0 %v1591
        %v1790 = vpop.f32.mrf.mxu0
        %v1791 = vadd.f32 %v1400, %v1790
        %1792 = vmatmul.f32.gmra.mxu0 %v1600
        %v1793 = vpop.f32.mrf.mxu0
        %v1794 = vadd.f32 %v1403, %v1793
        %1795 = vmatmul.f32.gmra.mxu0 %v1601
        %v1796 = vpop.f32.mrf.mxu0
        %v1797 = vadd.f32 %v1406, %v1796
        %1798 = vmatmul.f32.gmra.mxu0 %v1610
        %v1799 = vpop.f32.mrf.mxu0
        %v1800 = vadd.f32 %v1409, %v1799
        %1801 = vmatmul.f32.gmra.mxu0 %v1611
        %v1802 = vpop.f32.mrf.mxu0
        %v1803 = vadd.f32 %v1412, %v1802
        %1804 = vmatmul.f32.gmra.mxu0 %v1620
        %v1805 = vpop.f32.mrf.mxu0
        %v1806 = vadd.f32 %v1415, %v1805
        %1807 = vmatmul.f32.gmra.mxu0 %v1621
        %v1808 = vpop.f32.mrf.mxu0
        %v1809 = vadd.f32 %v1418, %v1808
        %1810 = vmatmul.f32.gmra.mxu0 %v1630
        %v1811 = vpop.f32.mrf.mxu0
        %v1812 = vadd.f32 %v1421, %v1811
        %1813 = vmatmul.f32.gmra.mxu0 %v1631
        %v1814 = vpop.f32.mrf.mxu0
        %v1815 = vadd.f32 %v1424, %v1814
        %1816 = vmatmul.f32.gmra.mxu0 %v1640
        %v1817 = vpop.f32.mrf.mxu0
        %v1818 = vadd.f32 %v1427, %v1817
        %1819 = vmatmul.f32.gmra.mxu0 %v1641
        %v1820 = vpop.f32.mrf.mxu0
        %v1821 = vadd.f32 %v1430, %v1820
        %1822 = vmatmul.f32.gmra.mxu0 %v1644
        %v1823 = vpop.f32.mrf.mxu0
        %v1824 = vadd.f32 %v1433, %v1823
        %1825 = vdwg.mxu0
        %1826 = vst.sshfl [vmem:[#allocation1] sm:$0xff pattern:$0x73625140] %v258
        %1827 = vst.sshfl [vmem:[#allocation1 + $0x20] sm:$0xff pattern:$0x73625140] %v259
        %s1828 = scalar_lea.vmem [#allocation1], 1
        %v1829 = vld [vmem:[%s1828] ss:$4 sm:$0xff]
        %s1830 = scalar_lea.vmem [#allocation1], 2
        %v1831 = vld [vmem:[%s1830] ss:$4 sm:$0xff]
        %s1832 = scalar_lea.vmem [#allocation1], 3
        %v1833 = vld [vmem:[%s1832] ss:$4 sm:$0xff]
        %s1834 = scalar_lea.vmem [#allocation1], 32
        %v1835 = vld [vmem:[%s1834] ss:$4 sm:$0xff]
        %s1836 = scalar_lea.vmem [#allocation1], 33
        %v1837 = vld [vmem:[%s1836] ss:$4 sm:$0xff]
        %s1838 = scalar_lea.vmem [#allocation1], 34
        %v1839 = vld [vmem:[%s1838] ss:$4 sm:$0xff]
        %s1840 = scalar_lea.vmem [#allocation1], 35
        %v1841 = vld [vmem:[%s1840] ss:$4 sm:$0xff]
        %1842 = vst.sshfl [vmem:[#allocation1] sm:$0xff pattern:$0x73625140] %v260
        %v1843 = vld [vmem:[#allocation1] ss:$4 sm:$0xff]
        %v1844 = vld [vmem:[%s1828] ss:$4 sm:$0xff]
        %1845 = vst.sshfl [vmem:[#allocation1 + $0x20] sm:$0xff pattern:$0x73625140] %v261
        %v1846 = vld [vmem:[%s1836] ss:$4 sm:$0xff]
        %v1847 = vld [vmem:[%s1838] ss:$4 sm:$0xff]
        %v1848 = vld [vmem:[%s1840] ss:$4 sm:$0xff]
        %1849 = vst.sshfl [vmem:[#allocation1] sm:$0xff pattern:$0x73625140] %v262
        %1850 = vst.sshfl [vmem:[#allocation1 + $0x20] sm:$0xff pattern:$0x73625140] %v263
        %v1851 = vld [vmem:[#allocation1] ss:$4 sm:$0xff]
        %v1852 = vld [vmem:[%s1828] ss:$4 sm:$0xff]
        %v1853 = vld [vmem:[%s1830] ss:$4 sm:$0xff]
        %v1854 = vld [vmem:[%s1832] ss:$4 sm:$0xff]
        %v1855 = vld [vmem:[%s1834] ss:$4 sm:$0xff]
        %v1856 = vld [vmem:[%s1836] ss:$4 sm:$0xff]
        %1857 = vst.sshfl [vmem:[#allocation1] sm:$0xff pattern:$0x73625140] %v264
        %1858 = vst.sshfl [vmem:[#allocation1 + $0x20] sm:$0xff pattern:$0x73625140] %v265
        %v1859 = vld [vmem:[%s1828] ss:$4 sm:$0xff]
        %v1860 = vld [vmem:[%s1830] ss:$4 sm:$0xff]
        %v1861 = vld [vmem:[%s1832] ss:$4 sm:$0xff]
        %v1862 = vld [vmem:[%s1834] ss:$4 sm:$0xff]
        %v1863 = vld [vmem:[%s1836] ss:$4 sm:$0xff]
        %v1864 = vld [vmem:[%s1838] ss:$4 sm:$0xff]
        %v1865 = vld [vmem:[%s1840] ss:$4 sm:$0xff]
        %1866 = vst.sshfl [vmem:[#allocation1] sm:$0xff pattern:$0x73625140] %v266
        %v1867 = vld [vmem:[#allocation1] ss:$4 sm:$0xff]
        %v1868 = vld [vmem:[%s1828] ss:$4 sm:$0xff]
        %1869 = vst.sshfl [vmem:[#allocation1 + $0x20] sm:$0xff pattern:$0x73625140] %v267
        %v1870 = vld [vmem:[%s1836] ss:$4 sm:$0xff]
        %v1871 = vld [vmem:[%s1838] ss:$4 sm:$0xff]
        %v1872 = vld [vmem:[%s1840] ss:$4 sm:$0xff]
        %1873 = vst.sshfl [vmem:[#allocation1] sm:$0xff pattern:$0x73625140] %v268
        %1874 = vst.sshfl [vmem:[#allocation1 + $0x20] sm:$0xff pattern:$0x73625140] %v269
        %v1875 = vld [vmem:[#allocation1] ss:$4 sm:$0xff]
        %v1876 = vld [vmem:[%s1828] ss:$4 sm:$0xff]
        %v1877 = vld [vmem:[%s1830] ss:$4 sm:$0xff]
        %v1878 = vld [vmem:[%s1832] ss:$4 sm:$0xff]
        %v1879 = vld [vmem:[%s1834] ss:$4 sm:$0xff]
        %v1880 = vld [vmem:[%s1836] ss:$4 sm:$0xff]
        %1881 = vst.sshfl [vmem:[#allocation1] sm:$0xff pattern:$0x73625140] %v270
        %1882 = vst.sshfl [vmem:[#allocation1 + $0x20] sm:$0xff pattern:$0x73625140] %v271
        %v1883 = vld [vmem:[%s1828] ss:$4 sm:$0xff]
        %v1884 = vld [vmem:[%s1830] ss:$4 sm:$0xff]
        %v1885 = vld [vmem:[%s1832] ss:$4 sm:$0xff]
        %v1886 = vld [vmem:[%s1834] ss:$4 sm:$0xff]
        %v1887 = vld [vmem:[%s1836] ss:$4 sm:$0xff]
        %v1888 = vld [vmem:[%s1838] ss:$4 sm:$0xff]
        %v1889 = vld [vmem:[%s1840] ss:$4 sm:$0xff]
        %1890 = vst.sshfl [vmem:[#allocation1] sm:$0xff pattern:$0x73625140] %v272
        %v1891 = vld [vmem:[#allocation1] ss:$4 sm:$0xff]
        %v1892 = vld [vmem:[%s1828] ss:$4 sm:$0xff]
        %1893 = vst.sshfl [vmem:[#allocation1 + $0x20] sm:$0xff pattern:$0x73625140] %v273
        %v1894 = vld [vmem:[%s1836] ss:$4 sm:$0xff]
        %v1895 = vld [vmem:[%s1838] ss:$4 sm:$0xff]
        %v1896 = vld [vmem:[%s1840] ss:$4 sm:$0xff]
        %1897 = vst.sshfl [vmem:[#allocation1] sm:$0xff pattern:$0x73625140] %v274
        %1898 = vst.sshfl [vmem:[#allocation1 + $0x20] sm:$0xff pattern:$0x73625140] %v275
        %v1899 = vld [vmem:[#allocation1] ss:$4 sm:$0xff]
        %v1900 = vld [vmem:[%s1828] ss:$4 sm:$0xff]
        %v1901 = vld [vmem:[%s1830] ss:$4 sm:$0xff]
        %v1902 = vld [vmem:[%s1832] ss:$4 sm:$0xff]
        %v1903 = vld [vmem:[%s1834] ss:$4 sm:$0xff]
        %v1904 = vld [vmem:[%s1836] ss:$4 sm:$0xff]
        %1905 = vst.sshfl [vmem:[#allocation1] sm:$0xff pattern:$0x73625140] %v276
        %1906 = vst.sshfl [vmem:[#allocation1 + $0x20] sm:$0xff pattern:$0x73625140] %v277
        %v1907 = vld [vmem:[%s1828] ss:$4 sm:$0xff]
        %v1908 = vld [vmem:[%s1830] ss:$4 sm:$0xff]
        %v1909 = vld [vmem:[%s1832] ss:$4 sm:$0xff]
        %v1910 = vld [vmem:[%s1834] ss:$4 sm:$0xff]
        %v1911 = vld [vmem:[%s1836] ss:$4 sm:$0xff]
        %v1912 = vld [vmem:[%s1838] ss:$4 sm:$0xff]
        %v1913 = vld [vmem:[%s1840] ss:$4 sm:$0xff]
        %1914 = vst.sshfl [vmem:[#allocation1] sm:$0xff pattern:$0x73625140] %v278
        %v1915 = vld [vmem:[#allocation1] ss:$4 sm:$0xff]
        %v1916 = vld [vmem:[%s1828] ss:$4 sm:$0xff]
        %1917 = vst.sshfl [vmem:[#allocation1 + $0x20] sm:$0xff pattern:$0x73625140] %v279
        %v1918 = vld [vmem:[%s1836] ss:$4 sm:$0xff]
        %v1919 = vld [vmem:[%s1838] ss:$4 sm:$0xff]
        %v1920 = vld [vmem:[%s1840] ss:$4 sm:$0xff]
        %1921 = vst.sshfl [vmem:[#allocation1] sm:$0xff pattern:$0x73625140] %v280
        %1922 = vst.sshfl [vmem:[#allocation1 + $0x20] sm:$0xff pattern:$0x73625140] %v281
        %v1923 = vld [vmem:[#allocation1] ss:$4 sm:$0xff]
        %v1924 = vld [vmem:[%s1828] ss:$4 sm:$0xff]
        %v1925 = vld [vmem:[%s1830] ss:$4 sm:$0xff]
        %v1926 = vld [vmem:[%s1832] ss:$4 sm:$0xff]
        %v1927 = vld [vmem:[%s1834] ss:$4 sm:$0xff]
        %v1928 = vld [vmem:[%s1836] ss:$4 sm:$0xff]
        %1929 = vst.sshfl [vmem:[#allocation1] sm:$0xff pattern:$0x73625140] %v282
        %1930 = vst.sshfl [vmem:[#allocation1 + $0x20] sm:$0xff pattern:$0x73625140] %v283
        %v1931 = vld [vmem:[%s1828] ss:$4 sm:$0xff]
        %v1932 = vld [vmem:[%s1830] ss:$4 sm:$0xff]
        %v1933 = vld [vmem:[%s1832] ss:$4 sm:$0xff]
        %v1934 = vld [vmem:[%s1834] ss:$4 sm:$0xff]
        %v1935 = vld [vmem:[%s1836] ss:$4 sm:$0xff]
        %v1936 = vld [vmem:[%s1838] ss:$4 sm:$0xff]
        %v1937 = vld [vmem:[%s1840] ss:$4 sm:$0xff]
        %1938 = vst.sshfl [vmem:[#allocation1] sm:$0xff pattern:$0x73625140] %v284
        %v1939 = vld [vmem:[#allocation1] ss:$4 sm:$0xff]
        %v1940 = vld [vmem:[%s1828] ss:$4 sm:$0xff]
        %1941 = vst.sshfl [vmem:[#allocation1 + $0x20] sm:$0xff pattern:$0x73625140] %v285
        %v1942 = vld [vmem:[%s1836] ss:$4 sm:$0xff]
        %v1943 = vld [vmem:[%s1838] ss:$4 sm:$0xff]
        %v1944 = vld [vmem:[%s1840] ss:$4 sm:$0xff]
        %1945 = vst.sshfl [vmem:[#allocation1] sm:$0xff pattern:$0x73625140] %v286
        %1946 = vst.sshfl [vmem:[#allocation1 + $0x20] sm:$0xff pattern:$0x73625140] %v287
        %v1947 = vld [vmem:[#allocation1] ss:$4 sm:$0xff]
        %v1948 = vld [vmem:[%s1828] ss:$4 sm:$0xff]
        %v1949 = vld [vmem:[%s1830] ss:$4 sm:$0xff]
        %v1950 = vld [vmem:[%s1832] ss:$4 sm:$0xff]
        %v1951 = vld [vmem:[%s1834] ss:$4 sm:$0xff]
        %v1952 = vld [vmem:[%s1836] ss:$4 sm:$0xff]
        %1953 = vst.sshfl [vmem:[#allocation1] sm:$0xff pattern:$0x73625140] %v288
        %1954 = vst.sshfl [vmem:[#allocation1 + $0x20] sm:$0xff pattern:$0x73625140] %v289
        %v1955 = vld [vmem:[%s1828] ss:$4 sm:$0xff]
        %v1956 = vld [vmem:[%s1830] ss:$4 sm:$0xff]
        %v1957 = vld [vmem:[%s1832] ss:$4 sm:$0xff]
        %v1958 = vld [vmem:[%s1834] ss:$4 sm:$0xff]
        %v1959 = vld [vmem:[%s1836] ss:$4 sm:$0xff]
        %v1960 = vld [vmem:[%s1838] ss:$4 sm:$0xff]
        %v1961 = vld [vmem:[%s1840] ss:$4 sm:$0xff]
        %1962 = vst.sshfl [vmem:[#allocation1] sm:$0xff pattern:$0x73625140] %v290
        %v1963 = vld [vmem:[#allocation1] ss:$4 sm:$0xff]
        %v1964 = vld [vmem:[%s1828] ss:$4 sm:$0xff]
        %1965 = vst.sshfl [vmem:[#allocation1 + $0x20] sm:$0xff pattern:$0x73625140] %v291
        %v1966 = vld [vmem:[%s1836] ss:$4 sm:$0xff]
        %v1967 = vld [vmem:[%s1838] ss:$4 sm:$0xff]
        %v1968 = vld [vmem:[%s1840] ss:$4 sm:$0xff]
        %1969 = vst.sshfl [vmem:[#allocation1] sm:$0xff pattern:$0x73625140] %v292
        %1970 = vst.sshfl [vmem:[#allocation1 + $0x20] sm:$0xff pattern:$0x73625140] %v293
        %v1971 = vld [vmem:[#allocation1] ss:$4 sm:$0xff]
        %v1972 = vld [vmem:[%s1828] ss:$4 sm:$0xff]
        %v1973 = vld [vmem:[%s1830] ss:$4 sm:$0xff]
        %v1974 = vld [vmem:[%s1832] ss:$4 sm:$0xff]
        %v1975 = vld [vmem:[%s1834] ss:$4 sm:$0xff]
        %v1976 = vld [vmem:[%s1836] ss:$4 sm:$0xff]
        %1977 = vst.sshfl [vmem:[#allocation1] sm:$0xff pattern:$0x73625140] %v294
        %1978 = vst.sshfl [vmem:[#allocation1 + $0x20] sm:$0xff pattern:$0x73625140] %v295
        %v1979 = vld [vmem:[%s1828] ss:$4 sm:$0xff]
        %v1980 = vld [vmem:[%s1830] ss:$4 sm:$0xff]
        %v1981 = vld [vmem:[%s1832] ss:$4 sm:$0xff]
        %v1982 = vld [vmem:[%s1834] ss:$4 sm:$0xff]
        %v1983 = vld [vmem:[%s1836] ss:$4 sm:$0xff]
        %v1984 = vld [vmem:[%s1838] ss:$4 sm:$0xff]
        %v1985 = vld [vmem:[%s1840] ss:$4 sm:$0xff]
        %1986 = vst.sshfl [vmem:[#allocation1] sm:$0xff pattern:$0x73625140] %v296
        %v1987 = vld [vmem:[#allocation1] ss:$4 sm:$0xff]
        %v1988 = vld [vmem:[%s1828] ss:$4 sm:$0xff]
        %1989 = vst.sshfl [vmem:[#allocation1 + $0x20] sm:$0xff pattern:$0x73625140] %v297
        %v1990 = vld [vmem:[%s1836] ss:$4 sm:$0xff]
        %v1991 = vld [vmem:[%s1838] ss:$4 sm:$0xff]
        %v1992 = vld [vmem:[%s1840] ss:$4 sm:$0xff]
        %1993 = vst.sshfl [vmem:[#allocation1] sm:$0xff pattern:$0x73625140] %v298
        %1994 = vst.sshfl [vmem:[#allocation1 + $0x20] sm:$0xff pattern:$0x73625140] %v299
        %v1995 = vld [vmem:[#allocation1] ss:$4 sm:$0xff]
        %v1996 = vld [vmem:[%s1828] ss:$4 sm:$0xff]
        %v1997 = vld [vmem:[%s1830] ss:$4 sm:$0xff]
        %v1998 = vld [vmem:[%s1832] ss:$4 sm:$0xff]
        %v1999 = vld [vmem:[%s1834] ss:$4 sm:$0xff]
        %v2000 = vld [vmem:[%s1836] ss:$4 sm:$0xff]
        %2001 = vst.sshfl [vmem:[#allocation1] sm:$0xff pattern:$0x73625140] %v300
        %2002 = vst.sshfl [vmem:[#allocation1 + $0x20] sm:$0xff pattern:$0x73625140] %v301
        %v2003 = vld [vmem:[%s1828] ss:$4 sm:$0xff]
        %v2004 = vld [vmem:[%s1830] ss:$4 sm:$0xff]
        %v2005 = vld [vmem:[%s1832] ss:$4 sm:$0xff]
        %v2006 = vld [vmem:[%s1834] ss:$4 sm:$0xff]
        %v2007 = vld [vmem:[%s1836] ss:$4 sm:$0xff]
        %v2008 = vld [vmem:[%s1838] ss:$4 sm:$0xff]
        %v2009 = vld [vmem:[%s1840] ss:$4 sm:$0xff]
        %2010 = vst.sshfl [vmem:[#allocation1] sm:$0xff pattern:$0x73625140] %v302
        %v2011 = vld [vmem:[#allocation1] ss:$4 sm:$0xff]
        %v2012 = vld [vmem:[%s1828] ss:$4 sm:$0xff]
        %2013 = vst.sshfl [vmem:[#allocation1 + $0x20] sm:$0xff pattern:$0x73625140] %v303
        %v2014 = vld [vmem:[%s1836] ss:$4 sm:$0xff]
        %v2015 = vld [vmem:[%s1838] ss:$4 sm:$0xff]
        %v2016 = vld [vmem:[%s1840] ss:$4 sm:$0xff]
        %2017 = vst.sshfl [vmem:[#allocation1] sm:$0xff pattern:$0x73625140] %v304
        %2018 = vst.sshfl [vmem:[#allocation1 + $0x20] sm:$0xff pattern:$0x73625140] %v305
        %v2019 = vld [vmem:[#allocation1] ss:$4 sm:$0xff]
        %v2020 = vld [vmem:[%s1828] ss:$4 sm:$0xff]
        %v2021 = vld [vmem:[%s1830] ss:$4 sm:$0xff]
        %v2022 = vld [vmem:[%s1832] ss:$4 sm:$0xff]
        %v2023 = vld [vmem:[%s1834] ss:$4 sm:$0xff]
        %v2024 = vld [vmem:[%s1836] ss:$4 sm:$0xff]
        %2025 = vst.sshfl [vmem:[#allocation1] sm:$0xff pattern:$0x73625140] %v306
        %2026 = vst.sshfl [vmem:[#allocation1 + $0x20] sm:$0xff pattern:$0x73625140] %v307
        %v2027 = vld [vmem:[%s1828] ss:$4 sm:$0xff]
        %v2028 = vld [vmem:[%s1830] ss:$4 sm:$0xff]
        %v2029 = vld [vmem:[%s1832] ss:$4 sm:$0xff]
        %v2030 = vld [vmem:[%s1834] ss:$4 sm:$0xff]
        %v2031 = vld [vmem:[%s1836] ss:$4 sm:$0xff]
        %v2032 = vld [vmem:[%s1838] ss:$4 sm:$0xff]
        %v2033 = vld [vmem:[%s1840] ss:$4 sm:$0xff]
        %2034 = vst.sshfl [vmem:[#allocation1] sm:$0xff pattern:$0x73625140] %v308
        %v2035 = vld [vmem:[#allocation1] ss:$4 sm:$0xff]
        %v2036 = vld [vmem:[%s1828] ss:$4 sm:$0xff]
        %2037 = vst.sshfl [vmem:[#allocation1 + $0x20] sm:$0xff pattern:$0x73625140] %v309
        %v2038 = vld [vmem:[%s1836] ss:$4 sm:$0xff]
        %v2039 = vld [vmem:[%s1838] ss:$4 sm:$0xff]
        %v2040 = vld [vmem:[%s1840] ss:$4 sm:$0xff]
        %2041 = vst.sshfl [vmem:[#allocation1] sm:$0xff pattern:$0x73625140] %v310
        %2042 = vst.sshfl [vmem:[#allocation1 + $0x20] sm:$0xff pattern:$0x73625140] %v311
        %v2043 = vld [vmem:[#allocation1] ss:$4 sm:$0xff]
        %v2044 = vld [vmem:[%s1828] ss:$4 sm:$0xff]
        %v2045 = vld [vmem:[%s1830] ss:$4 sm:$0xff]
        %v2046 = vld [vmem:[%s1832] ss:$4 sm:$0xff]
        %v2047 = vld [vmem:[%s1834] ss:$4 sm:$0xff]
        %v2048 = vld [vmem:[%s1836] ss:$4 sm:$0xff]
        %s2049 = scalar_lea.vmem %s1, 256
        %v2050 = vld [vmem:[%s2049] sm:$0xff]
        %v2051 = vld [vmem:[%s2049 + $0x8] sm:$0xff]
        %v2052 = vld [vmem:[%s2049 + $0x10] sm:$0xff]
        %v2053 = vld [vmem:[%s2049 + $0x18] sm:$0xff]
        %v2054 = vld [vmem:[%s2049 + $0x20] sm:$0xff]
        %v2055 = vld [vmem:[%s2049 + $0x28] sm:$0xff]
        %v2056 = vld [vmem:[%s2049 + $0x30] sm:$0xff]
        %v2057 = vld [vmem:[%s2049 + $0x38] sm:$0xff]
        %v2058 = vld [vmem:[%s2049 + $0x40] sm:$0xff]
        %v2059 = vld [vmem:[%s2049 + $0x48] sm:$0xff]
        %v2060 = vld [vmem:[%s2049 + $0x50] sm:$0xff]
        %v2061 = vld [vmem:[%s2049 + $0x58] sm:$0xff]
        %v2062 = vld [vmem:[%s2049 + $0x60] sm:$0xff]
        %v2063 = vld [vmem:[%s2049 + $0x68] sm:$0xff]
        %v2064 = vld [vmem:[%s2049 + $0x70] sm:$0xff]
        %v2065 = vld [vmem:[%s2049 + $0x78] sm:$0xff]
        %2066 = vst [vmem:[#allocation1] ss:$4 sm:$0xff] %v1829
        %s2067 = scalar_lea.vmem [#allocation1], 1
        %2068 = vst [vmem:[%s2067] ss:$4 sm:$0xff] %v1831
        %s2069 = scalar_lea.vmem [#allocation1], 2
        %2070 = vst [vmem:[%s2069] ss:$4 sm:$0xff] %v1833
        %s2071 = scalar_lea.vmem [#allocation1], 3
        %2072 = vst [vmem:[%s2071] ss:$4 sm:$0xff] %v1835
        %s2073 = scalar_lea.vmem [#allocation1], 32
        %2074 = vst [vmem:[%s2073] ss:$4 sm:$0xff] %v1837
        %s2075 = scalar_lea.vmem [#allocation1], 33
        %2076 = vst [vmem:[%s2075] ss:$4 sm:$0xff] %v1839
        %s2077 = scalar_lea.vmem [#allocation1], 34
        %2078 = vst [vmem:[%s2077] ss:$4 sm:$0xff] %v1841
        %s2079 = scalar_lea.vmem [#allocation1], 35
        %2080 = vst [vmem:[%s2079] ss:$4 sm:$0xff] %v1843
        %v2081 = vld.sshfl [vmem:[#allocation1] sm:$0xff pattern:$0x73625140]
        %v2082 = vld.sshfl [vmem:[#allocation1 + $0x20] sm:$0xff pattern:$0x73625140]
        %2083 = vst [vmem:[#allocation1] ss:$4 sm:$0xff] %v1844
        %2084 = vst [vmem:[%s2067] ss:$4 sm:$0xff] %v1846
        %2085 = vst [vmem:[%s2069] ss:$4 sm:$0xff] %v1847
        %2086 = vst [vmem:[%s2071] ss:$4 sm:$0xff] %v1848
        %2087 = vst [vmem:[%s2073] ss:$4 sm:$0xff] %v1851
        %2088 = vst [vmem:[%s2075] ss:$4 sm:$0xff] %v1852
        %2089 = vst [vmem:[%s2077] ss:$4 sm:$0xff] %v1853
        %2090 = vst [vmem:[%s2079] ss:$4 sm:$0xff] %v1854
        %v2091 = vld.sshfl [vmem:[#allocation1] sm:$0xff pattern:$0x73625140]
        %v2092 = vld.sshfl [vmem:[#allocation1 + $0x20] sm:$0xff pattern:$0x73625140]
        %2093 = vst [vmem:[#allocation1] ss:$4 sm:$0xff] %v1855
        %2094 = vst [vmem:[%s2067] ss:$4 sm:$0xff] %v1856
        %2095 = vst [vmem:[%s2069] ss:$4 sm:$0xff] %v1859
        %2096 = vst [vmem:[%s2071] ss:$4 sm:$0xff] %v1860
        %2097 = vst [vmem:[%s2073] ss:$4 sm:$0xff] %v1861
        %2098 = vst [vmem:[%s2075] ss:$4 sm:$0xff] %v1862
        %2099 = vst [vmem:[%s2077] ss:$4 sm:$0xff] %v1863
        %2100 = vst [vmem:[%s2079] ss:$4 sm:$0xff] %v1864
        %v2101 = vld.sshfl [vmem:[#allocation1] sm:$0xff pattern:$0x73625140]
        %v2102 = vld.sshfl [vmem:[#allocation1 + $0x20] sm:$0xff pattern:$0x73625140]
        %2103 = vst [vmem:[#allocation1] ss:$4 sm:$0xff] %v1865
        %2104 = vst [vmem:[%s2067] ss:$4 sm:$0xff] %v1867
        %2105 = vst [vmem:[%s2069] ss:$4 sm:$0xff] %v1868
        %2106 = vst [vmem:[%s2071] ss:$4 sm:$0xff] %v1870
        %2107 = vst [vmem:[%s2073] ss:$4 sm:$0xff] %v1871
        %2108 = vst [vmem:[%s2075] ss:$4 sm:$0xff] %v1872
        %2109 = vst [vmem:[%s2077] ss:$4 sm:$0xff] %v1875
        %2110 = vst [vmem:[%s2079] ss:$4 sm:$0xff] %v1876
        %v2111 = vld.sshfl [vmem:[#allocation1] sm:$0xff pattern:$0x73625140]
        %v2112 = vld.sshfl [vmem:[#allocation1 + $0x20] sm:$0xff pattern:$0x73625140]
        %2113 = vst [vmem:[#allocation1] ss:$4 sm:$0xff] %v1877
        %2114 = vst [vmem:[%s2067] ss:$4 sm:$0xff] %v1878
        %2115 = vst [vmem:[%s2069] ss:$4 sm:$0xff] %v1879
        %2116 = vst [vmem:[%s2071] ss:$4 sm:$0xff] %v1880
        %2117 = vst [vmem:[%s2073] ss:$4 sm:$0xff] %v1883
        %2118 = vst [vmem:[%s2075] ss:$4 sm:$0xff] %v1884
        %2119 = vst [vmem:[%s2077] ss:$4 sm:$0xff] %v1885
        %2120 = vst [vmem:[%s2079] ss:$4 sm:$0xff] %v1886
        %v2121 = vld.sshfl [vmem:[#allocation1] sm:$0xff pattern:$0x73625140]
        %v2122 = vld.sshfl [vmem:[#allocation1 + $0x20] sm:$0xff pattern:$0x73625140]
        %2123 = vst [vmem:[#allocation1] ss:$4 sm:$0xff] %v1887
        %2124 = vst [vmem:[%s2067] ss:$4 sm:$0xff] %v1888
        %2125 = vst [vmem:[%s2069] ss:$4 sm:$0xff] %v1889
        %2126 = vst [vmem:[%s2071] ss:$4 sm:$0xff] %v1891
        %2127 = vst [vmem:[%s2073] ss:$4 sm:$0xff] %v1892
        %2128 = vst [vmem:[%s2075] ss:$4 sm:$0xff] %v1894
        %2129 = vst [vmem:[%s2077] ss:$4 sm:$0xff] %v1895
        %2130 = vst [vmem:[%s2079] ss:$4 sm:$0xff] %v1896
        %v2131 = vld.sshfl [vmem:[#allocation1] sm:$0xff pattern:$0x73625140]
        %v2132 = vld.sshfl [vmem:[#allocation1 + $0x20] sm:$0xff pattern:$0x73625140]
        %2133 = vst [vmem:[#allocation1] ss:$4 sm:$0xff] %v1899
        %2134 = vst [vmem:[%s2067] ss:$4 sm:$0xff] %v1900
        %2135 = vst [vmem:[%s2069] ss:$4 sm:$0xff] %v1901
        %2136 = vst [vmem:[%s2071] ss:$4 sm:$0xff] %v1902
        %2137 = vst [vmem:[%s2073] ss:$4 sm:$0xff] %v1903
        %2138 = vst [vmem:[%s2075] ss:$4 sm:$0xff] %v1904
        %2139 = vst [vmem:[%s2077] ss:$4 sm:$0xff] %v1907
        %2140 = vst [vmem:[%s2079] ss:$4 sm:$0xff] %v1908
        %v2141 = vld.sshfl [vmem:[#allocation1] sm:$0xff pattern:$0x73625140]
        %v2142 = vld.sshfl [vmem:[#allocation1 + $0x20] sm:$0xff pattern:$0x73625140]
        %2143 = vst [vmem:[#allocation1] ss:$4 sm:$0xff] %v1909
        %2144 = vst [vmem:[%s2067] ss:$4 sm:$0xff] %v1910
        %2145 = vst [vmem:[%s2069] ss:$4 sm:$0xff] %v1911
        %2146 = vst [vmem:[%s2071] ss:$4 sm:$0xff] %v1912
        %2147 = vst [vmem:[%s2073] ss:$4 sm:$0xff] %v1913
        %2148 = vst [vmem:[%s2075] ss:$4 sm:$0xff] %v1915
        %2149 = vst [vmem:[%s2077] ss:$4 sm:$0xff] %v1916
        %2150 = vst [vmem:[%s2079] ss:$4 sm:$0xff] %v1918
        %v2151 = vld.sshfl [vmem:[#allocation1] sm:$0xff pattern:$0x73625140]
        %v2152 = vld.sshfl [vmem:[#allocation1 + $0x20] sm:$0xff pattern:$0x73625140]
        %2153 = vst [vmem:[#allocation1] ss:$4 sm:$0xff] %v1919
        %2154 = vst [vmem:[%s2067] ss:$4 sm:$0xff] %v1920
        %2155 = vst [vmem:[%s2069] ss:$4 sm:$0xff] %v1923
        %2156 = vst [vmem:[%s2071] ss:$4 sm:$0xff] %v1924
        %2157 = vst [vmem:[%s2073] ss:$4 sm:$0xff] %v1925
        %2158 = vst [vmem:[%s2075] ss:$4 sm:$0xff] %v1926
        %2159 = vst [vmem:[%s2077] ss:$4 sm:$0xff] %v1927
        %2160 = vst [vmem:[%s2079] ss:$4 sm:$0xff] %v1928
        %v2161 = vld.sshfl [vmem:[#allocation1] sm:$0xff pattern:$0x73625140]
        %v2162 = vld.sshfl [vmem:[#allocation1 + $0x20] sm:$0xff pattern:$0x73625140]
        %2163 = vst [vmem:[#allocation1] ss:$4 sm:$0xff] %v1931
        %2164 = vst [vmem:[%s2067] ss:$4 sm:$0xff] %v1932
        %2165 = vst [vmem:[%s2069] ss:$4 sm:$0xff] %v1933
        %2166 = vst [vmem:[%s2071] ss:$4 sm:$0xff] %v1934
        %2167 = vst [vmem:[%s2073] ss:$4 sm:$0xff] %v1935
        %2168 = vst [vmem:[%s2075] ss:$4 sm:$0xff] %v1936
        %2169 = vst [vmem:[%s2077] ss:$4 sm:$0xff] %v1937
        %2170 = vst [vmem:[%s2079] ss:$4 sm:$0xff] %v1939
        %v2171 = vld.sshfl [vmem:[#allocation1] sm:$0xff pattern:$0x73625140]
        %v2172 = vld.sshfl [vmem:[#allocation1 + $0x20] sm:$0xff pattern:$0x73625140]
        %2173 = vst [vmem:[#allocation1] ss:$4 sm:$0xff] %v1940
        %2174 = vst [vmem:[%s2067] ss:$4 sm:$0xff] %v1942
        %2175 = vst [vmem:[%s2069] ss:$4 sm:$0xff] %v1943
        %2176 = vst [vmem:[%s2071] ss:$4 sm:$0xff] %v1944
        %2177 = vst [vmem:[%s2073] ss:$4 sm:$0xff] %v1947
        %2178 = vst [vmem:[%s2075] ss:$4 sm:$0xff] %v1948
        %2179 = vst [vmem:[%s2077] ss:$4 sm:$0xff] %v1949
        %2180 = vst [vmem:[%s2079] ss:$4 sm:$0xff] %v1950
        %v2181 = vld.sshfl [vmem:[#allocation1] sm:$0xff pattern:$0x73625140]
        %v2182 = vld.sshfl [vmem:[#allocation1 + $0x20] sm:$0xff pattern:$0x73625140]
        %2183 = vst [vmem:[#allocation1] ss:$4 sm:$0xff] %v1951
        %2184 = vst [vmem:[%s2067] ss:$4 sm:$0xff] %v1952
        %2185 = vst [vmem:[%s2069] ss:$4 sm:$0xff] %v1955
        %2186 = vst [vmem:[%s2071] ss:$4 sm:$0xff] %v1956
        %2187 = vst [vmem:[%s2073] ss:$4 sm:$0xff] %v1957
        %2188 = vst [vmem:[%s2075] ss:$4 sm:$0xff] %v1958
        %2189 = vst [vmem:[%s2077] ss:$4 sm:$0xff] %v1959
        %2190 = vst [vmem:[%s2079] ss:$4 sm:$0xff] %v1960
        %v2191 = vld.sshfl [vmem:[#allocation1] sm:$0xff pattern:$0x73625140]
        %v2192 = vld.sshfl [vmem:[#allocation1 + $0x20] sm:$0xff pattern:$0x73625140]
        %2193 = vst [vmem:[#allocation1] ss:$4 sm:$0xff] %v1961
        %2194 = vst [vmem:[%s2067] ss:$4 sm:$0xff] %v1963
        %2195 = vst [vmem:[%s2069] ss:$4 sm:$0xff] %v1964
        %2196 = vst [vmem:[%s2071] ss:$4 sm:$0xff] %v1966
        %2197 = vst [vmem:[%s2073] ss:$4 sm:$0xff] %v1967
        %2198 = vst [vmem:[%s2075] ss:$4 sm:$0xff] %v1968
        %2199 = vst [vmem:[%s2077] ss:$4 sm:$0xff] %v1971
        %2200 = vst [vmem:[%s2079] ss:$4 sm:$0xff] %v1972
        %v2201 = vld.sshfl [vmem:[#allocation1] sm:$0xff pattern:$0x73625140]
        %v2202 = vld.sshfl [vmem:[#allocation1 + $0x20] sm:$0xff pattern:$0x73625140]
        %2203 = vst [vmem:[#allocation1] ss:$4 sm:$0xff] %v1973
        %2204 = vst [vmem:[%s2067] ss:$4 sm:$0xff] %v1974
        %2205 = vst [vmem:[%s2069] ss:$4 sm:$0xff] %v1975
        %2206 = vst [vmem:[%s2071] ss:$4 sm:$0xff] %v1976
        %2207 = vst [vmem:[%s2073] ss:$4 sm:$0xff] %v1979
        %2208 = vst [vmem:[%s2075] ss:$4 sm:$0xff] %v1980
        %2209 = vst [vmem:[%s2077] ss:$4 sm:$0xff] %v1981
        %2210 = vst [vmem:[%s2079] ss:$4 sm:$0xff] %v1982
        %v2211 = vld.sshfl [vmem:[#allocation1] sm:$0xff pattern:$0x73625140]
        %v2212 = vld.sshfl [vmem:[#allocation1 + $0x20] sm:$0xff pattern:$0x73625140]
        %2213 = vst [vmem:[#allocation1] ss:$4 sm:$0xff] %v1983
        %2214 = vst [vmem:[%s2067] ss:$4 sm:$0xff] %v1984
        %2215 = vst [vmem:[%s2069] ss:$4 sm:$0xff] %v1985
        %2216 = vst [vmem:[%s2071] ss:$4 sm:$0xff] %v1987
        %2217 = vst [vmem:[%s2073] ss:$4 sm:$0xff] %v1988
        %2218 = vst [vmem:[%s2075] ss:$4 sm:$0xff] %v1990
        %2219 = vst [vmem:[%s2077] ss:$4 sm:$0xff] %v1991
        %2220 = vst [vmem:[%s2079] ss:$4 sm:$0xff] %v1992
        %v2221 = vld.sshfl [vmem:[#allocation1] sm:$0xff pattern:$0x73625140]
        %v2222 = vld.sshfl [vmem:[#allocation1 + $0x20] sm:$0xff pattern:$0x73625140]
        %2223 = vst [vmem:[#allocation1] ss:$4 sm:$0xff] %v1995
        %2224 = vst [vmem:[%s2067] ss:$4 sm:$0xff] %v1996
        %2225 = vst [vmem:[%s2069] ss:$4 sm:$0xff] %v1997
        %2226 = vst [vmem:[%s2071] ss:$4 sm:$0xff] %v1998
        %2227 = vst [vmem:[%s2073] ss:$4 sm:$0xff] %v1999
        %2228 = vst [vmem:[%s2075] ss:$4 sm:$0xff] %v2000
        %2229 = vst [vmem:[%s2077] ss:$4 sm:$0xff] %v2003
        %2230 = vst [vmem:[%s2079] ss:$4 sm:$0xff] %v2004
        %v2231 = vld.sshfl [vmem:[#allocation1] sm:$0xff pattern:$0x73625140]
        %v2232 = vld.sshfl [vmem:[#allocation1 + $0x20] sm:$0xff pattern:$0x73625140]
        %2233 = vst [vmem:[#allocation1] ss:$4 sm:$0xff] %v2005
        %2234 = vst [vmem:[%s2067] ss:$4 sm:$0xff] %v2006
        %2235 = vst [vmem:[%s2069] ss:$4 sm:$0xff] %v2007
        %2236 = vst [vmem:[%s2071] ss:$4 sm:$0xff] %v2008
        %2237 = vst [vmem:[%s2073] ss:$4 sm:$0xff] %v2009
        %2238 = vst [vmem:[%s2075] ss:$4 sm:$0xff] %v2011
        %2239 = vst [vmem:[%s2077] ss:$4 sm:$0xff] %v2012
        %2240 = vst [vmem:[%s2079] ss:$4 sm:$0xff] %v2014
        %v2241 = vld.sshfl [vmem:[#allocation1] sm:$0xff pattern:$0x73625140]
        %v2242 = vld.sshfl [vmem:[#allocation1 + $0x20] sm:$0xff pattern:$0x73625140]
        %2243 = vst [vmem:[#allocation1] ss:$4 sm:$0xff] %v2015
        %2244 = vst [vmem:[%s2067] ss:$4 sm:$0xff] %v2016
        %2245 = vst [vmem:[%s2069] ss:$4 sm:$0xff] %v2019
        %2246 = vst [vmem:[%s2071] ss:$4 sm:$0xff] %v2020
        %2247 = vst [vmem:[%s2073] ss:$4 sm:$0xff] %v2021
        %2248 = vst [vmem:[%s2075] ss:$4 sm:$0xff] %v2022
        %2249 = vst [vmem:[%s2077] ss:$4 sm:$0xff] %v2023
        %2250 = vst [vmem:[%s2079] ss:$4 sm:$0xff] %v2024
        %v2251 = vld.sshfl [vmem:[#allocation1] sm:$0xff pattern:$0x73625140]
        %v2252 = vld.sshfl [vmem:[#allocation1 + $0x20] sm:$0xff pattern:$0x73625140]
        %2253 = vst [vmem:[#allocation1] ss:$4 sm:$0xff] %v2027
        %2254 = vst [vmem:[%s2067] ss:$4 sm:$0xff] %v2028
        %2255 = vst [vmem:[%s2069] ss:$4 sm:$0xff] %v2029
        %2256 = vst [vmem:[%s2071] ss:$4 sm:$0xff] %v2030
        %2257 = vst [vmem:[%s2073] ss:$4 sm:$0xff] %v2031
        %2258 = vst [vmem:[%s2075] ss:$4 sm:$0xff] %v2032
        %2259 = vst [vmem:[%s2077] ss:$4 sm:$0xff] %v2033
        %2260 = vst [vmem:[%s2079] ss:$4 sm:$0xff] %v2035
        %v2261 = vld.sshfl [vmem:[#allocation1] sm:$0xff pattern:$0x73625140]
        %v2262 = vld.sshfl [vmem:[#allocation1 + $0x20] sm:$0xff pattern:$0x73625140]
        %2263 = vst [vmem:[#allocation1] ss:$4 sm:$0xff] %v2036
        %2264 = vst [vmem:[%s2067] ss:$4 sm:$0xff] %v2038
        %2265 = vst [vmem:[%s2069] ss:$4 sm:$0xff] %v2039
        %2266 = vst [vmem:[%s2071] ss:$4 sm:$0xff] %v2040
        %2267 = vst [vmem:[%s2073] ss:$4 sm:$0xff] %v2043
        %2268 = vst [vmem:[%s2075] ss:$4 sm:$0xff] %v2044
        %2269 = vst [vmem:[%s2077] ss:$4 sm:$0xff] %v2045
        %2270 = vst [vmem:[%s2079] ss:$4 sm:$0xff] %v2046
        %v2271 = vld.sshfl [vmem:[#allocation1] sm:$0xff pattern:$0x73625140]
        %v2272 = vld.sshfl [vmem:[#allocation1 + $0x20] sm:$0xff pattern:$0x73625140]
        %2273 = vst [vmem:[#allocation1] ss:$4 sm:$0xff] %v2047
        %2274 = vst [vmem:[%s2067] ss:$4 sm:$0xff] %v2048
        %v2275 = vld.sshfl [vmem:[#allocation1] sm:$0xff pattern:$0x73625140]
        %2317 = vmatpush.msra.mxu0 %v2065
        %2318 = vmatpush.msra.mxu0 %v2064
        %2319 = vmatpush.msra.mxu0 %v2063
        %2320 = vmatpush.msra.mxu0 %v2062
        %2321 = vmatpush.msra.mxu0 %v2061
        %2322 = vmatpush.msra.mxu0 %v2060
        %2323 = vmatpush.msra.mxu0 %v2059
        %2324 = vmatpush.msra.mxu0 %v2058
        %2325 = vmatpush.msra.mxu0 %v2057
        %2326 = vmatpush.msra.mxu0 %v2056
        %2327 = vmatpush.msra.mxu0 %v2055
        %2328 = vmatpush.msra.mxu0 %v2054
        %2329 = vmatpush.msra.mxu0 %v2053
        %2330 = vmatpush.msra.mxu0 %v2052
        %2331 = vmatpush.msra.mxu0 %v2051
        %2332 = vmatpush.msra.mxu0 %v2050
        %2333 = vmatmul.f32.gmra.mxu0 %v2081
        %v2334 = vpop.f32.mrf.mxu0
        %v2335 = vadd.f32 0.0, %v2334
        %2336 = vmatmul.f32.gmra.mxu0 %v2082
        %v2337 = vpop.f32.mrf.mxu0
        %v2338 = vadd.f32 0.0, %v2337
        %2339 = vmatmul.f32.gmra.mxu0 %v2091
        %v2340 = vpop.f32.mrf.mxu0
        %v2341 = vadd.f32 0.0, %v2340
        %2342 = vmatmul.f32.gmra.mxu0 %v2092
        %v2343 = vpop.f32.mrf.mxu0
        %v2344 = vadd.f32 0.0, %v2343
        %2345 = vmatmul.f32.gmra.mxu0 %v2101
        %v2346 = vpop.f32.mrf.mxu0
        %v2347 = vadd.f32 0.0, %v2346
        %2348 = vmatmul.f32.gmra.mxu0 %v2102
        %v2349 = vpop.f32.mrf.mxu0
        %v2350 = vadd.f32 0.0, %v2349
        %2351 = vmatmul.f32.gmra.mxu0 %v2111
        %v2352 = vpop.f32.mrf.mxu0
        %v2353 = vadd.f32 0.0, %v2352
        %2354 = vmatmul.f32.gmra.mxu0 %v2112
        %v2355 = vpop.f32.mrf.mxu0
        %v2356 = vadd.f32 0.0, %v2355
        %2357 = vmatmul.f32.gmra.mxu0 %v2121
        %v2358 = vpop.f32.mrf.mxu0
        %v2359 = vadd.f32 0.0, %v2358
        %2360 = vmatmul.f32.gmra.mxu0 %v2122
        %v2361 = vpop.f32.mrf.mxu0
        %v2362 = vadd.f32 0.0, %v2361
        %2363 = vmatmul.f32.gmra.mxu0 %v2131
        %v2364 = vpop.f32.mrf.mxu0
        %v2365 = vadd.f32 0.0, %v2364
        %2366 = vmatmul.f32.gmra.mxu0 %v2132
        %v2367 = vpop.f32.mrf.mxu0
        %v2368 = vadd.f32 0.0, %v2367
        %2369 = vmatmul.f32.gmra.mxu0 %v2141
        %v2370 = vpop.f32.mrf.mxu0
        %v2371 = vadd.f32 0.0, %v2370
        %2372 = vmatmul.f32.gmra.mxu0 %v2142
        %v2373 = vpop.f32.mrf.mxu0
        %v2374 = vadd.f32 0.0, %v2373
        %2375 = vmatmul.f32.gmra.mxu0 %v2151
        %v2376 = vpop.f32.mrf.mxu0
        %v2377 = vadd.f32 0.0, %v2376
        %2378 = vmatmul.f32.gmra.mxu0 %v2152
        %v2379 = vpop.f32.mrf.mxu0
        %v2380 = vadd.f32 0.0, %v2379
        %2381 = vmatmul.f32.gmra.mxu0 %v2161
        %v2382 = vpop.f32.mrf.mxu0
        %v2383 = vadd.f32 0.0, %v2382
        %2384 = vmatmul.f32.gmra.mxu0 %v2162
        %v2385 = vpop.f32.mrf.mxu0
        %v2386 = vadd.f32 0.0, %v2385
        %2387 = vmatmul.f32.gmra.mxu0 %v2171
        %v2388 = vpop.f32.mrf.mxu0
        %v2389 = vadd.f32 0.0, %v2388
        %2390 = vmatmul.f32.gmra.mxu0 %v2172
        %v2391 = vpop.f32.mrf.mxu0
        %v2392 = vadd.f32 0.0, %v2391
        %2393 = vmatmul.f32.gmra.mxu0 %v2181
        %v2394 = vpop.f32.mrf.mxu0
        %v2395 = vadd.f32 0.0, %v2394
        %2396 = vmatmul.f32.gmra.mxu0 %v2182
        %v2397 = vpop.f32.mrf.mxu0
        %v2398 = vadd.f32 0.0, %v2397
        %2399 = vmatmul.f32.gmra.mxu0 %v2191
        %v2400 = vpop.f32.mrf.mxu0
        %v2401 = vadd.f32 0.0, %v2400
        %2402 = vmatmul.f32.gmra.mxu0 %v2192
        %v2403 = vpop.f32.mrf.mxu0
        %v2404 = vadd.f32 0.0, %v2403
        %2405 = vmatmul.f32.gmra.mxu0 %v2201
        %v2406 = vpop.f32.mrf.mxu0
        %v2407 = vadd.f32 0.0, %v2406
        %2408 = vmatmul.f32.gmra.mxu0 %v2202
        %v2409 = vpop.f32.mrf.mxu0
        %v2410 = vadd.f32 0.0, %v2409
        %2411 = vmatmul.f32.gmra.mxu0 %v2211
        %v2412 = vpop.f32.mrf.mxu0
        %v2413 = vadd.f32 0.0, %v2412
        %2414 = vmatmul.f32.gmra.mxu0 %v2212
        %v2415 = vpop.f32.mrf.mxu0
        %v2416 = vadd.f32 0.0, %v2415
        %2417 = vmatmul.f32.gmra.mxu0 %v2221
        %v2418 = vpop.f32.mrf.mxu0
        %v2419 = vadd.f32 0.0, %v2418
        %2420 = vmatmul.f32.gmra.mxu0 %v2222
        %v2421 = vpop.f32.mrf.mxu0
        %v2422 = vadd.f32 0.0, %v2421
        %2423 = vmatmul.f32.gmra.mxu0 %v2231
        %v2424 = vpop.f32.mrf.mxu0
        %v2425 = vadd.f32 0.0, %v2424
        %2426 = vmatmul.f32.gmra.mxu0 %v2232
        %v2427 = vpop.f32.mrf.mxu0
        %v2428 = vadd.f32 0.0, %v2427
        %2429 = vmatmul.f32.gmra.mxu0 %v2241
        %v2430 = vpop.f32.mrf.mxu0
        %v2431 = vadd.f32 0.0, %v2430
        %2432 = vmatmul.f32.gmra.mxu0 %v2242
        %v2433 = vpop.f32.mrf.mxu0
        %v2434 = vadd.f32 0.0, %v2433
        %2435 = vmatmul.f32.gmra.mxu0 %v2251
        %v2436 = vpop.f32.mrf.mxu0
        %v2437 = vadd.f32 0.0, %v2436
        %2438 = vmatmul.f32.gmra.mxu0 %v2252
        %v2439 = vpop.f32.mrf.mxu0
        %v2440 = vadd.f32 0.0, %v2439
        %2441 = vmatmul.f32.gmra.mxu0 %v2261
        %v2442 = vpop.f32.mrf.mxu0
        %v2443 = vadd.f32 0.0, %v2442
        %2444 = vmatmul.f32.gmra.mxu0 %v2262
        %v2445 = vpop.f32.mrf.mxu0
        %v2446 = vadd.f32 0.0, %v2445
        %2447 = vmatmul.f32.gmra.mxu0 %v2271
        %v2448 = vpop.f32.mrf.mxu0
        %v2449 = vadd.f32 0.0, %v2448
        %2450 = vmatmul.f32.gmra.mxu0 %v2272
        %v2451 = vpop.f32.mrf.mxu0
        %v2452 = vadd.f32 0.0, %v2451
        %2453 = vmatmul.f32.gmra.mxu0 %v2275
        %v2454 = vpop.f32.mrf.mxu0
        %v2455 = vadd.f32 0.0, %v2454
        %2456 = vdwg.mxu0
        %v2457 = vadd.f32 %v1704, %v2335
        %v2458 = vadd.f32 %v1707, %v2338
        %v2459 = vadd.f32 %v1710, %v2341
        %v2460 = vadd.f32 %v1713, %v2344
        %v2461 = vadd.f32 %v1716, %v2347
        %v2462 = vadd.f32 %v1719, %v2350
        %v2463 = vadd.f32 %v1722, %v2353
        %v2464 = vadd.f32 %v1725, %v2356
        %v2465 = vadd.f32 %v1728, %v2359
        %v2466 = vadd.f32 %v1731, %v2362
        %v2467 = vadd.f32 %v1734, %v2365
        %v2468 = vadd.f32 %v1737, %v2368
        %v2469 = vadd.f32 %v1740, %v2371
        %v2470 = vadd.f32 %v1743, %v2374
        %v2471 = vadd.f32 %v1746, %v2377
        %v2472 = vadd.f32 %v1749, %v2380
        %v2473 = vadd.f32 %v1752, %v2383
        %v2474 = vadd.f32 %v1755, %v2386
        %v2475 = vadd.f32 %v1758, %v2389
        %v2476 = vadd.f32 %v1761, %v2392
        %v2477 = vadd.f32 %v1764, %v2395
        %v2478 = vadd.f32 %v1767, %v2398
        %v2479 = vadd.f32 %v1770, %v2401
        %v2480 = vadd.f32 %v1773, %v2404
        %v2481 = vadd.f32 %v1776, %v2407
        %v2482 = vadd.f32 %v1779, %v2410
        %v2483 = vadd.f32 %v1782, %v2413
        %v2484 = vadd.f32 %v1785, %v2416
        %v2485 = vadd.f32 %v1788, %v2419
        %v2486 = vadd.f32 %v1791, %v2422
        %v2487 = vadd.f32 %v1794, %v2425
        %v2488 = vadd.f32 %v1797, %v2428
        %v2489 = vadd.f32 %v1800, %v2431
        %v2490 = vadd.f32 %v1803, %v2434
        %v2491 = vadd.f32 %v1806, %v2437
        %v2492 = vadd.f32 %v1809, %v2440
        %v2493 = vadd.f32 %v1812, %v2443
        %v2494 = vadd.f32 %v1815, %v2446
        %v2495 = vadd.f32 %v1818, %v2449
        %v2496 = vadd.f32 %v1821, %v2452
        %v2497 = vadd.f32 %v1824, %v2455
        %v2501 = vrot.slane %v312, 2
        %v2502 = vrot.slane %v312, 4
        %v2503 = vrot.slane %v312, 6
        %v2504 = vrot.slane %v313, 2
        %v2505 = vrot.slane %v313, 4
        %v2506 = vrot.slane %v313, 6
        %s2507 = scalar_lea.vmem %s1, 384
        %v2508 = vld [vmem:[%s2507] sm:$0xff]
        %v2509 = vld [vmem:[%s2507 + $0x8] sm:$0xff]
        %v2510 = vld [vmem:[%s2507 + $0x10] sm:$0xff]
        %v2511 = vld [vmem:[%s2507 + $0x18] sm:$0xff]
        %v2512 = vld [vmem:[%s2507 + $0x20] sm:$0xff]
        %v2513 = vld [vmem:[%s2507 + $0x28] sm:$0xff]
        %v2514 = vld [vmem:[%s2507 + $0x30] sm:$0xff]
        %v2515 = vld [vmem:[%s2507 + $0x38] sm:$0xff]
        %v2516 = vld [vmem:[%s2507 + $0x40] sm:$0xff]
        %v2517 = vld [vmem:[%s2507 + $0x48] sm:$0xff]
        %v2518 = vld [vmem:[%s2507 + $0x50] sm:$0xff]
        %v2519 = vld [vmem:[%s2507 + $0x58] sm:$0xff]
        %v2520 = vld [vmem:[%s2507 + $0x60] sm:$0xff]
        %v2521 = vld [vmem:[%s2507 + $0x68] sm:$0xff]
        %v2522 = vld [vmem:[%s2507 + $0x70] sm:$0xff]
        %v2523 = vld [vmem:[%s2507 + $0x78] sm:$0xff]
        %2524 = vst [vmem:[#allocation1] ss:$4 sm:$0xff] %v261
        %s2525 = scalar_lea.vmem [#allocation1], 1
        %2526 = vst [vmem:[%s2525] ss:$4 sm:$0xff] %v380
        %s2527 = scalar_lea.vmem [#allocation1], 2
        %2528 = vst [vmem:[%s2527] ss:$4 sm:$0xff] %v381
        %s2529 = scalar_lea.vmem [#allocation1], 3
        %2530 = vst [vmem:[%s2529] ss:$4 sm:$0xff] %v382
        %s2531 = scalar_lea.vmem [#allocation1], 32
        %2532 = vst [vmem:[%s2531] ss:$4 sm:$0xff] %v262
        %s2533 = scalar_lea.vmem [#allocation1], 33
        %2534 = vst [vmem:[%s2533] ss:$4 sm:$0xff] %v383
        %s2535 = scalar_lea.vmem [#allocation1], 34
        %2536 = vst [vmem:[%s2535] ss:$4 sm:$0xff] %v384
        %s2537 = scalar_lea.vmem [#allocation1], 35
        %2538 = vst [vmem:[%s2537] ss:$4 sm:$0xff] %v385
        %v2539 = vld.sshfl [vmem:[#allocation1] sm:$0xff pattern:$0x73625140]
        %v2540 = vld.sshfl [vmem:[#allocation1 + $0x20] sm:$0xff pattern:$0x73625140]
        %2541 = vst [vmem:[#allocation1] ss:$4 sm:$0xff] %v263
        %2542 = vst [vmem:[%s2525] ss:$4 sm:$0xff] %v264
        %2543 = vst [vmem:[%s2527] ss:$4 sm:$0xff] %v386
        %2544 = vst [vmem:[%s2529] ss:$4 sm:$0xff] %v387
        %2545 = vst [vmem:[%s2531] ss:$4 sm:$0xff] %v388
        %2546 = vst [vmem:[%s2533] ss:$4 sm:$0xff] %v265
        %2547 = vst [vmem:[%s2535] ss:$4 sm:$0xff] %v389
        %2548 = vst [vmem:[%s2537] ss:$4 sm:$0xff] %v390
        %v2549 = vld.sshfl [vmem:[#allocation1] sm:$0xff pattern:$0x73625140]
        %v2550 = vld.sshfl [vmem:[#allocation1 + $0x20] sm:$0xff pattern:$0x73625140]
        %2551 = vst [vmem:[#allocation1] ss:$4 sm:$0xff] %v391
        %2552 = vst [vmem:[%s2525] ss:$4 sm:$0xff] %v266
        %2553 = vst [vmem:[%s2527] ss:$4 sm:$0xff] %v267
        %2554 = vst [vmem:[%s2529] ss:$4 sm:$0xff] %v392
        %2555 = vst [vmem:[%s2531] ss:$4 sm:$0xff] %v393
        %2556 = vst [vmem:[%s2533] ss:$4 sm:$0xff] %v394
        %2557 = vst [vmem:[%s2535] ss:$4 sm:$0xff] %v268
        %2558 = vst [vmem:[%s2537] ss:$4 sm:$0xff] %v395
        %v2559 = vld.sshfl [vmem:[#allocation1] sm:$0xff pattern:$0x73625140]
        %v2560 = vld.sshfl [vmem:[#allocation1 + $0x20] sm:$0xff pattern:$0x73625140]
        %2561 = vst [vmem:[#allocation1] ss:$4 sm:$0xff] %v396
        %2562 = vst [vmem:[%s2525] ss:$4 sm:$0xff] %v397
        %2563 = vst [vmem:[%s2527] ss:$4 sm:$0xff] %v269
        %2564 = vst [vmem:[%s2529] ss:$4 sm:$0xff] %v270
        %2565 = vst [vmem:[%s2531] ss:$4 sm:$0xff] %v398
        %2566 = vst [vmem:[%s2533] ss:$4 sm:$0xff] %v399
        %2567 = vst [vmem:[%s2535] ss:$4 sm:$0xff] %v400
        %2568 = vst [vmem:[%s2537] ss:$4 sm:$0xff] %v271
        %v2569 = vld.sshfl [vmem:[#allocation1] sm:$0xff pattern:$0x73625140]
        %v2570 = vld.sshfl [vmem:[#allocation1 + $0x20] sm:$0xff pattern:$0x73625140]
        %2571 = vst [vmem:[#allocation1] ss:$4 sm:$0xff] %v401
        %2572 = vst [vmem:[%s2525] ss:$4 sm:$0xff] %v402
        %2573 = vst [vmem:[%s2527] ss:$4 sm:$0xff] %v403
        %2574 = vst [vmem:[%s2529] ss:$4 sm:$0xff] %v272
        %2575 = vst [vmem:[%s2531] ss:$4 sm:$0xff] %v273
        %2576 = vst [vmem:[%s2533] ss:$4 sm:$0xff] %v404
        %2577 = vst [vmem:[%s2535] ss:$4 sm:$0xff] %v405
        %2578 = vst [vmem:[%s2537] ss:$4 sm:$0xff] %v406
        %v2579 = vld.sshfl [vmem:[#allocation1] sm:$0xff pattern:$0x73625140]
        %v2580 = vld.sshfl [vmem:[#allocation1 + $0x20] sm:$0xff pattern:$0x73625140]
        %2581 = vst [vmem:[#allocation1] ss:$4 sm:$0xff] %v274
        %2582 = vst [vmem:[%s2525] ss:$4 sm:$0xff] %v407
        %2583 = vst [vmem:[%s2527] ss:$4 sm:$0xff] %v408
        %2584 = vst [vmem:[%s2529] ss:$4 sm:$0xff] %v409
        %2585 = vst [vmem:[%s2531] ss:$4 sm:$0xff] %v275
        %2586 = vst [vmem:[%s2533] ss:$4 sm:$0xff] %v276
        %2587 = vst [vmem:[%s2535] ss:$4 sm:$0xff] %v410
        %2588 = vst [vmem:[%s2537] ss:$4 sm:$0xff] %v411
        %v2589 = vld.sshfl [vmem:[#allocation1] sm:$0xff pattern:$0x73625140]
        %v2590 = vld.sshfl [vmem:[#allocation1 + $0x20] sm:$0xff pattern:$0x73625140]
        %2591 = vst [vmem:[#allocation1] ss:$4 sm:$0xff] %v412
        %2592 = vst [vmem:[%s2525] ss:$4 sm:$0xff] %v277
        %2593 = vst [vmem:[%s2527] ss:$4 sm:$0xff] %v413
        %2594 = vst [vmem:[%s2529] ss:$4 sm:$0xff] %v414
        %2595 = vst [vmem:[%s2531] ss:$4 sm:$0xff] %v415
        %2596 = vst [vmem:[%s2533] ss:$4 sm:$0xff] %v278
        %2597 = vst [vmem:[%s2535] ss:$4 sm:$0xff] %v279
        %2598 = vst [vmem:[%s2537] ss:$4 sm:$0xff] %v416
        %v2599 = vld.sshfl [vmem:[#allocation1] sm:$0xff pattern:$0x73625140]
        %v2600 = vld.sshfl [vmem:[#allocation1 + $0x20] sm:$0xff pattern:$0x73625140]
        %2601 = vst [vmem:[#allocation1] ss:$4 sm:$0xff] %v417
        %2602 = vst [vmem:[%s2525] ss:$4 sm:$0xff] %v418
        %2603 = vst [vmem:[%s2527] ss:$4 sm:$0xff] %v280
        %2604 = vst [vmem:[%s2529] ss:$4 sm:$0xff] %v419
        %2605 = vst [vmem:[%s2531] ss:$4 sm:$0xff] %v420
        %2606 = vst [vmem:[%s2533] ss:$4 sm:$0xff] %v421
        %2607 = vst [vmem:[%s2535] ss:$4 sm:$0xff] %v281
        %2608 = vst [vmem:[%s2537] ss:$4 sm:$0xff] %v282
        %v2609 = vld.sshfl [vmem:[#allocation1] sm:$0xff pattern:$0x73625140]
        %v2610 = vld.sshfl [vmem:[#allocation1 + $0x20] sm:$0xff pattern:$0x73625140]
        %2611 = vst [vmem:[#allocation1] ss:$4 sm:$0xff] %v422
        %2612 = vst [vmem:[%s2525] ss:$4 sm:$0xff] %v423
        %2613 = vst [vmem:[%s2527] ss:$4 sm:$0xff] %v424
        %2614 = vst [vmem:[%s2529] ss:$4 sm:$0xff] %v283
        %2615 = vst [vmem:[%s2531] ss:$4 sm:$0xff] %v425
        %2616 = vst [vmem:[%s2533] ss:$4 sm:$0xff] %v426
        %2617 = vst [vmem:[%s2535] ss:$4 sm:$0xff] %v427
        %2618 = vst [vmem:[%s2537] ss:$4 sm:$0xff] %v284
        %v2619 = vld.sshfl [vmem:[#allocation1] sm:$0xff pattern:$0x73625140]
        %v2620 = vld.sshfl [vmem:[#allocation1 + $0x20] sm:$0xff pattern:$0x73625140]
        %2621 = vst [vmem:[#allocation1] ss:$4 sm:$0xff] %v285
        %2622 = vst [vmem:[%s2525] ss:$4 sm:$0xff] %v428
        %2623 = vst [vmem:[%s2527] ss:$4 sm:$0xff] %v429
        %2624 = vst [vmem:[%s2529] ss:$4 sm:$0xff] %v430
        %2625 = vst [vmem:[%s2531] ss:$4 sm:$0xff] %v286
        %2626 = vst [vmem:[%s2533] ss:$4 sm:$0xff] %v431
        %2627 = vst [vmem:[%s2535] ss:$4 sm:$0xff] %v432
        %2628 = vst [vmem:[%s2537] ss:$4 sm:$0xff] %v433
        %v2629 = vld.sshfl [vmem:[#allocation1] sm:$0xff pattern:$0x73625140]
        %v2630 = vld.sshfl [vmem:[#allocation1 + $0x20] sm:$0xff pattern:$0x73625140]
        %2631 = vst [vmem:[#allocation1] ss:$4 sm:$0xff] %v287
        %2632 = vst [vmem:[%s2525] ss:$4 sm:$0xff] %v288
        %2633 = vst [vmem:[%s2527] ss:$4 sm:$0xff] %v434
        %2634 = vst [vmem:[%s2529] ss:$4 sm:$0xff] %v435
        %2635 = vst [vmem:[%s2531] ss:$4 sm:$0xff] %v436
        %2636 = vst [vmem:[%s2533] ss:$4 sm:$0xff] %v289
        %2637 = vst [vmem:[%s2535] ss:$4 sm:$0xff] %v437
        %2638 = vst [vmem:[%s2537] ss:$4 sm:$0xff] %v438
        %v2639 = vld.sshfl [vmem:[#allocation1] sm:$0xff pattern:$0x73625140]
        %v2640 = vld.sshfl [vmem:[#allocation1 + $0x20] sm:$0xff pattern:$0x73625140]
        %2641 = vst [vmem:[#allocation1] ss:$4 sm:$0xff] %v439
        %2642 = vst [vmem:[%s2525] ss:$4 sm:$0xff] %v290
        %2643 = vst [vmem:[%s2527] ss:$4 sm:$0xff] %v291
        %2644 = vst [vmem:[%s2529] ss:$4 sm:$0xff] %v440
        %2645 = vst [vmem:[%s2531] ss:$4 sm:$0xff] %v441
        %2646 = vst [vmem:[%s2533] ss:$4 sm:$0xff] %v442
        %2647 = vst [vmem:[%s2535] ss:$4 sm:$0xff] %v292
        %2648 = vst [vmem:[%s2537] ss:$4 sm:$0xff] %v443
        %v2649 = vld.sshfl [vmem:[#allocation1] sm:$0xff pattern:$0x73625140]
        %v2650 = vld.sshfl [vmem:[#allocation1 + $0x20] sm:$0xff pattern:$0x73625140]
        %2651 = vst [vmem:[#allocation1] ss:$4 sm:$0xff] %v444
        %2652 = vst [vmem:[%s2525] ss:$4 sm:$0xff] %v445
        %2653 = vst [vmem:[%s2527] ss:$4 sm:$0xff] %v293
        %2654 = vst [vmem:[%s2529] ss:$4 sm:$0xff] %v294
        %2655 = vst [vmem:[%s2531] ss:$4 sm:$0xff] %v446
        %2656 = vst [vmem:[%s2533] ss:$4 sm:$0xff] %v447
        %2657 = vst [vmem:[%s2535] ss:$4 sm:$0xff] %v448
        %2658 = vst [vmem:[%s2537] ss:$4 sm:$0xff] %v295
        %v2659 = vld.sshfl [vmem:[#allocation1] sm:$0xff pattern:$0x73625140]
        %v2660 = vld.sshfl [vmem:[#allocation1 + $0x20] sm:$0xff pattern:$0x73625140]
        %2661 = vst [vmem:[#allocation1] ss:$4 sm:$0xff] %v449
        %2662 = vst [vmem:[%s2525] ss:$4 sm:$0xff] %v450
        %2663 = vst [vmem:[%s2527] ss:$4 sm:$0xff] %v451
        %2664 = vst [vmem:[%s2529] ss:$4 sm:$0xff] %v296
        %2665 = vst [vmem:[%s2531] ss:$4 sm:$0xff] %v297
        %2666 = vst [vmem:[%s2533] ss:$4 sm:$0xff] %v452
        %2667 = vst [vmem:[%s2535] ss:$4 sm:$0xff] %v453
        %2668 = vst [vmem:[%s2537] ss:$4 sm:$0xff] %v454
        %v2669 = vld.sshfl [vmem:[#allocation1] sm:$0xff pattern:$0x73625140]
        %v2670 = vld.sshfl [vmem:[#allocation1 + $0x20] sm:$0xff pattern:$0x73625140]
        %2671 = vst [vmem:[#allocation1] ss:$4 sm:$0xff] %v298
        %2672 = vst [vmem:[%s2525] ss:$4 sm:$0xff] %v455
        %2673 = vst [vmem:[%s2527] ss:$4 sm:$0xff] %v456
        %2674 = vst [vmem:[%s2529] ss:$4 sm:$0xff] %v457
        %2675 = vst [vmem:[%s2531] ss:$4 sm:$0xff] %v299
        %2676 = vst [vmem:[%s2533] ss:$4 sm:$0xff] %v300
        %2677 = vst [vmem:[%s2535] ss:$4 sm:$0xff] %v458
        %2678 = vst [vmem:[%s2537] ss:$4 sm:$0xff] %v459
        %v2679 = vld.sshfl [vmem:[#allocation1] sm:$0xff pattern:$0x73625140]
        %v2680 = vld.sshfl [vmem:[#allocation1 + $0x20] sm:$0xff pattern:$0x73625140]
        %2681 = vst [vmem:[#allocation1] ss:$4 sm:$0xff] %v460
        %2682 = vst [vmem:[%s2525] ss:$4 sm:$0xff] %v301
        %2683 = vst [vmem:[%s2527] ss:$4 sm:$0xff] %v461
        %2684 = vst [vmem:[%s2529] ss:$4 sm:$0xff] %v462
        %2685 = vst [vmem:[%s2531] ss:$4 sm:$0xff] %v463
        %2686 = vst [vmem:[%s2533] ss:$4 sm:$0xff] %v302
        %2687 = vst [vmem:[%s2535] ss:$4 sm:$0xff] %v303
        %2688 = vst [vmem:[%s2537] ss:$4 sm:$0xff] %v464
        %v2689 = vld.sshfl [vmem:[#allocation1] sm:$0xff pattern:$0x73625140]
        %v2690 = vld.sshfl [vmem:[#allocation1 + $0x20] sm:$0xff pattern:$0x73625140]
        %2691 = vst [vmem:[#allocation1] ss:$4 sm:$0xff] %v465
        %2692 = vst [vmem:[%s2525] ss:$4 sm:$0xff] %v466
        %2693 = vst [vmem:[%s2527] ss:$4 sm:$0xff] %v304
        %2694 = vst [vmem:[%s2529] ss:$4 sm:$0xff] %v467
        %2695 = vst [vmem:[%s2531] ss:$4 sm:$0xff] %v468
        %2696 = vst [vmem:[%s2533] ss:$4 sm:$0xff] %v469
        %2697 = vst [vmem:[%s2535] ss:$4 sm:$0xff] %v305
        %2698 = vst [vmem:[%s2537] ss:$4 sm:$0xff] %v306
        %v2699 = vld.sshfl [vmem:[#allocation1] sm:$0xff pattern:$0x73625140]
        %v2700 = vld.sshfl [vmem:[#allocation1 + $0x20] sm:$0xff pattern:$0x73625140]
        %2701 = vst [vmem:[#allocation1] ss:$4 sm:$0xff] %v470
        %2702 = vst [vmem:[%s2525] ss:$4 sm:$0xff] %v471
        %2703 = vst [vmem:[%s2527] ss:$4 sm:$0xff] %v472
        %2704 = vst [vmem:[%s2529] ss:$4 sm:$0xff] %v307
        %2705 = vst [vmem:[%s2531] ss:$4 sm:$0xff] %v473
        %2706 = vst [vmem:[%s2533] ss:$4 sm:$0xff] %v474
        %2707 = vst [vmem:[%s2535] ss:$4 sm:$0xff] %v475
        %2708 = vst [vmem:[%s2537] ss:$4 sm:$0xff] %v308
        %v2709 = vld.sshfl [vmem:[#allocation1] sm:$0xff pattern:$0x73625140]
        %v2710 = vld.sshfl [vmem:[#allocation1 + $0x20] sm:$0xff pattern:$0x73625140]
        %2711 = vst [vmem:[#allocation1] ss:$4 sm:$0xff] %v309
        %2712 = vst [vmem:[%s2525] ss:$4 sm:$0xff] %v476
        %2713 = vst [vmem:[%s2527] ss:$4 sm:$0xff] %v477
        %2714 = vst [vmem:[%s2529] ss:$4 sm:$0xff] %v478
        %2715 = vst [vmem:[%s2531] ss:$4 sm:$0xff] %v310
        %2716 = vst [vmem:[%s2533] ss:$4 sm:$0xff] %v479
        %2717 = vst [vmem:[%s2535] ss:$4 sm:$0xff] %v480
        %2718 = vst [vmem:[%s2537] ss:$4 sm:$0xff] %v481
        %v2719 = vld.sshfl [vmem:[#allocation1] sm:$0xff pattern:$0x73625140]
        %v2720 = vld.sshfl [vmem:[#allocation1 + $0x20] sm:$0xff pattern:$0x73625140]
        %2721 = vst [vmem:[#allocation1] ss:$4 sm:$0xff] %v311
        %2722 = vst [vmem:[%s2525] ss:$4 sm:$0xff] %v312
        %2723 = vst [vmem:[%s2527] ss:$4 sm:$0xff] %v2501
        %2724 = vst [vmem:[%s2529] ss:$4 sm:$0xff] %v2502
        %2725 = vst [vmem:[%s2531] ss:$4 sm:$0xff] %v2503
        %2726 = vst [vmem:[%s2533] ss:$4 sm:$0xff] %v313
        %2727 = vst [vmem:[%s2535] ss:$4 sm:$0xff] %v2504
        %2728 = vst [vmem:[%s2537] ss:$4 sm:$0xff] %v2505
        %v2729 = vld.sshfl [vmem:[#allocation1] sm:$0xff pattern:$0x73625140]
        %v2730 = vld.sshfl [vmem:[#allocation1 + $0x20] sm:$0xff pattern:$0x73625140]
        %2731 = vst [vmem:[#allocation1] ss:$4 sm:$0xff] %v2506
        %2732 = vst [vmem:[%s2525] ss:$4 sm:$0xff] %v314
        %v2733 = vld.sshfl [vmem:[#allocation1] sm:$0xff pattern:$0x73625140]
        %2775 = vmatpush.msra.mxu0 %v2523
        %2776 = vmatpush.msra.mxu0 %v2522
        %2777 = vmatpush.msra.mxu0 %v2521
        %2778 = vmatpush.msra.mxu0 %v2520
        %2779 = vmatpush.msra.mxu0 %v2519
        %2780 = vmatpush.msra.mxu0 %v2518
        %2781 = vmatpush.msra.mxu0 %v2517
        %2782 = vmatpush.msra.mxu0 %v2516
        %2783 = vmatpush.msra.mxu0 %v2515
        %2784 = vmatpush.msra.mxu0 %v2514
        %2785 = vmatpush.msra.mxu0 %v2513
        %2786 = vmatpush.msra.mxu0 %v2512
        %2787 = vmatpush.msra.mxu0 %v2511
        %2788 = vmatpush.msra.mxu0 %v2510
        %2789 = vmatpush.msra.mxu0 %v2509
        %2790 = vmatpush.msra.mxu0 %v2508
        %2791 = vmatmul.f32.gmra.mxu0 %v2539
        %v2792 = vpop.f32.mrf.mxu0
        %v2793 = vadd.f32 0.0, %v2792
        %2794 = vmatmul.f32.gmra.mxu0 %v2540
        %v2795 = vpop.f32.mrf.mxu0
        %v2796 = vadd.f32 0.0, %v2795
        %2797 = vmatmul.f32.gmra.mxu0 %v2549
        %v2798 = vpop.f32.mrf.mxu0
        %v2799 = vadd.f32 0.0, %v2798
        %2800 = vmatmul.f32.gmra.mxu0 %v2550
        %v2801 = vpop.f32.mrf.mxu0
        %v2802 = vadd.f32 0.0, %v2801
        %2803 = vmatmul.f32.gmra.mxu0 %v2559
        %v2804 = vpop.f32.mrf.mxu0
        %v2805 = vadd.f32 0.0, %v2804
        %2806 = vmatmul.f32.gmra.mxu0 %v2560
        %v2807 = vpop.f32.mrf.mxu0
        %v2808 = vadd.f32 0.0, %v2807
        %2809 = vmatmul.f32.gmra.mxu0 %v2569
        %v2810 = vpop.f32.mrf.mxu0
        %v2811 = vadd.f32 0.0, %v2810
        %2812 = vmatmul.f32.gmra.mxu0 %v2570
        %v2813 = vpop.f32.mrf.mxu0
        %v2814 = vadd.f32 0.0, %v2813
        %2815 = vmatmul.f32.gmra.mxu0 %v2579
        %v2816 = vpop.f32.mrf.mxu0
        %v2817 = vadd.f32 0.0, %v2816
        %2818 = vmatmul.f32.gmra.mxu0 %v2580
        %v2819 = vpop.f32.mrf.mxu0
        %v2820 = vadd.f32 0.0, %v2819
        %2821 = vmatmul.f32.gmra.mxu0 %v2589
        %v2822 = vpop.f32.mrf.mxu0
        %v2823 = vadd.f32 0.0, %v2822
        %2824 = vmatmul.f32.gmra.mxu0 %v2590
        %v2825 = vpop.f32.mrf.mxu0
        %v2826 = vadd.f32 0.0, %v2825
        %2827 = vmatmul.f32.gmra.mxu0 %v2599
        %v2828 = vpop.f32.mrf.mxu0
        %v2829 = vadd.f32 0.0, %v2828
        %2830 = vmatmul.f32.gmra.mxu0 %v2600
        %v2831 = vpop.f32.mrf.mxu0
        %v2832 = vadd.f32 0.0, %v2831
        %2833 = vmatmul.f32.gmra.mxu0 %v2609
        %v2834 = vpop.f32.mrf.mxu0
        %v2835 = vadd.f32 0.0, %v2834
        %2836 = vmatmul.f32.gmra.mxu0 %v2610
        %v2837 = vpop.f32.mrf.mxu0
        %v2838 = vadd.f32 0.0, %v2837
        %2839 = vmatmul.f32.gmra.mxu0 %v2619
        %v2840 = vpop.f32.mrf.mxu0
        %v2841 = vadd.f32 0.0, %v2840
        %2842 = vmatmul.f32.gmra.mxu0 %v2620
        %v2843 = vpop.f32.mrf.mxu0
        %v2844 = vadd.f32 0.0, %v2843
        %2845 = vmatmul.f32.gmra.mxu0 %v2629
        %v2846 = vpop.f32.mrf.mxu0
        %v2847 = vadd.f32 0.0, %v2846
        %2848 = vmatmul.f32.gmra.mxu0 %v2630
        %v2849 = vpop.f32.mrf.mxu0
        %v2850 = vadd.f32 0.0, %v2849
        %2851 = vmatmul.f32.gmra.mxu0 %v2639
        %v2852 = vpop.f32.mrf.mxu0
        %v2853 = vadd.f32 0.0, %v2852
        %2854 = vmatmul.f32.gmra.mxu0 %v2640
        %v2855 = vpop.f32.mrf.mxu0
        %v2856 = vadd.f32 0.0, %v2855
        %2857 = vmatmul.f32.gmra.mxu0 %v2649
        %v2858 = vpop.f32.mrf.mxu0
        %v2859 = vadd.f32 0.0, %v2858
        %2860 = vmatmul.f32.gmra.mxu0 %v2650
        %v2861 = vpop.f32.mrf.mxu0
        %v2862 = vadd.f32 0.0, %v2861
        %2863 = vmatmul.f32.gmra.mxu0 %v2659
        %v2864 = vpop.f32.mrf.mxu0
        %v2865 = vadd.f32 0.0, %v2864
        %2866 = vmatmul.f32.gmra.mxu0 %v2660
        %v2867 = vpop.f32.mrf.mxu0
        %v2868 = vadd.f32 0.0, %v2867
        %2869 = vmatmul.f32.gmra.mxu0 %v2669
        %v2870 = vpop.f32.mrf.mxu0
        %v2871 = vadd.f32 0.0, %v2870
        %2872 = vmatmul.f32.gmra.mxu0 %v2670
        %v2873 = vpop.f32.mrf.mxu0
        %v2874 = vadd.f32 0.0, %v2873
        %2875 = vmatmul.f32.gmra.mxu0 %v2679
        %v2876 = vpop.f32.mrf.mxu0
        %v2877 = vadd.f32 0.0, %v2876
        %2878 = vmatmul.f32.gmra.mxu0 %v2680
        %v2879 = vpop.f32.mrf.mxu0
        %v2880 = vadd.f32 0.0, %v2879
        %2881 = vmatmul.f32.gmra.mxu0 %v2689
        %v2882 = vpop.f32.mrf.mxu0
        %v2883 = vadd.f32 0.0, %v2882
        %2884 = vmatmul.f32.gmra.mxu0 %v2690
        %v2885 = vpop.f32.mrf.mxu0
        %v2886 = vadd.f32 0.0, %v2885
        %2887 = vmatmul.f32.gmra.mxu0 %v2699
        %v2888 = vpop.f32.mrf.mxu0
        %v2889 = vadd.f32 0.0, %v2888
        %2890 = vmatmul.f32.gmra.mxu0 %v2700
        %v2891 = vpop.f32.mrf.mxu0
        %v2892 = vadd.f32 0.0, %v2891
        %2893 = vmatmul.f32.gmra.mxu0 %v2709
        %v2894 = vpop.f32.mrf.mxu0
        %v2895 = vadd.f32 0.0, %v2894
        %2896 = vmatmul.f32.gmra.mxu0 %v2710
        %v2897 = vpop.f32.mrf.mxu0
        %v2898 = vadd.f32 0.0, %v2897
        %2899 = vmatmul.f32.gmra.mxu0 %v2719
        %v2900 = vpop.f32.mrf.mxu0
        %v2901 = vadd.f32 0.0, %v2900
        %2902 = vmatmul.f32.gmra.mxu0 %v2720
        %v2903 = vpop.f32.mrf.mxu0
        %v2904 = vadd.f32 0.0, %v2903
        %2905 = vmatmul.f32.gmra.mxu0 %v2729
        %v2906 = vpop.f32.mrf.mxu0
        %v2907 = vadd.f32 0.0, %v2906
        %2908 = vmatmul.f32.gmra.mxu0 %v2730
        %v2909 = vpop.f32.mrf.mxu0
        %v2910 = vadd.f32 0.0, %v2909
        %2911 = vmatmul.f32.gmra.mxu0 %v2733
        %v2912 = vpop.f32.mrf.mxu0
        %v2913 = vadd.f32 0.0, %v2912
        %2914 = vdwg.mxu0
        %v2915 = vadd.f32 %v2457, %v2793
        %v2916 = vadd.f32 %v2458, %v2796
        %v2917 = vadd.f32 %v2459, %v2799
        %v2918 = vadd.f32 %v2460, %v2802
        %v2919 = vadd.f32 %v2461, %v2805
        %v2920 = vadd.f32 %v2462, %v2808
        %v2921 = vadd.f32 %v2463, %v2811
        %v2922 = vadd.f32 %v2464, %v2814
        %v2923 = vadd.f32 %v2465, %v2817
        %v2924 = vadd.f32 %v2466, %v2820
        %v2925 = vadd.f32 %v2467, %v2823
        %v2926 = vadd.f32 %v2468, %v2826
        %v2927 = vadd.f32 %v2469, %v2829
        %v2928 = vadd.f32 %v2470, %v2832
        %v2929 = vadd.f32 %v2471, %v2835
        %v2930 = vadd.f32 %v2472, %v2838
        %v2931 = vadd.f32 %v2473, %v2841
        %v2932 = vadd.f32 %v2474, %v2844
        %v2933 = vadd.f32 %v2475, %v2847
        %v2934 = vadd.f32 %v2476, %v2850
        %v2935 = vadd.f32 %v2477, %v2853
        %v2936 = vadd.f32 %v2478, %v2856
        %v2937 = vadd.f32 %v2479, %v2859
        %v2938 = vadd.f32 %v2480, %v2862
        %v2939 = vadd.f32 %v2481, %v2865
        %v2940 = vadd.f32 %v2482, %v2868
        %v2941 = vadd.f32 %v2483, %v2871
        %v2942 = vadd.f32 %v2484, %v2874
        %v2943 = vadd.f32 %v2485, %v2877
        %v2944 = vadd.f32 %v2486, %v2880
        %v2945 = vadd.f32 %v2487, %v2883
        %v2946 = vadd.f32 %v2488, %v2886
        %v2947 = vadd.f32 %v2489, %v2889
        %v2948 = vadd.f32 %v2490, %v2892
        %v2949 = vadd.f32 %v2491, %v2895
        %v2950 = vadd.f32 %v2492, %v2898
        %v2951 = vadd.f32 %v2493, %v2901
        %v2952 = vadd.f32 %v2494, %v2904
        %v2953 = vadd.f32 %v2495, %v2907
        %v2954 = vadd.f32 %v2496, %v2910
        %v2955 = vadd.f32 %v2497, %v2913
        %v2956 = vrot.slane %v314, 2
        %v2957 = vrot.slane %v312, 7
        %v2958 = vrot.slane %v2957, 2
        %v2959 = vrot.slane %v2501, 7
        %v2960 = vsel %vm522, %v2958, %v2959
        %v2961 = vrot.slane %v2959, 2
        %v2962 = vrot.slane %v2502, 7
        %v2963 = vsel %vm522, %v2961, %v2962
        %v2964 = vrot.slane %v2962, 2
        %v2965 = vrot.slane %v2503, 7
        %v2966 = vsel %vm522, %v2964, %v2965
        %v2967 = vrot.slane %v2965, 2
        %v2968 = vrot.slane %v313, 7
        %v2969 = vsel %vm522, %v2967, %v2968
        %v2970 = vrot.slane %v2968, 2
        %v2971 = vrot.slane %v2504, 7
        %v2972 = vsel %vm522, %v2970, %v2971
        %v2973 = vrot.slane %v2971, 2
        %v2974 = vrot.slane %v2505, 7
        %v2975 = vsel %vm522, %v2973, %v2974
        %v2976 = vrot.slane %v2974, 2
        %v2977 = vrot.slane %v2506, 7
        %v2978 = vsel %vm522, %v2976, %v2977
        %v2979 = vrot.slane %v2977, 2
        %v2980 = vrot.slane %v314, 7
        %v2981 = vsel %vm522, %v2979, %v2980
        %v2982 = vrot.slane %v2980, 2
        %v2983 = vrot.slane %v2956, 7
        %v2984 = vsel %vm522, %v2982, %v2983
        %s2985 = scalar_lea.vmem %s1, 512
        %v2986 = vld [vmem:[%s2985] sm:$0xff]
        %v2987 = vld [vmem:[%s2985 + $0x8] sm:$0xff]
        %v2988 = vld [vmem:[%s2985 + $0x10] sm:$0xff]
        %v2989 = vld [vmem:[%s2985 + $0x18] sm:$0xff]
        %v2990 = vld [vmem:[%s2985 + $0x20] sm:$0xff]
        %v2991 = vld [vmem:[%s2985 + $0x28] sm:$0xff]
        %v2992 = vld [vmem:[%s2985 + $0x30] sm:$0xff]
        %v2993 = vld [vmem:[%s2985 + $0x38] sm:$0xff]
        %v2994 = vld [vmem:[%s2985 + $0x40] sm:$0xff]
        %v2995 = vld [vmem:[%s2985 + $0x48] sm:$0xff]
        %v2996 = vld [vmem:[%s2985 + $0x50] sm:$0xff]
        %v2997 = vld [vmem:[%s2985 + $0x58] sm:$0xff]
        %v2998 = vld [vmem:[%s2985 + $0x60] sm:$0xff]
        %v2999 = vld [vmem:[%s2985 + $0x68] sm:$0xff]
        %v3000 = vld [vmem:[%s2985 + $0x70] sm:$0xff]
        %v3001 = vld [vmem:[%s2985 + $0x78] sm:$0xff]
        %3002 = vst [vmem:[#allocation1] ss:$4 sm:$0xff] %v554
        %s3003 = scalar_lea.vmem [#allocation1], 1
        %3004 = vst [vmem:[%s3003] ss:$4 sm:$0xff] %v557
        %s3005 = scalar_lea.vmem [#allocation1], 2
        %3006 = vst [vmem:[%s3005] ss:$4 sm:$0xff] %v560
        %s3007 = scalar_lea.vmem [#allocation1], 3
        %3008 = vst [vmem:[%s3007] ss:$4 sm:$0xff] %v563
        %s3009 = scalar_lea.vmem [#allocation1], 32
        %3010 = vst [vmem:[%s3009] ss:$4 sm:$0xff] %v566
        %s3011 = scalar_lea.vmem [#allocation1], 33
        %3012 = vst [vmem:[%s3011] ss:$4 sm:$0xff] %v569
        %s3013 = scalar_lea.vmem [#allocation1], 34
        %3014 = vst [vmem:[%s3013] ss:$4 sm:$0xff] %v572
        %s3015 = scalar_lea.vmem [#allocation1], 35
        %3016 = vst [vmem:[%s3015] ss:$4 sm:$0xff] %v575
        %v3017 = vld.sshfl [vmem:[#allocation1] sm:$0xff pattern:$0x73625140]
        %v3018 = vld.sshfl [vmem:[#allocation1 + $0x20] sm:$0xff pattern:$0x73625140]
        %3019 = vst [vmem:[#allocation1] ss:$4 sm:$0xff] %v578
        %3020 = vst [vmem:[%s3003] ss:$4 sm:$0xff] %v582
        %3021 = vst [vmem:[%s3005] ss:$4 sm:$0xff] %v585
        %3022 = vst [vmem:[%s3007] ss:$4 sm:$0xff] %v588
        %3023 = vst [vmem:[%s3009] ss:$4 sm:$0xff] %v591
        %3024 = vst [vmem:[%s3011] ss:$4 sm:$0xff] %v594
        %3025 = vst [vmem:[%s3013] ss:$4 sm:$0xff] %v597
        %3026 = vst [vmem:[%s3015] ss:$4 sm:$0xff] %v600
        %v3027 = vld.sshfl [vmem:[#allocation1] sm:$0xff pattern:$0x73625140]
        %v3028 = vld.sshfl [vmem:[#allocation1 + $0x20] sm:$0xff pattern:$0x73625140]
        %3029 = vst [vmem:[#allocation1] ss:$4 sm:$0xff] %v603
        %3030 = vst [vmem:[%s3003] ss:$4 sm:$0xff] %v606
        %3031 = vst [vmem:[%s3005] ss:$4 sm:$0xff] %v610
        %3032 = vst [vmem:[%s3007] ss:$4 sm:$0xff] %v613
        %3033 = vst [vmem:[%s3009] ss:$4 sm:$0xff] %v616
        %3034 = vst [vmem:[%s3011] ss:$4 sm:$0xff] %v619
        %3035 = vst [vmem:[%s3013] ss:$4 sm:$0xff] %v622
        %3036 = vst [vmem:[%s3015] ss:$4 sm:$0xff] %v625
        %v3037 = vld.sshfl [vmem:[#allocation1] sm:$0xff pattern:$0x73625140]
        %v3038 = vld.sshfl [vmem:[#allocation1 + $0x20] sm:$0xff pattern:$0x73625140]
        %3039 = vst [vmem:[#allocation1] ss:$4 sm:$0xff] %v628
        %3040 = vst [vmem:[%s3003] ss:$4 sm:$0xff] %v631
        %3041 = vst [vmem:[%s3005] ss:$4 sm:$0xff] %v634
        %3042 = vst [vmem:[%s3007] ss:$4 sm:$0xff] %v638
        %3043 = vst [vmem:[%s3009] ss:$4 sm:$0xff] %v641
        %3044 = vst [vmem:[%s3011] ss:$4 sm:$0xff] %v644
        %3045 = vst [vmem:[%s3013] ss:$4 sm:$0xff] %v647
        %3046 = vst [vmem:[%s3015] ss:$4 sm:$0xff] %v650
        %v3047 = vld.sshfl [vmem:[#allocation1] sm:$0xff pattern:$0x73625140]
        %v3048 = vld.sshfl [vmem:[#allocation1 + $0x20] sm:$0xff pattern:$0x73625140]
        %3049 = vst [vmem:[#allocation1] ss:$4 sm:$0xff] %v653
        %3050 = vst [vmem:[%s3003] ss:$4 sm:$0xff] %v656
        %3051 = vst [vmem:[%s3005] ss:$4 sm:$0xff] %v659
        %3052 = vst [vmem:[%s3007] ss:$4 sm:$0xff] %v662
        %3053 = vst [vmem:[%s3009] ss:$4 sm:$0xff] %v666
        %3054 = vst [vmem:[%s3011] ss:$4 sm:$0xff] %v669
        %3055 = vst [vmem:[%s3013] ss:$4 sm:$0xff] %v672
        %3056 = vst [vmem:[%s3015] ss:$4 sm:$0xff] %v675
        %v3057 = vld.sshfl [vmem:[#allocation1] sm:$0xff pattern:$0x73625140]
        %v3058 = vld.sshfl [vmem:[#allocation1 + $0x20] sm:$0xff pattern:$0x73625140]
        %3059 = vst [vmem:[#allocation1] ss:$4 sm:$0xff] %v678
        %3060 = vst [vmem:[%s3003] ss:$4 sm:$0xff] %v681
        %3061 = vst [vmem:[%s3005] ss:$4 sm:$0xff] %v684
        %3062 = vst [vmem:[%s3007] ss:$4 sm:$0xff] %v687
        %3063 = vst [vmem:[%s3009] ss:$4 sm:$0xff] %v690
        %3064 = vst [vmem:[%s3011] ss:$4 sm:$0xff] %v694
        %3065 = vst [vmem:[%s3013] ss:$4 sm:$0xff] %v697
        %3066 = vst [vmem:[%s3015] ss:$4 sm:$0xff] %v700
        %v3067 = vld.sshfl [vmem:[#allocation1] sm:$0xff pattern:$0x73625140]
        %v3068 = vld.sshfl [vmem:[#allocation1 + $0x20] sm:$0xff pattern:$0x73625140]
        %3069 = vst [vmem:[#allocation1] ss:$4 sm:$0xff] %v703
        %3070 = vst [vmem:[%s3003] ss:$4 sm:$0xff] %v706
        %3071 = vst [vmem:[%s3005] ss:$4 sm:$0xff] %v709
        %3072 = vst [vmem:[%s3007] ss:$4 sm:$0xff] %v712
        %3073 = vst [vmem:[%s3009] ss:$4 sm:$0xff] %v715
        %3074 = vst [vmem:[%s3011] ss:$4 sm:$0xff] %v718
        %3075 = vst [vmem:[%s3013] ss:$4 sm:$0xff] %v722
        %3076 = vst [vmem:[%s3015] ss:$4 sm:$0xff] %v725
        %v3077 = vld.sshfl [vmem:[#allocation1] sm:$0xff pattern:$0x73625140]
        %v3078 = vld.sshfl [vmem:[#allocation1 + $0x20] sm:$0xff pattern:$0x73625140]
        %3079 = vst [vmem:[#allocation1] ss:$4 sm:$0xff] %v728
        %3080 = vst [vmem:[%s3003] ss:$4 sm:$0xff] %v731
        %3081 = vst [vmem:[%s3005] ss:$4 sm:$0xff] %v734
        %3082 = vst [vmem:[%s3007] ss:$4 sm:$0xff] %v737
        %3083 = vst [vmem:[%s3009] ss:$4 sm:$0xff] %v740
        %3084 = vst [vmem:[%s3011] ss:$4 sm:$0xff] %v743
        %3085 = vst [vmem:[%s3013] ss:$4 sm:$0xff] %v746
        %3086 = vst [vmem:[%s3015] ss:$4 sm:$0xff] %v750
        %v3087 = vld.sshfl [vmem:[#allocation1] sm:$0xff pattern:$0x73625140]
        %v3088 = vld.sshfl [vmem:[#allocation1 + $0x20] sm:$0xff pattern:$0x73625140]
        %3089 = vst [vmem:[#allocation1] ss:$4 sm:$0xff] %v753
        %3090 = vst [vmem:[%s3003] ss:$4 sm:$0xff] %v756
        %3091 = vst [vmem:[%s3005] ss:$4 sm:$0xff] %v759
        %3092 = vst [vmem:[%s3007] ss:$4 sm:$0xff] %v762
        %3093 = vst [vmem:[%s3009] ss:$4 sm:$0xff] %v765
        %3094 = vst [vmem:[%s3011] ss:$4 sm:$0xff] %v768
        %3095 = vst [vmem:[%s3013] ss:$4 sm:$0xff] %v771
        %3096 = vst [vmem:[%s3015] ss:$4 sm:$0xff] %v774
        %v3097 = vld.sshfl [vmem:[#allocation1] sm:$0xff pattern:$0x73625140]
        %v3098 = vld.sshfl [vmem:[#allocation1 + $0x20] sm:$0xff pattern:$0x73625140]
        %3099 = vst [vmem:[#allocation1] ss:$4 sm:$0xff] %v778
        %3100 = vst [vmem:[%s3003] ss:$4 sm:$0xff] %v781
        %3101 = vst [vmem:[%s3005] ss:$4 sm:$0xff] %v784
        %3102 = vst [vmem:[%s3007] ss:$4 sm:$0xff] %v787
        %3103 = vst [vmem:[%s3009] ss:$4 sm:$0xff] %v790
        %3104 = vst [vmem:[%s3011] ss:$4 sm:$0xff] %v793
        %3105 = vst [vmem:[%s3013] ss:$4 sm:$0xff] %v796
        %3106 = vst [vmem:[%s3015] ss:$4 sm:$0xff] %v799
        %v3107 = vld.sshfl [vmem:[#allocation1] sm:$0xff pattern:$0x73625140]
        %v3108 = vld.sshfl [vmem:[#allocation1 + $0x20] sm:$0xff pattern:$0x73625140]
        %3109 = vst [vmem:[#allocation1] ss:$4 sm:$0xff] %v802
        %3110 = vst [vmem:[%s3003] ss:$4 sm:$0xff] %v806
        %3111 = vst [vmem:[%s3005] ss:$4 sm:$0xff] %v809
        %3112 = vst [vmem:[%s3007] ss:$4 sm:$0xff] %v812
        %3113 = vst [vmem:[%s3009] ss:$4 sm:$0xff] %v815
        %3114 = vst [vmem:[%s3011] ss:$4 sm:$0xff] %v818
        %3115 = vst [vmem:[%s3013] ss:$4 sm:$0xff] %v821
        %3116 = vst [vmem:[%s3015] ss:$4 sm:$0xff] %v824
        %v3117 = vld.sshfl [vmem:[#allocation1] sm:$0xff pattern:$0x73625140]
        %v3118 = vld.sshfl [vmem:[#allocation1 + $0x20] sm:$0xff pattern:$0x73625140]
        %3119 = vst [vmem:[#allocation1] ss:$4 sm:$0xff] %v827
        %3120 = vst [vmem:[%s3003] ss:$4 sm:$0xff] %v830
        %3121 = vst [vmem:[%s3005] ss:$4 sm:$0xff] %v834
        %3122 = vst [vmem:[%s3007] ss:$4 sm:$0xff] %v837
        %3123 = vst [vmem:[%s3009] ss:$4 sm:$0xff] %v840
        %3124 = vst [vmem:[%s3011] ss:$4 sm:$0xff] %v843
        %3125 = vst [vmem:[%s3013] ss:$4 sm:$0xff] %v846
        %3126 = vst [vmem:[%s3015] ss:$4 sm:$0xff] %v849
        %v3127 = vld.sshfl [vmem:[#allocation1] sm:$0xff pattern:$0x73625140]
        %v3128 = vld.sshfl [vmem:[#allocation1 + $0x20] sm:$0xff pattern:$0x73625140]
        %3129 = vst [vmem:[#allocation1] ss:$4 sm:$0xff] %v852
        %3130 = vst [vmem:[%s3003] ss:$4 sm:$0xff] %v855
        %3131 = vst [vmem:[%s3005] ss:$4 sm:$0xff] %v858
        %3132 = vst [vmem:[%s3007] ss:$4 sm:$0xff] %v862
        %3133 = vst [vmem:[%s3009] ss:$4 sm:$0xff] %v865
        %3134 = vst [vmem:[%s3011] ss:$4 sm:$0xff] %v868
        %3135 = vst [vmem:[%s3013] ss:$4 sm:$0xff] %v871
        %3136 = vst [vmem:[%s3015] ss:$4 sm:$0xff] %v874
        %v3137 = vld.sshfl [vmem:[#allocation1] sm:$0xff pattern:$0x73625140]
        %v3138 = vld.sshfl [vmem:[#allocation1 + $0x20] sm:$0xff pattern:$0x73625140]
        %3139 = vst [vmem:[#allocation1] ss:$4 sm:$0xff] %v877
        %3140 = vst [vmem:[%s3003] ss:$4 sm:$0xff] %v880
        %3141 = vst [vmem:[%s3005] ss:$4 sm:$0xff] %v883
        %3142 = vst [vmem:[%s3007] ss:$4 sm:$0xff] %v886
        %3143 = vst [vmem:[%s3009] ss:$4 sm:$0xff] %v890
        %3144 = vst [vmem:[%s3011] ss:$4 sm:$0xff] %v893
        %3145 = vst [vmem:[%s3013] ss:$4 sm:$0xff] %v896
        %3146 = vst [vmem:[%s3015] ss:$4 sm:$0xff] %v899
        %v3147 = vld.sshfl [vmem:[#allocation1] sm:$0xff pattern:$0x73625140]
        %v3148 = vld.sshfl [vmem:[#allocation1 + $0x20] sm:$0xff pattern:$0x73625140]
        %3149 = vst [vmem:[#allocation1] ss:$4 sm:$0xff] %v902
        %3150 = vst [vmem:[%s3003] ss:$4 sm:$0xff] %v905
        %3151 = vst [vmem:[%s3005] ss:$4 sm:$0xff] %v908
        %3152 = vst [vmem:[%s3007] ss:$4 sm:$0xff] %v911
        %3153 = vst [vmem:[%s3009] ss:$4 sm:$0xff] %v914
        %3154 = vst [vmem:[%s3011] ss:$4 sm:$0xff] %v918
        %3155 = vst [vmem:[%s3013] ss:$4 sm:$0xff] %v921
        %3156 = vst [vmem:[%s3015] ss:$4 sm:$0xff] %v924
        %v3157 = vld.sshfl [vmem:[#allocation1] sm:$0xff pattern:$0x73625140]
        %v3158 = vld.sshfl [vmem:[#allocation1 + $0x20] sm:$0xff pattern:$0x73625140]
        %3159 = vst [vmem:[#allocation1] ss:$4 sm:$0xff] %v927
        %3160 = vst [vmem:[%s3003] ss:$4 sm:$0xff] %v930
        %3161 = vst [vmem:[%s3005] ss:$4 sm:$0xff] %v933
        %3162 = vst [vmem:[%s3007] ss:$4 sm:$0xff] %v936
        %3163 = vst [vmem:[%s3009] ss:$4 sm:$0xff] %v939
        %3164 = vst [vmem:[%s3011] ss:$4 sm:$0xff] %v942
        %3165 = vst [vmem:[%s3013] ss:$4 sm:$0xff] %v946
        %3166 = vst [vmem:[%s3015] ss:$4 sm:$0xff] %v949
        %v3167 = vld.sshfl [vmem:[#allocation1] sm:$0xff pattern:$0x73625140]
        %v3168 = vld.sshfl [vmem:[#allocation1 + $0x20] sm:$0xff pattern:$0x73625140]
        %3169 = vst [vmem:[#allocation1] ss:$4 sm:$0xff] %v952
        %3170 = vst [vmem:[%s3003] ss:$4 sm:$0xff] %v955
        %3171 = vst [vmem:[%s3005] ss:$4 sm:$0xff] %v958
        %3172 = vst [vmem:[%s3007] ss:$4 sm:$0xff] %v961
        %3173 = vst [vmem:[%s3009] ss:$4 sm:$0xff] %v964
        %3174 = vst [vmem:[%s3011] ss:$4 sm:$0xff] %v967
        %3175 = vst [vmem:[%s3013] ss:$4 sm:$0xff] %v970
        %3176 = vst [vmem:[%s3015] ss:$4 sm:$0xff] %v974
        %v3177 = vld.sshfl [vmem:[#allocation1] sm:$0xff pattern:$0x73625140]
        %v3178 = vld.sshfl [vmem:[#allocation1 + $0x20] sm:$0xff pattern:$0x73625140]
        %3179 = vst [vmem:[#allocation1] ss:$4 sm:$0xff] %v977
        %3180 = vst [vmem:[%s3003] ss:$4 sm:$0xff] %v980
        %3181 = vst [vmem:[%s3005] ss:$4 sm:$0xff] %v983
        %3182 = vst [vmem:[%s3007] ss:$4 sm:$0xff] %v986
        %3183 = vst [vmem:[%s3009] ss:$4 sm:$0xff] %v989
        %3184 = vst [vmem:[%s3011] ss:$4 sm:$0xff] %v992
        %3185 = vst [vmem:[%s3013] ss:$4 sm:$0xff] %v995
        %3186 = vst [vmem:[%s3015] ss:$4 sm:$0xff] %v998
        %v3187 = vld.sshfl [vmem:[#allocation1] sm:$0xff pattern:$0x73625140]
        %v3188 = vld.sshfl [vmem:[#allocation1 + $0x20] sm:$0xff pattern:$0x73625140]
        %3189 = vst [vmem:[#allocation1] ss:$4 sm:$0xff] %v1002
        %3190 = vst [vmem:[%s3003] ss:$4 sm:$0xff] %v1005
        %3191 = vst [vmem:[%s3005] ss:$4 sm:$0xff] %v1008
        %3192 = vst [vmem:[%s3007] ss:$4 sm:$0xff] %v1011
        %3193 = vst [vmem:[%s3009] ss:$4 sm:$0xff] %v1014
        %3194 = vst [vmem:[%s3011] ss:$4 sm:$0xff] %v1017
        %3195 = vst [vmem:[%s3013] ss:$4 sm:$0xff] %v1020
        %3196 = vst [vmem:[%s3015] ss:$4 sm:$0xff] %v1023
        %v3197 = vld.sshfl [vmem:[#allocation1] sm:$0xff pattern:$0x73625140]
        %v3198 = vld.sshfl [vmem:[#allocation1 + $0x20] sm:$0xff pattern:$0x73625140]
        %3199 = vst [vmem:[#allocation1] ss:$4 sm:$0xff] %v1026
        %3200 = vst [vmem:[%s3003] ss:$4 sm:$0xff] %v2960
        %3201 = vst [vmem:[%s3005] ss:$4 sm:$0xff] %v2963
        %3202 = vst [vmem:[%s3007] ss:$4 sm:$0xff] %v2966
        %3203 = vst [vmem:[%s3009] ss:$4 sm:$0xff] %v2969
        %3204 = vst [vmem:[%s3011] ss:$4 sm:$0xff] %v2972
        %3205 = vst [vmem:[%s3013] ss:$4 sm:$0xff] %v2975
        %3206 = vst [vmem:[%s3015] ss:$4 sm:$0xff] %v2978
        %v3207 = vld.sshfl [vmem:[#allocation1] sm:$0xff pattern:$0x73625140]
        %v3208 = vld.sshfl [vmem:[#allocation1 + $0x20] sm:$0xff pattern:$0x73625140]
        %3209 = vst [vmem:[#allocation1] ss:$4 sm:$0xff] %v2981
        %3210 = vst [vmem:[%s3003] ss:$4 sm:$0xff] %v2984
        %v3211 = vld.sshfl [vmem:[#allocation1] sm:$0xff pattern:$0x73625140]
        %3253 = vmatpush.msra.mxu0 %v3001
        %3254 = vmatpush.msra.mxu0 %v3000
        %3255 = vmatpush.msra.mxu0 %v2999
        %3256 = vmatpush.msra.mxu0 %v2998
        %3257 = vmatpush.msra.mxu0 %v2997
        %3258 = vmatpush.msra.mxu0 %v2996
        %3259 = vmatpush.msra.mxu0 %v2995
        %3260 = vmatpush.msra.mxu0 %v2994
        %3261 = vmatpush.msra.mxu0 %v2993
        %3262 = vmatpush.msra.mxu0 %v2992
        %3263 = vmatpush.msra.mxu0 %v2991
        %3264 = vmatpush.msra.mxu0 %v2990
        %3265 = vmatpush.msra.mxu0 %v2989
        %3266 = vmatpush.msra.mxu0 %v2988
        %3267 = vmatpush.msra.mxu0 %v2987
        %3268 = vmatpush.msra.mxu0 %v2986
        %3269 = vmatmul.f32.gmra.mxu0 %v3017
        %v3270 = vpop.f32.mrf.mxu0
        %v3271 = vadd.f32 0.0, %v3270
        %3272 = vmatmul.f32.gmra.mxu0 %v3018
        %v3273 = vpop.f32.mrf.mxu0
        %v3274 = vadd.f32 0.0, %v3273
        %3275 = vmatmul.f32.gmra.mxu0 %v3027
        %v3276 = vpop.f32.mrf.mxu0
        %v3277 = vadd.f32 0.0, %v3276
        %3278 = vmatmul.f32.gmra.mxu0 %v3028
        %v3279 = vpop.f32.mrf.mxu0
        %v3280 = vadd.f32 0.0, %v3279
        %3281 = vmatmul.f32.gmra.mxu0 %v3037
        %v3282 = vpop.f32.mrf.mxu0
        %v3283 = vadd.f32 0.0, %v3282
        %3284 = vmatmul.f32.gmra.mxu0 %v3038
        %v3285 = vpop.f32.mrf.mxu0
        %v3286 = vadd.f32 0.0, %v3285
        %3287 = vmatmul.f32.gmra.mxu0 %v3047
        %v3288 = vpop.f32.mrf.mxu0
        %v3289 = vadd.f32 0.0, %v3288
        %3290 = vmatmul.f32.gmra.mxu0 %v3048
        %v3291 = vpop.f32.mrf.mxu0
        %v3292 = vadd.f32 0.0, %v3291
        %3293 = vmatmul.f32.gmra.mxu0 %v3057
        %v3294 = vpop.f32.mrf.mxu0
        %v3295 = vadd.f32 0.0, %v3294
        %3296 = vmatmul.f32.gmra.mxu0 %v3058
        %v3297 = vpop.f32.mrf.mxu0
        %v3298 = vadd.f32 0.0, %v3297
        %3299 = vmatmul.f32.gmra.mxu0 %v3067
        %v3300 = vpop.f32.mrf.mxu0
        %v3301 = vadd.f32 0.0, %v3300
        %3302 = vmatmul.f32.gmra.mxu0 %v3068
        %v3303 = vpop.f32.mrf.mxu0
        %v3304 = vadd.f32 0.0, %v3303
        %3305 = vmatmul.f32.gmra.mxu0 %v3077
        %v3306 = vpop.f32.mrf.mxu0
        %v3307 = vadd.f32 0.0, %v3306
        %3308 = vmatmul.f32.gmra.mxu0 %v3078
        %v3309 = vpop.f32.mrf.mxu0
        %v3310 = vadd.f32 0.0, %v3309
        %3311 = vmatmul.f32.gmra.mxu0 %v3087
        %v3312 = vpop.f32.mrf.mxu0
        %v3313 = vadd.f32 0.0, %v3312
        %3314 = vmatmul.f32.gmra.mxu0 %v3088
        %v3315 = vpop.f32.mrf.mxu0
        %v3316 = vadd.f32 0.0, %v3315
        %3317 = vmatmul.f32.gmra.mxu0 %v3097
        %v3318 = vpop.f32.mrf.mxu0
        %v3319 = vadd.f32 0.0, %v3318
        %3320 = vmatmul.f32.gmra.mxu0 %v3098
        %v3321 = vpop.f32.mrf.mxu0
        %v3322 = vadd.f32 0.0, %v3321
        %3323 = vmatmul.f32.gmra.mxu0 %v3107
        %v3324 = vpop.f32.mrf.mxu0
        %v3325 = vadd.f32 0.0, %v3324
        %3326 = vmatmul.f32.gmra.mxu0 %v3108
        %v3327 = vpop.f32.mrf.mxu0
        %v3328 = vadd.f32 0.0, %v3327
        %3329 = vmatmul.f32.gmra.mxu0 %v3117
        %v3330 = vpop.f32.mrf.mxu0
        %v3331 = vadd.f32 0.0, %v3330
        %3332 = vmatmul.f32.gmra.mxu0 %v3118
        %v3333 = vpop.f32.mrf.mxu0
        %v3334 = vadd.f32 0.0, %v3333
        %3335 = vmatmul.f32.gmra.mxu0 %v3127
        %v3336 = vpop.f32.mrf.mxu0
        %v3337 = vadd.f32 0.0, %v3336
        %3338 = vmatmul.f32.gmra.mxu0 %v3128
        %v3339 = vpop.f32.mrf.mxu0
        %v3340 = vadd.f32 0.0, %v3339
        %3341 = vmatmul.f32.gmra.mxu0 %v3137
        %v3342 = vpop.f32.mrf.mxu0
        %v3343 = vadd.f32 0.0, %v3342
        %3344 = vmatmul.f32.gmra.mxu0 %v3138
        %v3345 = vpop.f32.mrf.mxu0
        %v3346 = vadd.f32 0.0, %v3345
        %3347 = vmatmul.f32.gmra.mxu0 %v3147
        %v3348 = vpop.f32.mrf.mxu0
        %v3349 = vadd.f32 0.0, %v3348
        %3350 = vmatmul.f32.gmra.mxu0 %v3148
        %v3351 = vpop.f32.mrf.mxu0
        %v3352 = vadd.f32 0.0, %v3351
        %3353 = vmatmul.f32.gmra.mxu0 %v3157
        %v3354 = vpop.f32.mrf.mxu0
        %v3355 = vadd.f32 0.0, %v3354
        %3356 = vmatmul.f32.gmra.mxu0 %v3158
        %v3357 = vpop.f32.mrf.mxu0
        %v3358 = vadd.f32 0.0, %v3357
        %3359 = vmatmul.f32.gmra.mxu0 %v3167
        %v3360 = vpop.f32.mrf.mxu0
        %v3361 = vadd.f32 0.0, %v3360
        %3362 = vmatmul.f32.gmra.mxu0 %v3168
        %v3363 = vpop.f32.mrf.mxu0
        %v3364 = vadd.f32 0.0, %v3363
        %3365 = vmatmul.f32.gmra.mxu0 %v3177
        %v3366 = vpop.f32.mrf.mxu0
        %v3367 = vadd.f32 0.0, %v3366
        %3368 = vmatmul.f32.gmra.mxu0 %v3178
        %v3369 = vpop.f32.mrf.mxu0
        %v3370 = vadd.f32 0.0, %v3369
        %3371 = vmatmul.f32.gmra.mxu0 %v3187
        %v3372 = vpop.f32.mrf.mxu0
        %v3373 = vadd.f32 0.0, %v3372
        %3374 = vmatmul.f32.gmra.mxu0 %v3188
        %v3375 = vpop.f32.mrf.mxu0
        %v3376 = vadd.f32 0.0, %v3375
        %3377 = vmatmul.f32.gmra.mxu0 %v3197
        %v3378 = vpop.f32.mrf.mxu0
        %v3379 = vadd.f32 0.0, %v3378
        %3380 = vmatmul.f32.gmra.mxu0 %v3198
        %v3381 = vpop.f32.mrf.mxu0
        %v3382 = vadd.f32 0.0, %v3381
        %3383 = vmatmul.f32.gmra.mxu0 %v3207
        %v3384 = vpop.f32.mrf.mxu0
        %v3385 = vadd.f32 0.0, %v3384
        %3386 = vmatmul.f32.gmra.mxu0 %v3208
        %v3387 = vpop.f32.mrf.mxu0
        %v3388 = vadd.f32 0.0, %v3387
        %3389 = vmatmul.f32.gmra.mxu0 %v3211
        %v3390 = vpop.f32.mrf.mxu0
        %v3391 = vadd.f32 0.0, %v3390
        %3392 = vdwg.mxu0
        %v3393 = vadd.f32 %v2915, %v3271
        %v3394 = vadd.f32 %v2916, %v3274
        %v3395 = vadd.f32 %v2917, %v3277
        %v3396 = vadd.f32 %v2918, %v3280
        %v3397 = vadd.f32 %v2919, %v3283
        %v3398 = vadd.f32 %v2920, %v3286
        %v3399 = vadd.f32 %v2921, %v3289
        %v3400 = vadd.f32 %v2922, %v3292
        %v3401 = vadd.f32 %v2923, %v3295
        %v3402 = vadd.f32 %v2924, %v3298
        %v3403 = vadd.f32 %v2925, %v3301
        %v3404 = vadd.f32 %v2926, %v3304
        %v3405 = vadd.f32 %v2927, %v3307
        %v3406 = vadd.f32 %v2928, %v3310
        %v3407 = vadd.f32 %v2929, %v3313
        %v3408 = vadd.f32 %v2930, %v3316
        %v3409 = vadd.f32 %v2931, %v3319
        %v3410 = vadd.f32 %v2932, %v3322
        %v3411 = vadd.f32 %v2933, %v3325
        %v3412 = vadd.f32 %v2934, %v3328
        %v3413 = vadd.f32 %v2935, %v3331
        %v3414 = vadd.f32 %v2936, %v3334
        %v3415 = vadd.f32 %v2937, %v3337
        %v3416 = vadd.f32 %v2938, %v3340
        %v3417 = vadd.f32 %v2939, %v3343
        %v3418 = vadd.f32 %v2940, %v3346
        %v3419 = vadd.f32 %v2941, %v3349
        %v3420 = vadd.f32 %v2942, %v3352
        %v3421 = vadd.f32 %v2943, %v3355
        %v3422 = vadd.f32 %v2944, %v3358
        %v3423 = vadd.f32 %v2945, %v3361
        %v3424 = vadd.f32 %v2946, %v3364
        %v3425 = vadd.f32 %v2947, %v3367
        %v3426 = vadd.f32 %v2948, %v3370
        %v3427 = vadd.f32 %v2949, %v3373
        %v3428 = vadd.f32 %v2950, %v3376
        %v3429 = vadd.f32 %v2951, %v3379
        %v3430 = vadd.f32 %v2952, %v3382
        %v3431 = vadd.f32 %v2953, %v3385
        %v3432 = vadd.f32 %v2954, %v3388
        %v3433 = vadd.f32 %v2955, %v3391
        %3434 = vst.sshfl [vmem:[#allocation1] sm:$0xff pattern:$0x73625140] %v261
        %3435 = vst.sshfl [vmem:[#allocation1 + $0x20] sm:$0xff pattern:$0x73625140] %v262
        %s3436 = scalar_lea.vmem [#allocation1], 1
        %v3437 = vld [vmem:[%s3436] ss:$4 sm:$0xff]
        %s3438 = scalar_lea.vmem [#allocation1], 2
        %v3439 = vld [vmem:[%s3438] ss:$4 sm:$0xff]
        %s3440 = scalar_lea.vmem [#allocation1], 3
        %v3441 = vld [vmem:[%s3440] ss:$4 sm:$0xff]
        %s3442 = scalar_lea.vmem [#allocation1], 32
        %v3443 = vld [vmem:[%s3442] ss:$4 sm:$0xff]
        %s3444 = scalar_lea.vmem [#allocation1], 33
        %v3445 = vld [vmem:[%s3444] ss:$4 sm:$0xff]
        %s3446 = scalar_lea.vmem [#allocation1], 34
        %v3447 = vld [vmem:[%s3446] ss:$4 sm:$0xff]
        %s3448 = scalar_lea.vmem [#allocation1], 35
        %v3449 = vld [vmem:[%s3448] ss:$4 sm:$0xff]
        %3450 = vst.sshfl [vmem:[#allocation1] sm:$0xff pattern:$0x73625140] %v263
        %v3451 = vld [vmem:[#allocation1] ss:$4 sm:$0xff]
        %v3452 = vld [vmem:[%s3436] ss:$4 sm:$0xff]
        %3453 = vst.sshfl [vmem:[#allocation1 + $0x20] sm:$0xff pattern:$0x73625140] %v264
        %v3454 = vld [vmem:[%s3444] ss:$4 sm:$0xff]
        %v3455 = vld [vmem:[%s3446] ss:$4 sm:$0xff]
        %v3456 = vld [vmem:[%s3448] ss:$4 sm:$0xff]
        %3457 = vst.sshfl [vmem:[#allocation1] sm:$0xff pattern:$0x73625140] %v265
        %3458 = vst.sshfl [vmem:[#allocation1 + $0x20] sm:$0xff pattern:$0x73625140] %v266
        %v3459 = vld [vmem:[#allocation1] ss:$4 sm:$0xff]
        %v3460 = vld [vmem:[%s3436] ss:$4 sm:$0xff]
        %v3461 = vld [vmem:[%s3438] ss:$4 sm:$0xff]
        %v3462 = vld [vmem:[%s3440] ss:$4 sm:$0xff]
        %v3463 = vld [vmem:[%s3442] ss:$4 sm:$0xff]
        %v3464 = vld [vmem:[%s3444] ss:$4 sm:$0xff]
        %3465 = vst.sshfl [vmem:[#allocation1] sm:$0xff pattern:$0x73625140] %v267
        %3466 = vst.sshfl [vmem:[#allocation1 + $0x20] sm:$0xff pattern:$0x73625140] %v268
        %v3467 = vld [vmem:[%s3436] ss:$4 sm:$0xff]
        %v3468 = vld [vmem:[%s3438] ss:$4 sm:$0xff]
        %v3469 = vld [vmem:[%s3440] ss:$4 sm:$0xff]
        %v3470 = vld [vmem:[%s3442] ss:$4 sm:$0xff]
        %v3471 = vld [vmem:[%s3444] ss:$4 sm:$0xff]
        %v3472 = vld [vmem:[%s3446] ss:$4 sm:$0xff]
        %v3473 = vld [vmem:[%s3448] ss:$4 sm:$0xff]
        %3474 = vst.sshfl [vmem:[#allocation1] sm:$0xff pattern:$0x73625140] %v269
        %v3475 = vld [vmem:[#allocation1] ss:$4 sm:$0xff]
        %v3476 = vld [vmem:[%s3436] ss:$4 sm:$0xff]
        %3477 = vst.sshfl [vmem:[#allocation1 + $0x20] sm:$0xff pattern:$0x73625140] %v270
        %v3478 = vld [vmem:[%s3444] ss:$4 sm:$0xff]
        %v3479 = vld [vmem:[%s3446] ss:$4 sm:$0xff]
        %v3480 = vld [vmem:[%s3448] ss:$4 sm:$0xff]
        %3481 = vst.sshfl [vmem:[#allocation1] sm:$0xff pattern:$0x73625140] %v271
        %3482 = vst.sshfl [vmem:[#allocation1 + $0x20] sm:$0xff pattern:$0x73625140] %v272
        %v3483 = vld [vmem:[#allocation1] ss:$4 sm:$0xff]
        %v3484 = vld [vmem:[%s3436] ss:$4 sm:$0xff]
        %v3485 = vld [vmem:[%s3438] ss:$4 sm:$0xff]
        %v3486 = vld [vmem:[%s3440] ss:$4 sm:$0xff]
        %v3487 = vld [vmem:[%s3442] ss:$4 sm:$0xff]
        %v3488 = vld [vmem:[%s3444] ss:$4 sm:$0xff]
        %3489 = vst.sshfl [vmem:[#allocation1] sm:$0xff pattern:$0x73625140] %v273
        %3490 = vst.sshfl [vmem:[#allocation1 + $0x20] sm:$0xff pattern:$0x73625140] %v274
        %v3491 = vld [vmem:[%s3436] ss:$4 sm:$0xff]
        %v3492 = vld [vmem:[%s3438] ss:$4 sm:$0xff]
        %v3493 = vld [vmem:[%s3440] ss:$4 sm:$0xff]
        %v3494 = vld [vmem:[%s3442] ss:$4 sm:$0xff]
        %v3495 = vld [vmem:[%s3444] ss:$4 sm:$0xff]
        %v3496 = vld [vmem:[%s3446] ss:$4 sm:$0xff]
        %v3497 = vld [vmem:[%s3448] ss:$4 sm:$0xff]
        %3498 = vst.sshfl [vmem:[#allocation1] sm:$0xff pattern:$0x73625140] %v275
        %v3499 = vld [vmem:[#allocation1] ss:$4 sm:$0xff]
        %v3500 = vld [vmem:[%s3436] ss:$4 sm:$0xff]
        %3501 = vst.sshfl [vmem:[#allocation1 + $0x20] sm:$0xff pattern:$0x73625140] %v276
        %v3502 = vld [vmem:[%s3444] ss:$4 sm:$0xff]
        %v3503 = vld [vmem:[%s3446] ss:$4 sm:$0xff]
        %v3504 = vld [vmem:[%s3448] ss:$4 sm:$0xff]
        %3505 = vst.sshfl [vmem:[#allocation1] sm:$0xff pattern:$0x73625140] %v277
        %3506 = vst.sshfl [vmem:[#allocation1 + $0x20] sm:$0xff pattern:$0x73625140] %v278
        %v3507 = vld [vmem:[#allocation1] ss:$4 sm:$0xff]
        %v3508 = vld [vmem:[%s3436] ss:$4 sm:$0xff]
        %v3509 = vld [vmem:[%s3438] ss:$4 sm:$0xff]
        %v3510 = vld [vmem:[%s3440] ss:$4 sm:$0xff]
        %v3511 = vld [vmem:[%s3442] ss:$4 sm:$0xff]
        %v3512 = vld [vmem:[%s3444] ss:$4 sm:$0xff]
        %3513 = vst.sshfl [vmem:[#allocation1] sm:$0xff pattern:$0x73625140] %v279
        %3514 = vst.sshfl [vmem:[#allocation1 + $0x20] sm:$0xff pattern:$0x73625140] %v280
        %v3515 = vld [vmem:[%s3436] ss:$4 sm:$0xff]
        %v3516 = vld [vmem:[%s3438] ss:$4 sm:$0xff]
        %v3517 = vld [vmem:[%s3440] ss:$4 sm:$0xff]
        %v3518 = vld [vmem:[%s3442] ss:$4 sm:$0xff]
        %v3519 = vld [vmem:[%s3444] ss:$4 sm:$0xff]
        %v3520 = vld [vmem:[%s3446] ss:$4 sm:$0xff]
        %v3521 = vld [vmem:[%s3448] ss:$4 sm:$0xff]
        %3522 = vst.sshfl [vmem:[#allocation1] sm:$0xff pattern:$0x73625140] %v281
        %v3523 = vld [vmem:[#allocation1] ss:$4 sm:$0xff]
        %v3524 = vld [vmem:[%s3436] ss:$4 sm:$0xff]
        %3525 = vst.sshfl [vmem:[#allocation1 + $0x20] sm:$0xff pattern:$0x73625140] %v282
        %v3526 = vld [vmem:[%s3444] ss:$4 sm:$0xff]
        %v3527 = vld [vmem:[%s3446] ss:$4 sm:$0xff]
        %v3528 = vld [vmem:[%s3448] ss:$4 sm:$0xff]
        %3529 = vst.sshfl [vmem:[#allocation1] sm:$0xff pattern:$0x73625140] %v283
        %3530 = vst.sshfl [vmem:[#allocation1 + $0x20] sm:$0xff pattern:$0x73625140] %v284
        %v3531 = vld [vmem:[#allocation1] ss:$4 sm:$0xff]
        %v3532 = vld [vmem:[%s3436] ss:$4 sm:$0xff]
        %v3533 = vld [vmem:[%s3438] ss:$4 sm:$0xff]
        %v3534 = vld [vmem:[%s3440] ss:$4 sm:$0xff]
        %v3535 = vld [vmem:[%s3442] ss:$4 sm:$0xff]
        %v3536 = vld [vmem:[%s3444] ss:$4 sm:$0xff]
        %3537 = vst.sshfl [vmem:[#allocation1] sm:$0xff pattern:$0x73625140] %v285
        %3538 = vst.sshfl [vmem:[#allocation1 + $0x20] sm:$0xff pattern:$0x73625140] %v286
        %v3539 = vld [vmem:[%s3436] ss:$4 sm:$0xff]
        %v3540 = vld [vmem:[%s3438] ss:$4 sm:$0xff]
        %v3541 = vld [vmem:[%s3440] ss:$4 sm:$0xff]
        %v3542 = vld [vmem:[%s3442] ss:$4 sm:$0xff]
        %v3543 = vld [vmem:[%s3444] ss:$4 sm:$0xff]
        %v3544 = vld [vmem:[%s3446] ss:$4 sm:$0xff]
        %v3545 = vld [vmem:[%s3448] ss:$4 sm:$0xff]
        %3546 = vst.sshfl [vmem:[#allocation1] sm:$0xff pattern:$0x73625140] %v287
        %v3547 = vld [vmem:[#allocation1] ss:$4 sm:$0xff]
        %v3548 = vld [vmem:[%s3436] ss:$4 sm:$0xff]
        %3549 = vst.sshfl [vmem:[#allocation1 + $0x20] sm:$0xff pattern:$0x73625140] %v288
        %v3550 = vld [vmem:[%s3444] ss:$4 sm:$0xff]
        %v3551 = vld [vmem:[%s3446] ss:$4 sm:$0xff]
        %v3552 = vld [vmem:[%s3448] ss:$4 sm:$0xff]
        %3553 = vst.sshfl [vmem:[#allocation1] sm:$0xff pattern:$0x73625140] %v289
        %3554 = vst.sshfl [vmem:[#allocation1 + $0x20] sm:$0xff pattern:$0x73625140] %v290
        %v3555 = vld [vmem:[#allocation1] ss:$4 sm:$0xff]
        %v3556 = vld [vmem:[%s3436] ss:$4 sm:$0xff]
        %v3557 = vld [vmem:[%s3438] ss:$4 sm:$0xff]
        %v3558 = vld [vmem:[%s3440] ss:$4 sm:$0xff]
        %v3559 = vld [vmem:[%s3442] ss:$4 sm:$0xff]
        %v3560 = vld [vmem:[%s3444] ss:$4 sm:$0xff]
        %3561 = vst.sshfl [vmem:[#allocation1] sm:$0xff pattern:$0x73625140] %v291
        %3562 = vst.sshfl [vmem:[#allocation1 + $0x20] sm:$0xff pattern:$0x73625140] %v292
        %v3563 = vld [vmem:[%s3436] ss:$4 sm:$0xff]
        %v3564 = vld [vmem:[%s3438] ss:$4 sm:$0xff]
        %v3565 = vld [vmem:[%s3440] ss:$4 sm:$0xff]
        %v3566 = vld [vmem:[%s3442] ss:$4 sm:$0xff]
        %v3567 = vld [vmem:[%s3444] ss:$4 sm:$0xff]
        %v3568 = vld [vmem:[%s3446] ss:$4 sm:$0xff]
        %v3569 = vld [vmem:[%s3448] ss:$4 sm:$0xff]
        %3570 = vst.sshfl [vmem:[#allocation1] sm:$0xff pattern:$0x73625140] %v293
        %v3571 = vld [vmem:[#allocation1] ss:$4 sm:$0xff]
        %v3572 = vld [vmem:[%s3436] ss:$4 sm:$0xff]
        %3573 = vst.sshfl [vmem:[#allocation1 + $0x20] sm:$0xff pattern:$0x73625140] %v294
        %v3574 = vld [vmem:[%s3444] ss:$4 sm:$0xff]
        %v3575 = vld [vmem:[%s3446] ss:$4 sm:$0xff]
        %v3576 = vld [vmem:[%s3448] ss:$4 sm:$0xff]
        %3577 = vst.sshfl [vmem:[#allocation1] sm:$0xff pattern:$0x73625140] %v295
        %3578 = vst.sshfl [vmem:[#allocation1 + $0x20] sm:$0xff pattern:$0x73625140] %v296
        %v3579 = vld [vmem:[#allocation1] ss:$4 sm:$0xff]
        %v3580 = vld [vmem:[%s3436] ss:$4 sm:$0xff]
        %v3581 = vld [vmem:[%s3438] ss:$4 sm:$0xff]
        %v3582 = vld [vmem:[%s3440] ss:$4 sm:$0xff]
        %v3583 = vld [vmem:[%s3442] ss:$4 sm:$0xff]
        %v3584 = vld [vmem:[%s3444] ss:$4 sm:$0xff]
        %3585 = vst.sshfl [vmem:[#allocation1] sm:$0xff pattern:$0x73625140] %v297
        %3586 = vst.sshfl [vmem:[#allocation1 + $0x20] sm:$0xff pattern:$0x73625140] %v298
        %v3587 = vld [vmem:[%s3436] ss:$4 sm:$0xff]
        %v3588 = vld [vmem:[%s3438] ss:$4 sm:$0xff]
        %v3589 = vld [vmem:[%s3440] ss:$4 sm:$0xff]
        %v3590 = vld [vmem:[%s3442] ss:$4 sm:$0xff]
        %v3591 = vld [vmem:[%s3444] ss:$4 sm:$0xff]
        %v3592 = vld [vmem:[%s3446] ss:$4 sm:$0xff]
        %v3593 = vld [vmem:[%s3448] ss:$4 sm:$0xff]
        %3594 = vst.sshfl [vmem:[#allocation1] sm:$0xff pattern:$0x73625140] %v299
        %v3595 = vld [vmem:[#allocation1] ss:$4 sm:$0xff]
        %v3596 = vld [vmem:[%s3436] ss:$4 sm:$0xff]
        %3597 = vst.sshfl [vmem:[#allocation1 + $0x20] sm:$0xff pattern:$0x73625140] %v300
        %v3598 = vld [vmem:[%s3444] ss:$4 sm:$0xff]
        %v3599 = vld [vmem:[%s3446] ss:$4 sm:$0xff]
        %v3600 = vld [vmem:[%s3448] ss:$4 sm:$0xff]
        %3601 = vst.sshfl [vmem:[#allocation1] sm:$0xff pattern:$0x73625140] %v301
        %3602 = vst.sshfl [vmem:[#allocation1 + $0x20] sm:$0xff pattern:$0x73625140] %v302
        %v3603 = vld [vmem:[#allocation1] ss:$4 sm:$0xff]
        %v3604 = vld [vmem:[%s3436] ss:$4 sm:$0xff]
        %v3605 = vld [vmem:[%s3438] ss:$4 sm:$0xff]
        %v3606 = vld [vmem:[%s3440] ss:$4 sm:$0xff]
        %v3607 = vld [vmem:[%s3442] ss:$4 sm:$0xff]
        %v3608 = vld [vmem:[%s3444] ss:$4 sm:$0xff]
        %3609 = vst.sshfl [vmem:[#allocation1] sm:$0xff pattern:$0x73625140] %v303
        %3610 = vst.sshfl [vmem:[#allocation1 + $0x20] sm:$0xff pattern:$0x73625140] %v304
        %v3611 = vld [vmem:[%s3436] ss:$4 sm:$0xff]
        %v3612 = vld [vmem:[%s3438] ss:$4 sm:$0xff]
        %v3613 = vld [vmem:[%s3440] ss:$4 sm:$0xff]
        %v3614 = vld [vmem:[%s3442] ss:$4 sm:$0xff]
        %v3615 = vld [vmem:[%s3444] ss:$4 sm:$0xff]
        %v3616 = vld [vmem:[%s3446] ss:$4 sm:$0xff]
        %v3617 = vld [vmem:[%s3448] ss:$4 sm:$0xff]
        %3618 = vst.sshfl [vmem:[#allocation1] sm:$0xff pattern:$0x73625140] %v305
        %v3619 = vld [vmem:[#allocation1] ss:$4 sm:$0xff]
        %v3620 = vld [vmem:[%s3436] ss:$4 sm:$0xff]
        %3621 = vst.sshfl [vmem:[#allocation1 + $0x20] sm:$0xff pattern:$0x73625140] %v306
        %v3622 = vld [vmem:[%s3444] ss:$4 sm:$0xff]
        %v3623 = vld [vmem:[%s3446] ss:$4 sm:$0xff]
        %v3624 = vld [vmem:[%s3448] ss:$4 sm:$0xff]
        %3625 = vst.sshfl [vmem:[#allocation1] sm:$0xff pattern:$0x73625140] %v307
        %3626 = vst.sshfl [vmem:[#allocation1 + $0x20] sm:$0xff pattern:$0x73625140] %v308
        %v3627 = vld [vmem:[#allocation1] ss:$4 sm:$0xff]
        %v3628 = vld [vmem:[%s3436] ss:$4 sm:$0xff]
        %v3629 = vld [vmem:[%s3438] ss:$4 sm:$0xff]
        %v3630 = vld [vmem:[%s3440] ss:$4 sm:$0xff]
        %v3631 = vld [vmem:[%s3442] ss:$4 sm:$0xff]
        %v3632 = vld [vmem:[%s3444] ss:$4 sm:$0xff]
        %3633 = vst.sshfl [vmem:[#allocation1] sm:$0xff pattern:$0x73625140] %v309
        %3634 = vst.sshfl [vmem:[#allocation1 + $0x20] sm:$0xff pattern:$0x73625140] %v310
        %v3635 = vld [vmem:[%s3436] ss:$4 sm:$0xff]
        %v3636 = vld [vmem:[%s3438] ss:$4 sm:$0xff]
        %v3637 = vld [vmem:[%s3440] ss:$4 sm:$0xff]
        %v3638 = vld [vmem:[%s3442] ss:$4 sm:$0xff]
        %v3639 = vld [vmem:[%s3444] ss:$4 sm:$0xff]
        %v3640 = vld [vmem:[%s3446] ss:$4 sm:$0xff]
        %v3641 = vld [vmem:[%s3448] ss:$4 sm:$0xff]
        %3642 = vst.sshfl [vmem:[#allocation1] sm:$0xff pattern:$0x73625140] %v311
        %v3643 = vld [vmem:[#allocation1] ss:$4 sm:$0xff]
        %v3644 = vld [vmem:[%s3436] ss:$4 sm:$0xff]
        %3645 = vst.sshfl [vmem:[#allocation1 + $0x20] sm:$0xff pattern:$0x73625140] %v312
        %v3646 = vld [vmem:[%s3444] ss:$4 sm:$0xff]
        %v3647 = vld [vmem:[%s3446] ss:$4 sm:$0xff]
        %v3648 = vld [vmem:[%s3448] ss:$4 sm:$0xff]
        %3649 = vst.sshfl [vmem:[#allocation1] sm:$0xff pattern:$0x73625140] %v313
        %3650 = vst.sshfl [vmem:[#allocation1 + $0x20] sm:$0xff pattern:$0x73625140] %v314
        %v3651 = vld [vmem:[#allocation1] ss:$4 sm:$0xff]
        %v3652 = vld [vmem:[%s3436] ss:$4 sm:$0xff]
        %v3653 = vld [vmem:[%s3438] ss:$4 sm:$0xff]
        %v3654 = vld [vmem:[%s3440] ss:$4 sm:$0xff]
        %v3655 = vld [vmem:[%s3442] ss:$4 sm:$0xff]
        %v3656 = vld [vmem:[%s3444] ss:$4 sm:$0xff]
        %s3657 = scalar_lea.vmem %s1, 640
        %v3658 = vld [vmem:[%s3657] sm:$0xff]
        %v3659 = vld [vmem:[%s3657 + $0x8] sm:$0xff]
        %v3660 = vld [vmem:[%s3657 + $0x10] sm:$0xff]
        %v3661 = vld [vmem:[%s3657 + $0x18] sm:$0xff]
        %v3662 = vld [vmem:[%s3657 + $0x20] sm:$0xff]
        %v3663 = vld [vmem:[%s3657 + $0x28] sm:$0xff]
        %v3664 = vld [vmem:[%s3657 + $0x30] sm:$0xff]
        %v3665 = vld [vmem:[%s3657 + $0x38] sm:$0xff]
        %v3666 = vld [vmem:[%s3657 + $0x40] sm:$0xff]
        %v3667 = vld [vmem:[%s3657 + $0x48] sm:$0xff]
        %v3668 = vld [vmem:[%s3657 + $0x50] sm:$0xff]
        %v3669 = vld [vmem:[%s3657 + $0x58] sm:$0xff]
        %v3670 = vld [vmem:[%s3657 + $0x60] sm:$0xff]
        %v3671 = vld [vmem:[%s3657 + $0x68] sm:$0xff]
        %v3672 = vld [vmem:[%s3657 + $0x70] sm:$0xff]
        %v3673 = vld [vmem:[%s3657 + $0x78] sm:$0xff]
        %3674 = vst [vmem:[#allocation1] ss:$4 sm:$0xff] %v3437
        %s3675 = scalar_lea.vmem [#allocation1], 1
        %3676 = vst [vmem:[%s3675] ss:$4 sm:$0xff] %v3439
        %s3677 = scalar_lea.vmem [#allocation1], 2
        %3678 = vst [vmem:[%s3677] ss:$4 sm:$0xff] %v3441
        %s3679 = scalar_lea.vmem [#allocation1], 3
        %3680 = vst [vmem:[%s3679] ss:$4 sm:$0xff] %v3443
        %s3681 = scalar_lea.vmem [#allocation1], 32
        %3682 = vst [vmem:[%s3681] ss:$4 sm:$0xff] %v3445
        %s3683 = scalar_lea.vmem [#allocation1], 33
        %3684 = vst [vmem:[%s3683] ss:$4 sm:$0xff] %v3447
        %s3685 = scalar_lea.vmem [#allocation1], 34
        %3686 = vst [vmem:[%s3685] ss:$4 sm:$0xff] %v3449
        %s3687 = scalar_lea.vmem [#allocation1], 35
        %3688 = vst [vmem:[%s3687] ss:$4 sm:$0xff] %v3451
        %v3689 = vld.sshfl [vmem:[#allocation1] sm:$0xff pattern:$0x73625140]
        %v3690 = vld.sshfl [vmem:[#allocation1 + $0x20] sm:$0xff pattern:$0x73625140]
        %3691 = vst [vmem:[#allocation1] ss:$4 sm:$0xff] %v3452
        %3692 = vst [vmem:[%s3675] ss:$4 sm:$0xff] %v3454
        %3693 = vst [vmem:[%s3677] ss:$4 sm:$0xff] %v3455
        %3694 = vst [vmem:[%s3679] ss:$4 sm:$0xff] %v3456
        %3695 = vst [vmem:[%s3681] ss:$4 sm:$0xff] %v3459
        %3696 = vst [vmem:[%s3683] ss:$4 sm:$0xff] %v3460
        %3697 = vst [vmem:[%s3685] ss:$4 sm:$0xff] %v3461
        %3698 = vst [vmem:[%s3687] ss:$4 sm:$0xff] %v3462
        %v3699 = vld.sshfl [vmem:[#allocation1] sm:$0xff pattern:$0x73625140]
        %v3700 = vld.sshfl [vmem:[#allocation1 + $0x20] sm:$0xff pattern:$0x73625140]
        %3701 = vst [vmem:[#allocation1] ss:$4 sm:$0xff] %v3463
        %3702 = vst [vmem:[%s3675] ss:$4 sm:$0xff] %v3464
        %3703 = vst [vmem:[%s3677] ss:$4 sm:$0xff] %v3467
        %3704 = vst [vmem:[%s3679] ss:$4 sm:$0xff] %v3468
        %3705 = vst [vmem:[%s3681] ss:$4 sm:$0xff] %v3469
        %3706 = vst [vmem:[%s3683] ss:$4 sm:$0xff] %v3470
        %3707 = vst [vmem:[%s3685] ss:$4 sm:$0xff] %v3471
        %3708 = vst [vmem:[%s3687] ss:$4 sm:$0xff] %v3472
        %v3709 = vld.sshfl [vmem:[#allocation1] sm:$0xff pattern:$0x73625140]
        %v3710 = vld.sshfl [vmem:[#allocation1 + $0x20] sm:$0xff pattern:$0x73625140]
        %3711 = vst [vmem:[#allocation1] ss:$4 sm:$0xff] %v3473
        %3712 = vst [vmem:[%s3675] ss:$4 sm:$0xff] %v3475
        %3713 = vst [vmem:[%s3677] ss:$4 sm:$0xff] %v3476
        %3714 = vst [vmem:[%s3679] ss:$4 sm:$0xff] %v3478
        %3715 = vst [vmem:[%s3681] ss:$4 sm:$0xff] %v3479
        %3716 = vst [vmem:[%s3683] ss:$4 sm:$0xff] %v3480
        %3717 = vst [vmem:[%s3685] ss:$4 sm:$0xff] %v3483
        %3718 = vst [vmem:[%s3687] ss:$4 sm:$0xff] %v3484
        %v3719 = vld.sshfl [vmem:[#allocation1] sm:$0xff pattern:$0x73625140]
        %v3720 = vld.sshfl [vmem:[#allocation1 + $0x20] sm:$0xff pattern:$0x73625140]
        %3721 = vst [vmem:[#allocation1] ss:$4 sm:$0xff] %v3485
        %3722 = vst [vmem:[%s3675] ss:$4 sm:$0xff] %v3486
        %3723 = vst [vmem:[%s3677] ss:$4 sm:$0xff] %v3487
        %3724 = vst [vmem:[%s3679] ss:$4 sm:$0xff] %v3488
        %3725 = vst [vmem:[%s3681] ss:$4 sm:$0xff] %v3491
        %3726 = vst [vmem:[%s3683] ss:$4 sm:$0xff] %v3492
        %3727 = vst [vmem:[%s3685] ss:$4 sm:$0xff] %v3493
        %3728 = vst [vmem:[%s3687] ss:$4 sm:$0xff] %v3494
        %v3729 = vld.sshfl [vmem:[#allocation1] sm:$0xff pattern:$0x73625140]
        %v3730 = vld.sshfl [vmem:[#allocation1 + $0x20] sm:$0xff pattern:$0x73625140]
        %3731 = vst [vmem:[#allocation1] ss:$4 sm:$0xff] %v3495
        %3732 = vst [vmem:[%s3675] ss:$4 sm:$0xff] %v3496
        %3733 = vst [vmem:[%s3677] ss:$4 sm:$0xff] %v3497
        %3734 = vst [vmem:[%s3679] ss:$4 sm:$0xff] %v3499
        %3735 = vst [vmem:[%s3681] ss:$4 sm:$0xff] %v3500
        %3736 = vst [vmem:[%s3683] ss:$4 sm:$0xff] %v3502
        %3737 = vst [vmem:[%s3685] ss:$4 sm:$0xff] %v3503
        %3738 = vst [vmem:[%s3687] ss:$4 sm:$0xff] %v3504
        %v3739 = vld.sshfl [vmem:[#allocation1] sm:$0xff pattern:$0x73625140]
        %v3740 = vld.sshfl [vmem:[#allocation1 + $0x20] sm:$0xff pattern:$0x73625140]
        %3741 = vst [vmem:[#allocation1] ss:$4 sm:$0xff] %v3507
        %3742 = vst [vmem:[%s3675] ss:$4 sm:$0xff] %v3508
        %3743 = vst [vmem:[%s3677] ss:$4 sm:$0xff] %v3509
        %3744 = vst [vmem:[%s3679] ss:$4 sm:$0xff] %v3510
        %3745 = vst [vmem:[%s3681] ss:$4 sm:$0xff] %v3511
        %3746 = vst [vmem:[%s3683] ss:$4 sm:$0xff] %v3512
        %3747 = vst [vmem:[%s3685] ss:$4 sm:$0xff] %v3515
        %3748 = vst [vmem:[%s3687] ss:$4 sm:$0xff] %v3516
        %v3749 = vld.sshfl [vmem:[#allocation1] sm:$0xff pattern:$0x73625140]
        %v3750 = vld.sshfl [vmem:[#allocation1 + $0x20] sm:$0xff pattern:$0x73625140]
        %3751 = vst [vmem:[#allocation1] ss:$4 sm:$0xff] %v3517
        %3752 = vst [vmem:[%s3675] ss:$4 sm:$0xff] %v3518
        %3753 = vst [vmem:[%s3677] ss:$4 sm:$0xff] %v3519
        %3754 = vst [vmem:[%s3679] ss:$4 sm:$0xff] %v3520
        %3755 = vst [vmem:[%s3681] ss:$4 sm:$0xff] %v3521
        %3756 = vst [vmem:[%s3683] ss:$4 sm:$0xff] %v3523
        %3757 = vst [vmem:[%s3685] ss:$4 sm:$0xff] %v3524
        %3758 = vst [vmem:[%s3687] ss:$4 sm:$0xff] %v3526
        %v3759 = vld.sshfl [vmem:[#allocation1] sm:$0xff pattern:$0x73625140]
        %v3760 = vld.sshfl [vmem:[#allocation1 + $0x20] sm:$0xff pattern:$0x73625140]
        %3761 = vst [vmem:[#allocation1] ss:$4 sm:$0xff] %v3527
        %3762 = vst [vmem:[%s3675] ss:$4 sm:$0xff] %v3528
        %3763 = vst [vmem:[%s3677] ss:$4 sm:$0xff] %v3531
        %3764 = vst [vmem:[%s3679] ss:$4 sm:$0xff] %v3532
        %3765 = vst [vmem:[%s3681] ss:$4 sm:$0xff] %v3533
        %3766 = vst [vmem:[%s3683] ss:$4 sm:$0xff] %v3534
        %3767 = vst [vmem:[%s3685] ss:$4 sm:$0xff] %v3535
        %3768 = vst [vmem:[%s3687] ss:$4 sm:$0xff] %v3536
        %v3769 = vld.sshfl [vmem:[#allocation1] sm:$0xff pattern:$0x73625140]
        %v3770 = vld.sshfl [vmem:[#allocation1 + $0x20] sm:$0xff pattern:$0x73625140]
        %3771 = vst [vmem:[#allocation1] ss:$4 sm:$0xff] %v3539
        %3772 = vst [vmem:[%s3675] ss:$4 sm:$0xff] %v3540
        %3773 = vst [vmem:[%s3677] ss:$4 sm:$0xff] %v3541
        %3774 = vst [vmem:[%s3679] ss:$4 sm:$0xff] %v3542
        %3775 = vst [vmem:[%s3681] ss:$4 sm:$0xff] %v3543
        %3776 = vst [vmem:[%s3683] ss:$4 sm:$0xff] %v3544
        %3777 = vst [vmem:[%s3685] ss:$4 sm:$0xff] %v3545
        %3778 = vst [vmem:[%s3687] ss:$4 sm:$0xff] %v3547
        %v3779 = vld.sshfl [vmem:[#allocation1] sm:$0xff pattern:$0x73625140]
        %v3780 = vld.sshfl [vmem:[#allocation1 + $0x20] sm:$0xff pattern:$0x73625140]
        %3781 = vst [vmem:[#allocation1] ss:$4 sm:$0xff] %v3548
        %3782 = vst [vmem:[%s3675] ss:$4 sm:$0xff] %v3550
        %3783 = vst [vmem:[%s3677] ss:$4 sm:$0xff] %v3551
        %3784 = vst [vmem:[%s3679] ss:$4 sm:$0xff] %v3552
        %3785 = vst [vmem:[%s3681] ss:$4 sm:$0xff] %v3555
        %3786 = vst [vmem:[%s3683] ss:$4 sm:$0xff] %v3556
        %3787 = vst [vmem:[%s3685] ss:$4 sm:$0xff] %v3557
        %3788 = vst [vmem:[%s3687] ss:$4 sm:$0xff] %v3558
        %v3789 = vld.sshfl [vmem:[#allocation1] sm:$0xff pattern:$0x73625140]
        %v3790 = vld.sshfl [vmem:[#allocation1 + $0x20] sm:$0xff pattern:$0x73625140]
        %3791 = vst [vmem:[#allocation1] ss:$4 sm:$0xff] %v3559
        %3792 = vst [vmem:[%s3675] ss:$4 sm:$0xff] %v3560
        %3793 = vst [vmem:[%s3677] ss:$4 sm:$0xff] %v3563
        %3794 = vst [vmem:[%s3679] ss:$4 sm:$0xff] %v3564
        %3795 = vst [vmem:[%s3681] ss:$4 sm:$0xff] %v3565
        %3796 = vst [vmem:[%s3683] ss:$4 sm:$0xff] %v3566
        %3797 = vst [vmem:[%s3685] ss:$4 sm:$0xff] %v3567
        %3798 = vst [vmem:[%s3687] ss:$4 sm:$0xff] %v3568
        %v3799 = vld.sshfl [vmem:[#allocation1] sm:$0xff pattern:$0x73625140]
        %v3800 = vld.sshfl [vmem:[#allocation1 + $0x20] sm:$0xff pattern:$0x73625140]
        %3801 = vst [vmem:[#allocation1] ss:$4 sm:$0xff] %v3569
        %3802 = vst [vmem:[%s3675] ss:$4 sm:$0xff] %v3571
        %3803 = vst [vmem:[%s3677] ss:$4 sm:$0xff] %v3572
        %3804 = vst [vmem:[%s3679] ss:$4 sm:$0xff] %v3574
        %3805 = vst [vmem:[%s3681] ss:$4 sm:$0xff] %v3575
        %3806 = vst [vmem:[%s3683] ss:$4 sm:$0xff] %v3576
        %3807 = vst [vmem:[%s3685] ss:$4 sm:$0xff] %v3579
        %3808 = vst [vmem:[%s3687] ss:$4 sm:$0xff] %v3580
        %v3809 = vld.sshfl [vmem:[#allocation1] sm:$0xff pattern:$0x73625140]
        %v3810 = vld.sshfl [vmem:[#allocation1 + $0x20] sm:$0xff pattern:$0x73625140]
        %3811 = vst [vmem:[#allocation1] ss:$4 sm:$0xff] %v3581
        %3812 = vst [vmem:[%s3675] ss:$4 sm:$0xff] %v3582
        %3813 = vst [vmem:[%s3677] ss:$4 sm:$0xff] %v3583
        %3814 = vst [vmem:[%s3679] ss:$4 sm:$0xff] %v3584
        %3815 = vst [vmem:[%s3681] ss:$4 sm:$0xff] %v3587
        %3816 = vst [vmem:[%s3683] ss:$4 sm:$0xff] %v3588
        %3817 = vst [vmem:[%s3685] ss:$4 sm:$0xff] %v3589
        %3818 = vst [vmem:[%s3687] ss:$4 sm:$0xff] %v3590
        %v3819 = vld.sshfl [vmem:[#allocation1] sm:$0xff pattern:$0x73625140]
        %v3820 = vld.sshfl [vmem:[#allocation1 + $0x20] sm:$0xff pattern:$0x73625140]
        %3821 = vst [vmem:[#allocation1] ss:$4 sm:$0xff] %v3591
        %3822 = vst [vmem:[%s3675] ss:$4 sm:$0xff] %v3592
        %3823 = vst [vmem:[%s3677] ss:$4 sm:$0xff] %v3593
        %3824 = vst [vmem:[%s3679] ss:$4 sm:$0xff] %v3595
        %3825 = vst [vmem:[%s3681] ss:$4 sm:$0xff] %v3596
        %3826 = vst [vmem:[%s3683] ss:$4 sm:$0xff] %v3598
        %3827 = vst [vmem:[%s3685] ss:$4 sm:$0xff] %v3599
        %3828 = vst [vmem:[%s3687] ss:$4 sm:$0xff] %v3600
        %v3829 = vld.sshfl [vmem:[#allocation1] sm:$0xff pattern:$0x73625140]
        %v3830 = vld.sshfl [vmem:[#allocation1 + $0x20] sm:$0xff pattern:$0x73625140]
        %3831 = vst [vmem:[#allocation1] ss:$4 sm:$0xff] %v3603
        %3832 = vst [vmem:[%s3675] ss:$4 sm:$0xff] %v3604
        %3833 = vst [vmem:[%s3677] ss:$4 sm:$0xff] %v3605
        %3834 = vst [vmem:[%s3679] ss:$4 sm:$0xff] %v3606
        %3835 = vst [vmem:[%s3681] ss:$4 sm:$0xff] %v3607
        %3836 = vst [vmem:[%s3683] ss:$4 sm:$0xff] %v3608
        %3837 = vst [vmem:[%s3685] ss:$4 sm:$0xff] %v3611
        %3838 = vst [vmem:[%s3687] ss:$4 sm:$0xff] %v3612
        %v3839 = vld.sshfl [vmem:[#allocation1] sm:$0xff pattern:$0x73625140]
        %v3840 = vld.sshfl [vmem:[#allocation1 + $0x20] sm:$0xff pattern:$0x73625140]
        %3841 = vst [vmem:[#allocation1] ss:$4 sm:$0xff] %v3613
        %3842 = vst [vmem:[%s3675] ss:$4 sm:$0xff] %v3614
        %3843 = vst [vmem:[%s3677] ss:$4 sm:$0xff] %v3615
        %3844 = vst [vmem:[%s3679] ss:$4 sm:$0xff] %v3616
        %3845 = vst [vmem:[%s3681] ss:$4 sm:$0xff] %v3617
        %3846 = vst [vmem:[%s3683] ss:$4 sm:$0xff] %v3619
        %3847 = vst [vmem:[%s3685] ss:$4 sm:$0xff] %v3620
        %3848 = vst [vmem:[%s3687] ss:$4 sm:$0xff] %v3622
        %v3849 = vld.sshfl [vmem:[#allocation1] sm:$0xff pattern:$0x73625140]
        %v3850 = vld.sshfl [vmem:[#allocation1 + $0x20] sm:$0xff pattern:$0x73625140]
        %3851 = vst [vmem:[#allocation1] ss:$4 sm:$0xff] %v3623
        %3852 = vst [vmem:[%s3675] ss:$4 sm:$0xff] %v3624
        %3853 = vst [vmem:[%s3677] ss:$4 sm:$0xff] %v3627
        %3854 = vst [vmem:[%s3679] ss:$4 sm:$0xff] %v3628
        %3855 = vst [vmem:[%s3681] ss:$4 sm:$0xff] %v3629
        %3856 = vst [vmem:[%s3683] ss:$4 sm:$0xff] %v3630
        %3857 = vst [vmem:[%s3685] ss:$4 sm:$0xff] %v3631
        %3858 = vst [vmem:[%s3687] ss:$4 sm:$0xff] %v3632
        %v3859 = vld.sshfl [vmem:[#allocation1] sm:$0xff pattern:$0x73625140]
        %v3860 = vld.sshfl [vmem:[#allocation1 + $0x20] sm:$0xff pattern:$0x73625140]
        %3861 = vst [vmem:[#allocation1] ss:$4 sm:$0xff] %v3635
        %3862 = vst [vmem:[%s3675] ss:$4 sm:$0xff] %v3636
        %3863 = vst [vmem:[%s3677] ss:$4 sm:$0xff] %v3637
        %3864 = vst [vmem:[%s3679] ss:$4 sm:$0xff] %v3638
        %3865 = vst [vmem:[%s3681] ss:$4 sm:$0xff] %v3639
        %3866 = vst [vmem:[%s3683] ss:$4 sm:$0xff] %v3640
        %3867 = vst [vmem:[%s3685] ss:$4 sm:$0xff] %v3641
        %3868 = vst [vmem:[%s3687] ss:$4 sm:$0xff] %v3643
        %v3869 = vld.sshfl [vmem:[#allocation1] sm:$0xff pattern:$0x73625140]
        %v3870 = vld.sshfl [vmem:[#allocation1 + $0x20] sm:$0xff pattern:$0x73625140]
        %3871 = vst [vmem:[#allocation1] ss:$4 sm:$0xff] %v3644
        %3872 = vst [vmem:[%s3675] ss:$4 sm:$0xff] %v3646
        %3873 = vst [vmem:[%s3677] ss:$4 sm:$0xff] %v3647
        %3874 = vst [vmem:[%s3679] ss:$4 sm:$0xff] %v3648
        %3875 = vst [vmem:[%s3681] ss:$4 sm:$0xff] %v3651
        %3876 = vst [vmem:[%s3683] ss:$4 sm:$0xff] %v3652
        %3877 = vst [vmem:[%s3685] ss:$4 sm:$0xff] %v3653
        %3878 = vst [vmem:[%s3687] ss:$4 sm:$0xff] %v3654
        %v3879 = vld.sshfl [vmem:[#allocation1] sm:$0xff pattern:$0x73625140]
        %v3880 = vld.sshfl [vmem:[#allocation1 + $0x20] sm:$0xff pattern:$0x73625140]
        %3881 = vst [vmem:[#allocation1] ss:$4 sm:$0xff] %v3655
        %3882 = vst [vmem:[%s3675] ss:$4 sm:$0xff] %v3656
        %v3883 = vld.sshfl [vmem:[#allocation1] sm:$0xff pattern:$0x73625140]
        %3925 = vmatpush.msra.mxu0 %v3673
        %3926 = vmatpush.msra.mxu0 %v3672
        %3927 = vmatpush.msra.mxu0 %v3671
        %3928 = vmatpush.msra.mxu0 %v3670
        %3929 = vmatpush.msra.mxu0 %v3669
        %3930 = vmatpush.msra.mxu0 %v3668
        %3931 = vmatpush.msra.mxu0 %v3667
        %3932 = vmatpush.msra.mxu0 %v3666
        %3933 = vmatpush.msra.mxu0 %v3665
        %3934 = vmatpush.msra.mxu0 %v3664
        %3935 = vmatpush.msra.mxu0 %v3663
        %3936 = vmatpush.msra.mxu0 %v3662
        %3937 = vmatpush.msra.mxu0 %v3661
        %3938 = vmatpush.msra.mxu0 %v3660
        %3939 = vmatpush.msra.mxu0 %v3659
        %3940 = vmatpush.msra.mxu0 %v3658
        %3941 = vmatmul.f32.gmra.mxu0 %v3689
        %v3942 = vpop.f32.mrf.mxu0
        %v3943 = vadd.f32 0.0, %v3942
        %3944 = vmatmul.f32.gmra.mxu0 %v3690
        %v3945 = vpop.f32.mrf.mxu0
        %v3946 = vadd.f32 0.0, %v3945
        %3947 = vmatmul.f32.gmra.mxu0 %v3699
        %v3948 = vpop.f32.mrf.mxu0
        %v3949 = vadd.f32 0.0, %v3948
        %3950 = vmatmul.f32.gmra.mxu0 %v3700
        %v3951 = vpop.f32.mrf.mxu0
        %v3952 = vadd.f32 0.0, %v3951
        %3953 = vmatmul.f32.gmra.mxu0 %v3709
        %v3954 = vpop.f32.mrf.mxu0
        %v3955 = vadd.f32 0.0, %v3954
        %3956 = vmatmul.f32.gmra.mxu0 %v3710
        %v3957 = vpop.f32.mrf.mxu0
        %v3958 = vadd.f32 0.0, %v3957
        %3959 = vmatmul.f32.gmra.mxu0 %v3719
        %v3960 = vpop.f32.mrf.mxu0
        %v3961 = vadd.f32 0.0, %v3960
        %3962 = vmatmul.f32.gmra.mxu0 %v3720
        %v3963 = vpop.f32.mrf.mxu0
        %v3964 = vadd.f32 0.0, %v3963
        %3965 = vmatmul.f32.gmra.mxu0 %v3729
        %v3966 = vpop.f32.mrf.mxu0
        %v3967 = vadd.f32 0.0, %v3966
        %3968 = vmatmul.f32.gmra.mxu0 %v3730
        %v3969 = vpop.f32.mrf.mxu0
        %v3970 = vadd.f32 0.0, %v3969
        %3971 = vmatmul.f32.gmra.mxu0 %v3739
        %v3972 = vpop.f32.mrf.mxu0
        %v3973 = vadd.f32 0.0, %v3972
        %3974 = vmatmul.f32.gmra.mxu0 %v3740
        %v3975 = vpop.f32.mrf.mxu0
        %v3976 = vadd.f32 0.0, %v3975
        %3977 = vmatmul.f32.gmra.mxu0 %v3749
        %v3978 = vpop.f32.mrf.mxu0
        %v3979 = vadd.f32 0.0, %v3978
        %3980 = vmatmul.f32.gmra.mxu0 %v3750
        %v3981 = vpop.f32.mrf.mxu0
        %v3982 = vadd.f32 0.0, %v3981
        %3983 = vmatmul.f32.gmra.mxu0 %v3759
        %v3984 = vpop.f32.mrf.mxu0
        %v3985 = vadd.f32 0.0, %v3984
        %3986 = vmatmul.f32.gmra.mxu0 %v3760
        %v3987 = vpop.f32.mrf.mxu0
        %v3988 = vadd.f32 0.0, %v3987
        %3989 = vmatmul.f32.gmra.mxu0 %v3769
        %v3990 = vpop.f32.mrf.mxu0
        %v3991 = vadd.f32 0.0, %v3990
        %3992 = vmatmul.f32.gmra.mxu0 %v3770
        %v3993 = vpop.f32.mrf.mxu0
        %v3994 = vadd.f32 0.0, %v3993
        %3995 = vmatmul.f32.gmra.mxu0 %v3779
        %v3996 = vpop.f32.mrf.mxu0
        %v3997 = vadd.f32 0.0, %v3996
        %3998 = vmatmul.f32.gmra.mxu0 %v3780
        %v3999 = vpop.f32.mrf.mxu0
        %v4000 = vadd.f32 0.0, %v3999
        %4001 = vmatmul.f32.gmra.mxu0 %v3789
        %v4002 = vpop.f32.mrf.mxu0
        %v4003 = vadd.f32 0.0, %v4002
        %4004 = vmatmul.f32.gmra.mxu0 %v3790
        %v4005 = vpop.f32.mrf.mxu0
        %v4006 = vadd.f32 0.0, %v4005
        %4007 = vmatmul.f32.gmra.mxu0 %v3799
        %v4008 = vpop.f32.mrf.mxu0
        %v4009 = vadd.f32 0.0, %v4008
        %4010 = vmatmul.f32.gmra.mxu0 %v3800
        %v4011 = vpop.f32.mrf.mxu0
        %v4012 = vadd.f32 0.0, %v4011
        %4013 = vmatmul.f32.gmra.mxu0 %v3809
        %v4014 = vpop.f32.mrf.mxu0
        %v4015 = vadd.f32 0.0, %v4014
        %4016 = vmatmul.f32.gmra.mxu0 %v3810
        %v4017 = vpop.f32.mrf.mxu0
        %v4018 = vadd.f32 0.0, %v4017
        %4019 = vmatmul.f32.gmra.mxu0 %v3819
        %v4020 = vpop.f32.mrf.mxu0
        %v4021 = vadd.f32 0.0, %v4020
        %4022 = vmatmul.f32.gmra.mxu0 %v3820
        %v4023 = vpop.f32.mrf.mxu0
        %v4024 = vadd.f32 0.0, %v4023
        %4025 = vmatmul.f32.gmra.mxu0 %v3829
        %v4026 = vpop.f32.mrf.mxu0
        %v4027 = vadd.f32 0.0, %v4026
        %4028 = vmatmul.f32.gmra.mxu0 %v3830
        %v4029 = vpop.f32.mrf.mxu0
        %v4030 = vadd.f32 0.0, %v4029
        %4031 = vmatmul.f32.gmra.mxu0 %v3839
        %v4032 = vpop.f32.mrf.mxu0
        %v4033 = vadd.f32 0.0, %v4032
        %4034 = vmatmul.f32.gmra.mxu0 %v3840
        %v4035 = vpop.f32.mrf.mxu0
        %v4036 = vadd.f32 0.0, %v4035
        %4037 = vmatmul.f32.gmra.mxu0 %v3849
        %v4038 = vpop.f32.mrf.mxu0
        %v4039 = vadd.f32 0.0, %v4038
        %4040 = vmatmul.f32.gmra.mxu0 %v3850
        %v4041 = vpop.f32.mrf.mxu0
        %v4042 = vadd.f32 0.0, %v4041
        %4043 = vmatmul.f32.gmra.mxu0 %v3859
        %v4044 = vpop.f32.mrf.mxu0
        %v4045 = vadd.f32 0.0, %v4044
        %4046 = vmatmul.f32.gmra.mxu0 %v3860
        %v4047 = vpop.f32.mrf.mxu0
        %v4048 = vadd.f32 0.0, %v4047
        %4049 = vmatmul.f32.gmra.mxu0 %v3869
        %v4050 = vpop.f32.mrf.mxu0
        %v4051 = vadd.f32 0.0, %v4050
        %4052 = vmatmul.f32.gmra.mxu0 %v3870
        %v4053 = vpop.f32.mrf.mxu0
        %v4054 = vadd.f32 0.0, %v4053
        %4055 = vmatmul.f32.gmra.mxu0 %v3879
        %v4056 = vpop.f32.mrf.mxu0
        %v4057 = vadd.f32 0.0, %v4056
        %4058 = vmatmul.f32.gmra.mxu0 %v3880
        %v4059 = vpop.f32.mrf.mxu0
        %v4060 = vadd.f32 0.0, %v4059
        %4061 = vmatmul.f32.gmra.mxu0 %v3883
        %v4062 = vpop.f32.mrf.mxu0
        %v4063 = vadd.f32 0.0, %v4062
        %4064 = vdwg.mxu0
        %v4065 = vadd.f32 %v3393, %v3943
        %v4066 = vadd.f32 %v3394, %v3946
        %v4067 = vadd.f32 %v3395, %v3949
        %v4068 = vadd.f32 %v3396, %v3952
        %v4069 = vadd.f32 %v3397, %v3955
        %v4070 = vadd.f32 %v3398, %v3958
        %v4071 = vadd.f32 %v3399, %v3961
        %v4072 = vadd.f32 %v3400, %v3964
        %v4073 = vadd.f32 %v3401, %v3967
        %v4074 = vadd.f32 %v3402, %v3970
        %v4075 = vadd.f32 %v3403, %v3973
        %v4076 = vadd.f32 %v3404, %v3976
        %v4077 = vadd.f32 %v3405, %v3979
        %v4078 = vadd.f32 %v3406, %v3982
        %v4079 = vadd.f32 %v3407, %v3985
        %v4080 = vadd.f32 %v3408, %v3988
        %v4081 = vadd.f32 %v3409, %v3991
        %v4082 = vadd.f32 %v3410, %v3994
        %v4083 = vadd.f32 %v3411, %v3997
        %v4084 = vadd.f32 %v3412, %v4000
        %v4085 = vadd.f32 %v3413, %v4003
        %v4086 = vadd.f32 %v3414, %v4006
        %v4087 = vadd.f32 %v3415, %v4009
        %v4088 = vadd.f32 %v3416, %v4012
        %v4089 = vadd.f32 %v3417, %v4015
        %v4090 = vadd.f32 %v3418, %v4018
        %v4091 = vadd.f32 %v3419, %v4021
        %v4092 = vadd.f32 %v3420, %v4024
        %v4093 = vadd.f32 %v3421, %v4027
        %v4094 = vadd.f32 %v3422, %v4030
        %v4095 = vadd.f32 %v3423, %v4033
        %v4096 = vadd.f32 %v3424, %v4036
        %v4097 = vadd.f32 %v3425, %v4039
        %v4098 = vadd.f32 %v3426, %v4042
        %v4099 = vadd.f32 %v3427, %v4045
        %v4100 = vadd.f32 %v3428, %v4048
        %v4101 = vadd.f32 %v3429, %v4051
        %v4102 = vadd.f32 %v3430, %v4054
        %v4103 = vadd.f32 %v3431, %v4057
        %v4104 = vadd.f32 %v3432, %v4060
        %v4105 = vadd.f32 %v3433, %v4063
        %v4109 = vrot.slane %v315, 2
        %v4110 = vrot.slane %v315, 4
        %v4111 = vrot.slane %v315, 6
        %v4112 = vrot.slane %v316, 2
        %v4113 = vrot.slane %v316, 4
        %v4114 = vrot.slane %v316, 6
        %s4115 = scalar_lea.vmem %s1, 768
        %v4116 = vld [vmem:[%s4115] sm:$0xff]
        %v4117 = vld [vmem:[%s4115 + $0x8] sm:$0xff]
        %v4118 = vld [vmem:[%s4115 + $0x10] sm:$0xff]
        %v4119 = vld [vmem:[%s4115 + $0x18] sm:$0xff]
        %v4120 = vld [vmem:[%s4115 + $0x20] sm:$0xff]
        %v4121 = vld [vmem:[%s4115 + $0x28] sm:$0xff]
        %v4122 = vld [vmem:[%s4115 + $0x30] sm:$0xff]
        %v4123 = vld [vmem:[%s4115 + $0x38] sm:$0xff]
        %v4124 = vld [vmem:[%s4115 + $0x40] sm:$0xff]
        %v4125 = vld [vmem:[%s4115 + $0x48] sm:$0xff]
        %v4126 = vld [vmem:[%s4115 + $0x50] sm:$0xff]
        %v4127 = vld [vmem:[%s4115 + $0x58] sm:$0xff]
        %v4128 = vld [vmem:[%s4115 + $0x60] sm:$0xff]
        %v4129 = vld [vmem:[%s4115 + $0x68] sm:$0xff]
        %v4130 = vld [vmem:[%s4115 + $0x70] sm:$0xff]
        %v4131 = vld [vmem:[%s4115 + $0x78] sm:$0xff]
        %4132 = vst [vmem:[#allocation1] ss:$4 sm:$0xff] %v264
        %s4133 = scalar_lea.vmem [#allocation1], 1
        %4134 = vst [vmem:[%s4133] ss:$4 sm:$0xff] %v386
        %s4135 = scalar_lea.vmem [#allocation1], 2
        %4136 = vst [vmem:[%s4135] ss:$4 sm:$0xff] %v387
        %s4137 = scalar_lea.vmem [#allocation1], 3
        %4138 = vst [vmem:[%s4137] ss:$4 sm:$0xff] %v388
        %s4139 = scalar_lea.vmem [#allocation1], 32
        %4140 = vst [vmem:[%s4139] ss:$4 sm:$0xff] %v265
        %s4141 = scalar_lea.vmem [#allocation1], 33
        %4142 = vst [vmem:[%s4141] ss:$4 sm:$0xff] %v389
        %s4143 = scalar_lea.vmem [#allocation1], 34
        %4144 = vst [vmem:[%s4143] ss:$4 sm:$0xff] %v390
        %s4145 = scalar_lea.vmem [#allocation1], 35
        %4146 = vst [vmem:[%s4145] ss:$4 sm:$0xff] %v391
        %v4147 = vld.sshfl [vmem:[#allocation1] sm:$0xff pattern:$0x73625140]
        %v4148 = vld.sshfl [vmem:[#allocation1 + $0x20] sm:$0xff pattern:$0x73625140]
        %4149 = vst [vmem:[#allocation1] ss:$4 sm:$0xff] %v266
        %4150 = vst [vmem:[%s4133] ss:$4 sm:$0xff] %v267
        %4151 = vst [vmem:[%s4135] ss:$4 sm:$0xff] %v392
        %4152 = vst [vmem:[%s4137] ss:$4 sm:$0xff] %v393
        %4153 = vst [vmem:[%s4139] ss:$4 sm:$0xff] %v394
        %4154 = vst [vmem:[%s4141] ss:$4 sm:$0xff] %v268
        %4155 = vst [vmem:[%s4143] ss:$4 sm:$0xff] %v395
        %4156 = vst [vmem:[%s4145] ss:$4 sm:$0xff] %v396
        %v4157 = vld.sshfl [vmem:[#allocation1] sm:$0xff pattern:$0x73625140]
        %v4158 = vld.sshfl [vmem:[#allocation1 + $0x20] sm:$0xff pattern:$0x73625140]
        %4159 = vst [vmem:[#allocation1] ss:$4 sm:$0xff] %v397
        %4160 = vst [vmem:[%s4133] ss:$4 sm:$0xff] %v269
        %4161 = vst [vmem:[%s4135] ss:$4 sm:$0xff] %v270
        %4162 = vst [vmem:[%s4137] ss:$4 sm:$0xff] %v398
        %4163 = vst [vmem:[%s4139] ss:$4 sm:$0xff] %v399
        %4164 = vst [vmem:[%s4141] ss:$4 sm:$0xff] %v400
        %4165 = vst [vmem:[%s4143] ss:$4 sm:$0xff] %v271
        %4166 = vst [vmem:[%s4145] ss:$4 sm:$0xff] %v401
        %v4167 = vld.sshfl [vmem:[#allocation1] sm:$0xff pattern:$0x73625140]
        %v4168 = vld.sshfl [vmem:[#allocation1 + $0x20] sm:$0xff pattern:$0x73625140]
        %4169 = vst [vmem:[#allocation1] ss:$4 sm:$0xff] %v402
        %4170 = vst [vmem:[%s4133] ss:$4 sm:$0xff] %v403
        %4171 = vst [vmem:[%s4135] ss:$4 sm:$0xff] %v272
        %4172 = vst [vmem:[%s4137] ss:$4 sm:$0xff] %v273
        %4173 = vst [vmem:[%s4139] ss:$4 sm:$0xff] %v404
        %4174 = vst [vmem:[%s4141] ss:$4 sm:$0xff] %v405
        %4175 = vst [vmem:[%s4143] ss:$4 sm:$0xff] %v406
        %4176 = vst [vmem:[%s4145] ss:$4 sm:$0xff] %v274
        %v4177 = vld.sshfl [vmem:[#allocation1] sm:$0xff pattern:$0x73625140]
        %v4178 = vld.sshfl [vmem:[#allocation1 + $0x20] sm:$0xff pattern:$0x73625140]
        %4179 = vst [vmem:[#allocation1] ss:$4 sm:$0xff] %v407
        %4180 = vst [vmem:[%s4133] ss:$4 sm:$0xff] %v408
        %4181 = vst [vmem:[%s4135] ss:$4 sm:$0xff] %v409
        %4182 = vst [vmem:[%s4137] ss:$4 sm:$0xff] %v275
        %4183 = vst [vmem:[%s4139] ss:$4 sm:$0xff] %v276
        %4184 = vst [vmem:[%s4141] ss:$4 sm:$0xff] %v410
        %4185 = vst [vmem:[%s4143] ss:$4 sm:$0xff] %v411
        %4186 = vst [vmem:[%s4145] ss:$4 sm:$0xff] %v412
        %v4187 = vld.sshfl [vmem:[#allocation1] sm:$0xff pattern:$0x73625140]
        %v4188 = vld.sshfl [vmem:[#allocation1 + $0x20] sm:$0xff pattern:$0x73625140]
        %4189 = vst [vmem:[#allocation1] ss:$4 sm:$0xff] %v277
        %4190 = vst [vmem:[%s4133] ss:$4 sm:$0xff] %v413
        %4191 = vst [vmem:[%s4135] ss:$4 sm:$0xff] %v414
        %4192 = vst [vmem:[%s4137] ss:$4 sm:$0xff] %v415
        %4193 = vst [vmem:[%s4139] ss:$4 sm:$0xff] %v278
        %4194 = vst [vmem:[%s4141] ss:$4 sm:$0xff] %v279
        %4195 = vst [vmem:[%s4143] ss:$4 sm:$0xff] %v416
        %4196 = vst [vmem:[%s4145] ss:$4 sm:$0xff] %v417
        %v4197 = vld.sshfl [vmem:[#allocation1] sm:$0xff pattern:$0x73625140]
        %v4198 = vld.sshfl [vmem:[#allocation1 + $0x20] sm:$0xff pattern:$0x73625140]
        %4199 = vst [vmem:[#allocation1] ss:$4 sm:$0xff] %v418
        %4200 = vst [vmem:[%s4133] ss:$4 sm:$0xff] %v280
        %4201 = vst [vmem:[%s4135] ss:$4 sm:$0xff] %v419
        %4202 = vst [vmem:[%s4137] ss:$4 sm:$0xff] %v420
        %4203 = vst [vmem:[%s4139] ss:$4 sm:$0xff] %v421
        %4204 = vst [vmem:[%s4141] ss:$4 sm:$0xff] %v281
        %4205 = vst [vmem:[%s4143] ss:$4 sm:$0xff] %v282
        %4206 = vst [vmem:[%s4145] ss:$4 sm:$0xff] %v422
        %v4207 = vld.sshfl [vmem:[#allocation1] sm:$0xff pattern:$0x73625140]
        %v4208 = vld.sshfl [vmem:[#allocation1 + $0x20] sm:$0xff pattern:$0x73625140]
        %4209 = vst [vmem:[#allocation1] ss:$4 sm:$0xff] %v423
        %4210 = vst [vmem:[%s4133] ss:$4 sm:$0xff] %v424
        %4211 = vst [vmem:[%s4135] ss:$4 sm:$0xff] %v283
        %4212 = vst [vmem:[%s4137] ss:$4 sm:$0xff] %v425
        %4213 = vst [vmem:[%s4139] ss:$4 sm:$0xff] %v426
        %4214 = vst [vmem:[%s4141] ss:$4 sm:$0xff] %v427
        %4215 = vst [vmem:[%s4143] ss:$4 sm:$0xff] %v284
        %4216 = vst [vmem:[%s4145] ss:$4 sm:$0xff] %v285
        %v4217 = vld.sshfl [vmem:[#allocation1] sm:$0xff pattern:$0x73625140]
        %v4218 = vld.sshfl [vmem:[#allocation1 + $0x20] sm:$0xff pattern:$0x73625140]
        %4219 = vst [vmem:[#allocation1] ss:$4 sm:$0xff] %v428
        %4220 = vst [vmem:[%s4133] ss:$4 sm:$0xff] %v429
        %4221 = vst [vmem:[%s4135] ss:$4 sm:$0xff] %v430
        %4222 = vst [vmem:[%s4137] ss:$4 sm:$0xff] %v286
        %4223 = vst [vmem:[%s4139] ss:$4 sm:$0xff] %v431
        %4224 = vst [vmem:[%s4141] ss:$4 sm:$0xff] %v432
        %4225 = vst [vmem:[%s4143] ss:$4 sm:$0xff] %v433
        %4226 = vst [vmem:[%s4145] ss:$4 sm:$0xff] %v287
        %v4227 = vld.sshfl [vmem:[#allocation1] sm:$0xff pattern:$0x73625140]
        %v4228 = vld.sshfl [vmem:[#allocation1 + $0x20] sm:$0xff pattern:$0x73625140]
        %4229 = vst [vmem:[#allocation1] ss:$4 sm:$0xff] %v288
        %4230 = vst [vmem:[%s4133] ss:$4 sm:$0xff] %v434
        %4231 = vst [vmem:[%s4135] ss:$4 sm:$0xff] %v435
        %4232 = vst [vmem:[%s4137] ss:$4 sm:$0xff] %v436
        %4233 = vst [vmem:[%s4139] ss:$4 sm:$0xff] %v289
        %4234 = vst [vmem:[%s4141] ss:$4 sm:$0xff] %v437
        %4235 = vst [vmem:[%s4143] ss:$4 sm:$0xff] %v438
        %4236 = vst [vmem:[%s4145] ss:$4 sm:$0xff] %v439
        %v4237 = vld.sshfl [vmem:[#allocation1] sm:$0xff pattern:$0x73625140]
        %v4238 = vld.sshfl [vmem:[#allocation1 + $0x20] sm:$0xff pattern:$0x73625140]
        %4239 = vst [vmem:[#allocation1] ss:$4 sm:$0xff] %v290
        %4240 = vst [vmem:[%s4133] ss:$4 sm:$0xff] %v291
        %4241 = vst [vmem:[%s4135] ss:$4 sm:$0xff] %v440
        %4242 = vst [vmem:[%s4137] ss:$4 sm:$0xff] %v441
        %4243 = vst [vmem:[%s4139] ss:$4 sm:$0xff] %v442
        %4244 = vst [vmem:[%s4141] ss:$4 sm:$0xff] %v292
        %4245 = vst [vmem:[%s4143] ss:$4 sm:$0xff] %v443
        %4246 = vst [vmem:[%s4145] ss:$4 sm:$0xff] %v444
        %v4247 = vld.sshfl [vmem:[#allocation1] sm:$0xff pattern:$0x73625140]
        %v4248 = vld.sshfl [vmem:[#allocation1 + $0x20] sm:$0xff pattern:$0x73625140]
        %4249 = vst [vmem:[#allocation1] ss:$4 sm:$0xff] %v445
        %4250 = vst [vmem:[%s4133] ss:$4 sm:$0xff] %v293
        %4251 = vst [vmem:[%s4135] ss:$4 sm:$0xff] %v294
        %4252 = vst [vmem:[%s4137] ss:$4 sm:$0xff] %v446
        %4253 = vst [vmem:[%s4139] ss:$4 sm:$0xff] %v447
        %4254 = vst [vmem:[%s4141] ss:$4 sm:$0xff] %v448
        %4255 = vst [vmem:[%s4143] ss:$4 sm:$0xff] %v295
        %4256 = vst [vmem:[%s4145] ss:$4 sm:$0xff] %v449
        %v4257 = vld.sshfl [vmem:[#allocation1] sm:$0xff pattern:$0x73625140]
        %v4258 = vld.sshfl [vmem:[#allocation1 + $0x20] sm:$0xff pattern:$0x73625140]
        %4259 = vst [vmem:[#allocation1] ss:$4 sm:$0xff] %v450
        %4260 = vst [vmem:[%s4133] ss:$4 sm:$0xff] %v451
        %4261 = vst [vmem:[%s4135] ss:$4 sm:$0xff] %v296
        %4262 = vst [vmem:[%s4137] ss:$4 sm:$0xff] %v297
        %4263 = vst [vmem:[%s4139] ss:$4 sm:$0xff] %v452
        %4264 = vst [vmem:[%s4141] ss:$4 sm:$0xff] %v453
        %4265 = vst [vmem:[%s4143] ss:$4 sm:$0xff] %v454
        %4266 = vst [vmem:[%s4145] ss:$4 sm:$0xff] %v298
        %v4267 = vld.sshfl [vmem:[#allocation1] sm:$0xff pattern:$0x73625140]
        %v4268 = vld.sshfl [vmem:[#allocation1 + $0x20] sm:$0xff pattern:$0x73625140]
        %4269 = vst [vmem:[#allocation1] ss:$4 sm:$0xff] %v455
        %4270 = vst [vmem:[%s4133] ss:$4 sm:$0xff] %v456
        %4271 = vst [vmem:[%s4135] ss:$4 sm:$0xff] %v457
        %4272 = vst [vmem:[%s4137] ss:$4 sm:$0xff] %v299
        %4273 = vst [vmem:[%s4139] ss:$4 sm:$0xff] %v300
        %4274 = vst [vmem:[%s4141] ss:$4 sm:$0xff] %v458
        %4275 = vst [vmem:[%s4143] ss:$4 sm:$0xff] %v459
        %4276 = vst [vmem:[%s4145] ss:$4 sm:$0xff] %v460
        %v4277 = vld.sshfl [vmem:[#allocation1] sm:$0xff pattern:$0x73625140]
        %v4278 = vld.sshfl [vmem:[#allocation1 + $0x20] sm:$0xff pattern:$0x73625140]
        %4279 = vst [vmem:[#allocation1] ss:$4 sm:$0xff] %v301
        %4280 = vst [vmem:[%s4133] ss:$4 sm:$0xff] %v461
        %4281 = vst [vmem:[%s4135] ss:$4 sm:$0xff] %v462
        %4282 = vst [vmem:[%s4137] ss:$4 sm:$0xff] %v463
        %4283 = vst [vmem:[%s4139] ss:$4 sm:$0xff] %v302
        %4284 = vst [vmem:[%s4141] ss:$4 sm:$0xff] %v303
        %4285 = vst [vmem:[%s4143] ss:$4 sm:$0xff] %v464
        %4286 = vst [vmem:[%s4145] ss:$4 sm:$0xff] %v465
        %v4287 = vld.sshfl [vmem:[#allocation1] sm:$0xff pattern:$0x73625140]
        %v4288 = vld.sshfl [vmem:[#allocation1 + $0x20] sm:$0xff pattern:$0x73625140]
        %4289 = vst [vmem:[#allocation1] ss:$4 sm:$0xff] %v466
        %4290 = vst [vmem:[%s4133] ss:$4 sm:$0xff] %v304
        %4291 = vst [vmem:[%s4135] ss:$4 sm:$0xff] %v467
        %4292 = vst [vmem:[%s4137] ss:$4 sm:$0xff] %v468
        %4293 = vst [vmem:[%s4139] ss:$4 sm:$0xff] %v469
        %4294 = vst [vmem:[%s4141] ss:$4 sm:$0xff] %v305
        %4295 = vst [vmem:[%s4143] ss:$4 sm:$0xff] %v306
        %4296 = vst [vmem:[%s4145] ss:$4 sm:$0xff] %v470
        %v4297 = vld.sshfl [vmem:[#allocation1] sm:$0xff pattern:$0x73625140]
        %v4298 = vld.sshfl [vmem:[#allocation1 + $0x20] sm:$0xff pattern:$0x73625140]
        %4299 = vst [vmem:[#allocation1] ss:$4 sm:$0xff] %v471
        %4300 = vst [vmem:[%s4133] ss:$4 sm:$0xff] %v472
        %4301 = vst [vmem:[%s4135] ss:$4 sm:$0xff] %v307
        %4302 = vst [vmem:[%s4137] ss:$4 sm:$0xff] %v473
        %4303 = vst [vmem:[%s4139] ss:$4 sm:$0xff] %v474
        %4304 = vst [vmem:[%s4141] ss:$4 sm:$0xff] %v475
        %4305 = vst [vmem:[%s4143] ss:$4 sm:$0xff] %v308
        %4306 = vst [vmem:[%s4145] ss:$4 sm:$0xff] %v309
        %v4307 = vld.sshfl [vmem:[#allocation1] sm:$0xff pattern:$0x73625140]
        %v4308 = vld.sshfl [vmem:[#allocation1 + $0x20] sm:$0xff pattern:$0x73625140]
        %4309 = vst [vmem:[#allocation1] ss:$4 sm:$0xff] %v476
        %4310 = vst [vmem:[%s4133] ss:$4 sm:$0xff] %v477
        %4311 = vst [vmem:[%s4135] ss:$4 sm:$0xff] %v478
        %4312 = vst [vmem:[%s4137] ss:$4 sm:$0xff] %v310
        %4313 = vst [vmem:[%s4139] ss:$4 sm:$0xff] %v479
        %4314 = vst [vmem:[%s4141] ss:$4 sm:$0xff] %v480
        %4315 = vst [vmem:[%s4143] ss:$4 sm:$0xff] %v481
        %4316 = vst [vmem:[%s4145] ss:$4 sm:$0xff] %v311
        %v4317 = vld.sshfl [vmem:[#allocation1] sm:$0xff pattern:$0x73625140]
        %v4318 = vld.sshfl [vmem:[#allocation1 + $0x20] sm:$0xff pattern:$0x73625140]
        %4319 = vst [vmem:[#allocation1] ss:$4 sm:$0xff] %v312
        %4320 = vst [vmem:[%s4133] ss:$4 sm:$0xff] %v2501
        %4321 = vst [vmem:[%s4135] ss:$4 sm:$0xff] %v2502
        %4322 = vst [vmem:[%s4137] ss:$4 sm:$0xff] %v2503
        %4323 = vst [vmem:[%s4139] ss:$4 sm:$0xff] %v313
        %4324 = vst [vmem:[%s4141] ss:$4 sm:$0xff] %v2504
        %4325 = vst [vmem:[%s4143] ss:$4 sm:$0xff] %v2505
        %4326 = vst [vmem:[%s4145] ss:$4 sm:$0xff] %v2506
        %v4327 = vld.sshfl [vmem:[#allocation1] sm:$0xff pattern:$0x73625140]
        %v4328 = vld.sshfl [vmem:[#allocation1 + $0x20] sm:$0xff pattern:$0x73625140]
        %4329 = vst [vmem:[#allocation1] ss:$4 sm:$0xff] %v314
        %4330 = vst [vmem:[%s4133] ss:$4 sm:$0xff] %v315
        %4331 = vst [vmem:[%s4135] ss:$4 sm:$0xff] %v4109
        %4332 = vst [vmem:[%s4137] ss:$4 sm:$0xff] %v4110
        %4333 = vst [vmem:[%s4139] ss:$4 sm:$0xff] %v4111
        %4334 = vst [vmem:[%s4141] ss:$4 sm:$0xff] %v316
        %4335 = vst [vmem:[%s4143] ss:$4 sm:$0xff] %v4112
        %4336 = vst [vmem:[%s4145] ss:$4 sm:$0xff] %v4113
        %v4337 = vld.sshfl [vmem:[#allocation1] sm:$0xff pattern:$0x73625140]
        %v4338 = vld.sshfl [vmem:[#allocation1 + $0x20] sm:$0xff pattern:$0x73625140]
        %4339 = vst [vmem:[#allocation1] ss:$4 sm:$0xff] %v4114
        %4340 = vst [vmem:[%s4133] ss:$4 sm:$0xff] %v317
        %v4341 = vld.sshfl [vmem:[#allocation1] sm:$0xff pattern:$0x73625140]
        %4383 = vmatpush.msra.mxu0 %v4131
        %4384 = vmatpush.msra.mxu0 %v4130
        %4385 = vmatpush.msra.mxu0 %v4129
        %4386 = vmatpush.msra.mxu0 %v4128
        %4387 = vmatpush.msra.mxu0 %v4127
        %4388 = vmatpush.msra.mxu0 %v4126
        %4389 = vmatpush.msra.mxu0 %v4125
        %4390 = vmatpush.msra.mxu0 %v4124
        %4391 = vmatpush.msra.mxu0 %v4123
        %4392 = vmatpush.msra.mxu0 %v4122
        %4393 = vmatpush.msra.mxu0 %v4121
        %4394 = vmatpush.msra.mxu0 %v4120
        %4395 = vmatpush.msra.mxu0 %v4119
        %4396 = vmatpush.msra.mxu0 %v4118
        %4397 = vmatpush.msra.mxu0 %v4117
        %4398 = vmatpush.msra.mxu0 %v4116
        %4399 = vmatmul.f32.gmra.mxu0 %v4147
        %v4400 = vpop.f32.mrf.mxu0
        %v4401 = vadd.f32 0.0, %v4400
        %4402 = vmatmul.f32.gmra.mxu0 %v4148
        %v4403 = vpop.f32.mrf.mxu0
        %v4404 = vadd.f32 0.0, %v4403
        %4405 = vmatmul.f32.gmra.mxu0 %v4157
        %v4406 = vpop.f32.mrf.mxu0
        %v4407 = vadd.f32 0.0, %v4406
        %4408 = vmatmul.f32.gmra.mxu0 %v4158
        %v4409 = vpop.f32.mrf.mxu0
        %v4410 = vadd.f32 0.0, %v4409
        %4411 = vmatmul.f32.gmra.mxu0 %v4167
        %v4412 = vpop.f32.mrf.mxu0
        %v4413 = vadd.f32 0.0, %v4412
        %4414 = vmatmul.f32.gmra.mxu0 %v4168
        %v4415 = vpop.f32.mrf.mxu0
        %v4416 = vadd.f32 0.0, %v4415
        %4417 = vmatmul.f32.gmra.mxu0 %v4177
        %v4418 = vpop.f32.mrf.mxu0
        %v4419 = vadd.f32 0.0, %v4418
        %4420 = vmatmul.f32.gmra.mxu0 %v4178
        %v4421 = vpop.f32.mrf.mxu0
        %v4422 = vadd.f32 0.0, %v4421
        %4423 = vmatmul.f32.gmra.mxu0 %v4187
        %v4424 = vpop.f32.mrf.mxu0
        %v4425 = vadd.f32 0.0, %v4424
        %4426 = vmatmul.f32.gmra.mxu0 %v4188
        %v4427 = vpop.f32.mrf.mxu0
        %v4428 = vadd.f32 0.0, %v4427
        %4429 = vmatmul.f32.gmra.mxu0 %v4197
        %v4430 = vpop.f32.mrf.mxu0
        %v4431 = vadd.f32 0.0, %v4430
        %4432 = vmatmul.f32.gmra.mxu0 %v4198
        %v4433 = vpop.f32.mrf.mxu0
        %v4434 = vadd.f32 0.0, %v4433
        %4435 = vmatmul.f32.gmra.mxu0 %v4207
        %v4436 = vpop.f32.mrf.mxu0
        %v4437 = vadd.f32 0.0, %v4436
        %4438 = vmatmul.f32.gmra.mxu0 %v4208
        %v4439 = vpop.f32.mrf.mxu0
        %v4440 = vadd.f32 0.0, %v4439
        %4441 = vmatmul.f32.gmra.mxu0 %v4217
        %v4442 = vpop.f32.mrf.mxu0
        %v4443 = vadd.f32 0.0, %v4442
        %4444 = vmatmul.f32.gmra.mxu0 %v4218
        %v4445 = vpop.f32.mrf.mxu0
        %v4446 = vadd.f32 0.0, %v4445
        %4447 = vmatmul.f32.gmra.mxu0 %v4227
        %v4448 = vpop.f32.mrf.mxu0
        %v4449 = vadd.f32 0.0, %v4448
        %4450 = vmatmul.f32.gmra.mxu0 %v4228
        %v4451 = vpop.f32.mrf.mxu0
        %v4452 = vadd.f32 0.0, %v4451
        %4453 = vmatmul.f32.gmra.mxu0 %v4237
        %v4454 = vpop.f32.mrf.mxu0
        %v4455 = vadd.f32 0.0, %v4454
        %4456 = vmatmul.f32.gmra.mxu0 %v4238
        %v4457 = vpop.f32.mrf.mxu0
        %v4458 = vadd.f32 0.0, %v4457
        %4459 = vmatmul.f32.gmra.mxu0 %v4247
        %v4460 = vpop.f32.mrf.mxu0
        %v4461 = vadd.f32 0.0, %v4460
        %4462 = vmatmul.f32.gmra.mxu0 %v4248
        %v4463 = vpop.f32.mrf.mxu0
        %v4464 = vadd.f32 0.0, %v4463
        %4465 = vmatmul.f32.gmra.mxu0 %v4257
        %v4466 = vpop.f32.mrf.mxu0
        %v4467 = vadd.f32 0.0, %v4466
        %4468 = vmatmul.f32.gmra.mxu0 %v4258
        %v4469 = vpop.f32.mrf.mxu0
        %v4470 = vadd.f32 0.0, %v4469
        %4471 = vmatmul.f32.gmra.mxu0 %v4267
        %v4472 = vpop.f32.mrf.mxu0
        %v4473 = vadd.f32 0.0, %v4472
        %4474 = vmatmul.f32.gmra.mxu0 %v4268
        %v4475 = vpop.f32.mrf.mxu0
        %v4476 = vadd.f32 0.0, %v4475
        %4477 = vmatmul.f32.gmra.mxu0 %v4277
        %v4478 = vpop.f32.mrf.mxu0
        %v4479 = vadd.f32 0.0, %v4478
        %4480 = vmatmul.f32.gmra.mxu0 %v4278
        %v4481 = vpop.f32.mrf.mxu0
        %v4482 = vadd.f32 0.0, %v4481
        %4483 = vmatmul.f32.gmra.mxu0 %v4287
        %v4484 = vpop.f32.mrf.mxu0
        %v4485 = vadd.f32 0.0, %v4484
        %4486 = vmatmul.f32.gmra.mxu0 %v4288
        %v4487 = vpop.f32.mrf.mxu0
        %v4488 = vadd.f32 0.0, %v4487
        %4489 = vmatmul.f32.gmra.mxu0 %v4297
        %v4490 = vpop.f32.mrf.mxu0
        %v4491 = vadd.f32 0.0, %v4490
        %4492 = vmatmul.f32.gmra.mxu0 %v4298
        %v4493 = vpop.f32.mrf.mxu0
        %v4494 = vadd.f32 0.0, %v4493
        %4495 = vmatmul.f32.gmra.mxu0 %v4307
        %v4496 = vpop.f32.mrf.mxu0
        %v4497 = vadd.f32 0.0, %v4496
        %4498 = vmatmul.f32.gmra.mxu0 %v4308
        %v4499 = vpop.f32.mrf.mxu0
        %v4500 = vadd.f32 0.0, %v4499
        %4501 = vmatmul.f32.gmra.mxu0 %v4317
        %v4502 = vpop.f32.mrf.mxu0
        %v4503 = vadd.f32 0.0, %v4502
        %4504 = vmatmul.f32.gmra.mxu0 %v4318
        %v4505 = vpop.f32.mrf.mxu0
        %v4506 = vadd.f32 0.0, %v4505
        %4507 = vmatmul.f32.gmra.mxu0 %v4327
        %v4508 = vpop.f32.mrf.mxu0
        %v4509 = vadd.f32 0.0, %v4508
        %4510 = vmatmul.f32.gmra.mxu0 %v4328
        %v4511 = vpop.f32.mrf.mxu0
        %v4512 = vadd.f32 0.0, %v4511
        %4513 = vmatmul.f32.gmra.mxu0 %v4337
        %v4514 = vpop.f32.mrf.mxu0
        %v4515 = vadd.f32 0.0, %v4514
        %4516 = vmatmul.f32.gmra.mxu0 %v4338
        %v4517 = vpop.f32.mrf.mxu0
        %v4518 = vadd.f32 0.0, %v4517
        %4519 = vmatmul.f32.gmra.mxu0 %v4341
        %v4520 = vpop.f32.mrf.mxu0
        %v4521 = vadd.f32 0.0, %v4520
        %4522 = vdwg.mxu0
        %v4523 = vadd.f32 %v4065, %v4401
        %v4524 = vadd.f32 %v4066, %v4404
        %v4525 = vadd.f32 %v4067, %v4407
        %v4526 = vadd.f32 %v4068, %v4410
        %v4527 = vadd.f32 %v4069, %v4413
        %v4528 = vadd.f32 %v4070, %v4416
        %v4529 = vadd.f32 %v4071, %v4419
        %v4530 = vadd.f32 %v4072, %v4422
        %v4531 = vadd.f32 %v4073, %v4425
        %v4532 = vadd.f32 %v4074, %v4428
        %v4533 = vadd.f32 %v4075, %v4431
        %v4534 = vadd.f32 %v4076, %v4434
        %v4535 = vadd.f32 %v4077, %v4437
        %v4536 = vadd.f32 %v4078, %v4440
        %v4537 = vadd.f32 %v4079, %v4443
        %v4538 = vadd.f32 %v4080, %v4446
        %v4539 = vadd.f32 %v4081, %v4449
        %v4540 = vadd.f32 %v4082, %v4452
        %v4541 = vadd.f32 %v4083, %v4455
        %v4542 = vadd.f32 %v4084, %v4458
        %v4543 = vadd.f32 %v4085, %v4461
        %v4544 = vadd.f32 %v4086, %v4464
        %v4545 = vadd.f32 %v4087, %v4467
        %v4546 = vadd.f32 %v4088, %v4470
        %v4547 = vadd.f32 %v4089, %v4473
        %v4548 = vadd.f32 %v4090, %v4476
        %v4549 = vadd.f32 %v4091, %v4479
        %v4550 = vadd.f32 %v4092, %v4482
        %v4551 = vadd.f32 %v4093, %v4485
        %v4552 = vadd.f32 %v4094, %v4488
        %v4553 = vadd.f32 %v4095, %v4491
        %v4554 = vadd.f32 %v4096, %v4494
        %v4555 = vadd.f32 %v4097, %v4497
        %v4556 = vadd.f32 %v4098, %v4500
        %v4557 = vadd.f32 %v4099, %v4503
        %v4558 = vadd.f32 %v4100, %v4506
        %v4559 = vadd.f32 %v4101, %v4509
        %v4560 = vadd.f32 %v4102, %v4512
        %v4561 = vadd.f32 %v4103, %v4515
        %v4562 = vadd.f32 %v4104, %v4518
        %v4563 = vadd.f32 %v4105, %v4521
        %v4564 = vrot.slane %v317, 2
        %v4565 = vrot.slane %v315, 7
        %v4566 = vrot.slane %v4565, 2
        %v4567 = vrot.slane %v4109, 7
        %v4568 = vsel %vm522, %v4566, %v4567
        %v4569 = vrot.slane %v4567, 2
        %v4570 = vrot.slane %v4110, 7
        %v4571 = vsel %vm522, %v4569, %v4570
        %v4572 = vrot.slane %v4570, 2
        %v4573 = vrot.slane %v4111, 7
        %v4574 = vsel %vm522, %v4572, %v4573
        %v4575 = vrot.slane %v4573, 2
        %v4576 = vrot.slane %v316, 7
        %v4577 = vsel %vm522, %v4575, %v4576
        %v4578 = vrot.slane %v4576, 2
        %v4579 = vrot.slane %v4112, 7
        %v4580 = vsel %vm522, %v4578, %v4579
        %v4581 = vrot.slane %v4579, 2
        %v4582 = vrot.slane %v4113, 7
        %v4583 = vsel %vm522, %v4581, %v4582
        %v4584 = vrot.slane %v4582, 2
        %v4585 = vrot.slane %v4114, 7
        %v4586 = vsel %vm522, %v4584, %v4585
        %v4587 = vrot.slane %v4585, 2
        %v4588 = vrot.slane %v317, 7
        %v4589 = vsel %vm522, %v4587, %v4588
        %v4590 = vrot.slane %v4588, 2
        %v4591 = vrot.slane %v4564, 7
        %v4592 = vsel %vm522, %v4590, %v4591
        %s4593 = scalar_lea.vmem %s1, 896
        %v4594 = vld [vmem:[%s4593] sm:$0xff]
        %v4595 = vld [vmem:[%s4593 + $0x8] sm:$0xff]
        %v4596 = vld [vmem:[%s4593 + $0x10] sm:$0xff]
        %v4597 = vld [vmem:[%s4593 + $0x18] sm:$0xff]
        %v4598 = vld [vmem:[%s4593 + $0x20] sm:$0xff]
        %v4599 = vld [vmem:[%s4593 + $0x28] sm:$0xff]
        %v4600 = vld [vmem:[%s4593 + $0x30] sm:$0xff]
        %v4601 = vld [vmem:[%s4593 + $0x38] sm:$0xff]
        %v4602 = vld [vmem:[%s4593 + $0x40] sm:$0xff]
        %v4603 = vld [vmem:[%s4593 + $0x48] sm:$0xff]
        %v4604 = vld [vmem:[%s4593 + $0x50] sm:$0xff]
        %v4605 = vld [vmem:[%s4593 + $0x58] sm:$0xff]
        %v4606 = vld [vmem:[%s4593 + $0x60] sm:$0xff]
        %v4607 = vld [vmem:[%s4593 + $0x68] sm:$0xff]
        %v4608 = vld [vmem:[%s4593 + $0x70] sm:$0xff]
        %v4609 = vld [vmem:[%s4593 + $0x78] sm:$0xff]
        %4610 = vst [vmem:[#allocation1] ss:$4 sm:$0xff] %v582
        %s4611 = scalar_lea.vmem [#allocation1], 1
        %4612 = vst [vmem:[%s4611] ss:$4 sm:$0xff] %v585
        %s4613 = scalar_lea.vmem [#allocation1], 2
        %4614 = vst [vmem:[%s4613] ss:$4 sm:$0xff] %v588
        %s4615 = scalar_lea.vmem [#allocation1], 3
        %4616 = vst [vmem:[%s4615] ss:$4 sm:$0xff] %v591
        %s4617 = scalar_lea.vmem [#allocation1], 32
        %4618 = vst [vmem:[%s4617] ss:$4 sm:$0xff] %v594
        %s4619 = scalar_lea.vmem [#allocation1], 33
        %4620 = vst [vmem:[%s4619] ss:$4 sm:$0xff] %v597
        %s4621 = scalar_lea.vmem [#allocation1], 34
        %4622 = vst [vmem:[%s4621] ss:$4 sm:$0xff] %v600
        %s4623 = scalar_lea.vmem [#allocation1], 35
        %4624 = vst [vmem:[%s4623] ss:$4 sm:$0xff] %v603
        %v4625 = vld.sshfl [vmem:[#allocation1] sm:$0xff pattern:$0x73625140]
        %v4626 = vld.sshfl [vmem:[#allocation1 + $0x20] sm:$0xff pattern:$0x73625140]
        %4627 = vst [vmem:[#allocation1] ss:$4 sm:$0xff] %v606
        %4628 = vst [vmem:[%s4611] ss:$4 sm:$0xff] %v610
        %4629 = vst [vmem:[%s4613] ss:$4 sm:$0xff] %v613
        %4630 = vst [vmem:[%s4615] ss:$4 sm:$0xff] %v616
        %4631 = vst [vmem:[%s4617] ss:$4 sm:$0xff] %v619
        %4632 = vst [vmem:[%s4619] ss:$4 sm:$0xff] %v622
        %4633 = vst [vmem:[%s4621] ss:$4 sm:$0xff] %v625
        %4634 = vst [vmem:[%s4623] ss:$4 sm:$0xff] %v628
        %v4635 = vld.sshfl [vmem:[#allocation1] sm:$0xff pattern:$0x73625140]
        %v4636 = vld.sshfl [vmem:[#allocation1 + $0x20] sm:$0xff pattern:$0x73625140]
        %4637 = vst [vmem:[#allocation1] ss:$4 sm:$0xff] %v631
        %4638 = vst [vmem:[%s4611] ss:$4 sm:$0xff] %v634
        %4639 = vst [vmem:[%s4613] ss:$4 sm:$0xff] %v638
        %4640 = vst [vmem:[%s4615] ss:$4 sm:$0xff] %v641
        %4641 = vst [vmem:[%s4617] ss:$4 sm:$0xff] %v644
        %4642 = vst [vmem:[%s4619] ss:$4 sm:$0xff] %v647
        %4643 = vst [vmem:[%s4621] ss:$4 sm:$0xff] %v650
        %4644 = vst [vmem:[%s4623] ss:$4 sm:$0xff] %v653
        %v4645 = vld.sshfl [vmem:[#allocation1] sm:$0xff pattern:$0x73625140]
        %v4646 = vld.sshfl [vmem:[#allocation1 + $0x20] sm:$0xff pattern:$0x73625140]
        %4647 = vst [vmem:[#allocation1] ss:$4 sm:$0xff] %v656
        %4648 = vst [vmem:[%s4611] ss:$4 sm:$0xff] %v659
        %4649 = vst [vmem:[%s4613] ss:$4 sm:$0xff] %v662
        %4650 = vst [vmem:[%s4615] ss:$4 sm:$0xff] %v666
        %4651 = vst [vmem:[%s4617] ss:$4 sm:$0xff] %v669
        %4652 = vst [vmem:[%s4619] ss:$4 sm:$0xff] %v672
        %4653 = vst [vmem:[%s4621] ss:$4 sm:$0xff] %v675
        %4654 = vst [vmem:[%s4623] ss:$4 sm:$0xff] %v678
        %v4655 = vld.sshfl [vmem:[#allocation1] sm:$0xff pattern:$0x73625140]
        %v4656 = vld.sshfl [vmem:[#allocation1 + $0x20] sm:$0xff pattern:$0x73625140]
        %4657 = vst [vmem:[#allocation1] ss:$4 sm:$0xff] %v681
        %4658 = vst [vmem:[%s4611] ss:$4 sm:$0xff] %v684
        %4659 = vst [vmem:[%s4613] ss:$4 sm:$0xff] %v687
        %4660 = vst [vmem:[%s4615] ss:$4 sm:$0xff] %v690
        %4661 = vst [vmem:[%s4617] ss:$4 sm:$0xff] %v694
        %4662 = vst [vmem:[%s4619] ss:$4 sm:$0xff] %v697
        %4663 = vst [vmem:[%s4621] ss:$4 sm:$0xff] %v700
        %4664 = vst [vmem:[%s4623] ss:$4 sm:$0xff] %v703
        %v4665 = vld.sshfl [vmem:[#allocation1] sm:$0xff pattern:$0x73625140]
        %v4666 = vld.sshfl [vmem:[#allocation1 + $0x20] sm:$0xff pattern:$0x73625140]
        %4667 = vst [vmem:[#allocation1] ss:$4 sm:$0xff] %v706
        %4668 = vst [vmem:[%s4611] ss:$4 sm:$0xff] %v709
        %4669 = vst [vmem:[%s4613] ss:$4 sm:$0xff] %v712
        %4670 = vst [vmem:[%s4615] ss:$4 sm:$0xff] %v715
        %4671 = vst [vmem:[%s4617] ss:$4 sm:$0xff] %v718
        %4672 = vst [vmem:[%s4619] ss:$4 sm:$0xff] %v722
        %4673 = vst [vmem:[%s4621] ss:$4 sm:$0xff] %v725
        %4674 = vst [vmem:[%s4623] ss:$4 sm:$0xff] %v728
        %v4675 = vld.sshfl [vmem:[#allocation1] sm:$0xff pattern:$0x73625140]
        %v4676 = vld.sshfl [vmem:[#allocation1 + $0x20] sm:$0xff pattern:$0x73625140]
        %4677 = vst [vmem:[#allocation1] ss:$4 sm:$0xff] %v731
        %4678 = vst [vmem:[%s4611] ss:$4 sm:$0xff] %v734
        %4679 = vst [vmem:[%s4613] ss:$4 sm:$0xff] %v737
        %4680 = vst [vmem:[%s4615] ss:$4 sm:$0xff] %v740
        %4681 = vst [vmem:[%s4617] ss:$4 sm:$0xff] %v743
        %4682 = vst [vmem:[%s4619] ss:$4 sm:$0xff] %v746
        %4683 = vst [vmem:[%s4621] ss:$4 sm:$0xff] %v750
        %4684 = vst [vmem:[%s4623] ss:$4 sm:$0xff] %v753
        %v4685 = vld.sshfl [vmem:[#allocation1] sm:$0xff pattern:$0x73625140]
        %v4686 = vld.sshfl [vmem:[#allocation1 + $0x20] sm:$0xff pattern:$0x73625140]
        %4687 = vst [vmem:[#allocation1] ss:$4 sm:$0xff] %v756
        %4688 = vst [vmem:[%s4611] ss:$4 sm:$0xff] %v759
        %4689 = vst [vmem:[%s4613] ss:$4 sm:$0xff] %v762
        %4690 = vst [vmem:[%s4615] ss:$4 sm:$0xff] %v765
        %4691 = vst [vmem:[%s4617] ss:$4 sm:$0xff] %v768
        %4692 = vst [vmem:[%s4619] ss:$4 sm:$0xff] %v771
        %4693 = vst [vmem:[%s4621] ss:$4 sm:$0xff] %v774
        %4694 = vst [vmem:[%s4623] ss:$4 sm:$0xff] %v778
        %v4695 = vld.sshfl [vmem:[#allocation1] sm:$0xff pattern:$0x73625140]
        %v4696 = vld.sshfl [vmem:[#allocation1 + $0x20] sm:$0xff pattern:$0x73625140]
        %4697 = vst [vmem:[#allocation1] ss:$4 sm:$0xff] %v781
        %4698 = vst [vmem:[%s4611] ss:$4 sm:$0xff] %v784
        %4699 = vst [vmem:[%s4613] ss:$4 sm:$0xff] %v787
        %4700 = vst [vmem:[%s4615] ss:$4 sm:$0xff] %v790
        %4701 = vst [vmem:[%s4617] ss:$4 sm:$0xff] %v793
        %4702 = vst [vmem:[%s4619] ss:$4 sm:$0xff] %v796
        %4703 = vst [vmem:[%s4621] ss:$4 sm:$0xff] %v799
        %4704 = vst [vmem:[%s4623] ss:$4 sm:$0xff] %v802
        %v4705 = vld.sshfl [vmem:[#allocation1] sm:$0xff pattern:$0x73625140]
        %v4706 = vld.sshfl [vmem:[#allocation1 + $0x20] sm:$0xff pattern:$0x73625140]
        %4707 = vst [vmem:[#allocation1] ss:$4 sm:$0xff] %v806
        %4708 = vst [vmem:[%s4611] ss:$4 sm:$0xff] %v809
        %4709 = vst [vmem:[%s4613] ss:$4 sm:$0xff] %v812
        %4710 = vst [vmem:[%s4615] ss:$4 sm:$0xff] %v815
        %4711 = vst [vmem:[%s4617] ss:$4 sm:$0xff] %v818
        %4712 = vst [vmem:[%s4619] ss:$4 sm:$0xff] %v821
        %4713 = vst [vmem:[%s4621] ss:$4 sm:$0xff] %v824
        %4714 = vst [vmem:[%s4623] ss:$4 sm:$0xff] %v827
        %v4715 = vld.sshfl [vmem:[#allocation1] sm:$0xff pattern:$0x73625140]
        %v4716 = vld.sshfl [vmem:[#allocation1 + $0x20] sm:$0xff pattern:$0x73625140]
        %4717 = vst [vmem:[#allocation1] ss:$4 sm:$0xff] %v830
        %4718 = vst [vmem:[%s4611] ss:$4 sm:$0xff] %v834
        %4719 = vst [vmem:[%s4613] ss:$4 sm:$0xff] %v837
        %4720 = vst [vmem:[%s4615] ss:$4 sm:$0xff] %v840
        %4721 = vst [vmem:[%s4617] ss:$4 sm:$0xff] %v843
        %4722 = vst [vmem:[%s4619] ss:$4 sm:$0xff] %v846
        %4723 = vst [vmem:[%s4621] ss:$4 sm:$0xff] %v849
        %4724 = vst [vmem:[%s4623] ss:$4 sm:$0xff] %v852
        %v4725 = vld.sshfl [vmem:[#allocation1] sm:$0xff pattern:$0x73625140]
        %v4726 = vld.sshfl [vmem:[#allocation1 + $0x20] sm:$0xff pattern:$0x73625140]
        %4727 = vst [vmem:[#allocation1] ss:$4 sm:$0xff] %v855
        %4728 = vst [vmem:[%s4611] ss:$4 sm:$0xff] %v858
        %4729 = vst [vmem:[%s4613] ss:$4 sm:$0xff] %v862
        %4730 = vst [vmem:[%s4615] ss:$4 sm:$0xff] %v865
        %4731 = vst [vmem:[%s4617] ss:$4 sm:$0xff] %v868
        %4732 = vst [vmem:[%s4619] ss:$4 sm:$0xff] %v871
        %4733 = vst [vmem:[%s4621] ss:$4 sm:$0xff] %v874
        %4734 = vst [vmem:[%s4623] ss:$4 sm:$0xff] %v877
        %v4735 = vld.sshfl [vmem:[#allocation1] sm:$0xff pattern:$0x73625140]
        %v4736 = vld.sshfl [vmem:[#allocation1 + $0x20] sm:$0xff pattern:$0x73625140]
        %4737 = vst [vmem:[#allocation1] ss:$4 sm:$0xff] %v880
        %4738 = vst [vmem:[%s4611] ss:$4 sm:$0xff] %v883
        %4739 = vst [vmem:[%s4613] ss:$4 sm:$0xff] %v886
        %4740 = vst [vmem:[%s4615] ss:$4 sm:$0xff] %v890
        %4741 = vst [vmem:[%s4617] ss:$4 sm:$0xff] %v893
        %4742 = vst [vmem:[%s4619] ss:$4 sm:$0xff] %v896
        %4743 = vst [vmem:[%s4621] ss:$4 sm:$0xff] %v899
        %4744 = vst [vmem:[%s4623] ss:$4 sm:$0xff] %v902
        %v4745 = vld.sshfl [vmem:[#allocation1] sm:$0xff pattern:$0x73625140]
        %v4746 = vld.sshfl [vmem:[#allocation1 + $0x20] sm:$0xff pattern:$0x73625140]
        %4747 = vst [vmem:[#allocation1] ss:$4 sm:$0xff] %v905
        %4748 = vst [vmem:[%s4611] ss:$4 sm:$0xff] %v908
        %4749 = vst [vmem:[%s4613] ss:$4 sm:$0xff] %v911
        %4750 = vst [vmem:[%s4615] ss:$4 sm:$0xff] %v914
        %4751 = vst [vmem:[%s4617] ss:$4 sm:$0xff] %v918
        %4752 = vst [vmem:[%s4619] ss:$4 sm:$0xff] %v921
        %4753 = vst [vmem:[%s4621] ss:$4 sm:$0xff] %v924
        %4754 = vst [vmem:[%s4623] ss:$4 sm:$0xff] %v927
        %v4755 = vld.sshfl [vmem:[#allocation1] sm:$0xff pattern:$0x73625140]
        %v4756 = vld.sshfl [vmem:[#allocation1 + $0x20] sm:$0xff pattern:$0x73625140]
        %4757 = vst [vmem:[#allocation1] ss:$4 sm:$0xff] %v930
        %4758 = vst [vmem:[%s4611] ss:$4 sm:$0xff] %v933
        %4759 = vst [vmem:[%s4613] ss:$4 sm:$0xff] %v936
        %4760 = vst [vmem:[%s4615] ss:$4 sm:$0xff] %v939
        %4761 = vst [vmem:[%s4617] ss:$4 sm:$0xff] %v942
        %4762 = vst [vmem:[%s4619] ss:$4 sm:$0xff] %v946
        %4763 = vst [vmem:[%s4621] ss:$4 sm:$0xff] %v949
        %4764 = vst [vmem:[%s4623] ss:$4 sm:$0xff] %v952
        %v4765 = vld.sshfl [vmem:[#allocation1] sm:$0xff pattern:$0x73625140]
        %v4766 = vld.sshfl [vmem:[#allocation1 + $0x20] sm:$0xff pattern:$0x73625140]
        %4767 = vst [vmem:[#allocation1] ss:$4 sm:$0xff] %v955
        %4768 = vst [vmem:[%s4611] ss:$4 sm:$0xff] %v958
        %4769 = vst [vmem:[%s4613] ss:$4 sm:$0xff] %v961
        %4770 = vst [vmem:[%s4615] ss:$4 sm:$0xff] %v964
        %4771 = vst [vmem:[%s4617] ss:$4 sm:$0xff] %v967
        %4772 = vst [vmem:[%s4619] ss:$4 sm:$0xff] %v970
        %4773 = vst [vmem:[%s4621] ss:$4 sm:$0xff] %v974
        %4774 = vst [vmem:[%s4623] ss:$4 sm:$0xff] %v977
        %v4775 = vld.sshfl [vmem:[#allocation1] sm:$0xff pattern:$0x73625140]
        %v4776 = vld.sshfl [vmem:[#allocation1 + $0x20] sm:$0xff pattern:$0x73625140]
        %4777 = vst [vmem:[#allocation1] ss:$4 sm:$0xff] %v980
        %4778 = vst [vmem:[%s4611] ss:$4 sm:$0xff] %v983
        %4779 = vst [vmem:[%s4613] ss:$4 sm:$0xff] %v986
        %4780 = vst [vmem:[%s4615] ss:$4 sm:$0xff] %v989
        %4781 = vst [vmem:[%s4617] ss:$4 sm:$0xff] %v992
        %4782 = vst [vmem:[%s4619] ss:$4 sm:$0xff] %v995
        %4783 = vst [vmem:[%s4621] ss:$4 sm:$0xff] %v998
        %4784 = vst [vmem:[%s4623] ss:$4 sm:$0xff] %v1002
        %v4785 = vld.sshfl [vmem:[#allocation1] sm:$0xff pattern:$0x73625140]
        %v4786 = vld.sshfl [vmem:[#allocation1 + $0x20] sm:$0xff pattern:$0x73625140]
        %4787 = vst [vmem:[#allocation1] ss:$4 sm:$0xff] %v1005
        %4788 = vst [vmem:[%s4611] ss:$4 sm:$0xff] %v1008
        %4789 = vst [vmem:[%s4613] ss:$4 sm:$0xff] %v1011
        %4790 = vst [vmem:[%s4615] ss:$4 sm:$0xff] %v1014
        %4791 = vst [vmem:[%s4617] ss:$4 sm:$0xff] %v1017
        %4792 = vst [vmem:[%s4619] ss:$4 sm:$0xff] %v1020
        %4793 = vst [vmem:[%s4621] ss:$4 sm:$0xff] %v1023
        %4794 = vst [vmem:[%s4623] ss:$4 sm:$0xff] %v1026
        %v4795 = vld.sshfl [vmem:[#allocation1] sm:$0xff pattern:$0x73625140]
        %v4796 = vld.sshfl [vmem:[#allocation1 + $0x20] sm:$0xff pattern:$0x73625140]
        %4797 = vst [vmem:[#allocation1] ss:$4 sm:$0xff] %v2960
        %4798 = vst [vmem:[%s4611] ss:$4 sm:$0xff] %v2963
        %4799 = vst [vmem:[%s4613] ss:$4 sm:$0xff] %v2966
        %4800 = vst [vmem:[%s4615] ss:$4 sm:$0xff] %v2969
        %4801 = vst [vmem:[%s4617] ss:$4 sm:$0xff] %v2972
        %4802 = vst [vmem:[%s4619] ss:$4 sm:$0xff] %v2975
        %4803 = vst [vmem:[%s4621] ss:$4 sm:$0xff] %v2978
        %4804 = vst [vmem:[%s4623] ss:$4 sm:$0xff] %v2981
        %v4805 = vld.sshfl [vmem:[#allocation1] sm:$0xff pattern:$0x73625140]
        %v4806 = vld.sshfl [vmem:[#allocation1 + $0x20] sm:$0xff pattern:$0x73625140]
        %4807 = vst [vmem:[#allocation1] ss:$4 sm:$0xff] %v2984
        %4808 = vst [vmem:[%s4611] ss:$4 sm:$0xff] %v4568
        %4809 = vst [vmem:[%s4613] ss:$4 sm:$0xff] %v4571
        %4810 = vst [vmem:[%s4615] ss:$4 sm:$0xff] %v4574
        %4811 = vst [vmem:[%s4617] ss:$4 sm:$0xff] %v4577
        %4812 = vst [vmem:[%s4619] ss:$4 sm:$0xff] %v4580
        %4813 = vst [vmem:[%s4621] ss:$4 sm:$0xff] %v4583
        %4814 = vst [vmem:[%s4623] ss:$4 sm:$0xff] %v4586
        %v4815 = vld.sshfl [vmem:[#allocation1] sm:$0xff pattern:$0x73625140]
        %v4816 = vld.sshfl [vmem:[#allocation1 + $0x20] sm:$0xff pattern:$0x73625140]
        %4817 = vst [vmem:[#allocation1] ss:$4 sm:$0xff] %v4589
        %4818 = vst [vmem:[%s4611] ss:$4 sm:$0xff] %v4592
        %v4819 = vld.sshfl [vmem:[#allocation1] sm:$0xff pattern:$0x73625140]
        %4861 = vmatpush.msra.mxu0 %v4609
        %4862 = vmatpush.msra.mxu0 %v4608
        %4863 = vmatpush.msra.mxu0 %v4607
        %4864 = vmatpush.msra.mxu0 %v4606
        %4865 = vmatpush.msra.mxu0 %v4605
        %4866 = vmatpush.msra.mxu0 %v4604
        %4867 = vmatpush.msra.mxu0 %v4603
        %4868 = vmatpush.msra.mxu0 %v4602
        %4869 = vmatpush.msra.mxu0 %v4601
        %4870 = vmatpush.msra.mxu0 %v4600
        %4871 = vmatpush.msra.mxu0 %v4599
        %4872 = vmatpush.msra.mxu0 %v4598
        %4873 = vmatpush.msra.mxu0 %v4597
        %4874 = vmatpush.msra.mxu0 %v4596
        %4875 = vmatpush.msra.mxu0 %v4595
        %4876 = vmatpush.msra.mxu0 %v4594
        %4877 = vmatmul.f32.gmra.mxu0 %v4625
        %v4878 = vpop.f32.mrf.mxu0
        %v4879 = vadd.f32 0.0, %v4878
        %4880 = vmatmul.f32.gmra.mxu0 %v4626
        %v4881 = vpop.f32.mrf.mxu0
        %v4882 = vadd.f32 0.0, %v4881
        %4883 = vmatmul.f32.gmra.mxu0 %v4635
        %v4884 = vpop.f32.mrf.mxu0
        %v4885 = vadd.f32 0.0, %v4884
        %4886 = vmatmul.f32.gmra.mxu0 %v4636
        %v4887 = vpop.f32.mrf.mxu0
        %v4888 = vadd.f32 0.0, %v4887
        %4889 = vmatmul.f32.gmra.mxu0 %v4645
        %v4890 = vpop.f32.mrf.mxu0
        %v4891 = vadd.f32 0.0, %v4890
        %4892 = vmatmul.f32.gmra.mxu0 %v4646
        %v4893 = vpop.f32.mrf.mxu0
        %v4894 = vadd.f32 0.0, %v4893
        %4895 = vmatmul.f32.gmra.mxu0 %v4655
        %v4896 = vpop.f32.mrf.mxu0
        %v4897 = vadd.f32 0.0, %v4896
        %4898 = vmatmul.f32.gmra.mxu0 %v4656
        %v4899 = vpop.f32.mrf.mxu0
        %v4900 = vadd.f32 0.0, %v4899
        %4901 = vmatmul.f32.gmra.mxu0 %v4665
        %v4902 = vpop.f32.mrf.mxu0
        %v4903 = vadd.f32 0.0, %v4902
        %4904 = vmatmul.f32.gmra.mxu0 %v4666
        %v4905 = vpop.f32.mrf.mxu0
        %v4906 = vadd.f32 0.0, %v4905
        %4907 = vmatmul.f32.gmra.mxu0 %v4675
        %v4908 = vpop.f32.mrf.mxu0
        %v4909 = vadd.f32 0.0, %v4908
        %4910 = vmatmul.f32.gmra.mxu0 %v4676
        %v4911 = vpop.f32.mrf.mxu0
        %v4912 = vadd.f32 0.0, %v4911
        %4913 = vmatmul.f32.gmra.mxu0 %v4685
        %v4914 = vpop.f32.mrf.mxu0
        %v4915 = vadd.f32 0.0, %v4914
        %4916 = vmatmul.f32.gmra.mxu0 %v4686
        %v4917 = vpop.f32.mrf.mxu0
        %v4918 = vadd.f32 0.0, %v4917
        %4919 = vmatmul.f32.gmra.mxu0 %v4695
        %v4920 = vpop.f32.mrf.mxu0
        %v4921 = vadd.f32 0.0, %v4920
        %4922 = vmatmul.f32.gmra.mxu0 %v4696
        %v4923 = vpop.f32.mrf.mxu0
        %v4924 = vadd.f32 0.0, %v4923
        %4925 = vmatmul.f32.gmra.mxu0 %v4705
        %v4926 = vpop.f32.mrf.mxu0
        %v4927 = vadd.f32 0.0, %v4926
        %4928 = vmatmul.f32.gmra.mxu0 %v4706
        %v4929 = vpop.f32.mrf.mxu0
        %v4930 = vadd.f32 0.0, %v4929
        %4931 = vmatmul.f32.gmra.mxu0 %v4715
        %v4932 = vpop.f32.mrf.mxu0
        %v4933 = vadd.f32 0.0, %v4932
        %4934 = vmatmul.f32.gmra.mxu0 %v4716
        %v4935 = vpop.f32.mrf.mxu0
        %v4936 = vadd.f32 0.0, %v4935
        %4937 = vmatmul.f32.gmra.mxu0 %v4725
        %v4938 = vpop.f32.mrf.mxu0
        %v4939 = vadd.f32 0.0, %v4938
        %4940 = vmatmul.f32.gmra.mxu0 %v4726
        %v4941 = vpop.f32.mrf.mxu0
        %v4942 = vadd.f32 0.0, %v4941
        %4943 = vmatmul.f32.gmra.mxu0 %v4735
        %v4944 = vpop.f32.mrf.mxu0
        %v4945 = vadd.f32 0.0, %v4944
        %4946 = vmatmul.f32.gmra.mxu0 %v4736
        %v4947 = vpop.f32.mrf.mxu0
        %v4948 = vadd.f32 0.0, %v4947
        %4949 = vmatmul.f32.gmra.mxu0 %v4745
        %v4950 = vpop.f32.mrf.mxu0
        %v4951 = vadd.f32 0.0, %v4950
        %4952 = vmatmul.f32.gmra.mxu0 %v4746
        %v4953 = vpop.f32.mrf.mxu0
        %v4954 = vadd.f32 0.0, %v4953
        %4955 = vmatmul.f32.gmra.mxu0 %v4755
        %v4956 = vpop.f32.mrf.mxu0
        %v4957 = vadd.f32 0.0, %v4956
        %4958 = vmatmul.f32.gmra.mxu0 %v4756
        %v4959 = vpop.f32.mrf.mxu0
        %v4960 = vadd.f32 0.0, %v4959
        %4961 = vmatmul.f32.gmra.mxu0 %v4765
        %v4962 = vpop.f32.mrf.mxu0
        %v4963 = vadd.f32 0.0, %v4962
        %4964 = vmatmul.f32.gmra.mxu0 %v4766
        %v4965 = vpop.f32.mrf.mxu0
        %v4966 = vadd.f32 0.0, %v4965
        %4967 = vmatmul.f32.gmra.mxu0 %v4775
        %v4968 = vpop.f32.mrf.mxu0
        %v4969 = vadd.f32 0.0, %v4968
        %4970 = vmatmul.f32.gmra.mxu0 %v4776
        %v4971 = vpop.f32.mrf.mxu0
        %v4972 = vadd.f32 0.0, %v4971
        %4973 = vmatmul.f32.gmra.mxu0 %v4785
        %v4974 = vpop.f32.mrf.mxu0
        %v4975 = vadd.f32 0.0, %v4974
        %4976 = vmatmul.f32.gmra.mxu0 %v4786
        %v4977 = vpop.f32.mrf.mxu0
        %v4978 = vadd.f32 0.0, %v4977
        %4979 = vmatmul.f32.gmra.mxu0 %v4795
        %v4980 = vpop.f32.mrf.mxu0
        %v4981 = vadd.f32 0.0, %v4980
        %4982 = vmatmul.f32.gmra.mxu0 %v4796
        %v4983 = vpop.f32.mrf.mxu0
        %v4984 = vadd.f32 0.0, %v4983
        %4985 = vmatmul.f32.gmra.mxu0 %v4805
        %v4986 = vpop.f32.mrf.mxu0
        %v4987 = vadd.f32 0.0, %v4986
        %4988 = vmatmul.f32.gmra.mxu0 %v4806
        %v4989 = vpop.f32.mrf.mxu0
        %v4990 = vadd.f32 0.0, %v4989
        %4991 = vmatmul.f32.gmra.mxu0 %v4815
        %v4992 = vpop.f32.mrf.mxu0
        %v4993 = vadd.f32 0.0, %v4992
        %4994 = vmatmul.f32.gmra.mxu0 %v4816
        %v4995 = vpop.f32.mrf.mxu0
        %v4996 = vadd.f32 0.0, %v4995
        %4997 = vmatmul.f32.gmra.mxu0 %v4819
        %v4998 = vpop.f32.mrf.mxu0
        %v4999 = vadd.f32 0.0, %v4998
        %5000 = vdwg.mxu0
        %v5001 = vadd.f32 %v4523, %v4879
        %v5002 = vadd.f32 %v4524, %v4882
        %v5003 = vadd.f32 %v4525, %v4885
        %v5004 = vadd.f32 %v4526, %v4888
        %v5005 = vadd.f32 %v4527, %v4891
        %v5006 = vadd.f32 %v4528, %v4894
        %v5007 = vadd.f32 %v4529, %v4897
        %v5008 = vadd.f32 %v4530, %v4900
        %v5009 = vadd.f32 %v4531, %v4903
        %v5010 = vadd.f32 %v4532, %v4906
        %v5011 = vadd.f32 %v4533, %v4909
        %v5012 = vadd.f32 %v4534, %v4912
        %v5013 = vadd.f32 %v4535, %v4915
        %v5014 = vadd.f32 %v4536, %v4918
        %v5015 = vadd.f32 %v4537, %v4921
        %v5016 = vadd.f32 %v4538, %v4924
        %v5017 = vadd.f32 %v4539, %v4927
        %v5018 = vadd.f32 %v4540, %v4930
        %v5019 = vadd.f32 %v4541, %v4933
        %v5020 = vadd.f32 %v4542, %v4936
        %v5021 = vadd.f32 %v4543, %v4939
        %v5022 = vadd.f32 %v4544, %v4942
        %v5023 = vadd.f32 %v4545, %v4945
        %v5024 = vadd.f32 %v4546, %v4948
        %v5025 = vadd.f32 %v4547, %v4951
        %v5026 = vadd.f32 %v4548, %v4954
        %v5027 = vadd.f32 %v4549, %v4957
        %v5028 = vadd.f32 %v4550, %v4960
        %v5029 = vadd.f32 %v4551, %v4963
        %v5030 = vadd.f32 %v4552, %v4966
        %v5031 = vadd.f32 %v4553, %v4969
        %v5032 = vadd.f32 %v4554, %v4972
        %v5033 = vadd.f32 %v4555, %v4975
        %v5034 = vadd.f32 %v4556, %v4978
        %v5035 = vadd.f32 %v4557, %v4981
        %v5036 = vadd.f32 %v4558, %v4984
        %v5037 = vadd.f32 %v4559, %v4987
        %v5038 = vadd.f32 %v4560, %v4990
        %v5039 = vadd.f32 %v4561, %v4993
        %v5040 = vadd.f32 %v4562, %v4996
        %v5041 = vadd.f32 %v4563, %v4999
        %5042 = vst.sshfl [vmem:[#allocation1] sm:$0xff pattern:$0x73625140] %v264
        %5043 = vst.sshfl [vmem:[#allocation1 + $0x20] sm:$0xff pattern:$0x73625140] %v265
        %s5044 = scalar_lea.vmem [#allocation1], 1
        %v5045 = vld [vmem:[%s5044] ss:$4 sm:$0xff]
        %s5046 = scalar_lea.vmem [#allocation1], 2
        %v5047 = vld [vmem:[%s5046] ss:$4 sm:$0xff]
        %s5048 = scalar_lea.vmem [#allocation1], 3
        %v5049 = vld [vmem:[%s5048] ss:$4 sm:$0xff]
        %s5050 = scalar_lea.vmem [#allocation1], 32
        %v5051 = vld [vmem:[%s5050] ss:$4 sm:$0xff]
        %s5052 = scalar_lea.vmem [#allocation1], 33
        %v5053 = vld [vmem:[%s5052] ss:$4 sm:$0xff]
        %s5054 = scalar_lea.vmem [#allocation1], 34
        %v5055 = vld [vmem:[%s5054] ss:$4 sm:$0xff]
        %s5056 = scalar_lea.vmem [#allocation1], 35
        %v5057 = vld [vmem:[%s5056] ss:$4 sm:$0xff]
        %5058 = vst.sshfl [vmem:[#allocation1] sm:$0xff pattern:$0x73625140] %v266
        %v5059 = vld [vmem:[#allocation1] ss:$4 sm:$0xff]
        %v5060 = vld [vmem:[%s5044] ss:$4 sm:$0xff]
        %5061 = vst.sshfl [vmem:[#allocation1 + $0x20] sm:$0xff pattern:$0x73625140] %v267
        %v5062 = vld [vmem:[%s5052] ss:$4 sm:$0xff]
        %v5063 = vld [vmem:[%s5054] ss:$4 sm:$0xff]
        %v5064 = vld [vmem:[%s5056] ss:$4 sm:$0xff]
        %5065 = vst.sshfl [vmem:[#allocation1] sm:$0xff pattern:$0x73625140] %v268
        %5066 = vst.sshfl [vmem:[#allocation1 + $0x20] sm:$0xff pattern:$0x73625140] %v269
        %v5067 = vld [vmem:[#allocation1] ss:$4 sm:$0xff]
        %v5068 = vld [vmem:[%s5044] ss:$4 sm:$0xff]
        %v5069 = vld [vmem:[%s5046] ss:$4 sm:$0xff]
        %v5070 = vld [vmem:[%s5048] ss:$4 sm:$0xff]
        %v5071 = vld [vmem:[%s5050] ss:$4 sm:$0xff]
        %v5072 = vld [vmem:[%s5052] ss:$4 sm:$0xff]
        %5073 = vst.sshfl [vmem:[#allocation1] sm:$0xff pattern:$0x73625140] %v270
        %5074 = vst.sshfl [vmem:[#allocation1 + $0x20] sm:$0xff pattern:$0x73625140] %v271
        %v5075 = vld [vmem:[%s5044] ss:$4 sm:$0xff]
        %v5076 = vld [vmem:[%s5046] ss:$4 sm:$0xff]
        %v5077 = vld [vmem:[%s5048] ss:$4 sm:$0xff]
        %v5078 = vld [vmem:[%s5050] ss:$4 sm:$0xff]
        %v5079 = vld [vmem:[%s5052] ss:$4 sm:$0xff]
        %v5080 = vld [vmem:[%s5054] ss:$4 sm:$0xff]
        %v5081 = vld [vmem:[%s5056] ss:$4 sm:$0xff]
        %5082 = vst.sshfl [vmem:[#allocation1] sm:$0xff pattern:$0x73625140] %v272
        %v5083 = vld [vmem:[#allocation1] ss:$4 sm:$0xff]
        %v5084 = vld [vmem:[%s5044] ss:$4 sm:$0xff]
        %5085 = vst.sshfl [vmem:[#allocation1 + $0x20] sm:$0xff pattern:$0x73625140] %v273
        %v5086 = vld [vmem:[%s5052] ss:$4 sm:$0xff]
        %v5087 = vld [vmem:[%s5054] ss:$4 sm:$0xff]
        %v5088 = vld [vmem:[%s5056] ss:$4 sm:$0xff]
        %5089 = vst.sshfl [vmem:[#allocation1] sm:$0xff pattern:$0x73625140] %v274
        %5090 = vst.sshfl [vmem:[#allocation1 + $0x20] sm:$0xff pattern:$0x73625140] %v275
        %v5091 = vld [vmem:[#allocation1] ss:$4 sm:$0xff]
        %v5092 = vld [vmem:[%s5044] ss:$4 sm:$0xff]
        %v5093 = vld [vmem:[%s5046] ss:$4 sm:$0xff]
        %v5094 = vld [vmem:[%s5048] ss:$4 sm:$0xff]
        %v5095 = vld [vmem:[%s5050] ss:$4 sm:$0xff]
        %v5096 = vld [vmem:[%s5052] ss:$4 sm:$0xff]
        %5097 = vst.sshfl [vmem:[#allocation1] sm:$0xff pattern:$0x73625140] %v276
        %5098 = vst.sshfl [vmem:[#allocation1 + $0x20] sm:$0xff pattern:$0x73625140] %v277
        %v5099 = vld [vmem:[%s5044] ss:$4 sm:$0xff]
        %v5100 = vld [vmem:[%s5046] ss:$4 sm:$0xff]
        %v5101 = vld [vmem:[%s5048] ss:$4 sm:$0xff]
        %v5102 = vld [vmem:[%s5050] ss:$4 sm:$0xff]
        %v5103 = vld [vmem:[%s5052] ss:$4 sm:$0xff]
        %v5104 = vld [vmem:[%s5054] ss:$4 sm:$0xff]
        %v5105 = vld [vmem:[%s5056] ss:$4 sm:$0xff]
        %5106 = vst.sshfl [vmem:[#allocation1] sm:$0xff pattern:$0x73625140] %v278
        %v5107 = vld [vmem:[#allocation1] ss:$4 sm:$0xff]
        %v5108 = vld [vmem:[%s5044] ss:$4 sm:$0xff]
        %5109 = vst.sshfl [vmem:[#allocation1 + $0x20] sm:$0xff pattern:$0x73625140] %v279
        %v5110 = vld [vmem:[%s5052] ss:$4 sm:$0xff]
        %v5111 = vld [vmem:[%s5054] ss:$4 sm:$0xff]
        %v5112 = vld [vmem:[%s5056] ss:$4 sm:$0xff]
        %5113 = vst.sshfl [vmem:[#allocation1] sm:$0xff pattern:$0x73625140] %v280
        %5114 = vst.sshfl [vmem:[#allocation1 + $0x20] sm:$0xff pattern:$0x73625140] %v281
        %v5115 = vld [vmem:[#allocation1] ss:$4 sm:$0xff]
        %v5116 = vld [vmem:[%s5044] ss:$4 sm:$0xff]
        %v5117 = vld [vmem:[%s5046] ss:$4 sm:$0xff]
        %v5118 = vld [vmem:[%s5048] ss:$4 sm:$0xff]
        %v5119 = vld [vmem:[%s5050] ss:$4 sm:$0xff]
        %v5120 = vld [vmem:[%s5052] ss:$4 sm:$0xff]
        %5121 = vst.sshfl [vmem:[#allocation1] sm:$0xff pattern:$0x73625140] %v282
        %5122 = vst.sshfl [vmem:[#allocation1 + $0x20] sm:$0xff pattern:$0x73625140] %v283
        %v5123 = vld [vmem:[%s5044] ss:$4 sm:$0xff]
        %v5124 = vld [vmem:[%s5046] ss:$4 sm:$0xff]
        %v5125 = vld [vmem:[%s5048] ss:$4 sm:$0xff]
        %v5126 = vld [vmem:[%s5050] ss:$4 sm:$0xff]
        %v5127 = vld [vmem:[%s5052] ss:$4 sm:$0xff]
        %v5128 = vld [vmem:[%s5054] ss:$4 sm:$0xff]
        %v5129 = vld [vmem:[%s5056] ss:$4 sm:$0xff]
        %5130 = vst.sshfl [vmem:[#allocation1] sm:$0xff pattern:$0x73625140] %v284
        %v5131 = vld [vmem:[#allocation1] ss:$4 sm:$0xff]
        %v5132 = vld [vmem:[%s5044] ss:$4 sm:$0xff]
        %5133 = vst.sshfl [vmem:[#allocation1 + $0x20] sm:$0xff pattern:$0x73625140] %v285
        %v5134 = vld [vmem:[%s5052] ss:$4 sm:$0xff]
        %v5135 = vld [vmem:[%s5054] ss:$4 sm:$0xff]
        %v5136 = vld [vmem:[%s5056] ss:$4 sm:$0xff]
        %5137 = vst.sshfl [vmem:[#allocation1] sm:$0xff pattern:$0x73625140] %v286
        %5138 = vst.sshfl [vmem:[#allocation1 + $0x20] sm:$0xff pattern:$0x73625140] %v287
        %v5139 = vld [vmem:[#allocation1] ss:$4 sm:$0xff]
        %v5140 = vld [vmem:[%s5044] ss:$4 sm:$0xff]
        %v5141 = vld [vmem:[%s5046] ss:$4 sm:$0xff]
        %v5142 = vld [vmem:[%s5048] ss:$4 sm:$0xff]
        %v5143 = vld [vmem:[%s5050] ss:$4 sm:$0xff]
        %v5144 = vld [vmem:[%s5052] ss:$4 sm:$0xff]
        %5145 = vst.sshfl [vmem:[#allocation1] sm:$0xff pattern:$0x73625140] %v288
        %5146 = vst.sshfl [vmem:[#allocation1 + $0x20] sm:$0xff pattern:$0x73625140] %v289
        %v5147 = vld [vmem:[%s5044] ss:$4 sm:$0xff]
        %v5148 = vld [vmem:[%s5046] ss:$4 sm:$0xff]
        %v5149 = vld [vmem:[%s5048] ss:$4 sm:$0xff]
        %v5150 = vld [vmem:[%s5050] ss:$4 sm:$0xff]
        %v5151 = vld [vmem:[%s5052] ss:$4 sm:$0xff]
        %v5152 = vld [vmem:[%s5054] ss:$4 sm:$0xff]
        %v5153 = vld [vmem:[%s5056] ss:$4 sm:$0xff]
        %5154 = vst.sshfl [vmem:[#allocation1] sm:$0xff pattern:$0x73625140] %v290
        %v5155 = vld [vmem:[#allocation1] ss:$4 sm:$0xff]
        %v5156 = vld [vmem:[%s5044] ss:$4 sm:$0xff]
        %5157 = vst.sshfl [vmem:[#allocation1 + $0x20] sm:$0xff pattern:$0x73625140] %v291
        %v5158 = vld [vmem:[%s5052] ss:$4 sm:$0xff]
        %v5159 = vld [vmem:[%s5054] ss:$4 sm:$0xff]
        %v5160 = vld [vmem:[%s5056] ss:$4 sm:$0xff]
        %5161 = vst.sshfl [vmem:[#allocation1] sm:$0xff pattern:$0x73625140] %v292
        %5162 = vst.sshfl [vmem:[#allocation1 + $0x20] sm:$0xff pattern:$0x73625140] %v293
        %v5163 = vld [vmem:[#allocation1] ss:$4 sm:$0xff]
        %v5164 = vld [vmem:[%s5044] ss:$4 sm:$0xff]
        %v5165 = vld [vmem:[%s5046] ss:$4 sm:$0xff]
        %v5166 = vld [vmem:[%s5048] ss:$4 sm:$0xff]
        %v5167 = vld [vmem:[%s5050] ss:$4 sm:$0xff]
        %v5168 = vld [vmem:[%s5052] ss:$4 sm:$0xff]
        %5169 = vst.sshfl [vmem:[#allocation1] sm:$0xff pattern:$0x73625140] %v294
        %5170 = vst.sshfl [vmem:[#allocation1 + $0x20] sm:$0xff pattern:$0x73625140] %v295
        %v5171 = vld [vmem:[%s5044] ss:$4 sm:$0xff]
        %v5172 = vld [vmem:[%s5046] ss:$4 sm:$0xff]
        %v5173 = vld [vmem:[%s5048] ss:$4 sm:$0xff]
        %v5174 = vld [vmem:[%s5050] ss:$4 sm:$0xff]
        %v5175 = vld [vmem:[%s5052] ss:$4 sm:$0xff]
        %v5176 = vld [vmem:[%s5054] ss:$4 sm:$0xff]
        %v5177 = vld [vmem:[%s5056] ss:$4 sm:$0xff]
        %5178 = vst.sshfl [vmem:[#allocation1] sm:$0xff pattern:$0x73625140] %v296
        %v5179 = vld [vmem:[#allocation1] ss:$4 sm:$0xff]
        %v5180 = vld [vmem:[%s5044] ss:$4 sm:$0xff]
        %5181 = vst.sshfl [vmem:[#allocation1 + $0x20] sm:$0xff pattern:$0x73625140] %v297
        %v5182 = vld [vmem:[%s5052] ss:$4 sm:$0xff]
        %v5183 = vld [vmem:[%s5054] ss:$4 sm:$0xff]
        %v5184 = vld [vmem:[%s5056] ss:$4 sm:$0xff]
        %5185 = vst.sshfl [vmem:[#allocation1] sm:$0xff pattern:$0x73625140] %v298
        %5186 = vst.sshfl [vmem:[#allocation1 + $0x20] sm:$0xff pattern:$0x73625140] %v299
        %v5187 = vld [vmem:[#allocation1] ss:$4 sm:$0xff]
        %v5188 = vld [vmem:[%s5044] ss:$4 sm:$0xff]
        %v5189 = vld [vmem:[%s5046] ss:$4 sm:$0xff]
        %v5190 = vld [vmem:[%s5048] ss:$4 sm:$0xff]
        %v5191 = vld [vmem:[%s5050] ss:$4 sm:$0xff]
        %v5192 = vld [vmem:[%s5052] ss:$4 sm:$0xff]
        %5193 = vst.sshfl [vmem:[#allocation1] sm:$0xff pattern:$0x73625140] %v300
        %5194 = vst.sshfl [vmem:[#allocation1 + $0x20] sm:$0xff pattern:$0x73625140] %v301
        %v5195 = vld [vmem:[%s5044] ss:$4 sm:$0xff]
        %v5196 = vld [vmem:[%s5046] ss:$4 sm:$0xff]
        %v5197 = vld [vmem:[%s5048] ss:$4 sm:$0xff]
        %v5198 = vld [vmem:[%s5050] ss:$4 sm:$0xff]
        %v5199 = vld [vmem:[%s5052] ss:$4 sm:$0xff]
        %v5200 = vld [vmem:[%s5054] ss:$4 sm:$0xff]
        %v5201 = vld [vmem:[%s5056] ss:$4 sm:$0xff]
        %5202 = vst.sshfl [vmem:[#allocation1] sm:$0xff pattern:$0x73625140] %v302
        %v5203 = vld [vmem:[#allocation1] ss:$4 sm:$0xff]
        %v5204 = vld [vmem:[%s5044] ss:$4 sm:$0xff]
        %5205 = vst.sshfl [vmem:[#allocation1 + $0x20] sm:$0xff pattern:$0x73625140] %v303
        %v5206 = vld [vmem:[%s5052] ss:$4 sm:$0xff]
        %v5207 = vld [vmem:[%s5054] ss:$4 sm:$0xff]
        %v5208 = vld [vmem:[%s5056] ss:$4 sm:$0xff]
        %5209 = vst.sshfl [vmem:[#allocation1] sm:$0xff pattern:$0x73625140] %v304
        %5210 = vst.sshfl [vmem:[#allocation1 + $0x20] sm:$0xff pattern:$0x73625140] %v305
        %v5211 = vld [vmem:[#allocation1] ss:$4 sm:$0xff]
        %v5212 = vld [vmem:[%s5044] ss:$4 sm:$0xff]
        %v5213 = vld [vmem:[%s5046] ss:$4 sm:$0xff]
        %v5214 = vld [vmem:[%s5048] ss:$4 sm:$0xff]
        %v5215 = vld [vmem:[%s5050] ss:$4 sm:$0xff]
        %v5216 = vld [vmem:[%s5052] ss:$4 sm:$0xff]
        %5217 = vst.sshfl [vmem:[#allocation1] sm:$0xff pattern:$0x73625140] %v306
        %5218 = vst.sshfl [vmem:[#allocation1 + $0x20] sm:$0xff pattern:$0x73625140] %v307
        %v5219 = vld [vmem:[%s5044] ss:$4 sm:$0xff]
        %v5220 = vld [vmem:[%s5046] ss:$4 sm:$0xff]
        %v5221 = vld [vmem:[%s5048] ss:$4 sm:$0xff]
        %v5222 = vld [vmem:[%s5050] ss:$4 sm:$0xff]
        %v5223 = vld [vmem:[%s5052] ss:$4 sm:$0xff]
        %v5224 = vld [vmem:[%s5054] ss:$4 sm:$0xff]
        %v5225 = vld [vmem:[%s5056] ss:$4 sm:$0xff]
        %5226 = vst.sshfl [vmem:[#allocation1] sm:$0xff pattern:$0x73625140] %v308
        %v5227 = vld [vmem:[#allocation1] ss:$4 sm:$0xff]
        %v5228 = vld [vmem:[%s5044] ss:$4 sm:$0xff]
        %5229 = vst.sshfl [vmem:[#allocation1 + $0x20] sm:$0xff pattern:$0x73625140] %v309
        %v5230 = vld [vmem:[%s5052] ss:$4 sm:$0xff]
        %v5231 = vld [vmem:[%s5054] ss:$4 sm:$0xff]
        %v5232 = vld [vmem:[%s5056] ss:$4 sm:$0xff]
        %5233 = vst.sshfl [vmem:[#allocation1] sm:$0xff pattern:$0x73625140] %v310
        %5234 = vst.sshfl [vmem:[#allocation1 + $0x20] sm:$0xff pattern:$0x73625140] %v311
        %v5235 = vld [vmem:[#allocation1] ss:$4 sm:$0xff]
        %v5236 = vld [vmem:[%s5044] ss:$4 sm:$0xff]
        %v5237 = vld [vmem:[%s5046] ss:$4 sm:$0xff]
        %v5238 = vld [vmem:[%s5048] ss:$4 sm:$0xff]
        %v5239 = vld [vmem:[%s5050] ss:$4 sm:$0xff]
        %v5240 = vld [vmem:[%s5052] ss:$4 sm:$0xff]
        %5241 = vst.sshfl [vmem:[#allocation1] sm:$0xff pattern:$0x73625140] %v312
        %5242 = vst.sshfl [vmem:[#allocation1 + $0x20] sm:$0xff pattern:$0x73625140] %v313
        %v5243 = vld [vmem:[%s5044] ss:$4 sm:$0xff]
        %v5244 = vld [vmem:[%s5046] ss:$4 sm:$0xff]
        %v5245 = vld [vmem:[%s5048] ss:$4 sm:$0xff]
        %v5246 = vld [vmem:[%s5050] ss:$4 sm:$0xff]
        %v5247 = vld [vmem:[%s5052] ss:$4 sm:$0xff]
        %v5248 = vld [vmem:[%s5054] ss:$4 sm:$0xff]
        %v5249 = vld [vmem:[%s5056] ss:$4 sm:$0xff]
        %5250 = vst.sshfl [vmem:[#allocation1] sm:$0xff pattern:$0x73625140] %v314
        %v5251 = vld [vmem:[#allocation1] ss:$4 sm:$0xff]
        %v5252 = vld [vmem:[%s5044] ss:$4 sm:$0xff]
        %5253 = vst.sshfl [vmem:[#allocation1 + $0x20] sm:$0xff pattern:$0x73625140] %v315
        %v5254 = vld [vmem:[%s5052] ss:$4 sm:$0xff]
        %v5255 = vld [vmem:[%s5054] ss:$4 sm:$0xff]
        %v5256 = vld [vmem:[%s5056] ss:$4 sm:$0xff]
        %5257 = vst.sshfl [vmem:[#allocation1] sm:$0xff pattern:$0x73625140] %v316
        %5258 = vst.sshfl [vmem:[#allocation1 + $0x20] sm:$0xff pattern:$0x73625140] %v317
        %v5259 = vld [vmem:[#allocation1] ss:$4 sm:$0xff]
        %v5260 = vld [vmem:[%s5044] ss:$4 sm:$0xff]
        %v5261 = vld [vmem:[%s5046] ss:$4 sm:$0xff]
        %v5262 = vld [vmem:[%s5048] ss:$4 sm:$0xff]
        %v5263 = vld [vmem:[%s5050] ss:$4 sm:$0xff]
        %v5264 = vld [vmem:[%s5052] ss:$4 sm:$0xff]
        %s5265 = scalar_lea.vmem %s1, 1024
        %v5266 = vld [vmem:[%s5265] sm:$0xff]
        %v5267 = vld [vmem:[%s5265 + $0x8] sm:$0xff]
        %v5268 = vld [vmem:[%s5265 + $0x10] sm:$0xff]
        %v5269 = vld [vmem:[%s5265 + $0x18] sm:$0xff]
        %v5270 = vld [vmem:[%s5265 + $0x20] sm:$0xff]
        %v5271 = vld [vmem:[%s5265 + $0x28] sm:$0xff]
        %v5272 = vld [vmem:[%s5265 + $0x30] sm:$0xff]
        %v5273 = vld [vmem:[%s5265 + $0x38] sm:$0xff]
        %v5274 = vld [vmem:[%s5265 + $0x40] sm:$0xff]
        %v5275 = vld [vmem:[%s5265 + $0x48] sm:$0xff]
        %v5276 = vld [vmem:[%s5265 + $0x50] sm:$0xff]
        %v5277 = vld [vmem:[%s5265 + $0x58] sm:$0xff]
        %v5278 = vld [vmem:[%s5265 + $0x60] sm:$0xff]
        %v5279 = vld [vmem:[%s5265 + $0x68] sm:$0xff]
        %v5280 = vld [vmem:[%s5265 + $0x70] sm:$0xff]
        %v5281 = vld [vmem:[%s5265 + $0x78] sm:$0xff]
        %5282 = vst [vmem:[#allocation1] ss:$4 sm:$0xff] %v5045
        %s5283 = scalar_lea.vmem [#allocation1], 1
        %5284 = vst [vmem:[%s5283] ss:$4 sm:$0xff] %v5047
        %s5285 = scalar_lea.vmem [#allocation1], 2
        %5286 = vst [vmem:[%s5285] ss:$4 sm:$0xff] %v5049
        %s5287 = scalar_lea.vmem [#allocation1], 3
        %5288 = vst [vmem:[%s5287] ss:$4 sm:$0xff] %v5051
        %s5289 = scalar_lea.vmem [#allocation1], 32
        %5290 = vst [vmem:[%s5289] ss:$4 sm:$0xff] %v5053
        %s5291 = scalar_lea.vmem [#allocation1], 33
        %5292 = vst [vmem:[%s5291] ss:$4 sm:$0xff] %v5055
        %s5293 = scalar_lea.vmem [#allocation1], 34
        %5294 = vst [vmem:[%s5293] ss:$4 sm:$0xff] %v5057
        %s5295 = scalar_lea.vmem [#allocation1], 35
        %5296 = vst [vmem:[%s5295] ss:$4 sm:$0xff] %v5059
        %v5297 = vld.sshfl [vmem:[#allocation1] sm:$0xff pattern:$0x73625140]
        %v5298 = vld.sshfl [vmem:[#allocation1 + $0x20] sm:$0xff pattern:$0x73625140]
        %5299 = vst [vmem:[#allocation1] ss:$4 sm:$0xff] %v5060
        %5300 = vst [vmem:[%s5283] ss:$4 sm:$0xff] %v5062
        %5301 = vst [vmem:[%s5285] ss:$4 sm:$0xff] %v5063
        %5302 = vst [vmem:[%s5287] ss:$4 sm:$0xff] %v5064
        %5303 = vst [vmem:[%s5289] ss:$4 sm:$0xff] %v5067
        %5304 = vst [vmem:[%s5291] ss:$4 sm:$0xff] %v5068
        %5305 = vst [vmem:[%s5293] ss:$4 sm:$0xff] %v5069
        %5306 = vst [vmem:[%s5295] ss:$4 sm:$0xff] %v5070
        %v5307 = vld.sshfl [vmem:[#allocation1] sm:$0xff pattern:$0x73625140]
        %v5308 = vld.sshfl [vmem:[#allocation1 + $0x20] sm:$0xff pattern:$0x73625140]
        %5309 = vst [vmem:[#allocation1] ss:$4 sm:$0xff] %v5071
        %5310 = vst [vmem:[%s5283] ss:$4 sm:$0xff] %v5072
        %5311 = vst [vmem:[%s5285] ss:$4 sm:$0xff] %v5075
        %5312 = vst [vmem:[%s5287] ss:$4 sm:$0xff] %v5076
        %5313 = vst [vmem:[%s5289] ss:$4 sm:$0xff] %v5077
        %5314 = vst [vmem:[%s5291] ss:$4 sm:$0xff] %v5078
        %5315 = vst [vmem:[%s5293] ss:$4 sm:$0xff] %v5079
        %5316 = vst [vmem:[%s5295] ss:$4 sm:$0xff] %v5080
        %v5317 = vld.sshfl [vmem:[#allocation1] sm:$0xff pattern:$0x73625140]
        %v5318 = vld.sshfl [vmem:[#allocation1 + $0x20] sm:$0xff pattern:$0x73625140]
        %5319 = vst [vmem:[#allocation1] ss:$4 sm:$0xff] %v5081
        %5320 = vst [vmem:[%s5283] ss:$4 sm:$0xff] %v5083
        %5321 = vst [vmem:[%s5285] ss:$4 sm:$0xff] %v5084
        %5322 = vst [vmem:[%s5287] ss:$4 sm:$0xff] %v5086
        %5323 = vst [vmem:[%s5289] ss:$4 sm:$0xff] %v5087
        %5324 = vst [vmem:[%s5291] ss:$4 sm:$0xff] %v5088
        %5325 = vst [vmem:[%s5293] ss:$4 sm:$0xff] %v5091
        %5326 = vst [vmem:[%s5295] ss:$4 sm:$0xff] %v5092
        %v5327 = vld.sshfl [vmem:[#allocation1] sm:$0xff pattern:$0x73625140]
        %v5328 = vld.sshfl [vmem:[#allocation1 + $0x20] sm:$0xff pattern:$0x73625140]
        %5329 = vst [vmem:[#allocation1] ss:$4 sm:$0xff] %v5093
        %5330 = vst [vmem:[%s5283] ss:$4 sm:$0xff] %v5094
        %5331 = vst [vmem:[%s5285] ss:$4 sm:$0xff] %v5095
        %5332 = vst [vmem:[%s5287] ss:$4 sm:$0xff] %v5096
        %5333 = vst [vmem:[%s5289] ss:$4 sm:$0xff] %v5099
        %5334 = vst [vmem:[%s5291] ss:$4 sm:$0xff] %v5100
        %5335 = vst [vmem:[%s5293] ss:$4 sm:$0xff] %v5101
        %5336 = vst [vmem:[%s5295] ss:$4 sm:$0xff] %v5102
        %v5337 = vld.sshfl [vmem:[#allocation1] sm:$0xff pattern:$0x73625140]
        %v5338 = vld.sshfl [vmem:[#allocation1 + $0x20] sm:$0xff pattern:$0x73625140]
        %5339 = vst [vmem:[#allocation1] ss:$4 sm:$0xff] %v5103
        %5340 = vst [vmem:[%s5283] ss:$4 sm:$0xff] %v5104
        %5341 = vst [vmem:[%s5285] ss:$4 sm:$0xff] %v5105
        %5342 = vst [vmem:[%s5287] ss:$4 sm:$0xff] %v5107
        %5343 = vst [vmem:[%s5289] ss:$4 sm:$0xff] %v5108
        %5344 = vst [vmem:[%s5291] ss:$4 sm:$0xff] %v5110
        %5345 = vst [vmem:[%s5293] ss:$4 sm:$0xff] %v5111
        %5346 = vst [vmem:[%s5295] ss:$4 sm:$0xff] %v5112
        %v5347 = vld.sshfl [vmem:[#allocation1] sm:$0xff pattern:$0x73625140]
        %v5348 = vld.sshfl [vmem:[#allocation1 + $0x20] sm:$0xff pattern:$0x73625140]
        %5349 = vst [vmem:[#allocation1] ss:$4 sm:$0xff] %v5115
        %5350 = vst [vmem:[%s5283] ss:$4 sm:$0xff] %v5116
        %5351 = vst [vmem:[%s5285] ss:$4 sm:$0xff] %v5117
        %5352 = vst [vmem:[%s5287] ss:$4 sm:$0xff] %v5118
        %5353 = vst [vmem:[%s5289] ss:$4 sm:$0xff] %v5119
        %5354 = vst [vmem:[%s5291] ss:$4 sm:$0xff] %v5120
        %5355 = vst [vmem:[%s5293] ss:$4 sm:$0xff] %v5123
        %5356 = vst [vmem:[%s5295] ss:$4 sm:$0xff] %v5124
        %v5357 = vld.sshfl [vmem:[#allocation1] sm:$0xff pattern:$0x73625140]
        %v5358 = vld.sshfl [vmem:[#allocation1 + $0x20] sm:$0xff pattern:$0x73625140]
        %5359 = vst [vmem:[#allocation1] ss:$4 sm:$0xff] %v5125
        %5360 = vst [vmem:[%s5283] ss:$4 sm:$0xff] %v5126
        %5361 = vst [vmem:[%s5285] ss:$4 sm:$0xff] %v5127
        %5362 = vst [vmem:[%s5287] ss:$4 sm:$0xff] %v5128
        %5363 = vst [vmem:[%s5289] ss:$4 sm:$0xff] %v5129
        %5364 = vst [vmem:[%s5291] ss:$4 sm:$0xff] %v5131
        %5365 = vst [vmem:[%s5293] ss:$4 sm:$0xff] %v5132
        %5366 = vst [vmem:[%s5295] ss:$4 sm:$0xff] %v5134
        %v5367 = vld.sshfl [vmem:[#allocation1] sm:$0xff pattern:$0x73625140]
        %v5368 = vld.sshfl [vmem:[#allocation1 + $0x20] sm:$0xff pattern:$0x73625140]
        %5369 = vst [vmem:[#allocation1] ss:$4 sm:$0xff] %v5135
        %5370 = vst [vmem:[%s5283] ss:$4 sm:$0xff] %v5136
        %5371 = vst [vmem:[%s5285] ss:$4 sm:$0xff] %v5139
        %5372 = vst [vmem:[%s5287] ss:$4 sm:$0xff] %v5140
        %5373 = vst [vmem:[%s5289] ss:$4 sm:$0xff] %v5141
        %5374 = vst [vmem:[%s5291] ss:$4 sm:$0xff] %v5142
        %5375 = vst [vmem:[%s5293] ss:$4 sm:$0xff] %v5143
        %5376 = vst [vmem:[%s5295] ss:$4 sm:$0xff] %v5144
        %v5377 = vld.sshfl [vmem:[#allocation1] sm:$0xff pattern:$0x73625140]
        %v5378 = vld.sshfl [vmem:[#allocation1 + $0x20] sm:$0xff pattern:$0x73625140]
        %5379 = vst [vmem:[#allocation1] ss:$4 sm:$0xff] %v5147
        %5380 = vst [vmem:[%s5283] ss:$4 sm:$0xff] %v5148
        %5381 = vst [vmem:[%s5285] ss:$4 sm:$0xff] %v5149
        %5382 = vst [vmem:[%s5287] ss:$4 sm:$0xff] %v5150
        %5383 = vst [vmem:[%s5289] ss:$4 sm:$0xff] %v5151
        %5384 = vst [vmem:[%s5291] ss:$4 sm:$0xff] %v5152
        %5385 = vst [vmem:[%s5293] ss:$4 sm:$0xff] %v5153
        %5386 = vst [vmem:[%s5295] ss:$4 sm:$0xff] %v5155
        %v5387 = vld.sshfl [vmem:[#allocation1] sm:$0xff pattern:$0x73625140]
        %v5388 = vld.sshfl [vmem:[#allocation1 + $0x20] sm:$0xff pattern:$0x73625140]
        %5389 = vst [vmem:[#allocation1] ss:$4 sm:$0xff] %v5156
        %5390 = vst [vmem:[%s5283] ss:$4 sm:$0xff] %v5158
        %5391 = vst [vmem:[%s5285] ss:$4 sm:$0xff] %v5159
        %5392 = vst [vmem:[%s5287] ss:$4 sm:$0xff] %v5160
        %5393 = vst [vmem:[%s5289] ss:$4 sm:$0xff] %v5163
        %5394 = vst [vmem:[%s5291] ss:$4 sm:$0xff] %v5164
        %5395 = vst [vmem:[%s5293] ss:$4 sm:$0xff] %v5165
        %5396 = vst [vmem:[%s5295] ss:$4 sm:$0xff] %v5166
        %v5397 = vld.sshfl [vmem:[#allocation1] sm:$0xff pattern:$0x73625140]
        %v5398 = vld.sshfl [vmem:[#allocation1 + $0x20] sm:$0xff pattern:$0x73625140]
        %5399 = vst [vmem:[#allocation1] ss:$4 sm:$0xff] %v5167
        %5400 = vst [vmem:[%s5283] ss:$4 sm:$0xff] %v5168
        %5401 = vst [vmem:[%s5285] ss:$4 sm:$0xff] %v5171
        %5402 = vst [vmem:[%s5287] ss:$4 sm:$0xff] %v5172
        %5403 = vst [vmem:[%s5289] ss:$4 sm:$0xff] %v5173
        %5404 = vst [vmem:[%s5291] ss:$4 sm:$0xff] %v5174
        %5405 = vst [vmem:[%s5293] ss:$4 sm:$0xff] %v5175
        %5406 = vst [vmem:[%s5295] ss:$4 sm:$0xff] %v5176
        %v5407 = vld.sshfl [vmem:[#allocation1] sm:$0xff pattern:$0x73625140]
        %v5408 = vld.sshfl [vmem:[#allocation1 + $0x20] sm:$0xff pattern:$0x73625140]
        %5409 = vst [vmem:[#allocation1] ss:$4 sm:$0xff] %v5177
        %5410 = vst [vmem:[%s5283] ss:$4 sm:$0xff] %v5179
        %5411 = vst [vmem:[%s5285] ss:$4 sm:$0xff] %v5180
        %5412 = vst [vmem:[%s5287] ss:$4 sm:$0xff] %v5182
        %5413 = vst [vmem:[%s5289] ss:$4 sm:$0xff] %v5183
        %5414 = vst [vmem:[%s5291] ss:$4 sm:$0xff] %v5184
        %5415 = vst [vmem:[%s5293] ss:$4 sm:$0xff] %v5187
        %5416 = vst [vmem:[%s5295] ss:$4 sm:$0xff] %v5188
        %v5417 = vld.sshfl [vmem:[#allocation1] sm:$0xff pattern:$0x73625140]
        %v5418 = vld.sshfl [vmem:[#allocation1 + $0x20] sm:$0xff pattern:$0x73625140]
        %5419 = vst [vmem:[#allocation1] ss:$4 sm:$0xff] %v5189
        %5420 = vst [vmem:[%s5283] ss:$4 sm:$0xff] %v5190
        %5421 = vst [vmem:[%s5285] ss:$4 sm:$0xff] %v5191
        %5422 = vst [vmem:[%s5287] ss:$4 sm:$0xff] %v5192
        %5423 = vst [vmem:[%s5289] ss:$4 sm:$0xff] %v5195
        %5424 = vst [vmem:[%s5291] ss:$4 sm:$0xff] %v5196
        %5425 = vst [vmem:[%s5293] ss:$4 sm:$0xff] %v5197
        %5426 = vst [vmem:[%s5295] ss:$4 sm:$0xff] %v5198
        %v5427 = vld.sshfl [vmem:[#allocation1] sm:$0xff pattern:$0x73625140]
        %v5428 = vld.sshfl [vmem:[#allocation1 + $0x20] sm:$0xff pattern:$0x73625140]
        %5429 = vst [vmem:[#allocation1] ss:$4 sm:$0xff] %v5199
        %5430 = vst [vmem:[%s5283] ss:$4 sm:$0xff] %v5200
        %5431 = vst [vmem:[%s5285] ss:$4 sm:$0xff] %v5201
        %5432 = vst [vmem:[%s5287] ss:$4 sm:$0xff] %v5203
        %5433 = vst [vmem:[%s5289] ss:$4 sm:$0xff] %v5204
        %5434 = vst [vmem:[%s5291] ss:$4 sm:$0xff] %v5206
        %5435 = vst [vmem:[%s5293] ss:$4 sm:$0xff] %v5207
        %5436 = vst [vmem:[%s5295] ss:$4 sm:$0xff] %v5208
        %v5437 = vld.sshfl [vmem:[#allocation1] sm:$0xff pattern:$0x73625140]
        %v5438 = vld.sshfl [vmem:[#allocation1 + $0x20] sm:$0xff pattern:$0x73625140]
        %5439 = vst [vmem:[#allocation1] ss:$4 sm:$0xff] %v5211
        %5440 = vst [vmem:[%s5283] ss:$4 sm:$0xff] %v5212
        %5441 = vst [vmem:[%s5285] ss:$4 sm:$0xff] %v5213
        %5442 = vst [vmem:[%s5287] ss:$4 sm:$0xff] %v5214
        %5443 = vst [vmem:[%s5289] ss:$4 sm:$0xff] %v5215
        %5444 = vst [vmem:[%s5291] ss:$4 sm:$0xff] %v5216
        %5445 = vst [vmem:[%s5293] ss:$4 sm:$0xff] %v5219
        %5446 = vst [vmem:[%s5295] ss:$4 sm:$0xff] %v5220
        %v5447 = vld.sshfl [vmem:[#allocation1] sm:$0xff pattern:$0x73625140]
        %v5448 = vld.sshfl [vmem:[#allocation1 + $0x20] sm:$0xff pattern:$0x73625140]
        %5449 = vst [vmem:[#allocation1] ss:$4 sm:$0xff] %v5221
        %5450 = vst [vmem:[%s5283] ss:$4 sm:$0xff] %v5222
        %5451 = vst [vmem:[%s5285] ss:$4 sm:$0xff] %v5223
        %5452 = vst [vmem:[%s5287] ss:$4 sm:$0xff] %v5224
        %5453 = vst [vmem:[%s5289] ss:$4 sm:$0xff] %v5225
        %5454 = vst [vmem:[%s5291] ss:$4 sm:$0xff] %v5227
        %5455 = vst [vmem:[%s5293] ss:$4 sm:$0xff] %v5228
        %5456 = vst [vmem:[%s5295] ss:$4 sm:$0xff] %v5230
        %v5457 = vld.sshfl [vmem:[#allocation1] sm:$0xff pattern:$0x73625140]
        %v5458 = vld.sshfl [vmem:[#allocation1 + $0x20] sm:$0xff pattern:$0x73625140]
        %5459 = vst [vmem:[#allocation1] ss:$4 sm:$0xff] %v5231
        %5460 = vst [vmem:[%s5283] ss:$4 sm:$0xff] %v5232
        %5461 = vst [vmem:[%s5285] ss:$4 sm:$0xff] %v5235
        %5462 = vst [vmem:[%s5287] ss:$4 sm:$0xff] %v5236
        %5463 = vst [vmem:[%s5289] ss:$4 sm:$0xff] %v5237
        %5464 = vst [vmem:[%s5291] ss:$4 sm:$0xff] %v5238
        %5465 = vst [vmem:[%s5293] ss:$4 sm:$0xff] %v5239
        %5466 = vst [vmem:[%s5295] ss:$4 sm:$0xff] %v5240
        %v5467 = vld.sshfl [vmem:[#allocation1] sm:$0xff pattern:$0x73625140]
        %v5468 = vld.sshfl [vmem:[#allocation1 + $0x20] sm:$0xff pattern:$0x73625140]
        %5469 = vst [vmem:[#allocation1] ss:$4 sm:$0xff] %v5243
        %5470 = vst [vmem:[%s5283] ss:$4 sm:$0xff] %v5244
        %5471 = vst [vmem:[%s5285] ss:$4 sm:$0xff] %v5245
        %5472 = vst [vmem:[%s5287] ss:$4 sm:$0xff] %v5246
        %5473 = vst [vmem:[%s5289] ss:$4 sm:$0xff] %v5247
        %5474 = vst [vmem:[%s5291] ss:$4 sm:$0xff] %v5248
        %5475 = vst [vmem:[%s5293] ss:$4 sm:$0xff] %v5249
        %5476 = vst [vmem:[%s5295] ss:$4 sm:$0xff] %v5251
        %v5477 = vld.sshfl [vmem:[#allocation1] sm:$0xff pattern:$0x73625140]
        %v5478 = vld.sshfl [vmem:[#allocation1 + $0x20] sm:$0xff pattern:$0x73625140]
        %5479 = vst [vmem:[#allocation1] ss:$4 sm:$0xff] %v5252
        %5480 = vst [vmem:[%s5283] ss:$4 sm:$0xff] %v5254
        %5481 = vst [vmem:[%s5285] ss:$4 sm:$0xff] %v5255
        %5482 = vst [vmem:[%s5287] ss:$4 sm:$0xff] %v5256
        %5483 = vst [vmem:[%s5289] ss:$4 sm:$0xff] %v5259
        %5484 = vst [vmem:[%s5291] ss:$4 sm:$0xff] %v5260
        %5485 = vst [vmem:[%s5293] ss:$4 sm:$0xff] %v5261
        %5486 = vst [vmem:[%s5295] ss:$4 sm:$0xff] %v5262
        %v5487 = vld.sshfl [vmem:[#allocation1] sm:$0xff pattern:$0x73625140]
        %v5488 = vld.sshfl [vmem:[#allocation1 + $0x20] sm:$0xff pattern:$0x73625140]
        %5489 = vst [vmem:[#allocation1] ss:$4 sm:$0xff] %v5263
        %5490 = vst [vmem:[%s5283] ss:$4 sm:$0xff] %v5264
        %v5491 = vld.sshfl [vmem:[#allocation1] sm:$0xff pattern:$0x73625140]
        %5533 = vmatpush.msra.mxu0 %v5281
        %5534 = vmatpush.msra.mxu0 %v5280
        %5535 = vmatpush.msra.mxu0 %v5279
        %5536 = vmatpush.msra.mxu0 %v5278
        %5537 = vmatpush.msra.mxu0 %v5277
        %5538 = vmatpush.msra.mxu0 %v5276
        %5539 = vmatpush.msra.mxu0 %v5275
        %5540 = vmatpush.msra.mxu0 %v5274
        %5541 = vmatpush.msra.mxu0 %v5273
        %5542 = vmatpush.msra.mxu0 %v5272
        %5543 = vmatpush.msra.mxu0 %v5271
        %5544 = vmatpush.msra.mxu0 %v5270
        %5545 = vmatpush.msra.mxu0 %v5269
        %5546 = vmatpush.msra.mxu0 %v5268
        %5547 = vmatpush.msra.mxu0 %v5267
        %5548 = vmatpush.msra.mxu0 %v5266
        %5549 = vmatmul.f32.gmra.mxu0 %v5297
        %v5550 = vpop.f32.mrf.mxu0
        %v5551 = vadd.f32 0.0, %v5550
        %5552 = vmatmul.f32.gmra.mxu0 %v5298
        %v5553 = vpop.f32.mrf.mxu0
        %v5554 = vadd.f32 0.0, %v5553
        %5555 = vmatmul.f32.gmra.mxu0 %v5307
        %v5556 = vpop.f32.mrf.mxu0
        %v5557 = vadd.f32 0.0, %v5556
        %5558 = vmatmul.f32.gmra.mxu0 %v5308
        %v5559 = vpop.f32.mrf.mxu0
        %v5560 = vadd.f32 0.0, %v5559
        %5561 = vmatmul.f32.gmra.mxu0 %v5317
        %v5562 = vpop.f32.mrf.mxu0
        %v5563 = vadd.f32 0.0, %v5562
        %5564 = vmatmul.f32.gmra.mxu0 %v5318
        %v5565 = vpop.f32.mrf.mxu0
        %v5566 = vadd.f32 0.0, %v5565
        %5567 = vmatmul.f32.gmra.mxu0 %v5327
        %v5568 = vpop.f32.mrf.mxu0
        %v5569 = vadd.f32 0.0, %v5568
        %5570 = vmatmul.f32.gmra.mxu0 %v5328
        %v5571 = vpop.f32.mrf.mxu0
        %v5572 = vadd.f32 0.0, %v5571
        %5573 = vmatmul.f32.gmra.mxu0 %v5337
        %v5574 = vpop.f32.mrf.mxu0
        %v5575 = vadd.f32 0.0, %v5574
        %5576 = vmatmul.f32.gmra.mxu0 %v5338
        %v5577 = vpop.f32.mrf.mxu0
        %v5578 = vadd.f32 0.0, %v5577
        %5579 = vmatmul.f32.gmra.mxu0 %v5347
        %v5580 = vpop.f32.mrf.mxu0
        %v5581 = vadd.f32 0.0, %v5580
        %5582 = vmatmul.f32.gmra.mxu0 %v5348
        %v5583 = vpop.f32.mrf.mxu0
        %v5584 = vadd.f32 0.0, %v5583
        %5585 = vmatmul.f32.gmra.mxu0 %v5357
        %v5586 = vpop.f32.mrf.mxu0
        %v5587 = vadd.f32 0.0, %v5586
        %5588 = vmatmul.f32.gmra.mxu0 %v5358
        %v5589 = vpop.f32.mrf.mxu0
        %v5590 = vadd.f32 0.0, %v5589
        %5591 = vmatmul.f32.gmra.mxu0 %v5367
        %v5592 = vpop.f32.mrf.mxu0
        %v5593 = vadd.f32 0.0, %v5592
        %5594 = vmatmul.f32.gmra.mxu0 %v5368
        %v5595 = vpop.f32.mrf.mxu0
        %v5596 = vadd.f32 0.0, %v5595
        %5597 = vmatmul.f32.gmra.mxu0 %v5377
        %v5598 = vpop.f32.mrf.mxu0
        %v5599 = vadd.f32 0.0, %v5598
        %5600 = vmatmul.f32.gmra.mxu0 %v5378
        %v5601 = vpop.f32.mrf.mxu0
        %v5602 = vadd.f32 0.0, %v5601
        %5603 = vmatmul.f32.gmra.mxu0 %v5387
        %v5604 = vpop.f32.mrf.mxu0
        %v5605 = vadd.f32 0.0, %v5604
        %5606 = vmatmul.f32.gmra.mxu0 %v5388
        %v5607 = vpop.f32.mrf.mxu0
        %v5608 = vadd.f32 0.0, %v5607
        %5609 = vmatmul.f32.gmra.mxu0 %v5397
        %v5610 = vpop.f32.mrf.mxu0
        %v5611 = vadd.f32 0.0, %v5610
        %5612 = vmatmul.f32.gmra.mxu0 %v5398
        %v5613 = vpop.f32.mrf.mxu0
        %v5614 = vadd.f32 0.0, %v5613
        %5615 = vmatmul.f32.gmra.mxu0 %v5407
        %v5616 = vpop.f32.mrf.mxu0
        %v5617 = vadd.f32 0.0, %v5616
        %5618 = vmatmul.f32.gmra.mxu0 %v5408
        %v5619 = vpop.f32.mrf.mxu0
        %v5620 = vadd.f32 0.0, %v5619
        %5621 = vmatmul.f32.gmra.mxu0 %v5417
        %v5622 = vpop.f32.mrf.mxu0
        %v5623 = vadd.f32 0.0, %v5622
        %5624 = vmatmul.f32.gmra.mxu0 %v5418
        %v5625 = vpop.f32.mrf.mxu0
        %v5626 = vadd.f32 0.0, %v5625
        %5627 = vmatmul.f32.gmra.mxu0 %v5427
        %v5628 = vpop.f32.mrf.mxu0
        %v5629 = vadd.f32 0.0, %v5628
        %5630 = vmatmul.f32.gmra.mxu0 %v5428
        %v5631 = vpop.f32.mrf.mxu0
        %v5632 = vadd.f32 0.0, %v5631
        %5633 = vmatmul.f32.gmra.mxu0 %v5437
        %v5634 = vpop.f32.mrf.mxu0
        %v5635 = vadd.f32 0.0, %v5634
        %5636 = vmatmul.f32.gmra.mxu0 %v5438
        %v5637 = vpop.f32.mrf.mxu0
        %v5638 = vadd.f32 0.0, %v5637
        %5639 = vmatmul.f32.gmra.mxu0 %v5447
        %v5640 = vpop.f32.mrf.mxu0
        %v5641 = vadd.f32 0.0, %v5640
        %5642 = vmatmul.f32.gmra.mxu0 %v5448
        %v5643 = vpop.f32.mrf.mxu0
        %v5644 = vadd.f32 0.0, %v5643
        %5645 = vmatmul.f32.gmra.mxu0 %v5457
        %v5646 = vpop.f32.mrf.mxu0
        %v5647 = vadd.f32 0.0, %v5646
        %5648 = vmatmul.f32.gmra.mxu0 %v5458
        %v5649 = vpop.f32.mrf.mxu0
        %v5650 = vadd.f32 0.0, %v5649
        %5651 = vmatmul.f32.gmra.mxu0 %v5467
        %v5652 = vpop.f32.mrf.mxu0
        %v5653 = vadd.f32 0.0, %v5652
        %5654 = vmatmul.f32.gmra.mxu0 %v5468
        %v5655 = vpop.f32.mrf.mxu0
        %v5656 = vadd.f32 0.0, %v5655
        %5657 = vmatmul.f32.gmra.mxu0 %v5477
        %v5658 = vpop.f32.mrf.mxu0
        %v5659 = vadd.f32 0.0, %v5658
        %5660 = vmatmul.f32.gmra.mxu0 %v5478
        %v5661 = vpop.f32.mrf.mxu0
        %v5662 = vadd.f32 0.0, %v5661
        %5663 = vmatmul.f32.gmra.mxu0 %v5487
        %v5664 = vpop.f32.mrf.mxu0
        %v5665 = vadd.f32 0.0, %v5664
        %5666 = vmatmul.f32.gmra.mxu0 %v5488
        %v5667 = vpop.f32.mrf.mxu0
        %v5668 = vadd.f32 0.0, %v5667
        %5669 = vmatmul.f32.gmra.mxu0 %v5491
        %v5670 = vpop.f32.mrf.mxu0
        %v5671 = vadd.f32 0.0, %v5670
        %5672 = vdwg.mxu0
        %v5673 = vadd.f32 %v5001, %v5551
        %v5674 = vadd.f32 %v5002, %v5554
        %v5675 = vadd.f32 %v5003, %v5557
        %v5676 = vadd.f32 %v5004, %v5560
        %v5677 = vadd.f32 %v5005, %v5563
        %v5678 = vadd.f32 %v5006, %v5566
        %v5679 = vadd.f32 %v5007, %v5569
        %v5680 = vadd.f32 %v5008, %v5572
        %v5681 = vadd.f32 %v5009, %v5575
        %v5682 = vadd.f32 %v5010, %v5578
        %v5683 = vadd.f32 %v5011, %v5581
        %v5684 = vadd.f32 %v5012, %v5584
        %v5685 = vadd.f32 %v5013, %v5587
        %v5686 = vadd.f32 %v5014, %v5590
        %v5687 = vadd.f32 %v5015, %v5593
        %v5688 = vadd.f32 %v5016, %v5596
        %v5689 = vadd.f32 %v5017, %v5599
        %v5690 = vadd.f32 %v5018, %v5602
        %v5691 = vadd.f32 %v5019, %v5605
        %v5692 = vadd.f32 %v5020, %v5608
        %v5693 = vadd.f32 %v5021, %v5611
        %v5694 = vadd.f32 %v5022, %v5614
        %v5695 = vadd.f32 %v5023, %v5617
        %v5696 = vadd.f32 %v5024, %v5620
        %v5697 = vadd.f32 %v5025, %v5623
        %v5698 = vadd.f32 %v5026, %v5626
        %v5699 = vadd.f32 %v5027, %v5629
        %v5700 = vadd.f32 %v5028, %v5632
        %v5701 = vadd.f32 %v5029, %v5635
        %v5702 = vadd.f32 %v5030, %v5638
        %v5703 = vadd.f32 %v5031, %v5641
        %v5704 = vadd.f32 %v5032, %v5644
        %v5705 = vadd.f32 %v5033, %v5647
        %v5706 = vadd.f32 %v5034, %v5650
        %v5707 = vadd.f32 %v5035, %v5653
        %v5708 = vadd.f32 %v5036, %v5656
        %v5709 = vadd.f32 %v5037, %v5659
        %v5710 = vadd.f32 %v5038, %v5662
        %v5711 = vadd.f32 %v5039, %v5665
        %v5712 = vadd.f32 %v5040, %v5668
        %v5713 = vadd.f32 %v5041, %v5671
        %s5714 = ssub.s32 %s255, 1
        %v5715 = vstv %s5714
        %v5716 = vadd.s32 %v5715, 1
        %v5717 = vadd.s32 %v5715, 2
        %v5718 = vadd.s32 %v5715, 3
        %v5719 = vadd.s32 %v5715, 4
        %v5720 = vadd.s32 %v5715, 5
        %v5721 = vadd.s32 %v5715, 6
        %v5722 = vadd.s32 %v5715, 7
        %v5723 = vadd.s32 %v5715, 8
        %v5724 = vadd.s32 %v5715, 9
        %v5725 = vadd.s32 %v5715, 10
        %v5726 = vadd.s32 %v5715, 11
        %v5727 = vadd.s32 %v5715, 12
        %v5728 = vadd.s32 %v5715, 13
        %v5729 = vadd.s32 %v5715, 14
        %v5730 = vadd.s32 %v5715, 15
        %v5731 = vadd.s32 %v5715, 16
        %v5732 = vadd.s32 %v5715, 17
        %v5733 = vlaneseq
        %v5734 = vshrl.u32 %v5733, 7
        %v5735 = vadd.s32 %v5734, 8
        %v5736 = vadd.s32 %v5734, 16
        %v5737 = vsub.s32 %v5734, 1
        %v5738 = vsub.s32 %v5735, 1
        %v5739 = vsub.s32 %v5736, 1
        %vm5740 = vcmp.ge.s32.totalorder %v5715, 0
        %vm5741 = vcmp.ge.s32.totalorder %v5716, 0
        %vm5742 = vcmp.ge.s32.totalorder %v5717, 0
        %vm5743 = vcmp.ge.s32.totalorder %v5718, 0
        %vm5744 = vcmp.ge.s32.totalorder %v5719, 0
        %vm5745 = vcmp.ge.s32.totalorder %v5720, 0
        %vm5746 = vcmp.ge.s32.totalorder %v5721, 0
        %vm5747 = vcmp.ge.s32.totalorder %v5722, 0
        %vm5748 = vcmp.ge.s32.totalorder %v5723, 0
        %vm5749 = vcmp.ge.s32.totalorder %v5724, 0
        %vm5750 = vcmp.ge.s32.totalorder %v5725, 0
        %vm5751 = vcmp.ge.s32.totalorder %v5726, 0
        %vm5752 = vcmp.ge.s32.totalorder %v5727, 0
        %vm5753 = vcmp.ge.s32.totalorder %v5728, 0
        %vm5754 = vcmp.ge.s32.totalorder %v5729, 0
        %vm5755 = vcmp.ge.s32.totalorder %v5730, 0
        %vm5756 = vcmp.ge.s32.totalorder %v5731, 0
        %vm5757 = vcmp.ge.s32.totalorder %v5732, 0
        %vm5758 = vcmp.lt.s32.totalorder %v5715, 16
        %vm5759 = vcmp.lt.s32.totalorder %v5716, 16
        %vm5760 = vcmp.lt.s32.totalorder %v5717, 16
        %vm5761 = vcmp.lt.s32.totalorder %v5718, 16
        %vm5762 = vcmp.lt.s32.totalorder %v5719, 16
        %vm5763 = vcmp.lt.s32.totalorder %v5720, 16
        %vm5764 = vcmp.lt.s32.totalorder %v5721, 16
        %vm5765 = vcmp.lt.s32.totalorder %v5722, 16
        %vm5766 = vcmp.lt.s32.totalorder %v5723, 16
        %vm5767 = vcmp.lt.s32.totalorder %v5724, 16
        %vm5768 = vcmp.lt.s32.totalorder %v5725, 16
        %vm5769 = vcmp.lt.s32.totalorder %v5726, 16
        %vm5770 = vcmp.lt.s32.totalorder %v5727, 16
        %vm5771 = vcmp.lt.s32.totalorder %v5728, 16
        %vm5772 = vcmp.lt.s32.totalorder %v5729, 16
        %vm5773 = vcmp.lt.s32.totalorder %v5730, 16
        %vm5774 = vcmp.lt.s32.totalorder %v5731, 16
        %vm5775 = vcmp.lt.s32.totalorder %v5732, 16
        %vm5776 = vmand %vm5740, %vm5758
        %vm5777 = vmand %vm5741, %vm5759
        %vm5778 = vmand %vm5742, %vm5760
        %vm5779 = vmand %vm5743, %vm5761
        %vm5780 = vmand %vm5744, %vm5762
        %vm5781 = vmand %vm5745, %vm5763
        %vm5782 = vmand %vm5746, %vm5764
        %vm5783 = vmand %vm5747, %vm5765
        %vm5784 = vmand %vm5748, %vm5766
        %vm5785 = vmand %vm5749, %vm5767
        %vm5786 = vmand %vm5750, %vm5768
        %vm5787 = vmand %vm5751, %vm5769
        %vm5788 = vmand %vm5752, %vm5770
        %vm5789 = vmand %vm5753, %vm5771
        %vm5790 = vmand %vm5754, %vm5772
        %vm5791 = vmand %vm5755, %vm5773
        %vm5792 = vmand %vm5756, %vm5774
        %vm5793 = vmand %vm5757, %vm5775
        %vm5794 = vcmp.ge.s32.totalorder %v5737, 0
        %vm5795 = vcmp.ge.s32.totalorder %v5738, 0
        %vm5796 = vcmp.ge.s32.totalorder %v5739, 0
        %vm5797 = vmand %vm5776, %vm5794
        %vm5798 = vmand %vm5776, %vm5795
        %vm5799 = vmand %vm5776, %vm5796
        %vm5800 = vmand %vm5777, %vm5794
        %vm5801 = vmand %vm5777, %vm5795
        %vm5802 = vmand %vm5777, %vm5796
        %vm5803 = vmand %vm5778, %vm5794
        %vm5804 = vmand %vm5778, %vm5795
        %vm5805 = vmand %vm5778, %vm5796
        %vm5806 = vmand %vm5779, %vm5794
        %vm5807 = vmand %vm5779, %vm5795
        %vm5808 = vmand %vm5779, %vm5796
        %vm5809 = vmand %vm5780, %vm5794
        %vm5810 = vmand %vm5780, %vm5795
        %vm5811 = vmand %vm5780, %vm5796
        %vm5812 = vmand %vm5781, %vm5794
        %vm5813 = vmand %vm5781, %vm5795
        %vm5814 = vmand %vm5781, %vm5796
        %vm5815 = vmand %vm5782, %vm5794
        %vm5816 = vmand %vm5782, %vm5795
        %vm5817 = vmand %vm5782, %vm5796
        %vm5818 = vmand %vm5783, %vm5794
        %vm5819 = vmand %vm5783, %vm5795
        %vm5820 = vmand %vm5783, %vm5796
        %vm5821 = vmand %vm5784, %vm5794
        %vm5822 = vmand %vm5784, %vm5795
        %vm5823 = vmand %vm5784, %vm5796
        %vm5824 = vmand %vm5785, %vm5794
        %vm5825 = vmand %vm5785, %vm5795
        %vm5826 = vmand %vm5785, %vm5796
        %vm5827 = vmand %vm5786, %vm5794
        %vm5828 = vmand %vm5786, %vm5795
        %vm5829 = vmand %vm5786, %vm5796
        %vm5830 = vmand %vm5787, %vm5794
        %vm5831 = vmand %vm5787, %vm5795
        %vm5832 = vmand %vm5787, %vm5796
        %vm5833 = vmand %vm5788, %vm5794
        %vm5834 = vmand %vm5788, %vm5795
        %vm5835 = vmand %vm5788, %vm5796
        %vm5836 = vmand %vm5789, %vm5794
        %vm5837 = vmand %vm5789, %vm5795
        %vm5838 = vmand %vm5789, %vm5796
        %vm5839 = vmand %vm5790, %vm5794
        %vm5840 = vmand %vm5790, %vm5795
        %vm5841 = vmand %vm5790, %vm5796
        %vm5842 = vmand %vm5791, %vm5794
        %vm5843 = vmand %vm5791, %vm5795
        %vm5844 = vmand %vm5791, %vm5796
        %vm5845 = vmand %vm5792, %vm5794
        %vm5846 = vmand %vm5792, %vm5795
        %vm5847 = vmand %vm5792, %vm5796
        %vm5848 = vmand %vm5793, %vm5794
        %vm5849 = vmand %vm5793, %vm5795
        %vm5850 = vmand %vm5793, %vm5796
        %vm5851 = vcmp.lt.s32.totalorder %v5737, 16
        %vm5852 = vcmp.lt.s32.totalorder %v5738, 16
        %vm5853 = vcmp.lt.s32.totalorder %v5739, 16
        %vm5854 = vmand %vm5797, %vm5851
        %vm5855 = vmand %vm5798, %vm5852
        %vm5856 = vmand %vm5799, %vm5853
        %vm5857 = vmand %vm5800, %vm5851
        %vm5858 = vmand %vm5801, %vm5852
        %vm5859 = vmand %vm5802, %vm5853
        %vm5860 = vmand %vm5803, %vm5851
        %vm5861 = vmand %vm5804, %vm5852
        %vm5862 = vmand %vm5805, %vm5853
        %vm5863 = vmand %vm5806, %vm5851
        %vm5864 = vmand %vm5807, %vm5852
        %vm5865 = vmand %vm5808, %vm5853
        %vm5866 = vmand %vm5809, %vm5851
        %vm5867 = vmand %vm5810, %vm5852
        %vm5868 = vmand %vm5811, %vm5853
        %vm5869 = vmand %vm5812, %vm5851
        %vm5870 = vmand %vm5813, %vm5852
        %vm5871 = vmand %vm5814, %vm5853
        %vm5872 = vmand %vm5815, %vm5851
        %vm5873 = vmand %vm5816, %vm5852
        %vm5874 = vmand %vm5817, %vm5853
        %vm5875 = vmand %vm5818, %vm5851
        %vm5876 = vmand %vm5819, %vm5852
        %vm5877 = vmand %vm5820, %vm5853
        %vm5878 = vmand %vm5821, %vm5851
        %vm5879 = vmand %vm5822, %vm5852
        %vm5880 = vmand %vm5823, %vm5853
        %vm5881 = vmand %vm5824, %vm5851
        %vm5882 = vmand %vm5825, %vm5852
        %vm5883 = vmand %vm5826, %vm5853
        %vm5884 = vmand %vm5827, %vm5851
        %vm5885 = vmand %vm5828, %vm5852
        %vm5886 = vmand %vm5829, %vm5853
        %vm5887 = vmand %vm5830, %vm5851
        %vm5888 = vmand %vm5831, %vm5852
        %vm5889 = vmand %vm5832, %vm5853
        %vm5890 = vmand %vm5833, %vm5851
        %vm5891 = vmand %vm5834, %vm5852
        %vm5892 = vmand %vm5835, %vm5853
        %vm5893 = vmand %vm5836, %vm5851
        %vm5894 = vmand %vm5837, %vm5852
        %vm5895 = vmand %vm5838, %vm5853
        %vm5896 = vmand %vm5839, %vm5851
        %vm5897 = vmand %vm5840, %vm5852
        %vm5898 = vmand %vm5841, %vm5853
        %vm5899 = vmand %vm5842, %vm5851
        %vm5900 = vmand %vm5843, %vm5852
        %vm5901 = vmand %vm5844, %vm5853
        %vm5902 = vmand %vm5845, %vm5851
        %vm5903 = vmand %vm5846, %vm5852
        %vm5904 = vmand %vm5847, %vm5853
        %vm5905 = vmand %vm5848, %vm5851
        %vm5906 = vmand %vm5849, %vm5852
        %vm5907 = vmand %vm5850, %vm5853
        %v5949 = vrot.slane %v5673, 2
        %v5950 = vrot.slane %v5673, 4
        %v5951 = vrot.slane %v5673, 6
        %v5952 = vrot.slane %v5674, 2
        %v5953 = vrot.slane %v5674, 4
        %v5954 = vrot.slane %v5674, 6
        %v5955 = vrot.slane %v5675, 2
        %v5956 = vrot.slane %v5675, 4
        %v5957 = vrot.slane %v5675, 6
        %v5958 = vrot.slane %v5676, 2
        %v5959 = vrot.slane %v5676, 4
        %v5960 = vrot.slane %v5676, 6
        %v5961 = vrot.slane %v5677, 2
        %v5962 = vrot.slane %v5677, 4
        %v5963 = vrot.slane %v5677, 6
        %v5964 = vrot.slane %v5678, 2
        %v5965 = vrot.slane %v5678, 4
        %v5966 = vrot.slane %v5678, 6
        %v5967 = vrot.slane %v5679, 2
        %v5968 = vrot.slane %v5679, 4
        %v5969 = vrot.slane %v5679, 6
        %v5970 = vrot.slane %v5680, 2
        %v5971 = vrot.slane %v5680, 4
        %v5972 = vrot.slane %v5680, 6
        %v5973 = vrot.slane %v5681, 2
        %v5974 = vrot.slane %v5681, 4
        %v5975 = vrot.slane %v5681, 6
        %v5976 = vrot.slane %v5682, 2
        %v5977 = vrot.slane %v5682, 4
        %v5978 = vrot.slane %v5682, 6
        %v5979 = vrot.slane %v5683, 2
        %v5980 = vrot.slane %v5683, 4
        %v5981 = vrot.slane %v5683, 6
        %v5982 = vrot.slane %v5684, 2
        %v5983 = vrot.slane %v5684, 4
        %v5984 = vrot.slane %v5684, 6
        %v5985 = vrot.slane %v5685, 2
        %v5986 = vrot.slane %v5685, 4
        %v5987 = vrot.slane %v5685, 6
        %v5988 = vrot.slane %v5686, 2
        %v5989 = vrot.slane %v5686, 4
        %v5990 = vrot.slane %v5686, 6
        %v5991 = vrot.slane %v5687, 2
        %v5992 = vrot.slane %v5687, 4
        %v5993 = vrot.slane %v5687, 6
        %v5994 = vrot.slane %v5688, 2
        %v5995 = vrot.slane %v5688, 4
        %v5996 = vrot.slane %v5688, 6
        %v5997 = vrot.slane %v5689, 2
        %v5998 = vrot.slane %v5689, 4
        %v5999 = vrot.slane %v5689, 6
        %v6000 = vrot.slane %v5690, 2
        %v6001 = vrot.slane %v5690, 4
        %v6002 = vrot.slane %v5690, 6
        %v6003 = vrot.slane %v5691, 2
        %v6004 = vrot.slane %v5691, 4
        %v6005 = vrot.slane %v5691, 6
        %v6006 = vrot.slane %v5692, 2
        %v6007 = vrot.slane %v5692, 4
        %v6008 = vrot.slane %v5692, 6
        %v6009 = vrot.slane %v5693, 2
        %v6010 = vrot.slane %v5693, 4
        %v6011 = vrot.slane %v5693, 6
        %v6012 = vrot.slane %v5694, 2
        %v6013 = vrot.slane %v5694, 4
        %v6014 = vrot.slane %v5694, 6
        %v6015 = vrot.slane %v5695, 2
        %v6016 = vrot.slane %v5695, 4
        %v6017 = vrot.slane %v5695, 6
        %v6018 = vrot.slane %v5696, 2
        %v6019 = vrot.slane %v5696, 4
        %v6020 = vrot.slane %v5696, 6
        %v6021 = vrot.slane %v5697, 2
        %v6022 = vrot.slane %v5697, 4
        %v6023 = vrot.slane %v5697, 6
        %v6024 = vrot.slane %v5698, 2
        %v6025 = vrot.slane %v5698, 4
        %v6026 = vrot.slane %v5698, 6
        %v6027 = vrot.slane %v5699, 2
        %v6028 = vrot.slane %v5699, 4
        %v6029 = vrot.slane %v5699, 6
        %v6030 = vrot.slane %v5700, 2
        %v6031 = vrot.slane %v5700, 4
        %v6032 = vrot.slane %v5700, 6
        %v6033 = vrot.slane %v5701, 2
        %v6034 = vrot.slane %v5701, 4
        %v6035 = vrot.slane %v5701, 6
        %v6036 = vrot.slane %v5702, 2
        %v6037 = vrot.slane %v5702, 4
        %v6038 = vrot.slane %v5702, 6
        %v6039 = vrot.slane %v5703, 2
        %v6040 = vrot.slane %v5703, 4
        %v6041 = vrot.slane %v5703, 6
        %v6042 = vrot.slane %v5704, 2
        %v6043 = vrot.slane %v5704, 4
        %v6044 = vrot.slane %v5704, 6
        %v6045 = vrot.slane %v5705, 2
        %v6046 = vrot.slane %v5705, 4
        %v6047 = vrot.slane %v5705, 6
        %v6048 = vrot.slane %v5706, 2
        %v6049 = vrot.slane %v5706, 4
        %v6050 = vrot.slane %v5706, 6
        %v6051 = vrot.slane %v5707, 2
        %v6052 = vrot.slane %v5707, 4
        %v6053 = vrot.slane %v5707, 6
        %v6054 = vrot.slane %v5708, 2
        %v6055 = vrot.slane %v5708, 4
        %v6056 = vrot.slane %v5708, 6
        %v6057 = vrot.slane %v5709, 2
        %v6058 = vrot.slane %v5709, 4
        %v6059 = vrot.slane %v5709, 6
        %v6060 = vrot.slane %v5710, 2
        %v6061 = vrot.slane %v5710, 4
        %v6062 = vrot.slane %v5710, 6
        %v6063 = vrot.slane %v5711, 2
        %v6064 = vrot.slane %v5711, 4
        %v6065 = vrot.slane %v5711, 6
        %v6066 = vrot.slane %v5712, 2
        %v6067 = vrot.slane %v5712, 4
        %v6068 = vrot.slane %v5712, 6
        %v6069 = vrot.slane %v5713, 2
        %v6192 = vperm.slane %v318, 0
        %v6194 = vrot.slane %v6192, 2
        %v6195 = vrot.slane %v6192, 4
        %v6196 = vrot.slane %v6192, 6
        %v6200 = vadd.f32 %v5673, %v6192
        %v6201 = vadd.f32 %v5949, %v6194
        %v6202 = vadd.f32 %v5950, %v6195
        %v6203 = vadd.f32 %v5951, %v6196
        %v6204 = vadd.f32 %v5674, %v6192
        %v6205 = vadd.f32 %v5952, %v6194
        %v6206 = vadd.f32 %v5953, %v6195
        %v6207 = vadd.f32 %v5954, %v6196
        %v6208 = vadd.f32 %v5675, %v6192
        %v6209 = vadd.f32 %v5955, %v6192
        %v6210 = vadd.f32 %v5956, %v6194
        %v6211 = vadd.f32 %v5957, %v6195
        %v6212 = vadd.f32 %v5676, %v6196
        %v6213 = vadd.f32 %v5958, %v6192
        %v6214 = vadd.f32 %v5959, %v6194
        %v6215 = vadd.f32 %v5960, %v6195
        %v6216 = vadd.f32 %v5677, %v6196
        %v6217 = vadd.f32 %v5961, %v6192
        %v6218 = vadd.f32 %v5962, %v6192
        %v6219 = vadd.f32 %v5963, %v6194
        %v6220 = vadd.f32 %v5678, %v6195
        %v6221 = vadd.f32 %v5964, %v6196
        %v6222 = vadd.f32 %v5965, %v6192
        %v6223 = vadd.f32 %v5966, %v6194
        %v6224 = vadd.f32 %v5679, %v6195
        %v6225 = vadd.f32 %v5967, %v6196
        %v6226 = vadd.f32 %v5968, %v6192
        %v6227 = vadd.f32 %v5969, %v6192
        %v6228 = vadd.f32 %v5680, %v6194
        %v6229 = vadd.f32 %v5970, %v6195
        %v6230 = vadd.f32 %v5971, %v6196
        %v6231 = vadd.f32 %v5972, %v6192
        %v6232 = vadd.f32 %v5681, %v6194
        %v6233 = vadd.f32 %v5973, %v6195
        %v6234 = vadd.f32 %v5974, %v6196
        %v6235 = vadd.f32 %v5975, %v6192
        %v6236 = vadd.f32 %v5682, %v6192
        %v6237 = vadd.f32 %v5976, %v6194
        %v6238 = vadd.f32 %v5977, %v6195
        %v6239 = vadd.f32 %v5978, %v6196
        %v6240 = vadd.f32 %v5683, %v6192
        %v6241 = vadd.f32 %v5979, %v6194
        %v6242 = vadd.f32 %v5980, %v6195
        %v6243 = vadd.f32 %v5981, %v6196
        %v6244 = vadd.f32 %v5684, %v6192
        %v6245 = vadd.f32 %v5982, %v6192
        %v6246 = vadd.f32 %v5983, %v6194
        %v6247 = vadd.f32 %v5984, %v6195
        %v6248 = vadd.f32 %v5685, %v6196
        %v6249 = vadd.f32 %v5985, %v6192
        %v6250 = vadd.f32 %v5986, %v6194
        %v6251 = vadd.f32 %v5987, %v6195
        %v6252 = vadd.f32 %v5686, %v6196
        %v6253 = vadd.f32 %v5988, %v6192
        %v6254 = vadd.f32 %v5989, %v6192
        %v6255 = vadd.f32 %v5990, %v6194
        %v6256 = vadd.f32 %v5687, %v6195
        %v6257 = vadd.f32 %v5991, %v6196
        %v6258 = vadd.f32 %v5992, %v6192
        %v6259 = vadd.f32 %v5993, %v6194
        %v6260 = vadd.f32 %v5688, %v6195
        %v6261 = vadd.f32 %v5994, %v6196
        %v6262 = vadd.f32 %v5995, %v6192
        %v6263 = vadd.f32 %v5996, %v6192
        %v6264 = vadd.f32 %v5689, %v6194
        %v6265 = vadd.f32 %v5997, %v6195
        %v6266 = vadd.f32 %v5998, %v6196
        %v6267 = vadd.f32 %v5999, %v6192
        %v6268 = vadd.f32 %v5690, %v6194
        %v6269 = vadd.f32 %v6000, %v6195
        %v6270 = vadd.f32 %v6001, %v6196
        %v6271 = vadd.f32 %v6002, %v6192
        %v6272 = vadd.f32 %v5691, %v6192
        %v6273 = vadd.f32 %v6003, %v6194
        %v6274 = vadd.f32 %v6004, %v6195
        %v6275 = vadd.f32 %v6005, %v6196
        %v6276 = vadd.f32 %v5692, %v6192
        %v6277 = vadd.f32 %v6006, %v6194
        %v6278 = vadd.f32 %v6007, %v6195
        %v6279 = vadd.f32 %v6008, %v6196
        %v6280 = vadd.f32 %v5693, %v6192
        %v6281 = vadd.f32 %v6009, %v6192
        %v6282 = vadd.f32 %v6010, %v6194
        %v6283 = vadd.f32 %v6011, %v6195
        %v6284 = vadd.f32 %v5694, %v6196
        %v6285 = vadd.f32 %v6012, %v6192
        %v6286 = vadd.f32 %v6013, %v6194
        %v6287 = vadd.f32 %v6014, %v6195
        %v6288 = vadd.f32 %v5695, %v6196
        %v6289 = vadd.f32 %v6015, %v6192
        %v6290 = vadd.f32 %v6016, %v6192
        %v6291 = vadd.f32 %v6017, %v6194
        %v6292 = vadd.f32 %v5696, %v6195
        %v6293 = vadd.f32 %v6018, %v6196
        %v6294 = vadd.f32 %v6019, %v6192
        %v6295 = vadd.f32 %v6020, %v6194
        %v6296 = vadd.f32 %v5697, %v6195
        %v6297 = vadd.f32 %v6021, %v6196
        %v6298 = vadd.f32 %v6022, %v6192
        %v6299 = vadd.f32 %v6023, %v6192
        %v6300 = vadd.f32 %v5698, %v6194
        %v6301 = vadd.f32 %v6024, %v6195
        %v6302 = vadd.f32 %v6025, %v6196
        %v6303 = vadd.f32 %v6026, %v6192
        %v6304 = vadd.f32 %v5699, %v6194
        %v6305 = vadd.f32 %v6027, %v6195
        %v6306 = vadd.f32 %v6028, %v6196
        %v6307 = vadd.f32 %v6029, %v6192
        %v6308 = vadd.f32 %v5700, %v6192
        %v6309 = vadd.f32 %v6030, %v6194
        %v6310 = vadd.f32 %v6031, %v6195
        %v6311 = vadd.f32 %v6032, %v6196
        %v6312 = vadd.f32 %v5701, %v6192
        %v6313 = vadd.f32 %v6033, %v6194
        %v6314 = vadd.f32 %v6034, %v6195
        %v6315 = vadd.f32 %v6035, %v6196
        %v6316 = vadd.f32 %v5702, %v6192
        %v6317 = vadd.f32 %v6036, %v6192
        %v6318 = vadd.f32 %v6037, %v6194
        %v6319 = vadd.f32 %v6038, %v6195
        %v6320 = vadd.f32 %v5703, %v6196
        %v6321 = vadd.f32 %v6039, %v6192
        %v6322 = vadd.f32 %v6040, %v6194
        %v6323 = vadd.f32 %v6041, %v6195
        %v6324 = vadd.f32 %v5704, %v6196
        %v6325 = vadd.f32 %v6042, %v6192
        %v6326 = vadd.f32 %v6043, %v6192
        %v6327 = vadd.f32 %v6044, %v6194
        %v6328 = vadd.f32 %v5705, %v6195
        %v6329 = vadd.f32 %v6045, %v6196
        %v6330 = vadd.f32 %v6046, %v6192
        %v6331 = vadd.f32 %v6047, %v6194
        %v6332 = vadd.f32 %v5706, %v6195
        %v6333 = vadd.f32 %v6048, %v6196
        %v6334 = vadd.f32 %v6049, %v6192
        %v6335 = vadd.f32 %v6050, %v6192
        %v6336 = vadd.f32 %v5707, %v6194
        %v6337 = vadd.f32 %v6051, %v6195
        %v6338 = vadd.f32 %v6052, %v6196
        %v6339 = vadd.f32 %v6053, %v6192
        %v6340 = vadd.f32 %v5708, %v6194
        %v6341 = vadd.f32 %v6054, %v6195
        %v6342 = vadd.f32 %v6055, %v6196
        %v6343 = vadd.f32 %v6056, %v6192
        %v6344 = vadd.f32 %v5709, %v6192
        %v6345 = vadd.f32 %v6057, %v6194
        %v6346 = vadd.f32 %v6058, %v6195
        %v6347 = vadd.f32 %v6059, %v6196
        %v6348 = vadd.f32 %v5710, %v6192
        %v6349 = vadd.f32 %v6060, %v6194
        %v6350 = vadd.f32 %v6061, %v6195
        %v6351 = vadd.f32 %v6062, %v6196
        %v6352 = vadd.f32 %v5711, %v6192
        %v6353 = vadd.f32 %v6063, %v6192
        %v6354 = vadd.f32 %v6064, %v6194
        %v6355 = vadd.f32 %v6065, %v6195
        %v6356 = vadd.f32 %v5712, %v6196
        %v6357 = vadd.f32 %v6066, %v6192
        %v6358 = vadd.f32 %v6067, %v6194
        %v6359 = vadd.f32 %v6068, %v6195
        %v6360 = vadd.f32 %v5713, %v6196
        %v6361 = vadd.f32 %v6069, %v6192
        %v6362 = vmax.f32 %v6200, 0.0
        %v6363 = vmax.f32 %v6201, 0.0
        %v6364 = vmax.f32 %v6202, 0.0
        %v6365 = vmax.f32 %v6203, 0.0
        %v6366 = vmax.f32 %v6204, 0.0
        %v6367 = vmax.f32 %v6205, 0.0
        %v6368 = vmax.f32 %v6206, 0.0
        %v6369 = vmax.f32 %v6207, 0.0
        %v6370 = vmax.f32 %v6208, 0.0
        %v6371 = vmax.f32 %v6209, 0.0
        %v6372 = vmax.f32 %v6210, 0.0
        %v6373 = vmax.f32 %v6211, 0.0
        %v6374 = vmax.f32 %v6212, 0.0
        %v6375 = vmax.f32 %v6213, 0.0
        %v6376 = vmax.f32 %v6214, 0.0
        %v6377 = vmax.f32 %v6215, 0.0
        %v6378 = vmax.f32 %v6216, 0.0
        %v6379 = vmax.f32 %v6217, 0.0
        %v6380 = vmax.f32 %v6218, 0.0
        %v6381 = vmax.f32 %v6219, 0.0
        %v6382 = vmax.f32 %v6220, 0.0
        %v6383 = vmax.f32 %v6221, 0.0
        %v6384 = vmax.f32 %v6222, 0.0
        %v6385 = vmax.f32 %v6223, 0.0
        %v6386 = vmax.f32 %v6224, 0.0
        %v6387 = vmax.f32 %v6225, 0.0
        %v6388 = vmax.f32 %v6226, 0.0
        %v6389 = vmax.f32 %v6227, 0.0
        %v6390 = vmax.f32 %v6228, 0.0
        %v6391 = vmax.f32 %v6229, 0.0
        %v6392 = vmax.f32 %v6230, 0.0
        %v6393 = vmax.f32 %v6231, 0.0
        %v6394 = vmax.f32 %v6232, 0.0
        %v6395 = vmax.f32 %v6233, 0.0
        %v6396 = vmax.f32 %v6234, 0.0
        %v6397 = vmax.f32 %v6235, 0.0
        %v6398 = vmax.f32 %v6236, 0.0
        %v6399 = vmax.f32 %v6237, 0.0
        %v6400 = vmax.f32 %v6238, 0.0
        %v6401 = vmax.f32 %v6239, 0.0
        %v6402 = vmax.f32 %v6240, 0.0
        %v6403 = vmax.f32 %v6241, 0.0
        %v6404 = vmax.f32 %v6242, 0.0
        %v6405 = vmax.f32 %v6243, 0.0
        %v6406 = vmax.f32 %v6244, 0.0
        %v6407 = vmax.f32 %v6245, 0.0
        %v6408 = vmax.f32 %v6246, 0.0
        %v6409 = vmax.f32 %v6247, 0.0
        %v6410 = vmax.f32 %v6248, 0.0
        %v6411 = vmax.f32 %v6249, 0.0
        %v6412 = vmax.f32 %v6250, 0.0
        %v6413 = vmax.f32 %v6251, 0.0
        %v6414 = vmax.f32 %v6252, 0.0
        %v6415 = vmax.f32 %v6253, 0.0
        %v6416 = vmax.f32 %v6254, 0.0
        %v6417 = vmax.f32 %v6255, 0.0
        %v6418 = vmax.f32 %v6256, 0.0
        %v6419 = vmax.f32 %v6257, 0.0
        %v6420 = vmax.f32 %v6258, 0.0
        %v6421 = vmax.f32 %v6259, 0.0
        %v6422 = vmax.f32 %v6260, 0.0
        %v6423 = vmax.f32 %v6261, 0.0
        %v6424 = vmax.f32 %v6262, 0.0
        %v6425 = vmax.f32 %v6263, 0.0
        %v6426 = vmax.f32 %v6264, 0.0
        %v6427 = vmax.f32 %v6265, 0.0
        %v6428 = vmax.f32 %v6266, 0.0
        %v6429 = vmax.f32 %v6267, 0.0
        %v6430 = vmax.f32 %v6268, 0.0
        %v6431 = vmax.f32 %v6269, 0.0
        %v6432 = vmax.f32 %v6270, 0.0
        %v6433 = vmax.f32 %v6271, 0.0
        %v6434 = vmax.f32 %v6272, 0.0
        %v6435 = vmax.f32 %v6273, 0.0
        %v6436 = vmax.f32 %v6274, 0.0
        %v6437 = vmax.f32 %v6275, 0.0
        %v6438 = vmax.f32 %v6276, 0.0
        %v6439 = vmax.f32 %v6277, 0.0
        %v6440 = vmax.f32 %v6278, 0.0
        %v6441 = vmax.f32 %v6279, 0.0
        %v6442 = vmax.f32 %v6280, 0.0
        %v6443 = vmax.f32 %v6281, 0.0
        %v6444 = vmax.f32 %v6282, 0.0
        %v6445 = vmax.f32 %v6283, 0.0
        %v6446 = vmax.f32 %v6284, 0.0
        %v6447 = vmax.f32 %v6285, 0.0
        %v6448 = vmax.f32 %v6286, 0.0
        %v6449 = vmax.f32 %v6287, 0.0
        %v6450 = vmax.f32 %v6288, 0.0
        %v6451 = vmax.f32 %v6289, 0.0
        %v6452 = vmax.f32 %v6290, 0.0
        %v6453 = vmax.f32 %v6291, 0.0
        %v6454 = vmax.f32 %v6292, 0.0
        %v6455 = vmax.f32 %v6293, 0.0
        %v6456 = vmax.f32 %v6294, 0.0
        %v6457 = vmax.f32 %v6295, 0.0
        %v6458 = vmax.f32 %v6296, 0.0
        %v6459 = vmax.f32 %v6297, 0.0
        %v6460 = vmax.f32 %v6298, 0.0
        %v6461 = vmax.f32 %v6299, 0.0
        %v6462 = vmax.f32 %v6300, 0.0
        %v6463 = vmax.f32 %v6301, 0.0
        %v6464 = vmax.f32 %v6302, 0.0
        %v6465 = vmax.f32 %v6303, 0.0
        %v6466 = vmax.f32 %v6304, 0.0
        %v6467 = vmax.f32 %v6305, 0.0
        %v6468 = vmax.f32 %v6306, 0.0
        %v6469 = vmax.f32 %v6307, 0.0
        %v6470 = vmax.f32 %v6308, 0.0
        %v6471 = vmax.f32 %v6309, 0.0
        %v6472 = vmax.f32 %v6310, 0.0
        %v6473 = vmax.f32 %v6311, 0.0
        %v6474 = vmax.f32 %v6312, 0.0
        %v6475 = vmax.f32 %v6313, 0.0
        %v6476 = vmax.f32 %v6314, 0.0
        %v6477 = vmax.f32 %v6315, 0.0
        %v6478 = vmax.f32 %v6316, 0.0
        %v6479 = vmax.f32 %v6317, 0.0
        %v6480 = vmax.f32 %v6318, 0.0
        %v6481 = vmax.f32 %v6319, 0.0
        %v6482 = vmax.f32 %v6320, 0.0
        %v6483 = vmax.f32 %v6321, 0.0
        %v6484 = vmax.f32 %v6322, 0.0
        %v6485 = vmax.f32 %v6323, 0.0
        %v6486 = vmax.f32 %v6324, 0.0
        %v6487 = vmax.f32 %v6325, 0.0
        %v6488 = vmax.f32 %v6326, 0.0
        %v6489 = vmax.f32 %v6327, 0.0
        %v6490 = vmax.f32 %v6328, 0.0
        %v6491 = vmax.f32 %v6329, 0.0
        %v6492 = vmax.f32 %v6330, 0.0
        %v6493 = vmax.f32 %v6331, 0.0
        %v6494 = vmax.f32 %v6332, 0.0
        %v6495 = vmax.f32 %v6333, 0.0
        %v6496 = vmax.f32 %v6334, 0.0
        %v6497 = vmax.f32 %v6335, 0.0
        %v6498 = vmax.f32 %v6336, 0.0
        %v6499 = vmax.f32 %v6337, 0.0
        %v6500 = vmax.f32 %v6338, 0.0
        %v6501 = vmax.f32 %v6339, 0.0
        %v6502 = vmax.f32 %v6340, 0.0
        %v6503 = vmax.f32 %v6341, 0.0
        %v6504 = vmax.f32 %v6342, 0.0
        %v6505 = vmax.f32 %v6343, 0.0
        %v6506 = vmax.f32 %v6344, 0.0
        %v6507 = vmax.f32 %v6345, 0.0
        %v6508 = vmax.f32 %v6346, 0.0
        %v6509 = vmax.f32 %v6347, 0.0
        %v6510 = vmax.f32 %v6348, 0.0
        %v6511 = vmax.f32 %v6349, 0.0
        %v6512 = vmax.f32 %v6350, 0.0
        %v6513 = vmax.f32 %v6351, 0.0
        %v6514 = vmax.f32 %v6352, 0.0
        %v6515 = vmax.f32 %v6353, 0.0
        %v6516 = vmax.f32 %v6354, 0.0
        %v6517 = vmax.f32 %v6355, 0.0
        %v6518 = vmax.f32 %v6356, 0.0
        %v6519 = vmax.f32 %v6357, 0.0
        %v6520 = vmax.f32 %v6358, 0.0
        %v6521 = vmax.f32 %v6359, 0.0
        %v6522 = vmax.f32 %v6360, 0.0
        %v6523 = vmax.f32 %v6361, 0.0
        %v6524 = vsel %vm5854, 1, 0
        %v6525 = vsel %vm5855, 1, 0
        %v6526 = vsel %vm5856, 1, 0
        %v6527 = vsel %vm5857, 1, 0
        %v6528 = vsel %vm5858, 1, 0
        %v6529 = vsel %vm5859, 1, 0
        %v6530 = vsel %vm5860, 1, 0
        %v6531 = vsel %vm5861, 1, 0
        %v6532 = vsel %vm5862, 1, 0
        %v6533 = vsel %vm5863, 1, 0
        %v6534 = vsel %vm5864, 1, 0
        %v6535 = vsel %vm5865, 1, 0
        %v6536 = vsel %vm5866, 1, 0
        %v6537 = vsel %vm5867, 1, 0
        %v6538 = vsel %vm5868, 1, 0
        %v6539 = vsel %vm5869, 1, 0
        %v6540 = vsel %vm5870, 1, 0
        %v6541 = vsel %vm5871, 1, 0
        %v6542 = vsel %vm5872, 1, 0
        %v6543 = vsel %vm5873, 1, 0
        %v6544 = vsel %vm5874, 1, 0
        %v6545 = vsel %vm5875, 1, 0
        %v6546 = vsel %vm5876, 1, 0
        %v6547 = vsel %vm5877, 1, 0
        %v6548 = vsel %vm5878, 1, 0
        %v6549 = vsel %vm5879, 1, 0
        %v6550 = vsel %vm5880, 1, 0
        %v6551 = vsel %vm5881, 1, 0
        %v6552 = vsel %vm5882, 1, 0
        %v6553 = vsel %vm5883, 1, 0
        %v6554 = vsel %vm5884, 1, 0
        %v6555 = vsel %vm5885, 1, 0
        %v6556 = vsel %vm5886, 1, 0
        %v6557 = vsel %vm5887, 1, 0
        %v6558 = vsel %vm5888, 1, 0
        %v6559 = vsel %vm5889, 1, 0
        %v6560 = vsel %vm5890, 1, 0
        %v6561 = vsel %vm5891, 1, 0
        %v6562 = vsel %vm5892, 1, 0
        %v6563 = vsel %vm5893, 1, 0
        %v6564 = vsel %vm5894, 1, 0
        %v6565 = vsel %vm5895, 1, 0
        %v6566 = vsel %vm5896, 1, 0
        %v6567 = vsel %vm5897, 1, 0
        %v6568 = vsel %vm5898, 1, 0
        %v6569 = vsel %vm5899, 1, 0
        %v6570 = vsel %vm5900, 1, 0
        %v6571 = vsel %vm5901, 1, 0
        %v6572 = vsel %vm5902, 1, 0
        %v6573 = vsel %vm5903, 1, 0
        %v6574 = vsel %vm5904, 1, 0
        %v6575 = vsel %vm5905, 1, 0
        %v6576 = vsel %vm5906, 1, 0
        %v6577 = vsel %vm5907, 1, 0
        %vm6578 = vcmp.eq.s32.totalorder %v6524, 1
        %vm6579 = vcmp.eq.s32.totalorder %v6525, 1
        %vm6580 = vcmp.eq.s32.totalorder %v6526, 1
        %vm6581 = vcmp.eq.s32.totalorder %v6527, 1
        %vm6582 = vcmp.eq.s32.totalorder %v6528, 1
        %vm6583 = vcmp.eq.s32.totalorder %v6529, 1
        %vm6584 = vcmp.eq.s32.totalorder %v6530, 1
        %vm6585 = vcmp.eq.s32.totalorder %v6531, 1
        %vm6586 = vcmp.eq.s32.totalorder %v6532, 1
        %vm6587 = vcmp.eq.s32.totalorder %v6533, 1
        %vm6588 = vcmp.eq.s32.totalorder %v6534, 1
        %vm6589 = vcmp.eq.s32.totalorder %v6535, 1
        %vm6590 = vcmp.eq.s32.totalorder %v6536, 1
        %vm6591 = vcmp.eq.s32.totalorder %v6537, 1
        %vm6592 = vcmp.eq.s32.totalorder %v6538, 1
        %vm6593 = vcmp.eq.s32.totalorder %v6539, 1
        %vm6594 = vcmp.eq.s32.totalorder %v6540, 1
        %vm6595 = vcmp.eq.s32.totalorder %v6541, 1
        %vm6596 = vcmp.eq.s32.totalorder %v6542, 1
        %vm6597 = vcmp.eq.s32.totalorder %v6543, 1
        %vm6598 = vcmp.eq.s32.totalorder %v6544, 1
        %vm6599 = vcmp.eq.s32.totalorder %v6545, 1
        %vm6600 = vcmp.eq.s32.totalorder %v6546, 1
        %vm6601 = vcmp.eq.s32.totalorder %v6547, 1
        %vm6602 = vcmp.eq.s32.totalorder %v6548, 1
        %vm6603 = vcmp.eq.s32.totalorder %v6549, 1
        %vm6604 = vcmp.eq.s32.totalorder %v6550, 1
        %vm6605 = vcmp.eq.s32.totalorder %v6551, 1
        %vm6606 = vcmp.eq.s32.totalorder %v6552, 1
        %vm6607 = vcmp.eq.s32.totalorder %v6553, 1
        %vm6608 = vcmp.eq.s32.totalorder %v6554, 1
        %vm6609 = vcmp.eq.s32.totalorder %v6555, 1
        %vm6610 = vcmp.eq.s32.totalorder %v6556, 1
        %vm6611 = vcmp.eq.s32.totalorder %v6557, 1
        %vm6612 = vcmp.eq.s32.totalorder %v6558, 1
        %vm6613 = vcmp.eq.s32.totalorder %v6559, 1
        %vm6614 = vcmp.eq.s32.totalorder %v6560, 1
        %vm6615 = vcmp.eq.s32.totalorder %v6561, 1
        %vm6616 = vcmp.eq.s32.totalorder %v6562, 1
        %vm6617 = vcmp.eq.s32.totalorder %v6563, 1
        %vm6618 = vcmp.eq.s32.totalorder %v6564, 1
        %vm6619 = vcmp.eq.s32.totalorder %v6565, 1
        %vm6620 = vcmp.eq.s32.totalorder %v6566, 1
        %vm6621 = vcmp.eq.s32.totalorder %v6567, 1
        %vm6622 = vcmp.eq.s32.totalorder %v6568, 1
        %vm6623 = vcmp.eq.s32.totalorder %v6569, 1
        %vm6624 = vcmp.eq.s32.totalorder %v6570, 1
        %vm6625 = vcmp.eq.s32.totalorder %v6571, 1
        %vm6626 = vcmp.eq.s32.totalorder %v6572, 1
        %vm6627 = vcmp.eq.s32.totalorder %v6573, 1
        %vm6628 = vcmp.eq.s32.totalorder %v6574, 1
        %vm6629 = vcmp.eq.s32.totalorder %v6575, 1
        %vm6630 = vcmp.eq.s32.totalorder %v6576, 1
        %vm6631 = vcmp.eq.s32.totalorder %v6577, 1
        %6794 = vst [vmem:[#allocation1] ss:$4 sm:$0xff] %v6362
        %s6795 = scalar_lea.vmem [#allocation1], 1
        %6796 = vst [vmem:[%s6795] ss:$4 sm:$0xff] %v6363
        %s6797 = scalar_lea.vmem [#allocation1], 2
        %6798 = vst [vmem:[%s6797] ss:$4 sm:$0xff] %v6364
        %s6799 = scalar_lea.vmem [#allocation1], 3
        %6800 = vst [vmem:[%s6799] ss:$4 sm:$0xff] %v6365
        %s6801 = scalar_lea.vmem [#allocation1], 32
        %6802 = vst [vmem:[%s6801] ss:$4 sm:$0xff] %v6366
        %s6803 = scalar_lea.vmem [#allocation1], 33
        %6804 = vst [vmem:[%s6803] ss:$4 sm:$0xff] %v6367
        %s6805 = scalar_lea.vmem [#allocation1], 34
        %6806 = vst [vmem:[%s6805] ss:$4 sm:$0xff] %v6368
        %s6807 = scalar_lea.vmem [#allocation1], 35
        %6808 = vst [vmem:[%s6807] ss:$4 sm:$0xff] %v6369
        %v6809 = vld.sshfl [vmem:[#allocation1] sm:$0xff pattern:$0x73625140]
        %v6810 = vld.sshfl [vmem:[#allocation1 + $0x20] sm:$0xff pattern:$0x73625140]
        %6811 = vst [vmem:[#allocation1] ss:$4 sm:$0xff] %v6370
        %v6812 = vld.sshfl [vmem:[#allocation1] sm:$0xff pattern:$0x73625140]
        %6813 = vst [vmem:[%s6801] ss:$4 sm:$0xff] %v6371
        %6814 = vst [vmem:[%s6803] ss:$4 sm:$0xff] %v6372
        %6815 = vst [vmem:[%s6805] ss:$4 sm:$0xff] %v6373
        %6816 = vst [vmem:[%s6807] ss:$4 sm:$0xff] %v6374
        %v6817 = vld.sshfl [vmem:[#allocation1 + $0x20] sm:$0xff pattern:$0x73625140]
        %6818 = vst [vmem:[#allocation1] ss:$4 sm:$0xff] %v6375
        %6819 = vst [vmem:[%s6795] ss:$4 sm:$0xff] %v6376
        %6820 = vst [vmem:[%s6797] ss:$4 sm:$0xff] %v6377
        %6821 = vst [vmem:[%s6799] ss:$4 sm:$0xff] %v6378
        %6822 = vst [vmem:[%s6801] ss:$4 sm:$0xff] %v6379
        %v6823 = vld.sshfl [vmem:[#allocation1] sm:$0xff pattern:$0x73625140]
        %v6824 = vld.sshfl [vmem:[#allocation1 + $0x20] sm:$0xff pattern:$0x73625140]
        %6825 = vst [vmem:[#allocation1] ss:$4 sm:$0xff] %v6380
        %6826 = vst [vmem:[%s6795] ss:$4 sm:$0xff] %v6381
        %6827 = vst [vmem:[%s6797] ss:$4 sm:$0xff] %v6382
        %6828 = vst [vmem:[%s6799] ss:$4 sm:$0xff] %v6383
        %6829 = vst [vmem:[%s6801] ss:$4 sm:$0xff] %v6384
        %6830 = vst [vmem:[%s6803] ss:$4 sm:$0xff] %v6385
        %6831 = vst [vmem:[%s6805] ss:$4 sm:$0xff] %v6386
        %6832 = vst [vmem:[%s6807] ss:$4 sm:$0xff] %v6387
        %v6833 = vld.sshfl [vmem:[#allocation1] sm:$0xff pattern:$0x73625140]
        %v6834 = vld.sshfl [vmem:[#allocation1 + $0x20] sm:$0xff pattern:$0x73625140]
        %6835 = vst [vmem:[#allocation1] ss:$4 sm:$0xff] %v6388
        %v6836 = vld.sshfl [vmem:[#allocation1] sm:$0xff pattern:$0x73625140]
        %6837 = vst [vmem:[%s6801] ss:$4 sm:$0xff] %v6389
        %6838 = vst [vmem:[%s6803] ss:$4 sm:$0xff] %v6390
        %6839 = vst [vmem:[%s6805] ss:$4 sm:$0xff] %v6391
        %6840 = vst [vmem:[%s6807] ss:$4 sm:$0xff] %v6392
        %v6841 = vld.sshfl [vmem:[#allocation1 + $0x20] sm:$0xff pattern:$0x73625140]
        %6842 = vst [vmem:[#allocation1] ss:$4 sm:$0xff] %v6393
        %6843 = vst [vmem:[%s6795] ss:$4 sm:$0xff] %v6394
        %6844 = vst [vmem:[%s6797] ss:$4 sm:$0xff] %v6395
        %6845 = vst [vmem:[%s6799] ss:$4 sm:$0xff] %v6396
        %6846 = vst [vmem:[%s6801] ss:$4 sm:$0xff] %v6397
        %v6847 = vld.sshfl [vmem:[#allocation1] sm:$0xff pattern:$0x73625140]
        %v6848 = vld.sshfl [vmem:[#allocation1 + $0x20] sm:$0xff pattern:$0x73625140]
        %6849 = vst [vmem:[#allocation1] ss:$4 sm:$0xff] %v6398
        %6850 = vst [vmem:[%s6795] ss:$4 sm:$0xff] %v6399
        %6851 = vst [vmem:[%s6797] ss:$4 sm:$0xff] %v6400
        %6852 = vst [vmem:[%s6799] ss:$4 sm:$0xff] %v6401
        %6853 = vst [vmem:[%s6801] ss:$4 sm:$0xff] %v6402
        %6854 = vst [vmem:[%s6803] ss:$4 sm:$0xff] %v6403
        %6855 = vst [vmem:[%s6805] ss:$4 sm:$0xff] %v6404
        %6856 = vst [vmem:[%s6807] ss:$4 sm:$0xff] %v6405
        %v6857 = vld.sshfl [vmem:[#allocation1] sm:$0xff pattern:$0x73625140]
        %v6858 = vld.sshfl [vmem:[#allocation1 + $0x20] sm:$0xff pattern:$0x73625140]
        %6859 = vst [vmem:[#allocation1] ss:$4 sm:$0xff] %v6406
        %v6860 = vld.sshfl [vmem:[#allocation1] sm:$0xff pattern:$0x73625140]
        %6861 = vst [vmem:[%s6801] ss:$4 sm:$0xff] %v6407
        %6862 = vst [vmem:[%s6803] ss:$4 sm:$0xff] %v6408
        %6863 = vst [vmem:[%s6805] ss:$4 sm:$0xff] %v6409
        %6864 = vst [vmem:[%s6807] ss:$4 sm:$0xff] %v6410
        %v6865 = vld.sshfl [vmem:[#allocation1 + $0x20] sm:$0xff pattern:$0x73625140]
        %6866 = vst [vmem:[#allocation1] ss:$4 sm:$0xff] %v6411
        %6867 = vst [vmem:[%s6795] ss:$4 sm:$0xff] %v6412
        %6868 = vst [vmem:[%s6797] ss:$4 sm:$0xff] %v6413
        %6869 = vst [vmem:[%s6799] ss:$4 sm:$0xff] %v6414
        %6870 = vst [vmem:[%s6801] ss:$4 sm:$0xff] %v6415
        %v6871 = vld.sshfl [vmem:[#allocation1] sm:$0xff pattern:$0x73625140]
        %v6872 = vld.sshfl [vmem:[#allocation1 + $0x20] sm:$0xff pattern:$0x73625140]
        %6873 = vst [vmem:[#allocation1] ss:$4 sm:$0xff] %v6416
        %6874 = vst [vmem:[%s6795] ss:$4 sm:$0xff] %v6417
        %6875 = vst [vmem:[%s6797] ss:$4 sm:$0xff] %v6418
        %6876 = vst [vmem:[%s6799] ss:$4 sm:$0xff] %v6419
        %6877 = vst [vmem:[%s6801] ss:$4 sm:$0xff] %v6420
        %6878 = vst [vmem:[%s6803] ss:$4 sm:$0xff] %v6421
        %6879 = vst [vmem:[%s6805] ss:$4 sm:$0xff] %v6422
        %6880 = vst [vmem:[%s6807] ss:$4 sm:$0xff] %v6423
        %v6881 = vld.sshfl [vmem:[#allocation1] sm:$0xff pattern:$0x73625140]
        %v6882 = vld.sshfl [vmem:[#allocation1 + $0x20] sm:$0xff pattern:$0x73625140]
        %6883 = vst [vmem:[#allocation1] ss:$4 sm:$0xff] %v6424
        %v6884 = vld.sshfl [vmem:[#allocation1] sm:$0xff pattern:$0x73625140]
        %6885 = vst [vmem:[%s6801] ss:$4 sm:$0xff] %v6425
        %6886 = vst [vmem:[%s6803] ss:$4 sm:$0xff] %v6426
        %6887 = vst [vmem:[%s6805] ss:$4 sm:$0xff] %v6427
        %6888 = vst [vmem:[%s6807] ss:$4 sm:$0xff] %v6428
        %v6889 = vld.sshfl [vmem:[#allocation1 + $0x20] sm:$0xff pattern:$0x73625140]
        %6890 = vst [vmem:[#allocation1] ss:$4 sm:$0xff] %v6429
        %6891 = vst [vmem:[%s6795] ss:$4 sm:$0xff] %v6430
        %6892 = vst [vmem:[%s6797] ss:$4 sm:$0xff] %v6431
        %6893 = vst [vmem:[%s6799] ss:$4 sm:$0xff] %v6432
        %6894 = vst [vmem:[%s6801] ss:$4 sm:$0xff] %v6433
        %v6895 = vld.sshfl [vmem:[#allocation1] sm:$0xff pattern:$0x73625140]
        %v6896 = vld.sshfl [vmem:[#allocation1 + $0x20] sm:$0xff pattern:$0x73625140]
        %6897 = vst [vmem:[#allocation1] ss:$4 sm:$0xff] %v6434
        %6898 = vst [vmem:[%s6795] ss:$4 sm:$0xff] %v6435
        %6899 = vst [vmem:[%s6797] ss:$4 sm:$0xff] %v6436
        %6900 = vst [vmem:[%s6799] ss:$4 sm:$0xff] %v6437
        %6901 = vst [vmem:[%s6801] ss:$4 sm:$0xff] %v6438
        %6902 = vst [vmem:[%s6803] ss:$4 sm:$0xff] %v6439
        %6903 = vst [vmem:[%s6805] ss:$4 sm:$0xff] %v6440
        %6904 = vst [vmem:[%s6807] ss:$4 sm:$0xff] %v6441
        %v6905 = vld.sshfl [vmem:[#allocation1] sm:$0xff pattern:$0x73625140]
        %v6906 = vld.sshfl [vmem:[#allocation1 + $0x20] sm:$0xff pattern:$0x73625140]
        %6907 = vst [vmem:[#allocation1] ss:$4 sm:$0xff] %v6442
        %v6908 = vld.sshfl [vmem:[#allocation1] sm:$0xff pattern:$0x73625140]
        %6909 = vst [vmem:[%s6801] ss:$4 sm:$0xff] %v6443
        %6910 = vst [vmem:[%s6803] ss:$4 sm:$0xff] %v6444
        %6911 = vst [vmem:[%s6805] ss:$4 sm:$0xff] %v6445
        %6912 = vst [vmem:[%s6807] ss:$4 sm:$0xff] %v6446
        %v6913 = vld.sshfl [vmem:[#allocation1 + $0x20] sm:$0xff pattern:$0x73625140]
        %6914 = vst [vmem:[#allocation1] ss:$4 sm:$0xff] %v6447
        %6915 = vst [vmem:[%s6795] ss:$4 sm:$0xff] %v6448
        %6916 = vst [vmem:[%s6797] ss:$4 sm:$0xff] %v6449
        %6917 = vst [vmem:[%s6799] ss:$4 sm:$0xff] %v6450
        %6918 = vst [vmem:[%s6801] ss:$4 sm:$0xff] %v6451
        %v6919 = vld.sshfl [vmem:[#allocation1] sm:$0xff pattern:$0x73625140]
        %v6920 = vld.sshfl [vmem:[#allocation1 + $0x20] sm:$0xff pattern:$0x73625140]
        %6921 = vst [vmem:[#allocation1] ss:$4 sm:$0xff] %v6452
        %6922 = vst [vmem:[%s6795] ss:$4 sm:$0xff] %v6453
        %6923 = vst [vmem:[%s6797] ss:$4 sm:$0xff] %v6454
        %6924 = vst [vmem:[%s6799] ss:$4 sm:$0xff] %v6455
        %6925 = vst [vmem:[%s6801] ss:$4 sm:$0xff] %v6456
        %6926 = vst [vmem:[%s6803] ss:$4 sm:$0xff] %v6457
        %6927 = vst [vmem:[%s6805] ss:$4 sm:$0xff] %v6458
        %6928 = vst [vmem:[%s6807] ss:$4 sm:$0xff] %v6459
        %v6929 = vld.sshfl [vmem:[#allocation1] sm:$0xff pattern:$0x73625140]
        %v6930 = vld.sshfl [vmem:[#allocation1 + $0x20] sm:$0xff pattern:$0x73625140]
        %6931 = vst [vmem:[#allocation1] ss:$4 sm:$0xff] %v6460
        %v6932 = vld.sshfl [vmem:[#allocation1] sm:$0xff pattern:$0x73625140]
        %6933 = vst [vmem:[%s6801] ss:$4 sm:$0xff] %v6461
        %6934 = vst [vmem:[%s6803] ss:$4 sm:$0xff] %v6462
        %6935 = vst [vmem:[%s6805] ss:$4 sm:$0xff] %v6463
        %6936 = vst [vmem:[%s6807] ss:$4 sm:$0xff] %v6464
        %v6937 = vld.sshfl [vmem:[#allocation1 + $0x20] sm:$0xff pattern:$0x73625140]
        %6938 = vst [vmem:[#allocation1] ss:$4 sm:$0xff] %v6465
        %6939 = vst [vmem:[%s6795] ss:$4 sm:$0xff] %v6466
        %6940 = vst [vmem:[%s6797] ss:$4 sm:$0xff] %v6467
        %6941 = vst [vmem:[%s6799] ss:$4 sm:$0xff] %v6468
        %6942 = vst [vmem:[%s6801] ss:$4 sm:$0xff] %v6469
        %v6943 = vld.sshfl [vmem:[#allocation1] sm:$0xff pattern:$0x73625140]
        %v6944 = vld.sshfl [vmem:[#allocation1 + $0x20] sm:$0xff pattern:$0x73625140]
        %6945 = vst [vmem:[#allocation1] ss:$4 sm:$0xff] %v6470
        %6946 = vst [vmem:[%s6795] ss:$4 sm:$0xff] %v6471
        %6947 = vst [vmem:[%s6797] ss:$4 sm:$0xff] %v6472
        %6948 = vst [vmem:[%s6799] ss:$4 sm:$0xff] %v6473
        %6949 = vst [vmem:[%s6801] ss:$4 sm:$0xff] %v6474
        %6950 = vst [vmem:[%s6803] ss:$4 sm:$0xff] %v6475
        %6951 = vst [vmem:[%s6805] ss:$4 sm:$0xff] %v6476
        %6952 = vst [vmem:[%s6807] ss:$4 sm:$0xff] %v6477
        %v6953 = vld.sshfl [vmem:[#allocation1] sm:$0xff pattern:$0x73625140]
        %v6954 = vld.sshfl [vmem:[#allocation1 + $0x20] sm:$0xff pattern:$0x73625140]
        %6955 = vst [vmem:[#allocation1] ss:$4 sm:$0xff] %v6478
        %v6956 = vld.sshfl [vmem:[#allocation1] sm:$0xff pattern:$0x73625140]
        %6957 = vst [vmem:[%s6801] ss:$4 sm:$0xff] %v6479
        %6958 = vst [vmem:[%s6803] ss:$4 sm:$0xff] %v6480
        %6959 = vst [vmem:[%s6805] ss:$4 sm:$0xff] %v6481
        %6960 = vst [vmem:[%s6807] ss:$4 sm:$0xff] %v6482
        %v6961 = vld.sshfl [vmem:[#allocation1 + $0x20] sm:$0xff pattern:$0x73625140]
        %6962 = vst [vmem:[#allocation1] ss:$4 sm:$0xff] %v6483
        %6963 = vst [vmem:[%s6795] ss:$4 sm:$0xff] %v6484
        %6964 = vst [vmem:[%s6797] ss:$4 sm:$0xff] %v6485
        %6965 = vst [vmem:[%s6799] ss:$4 sm:$0xff] %v6486
        %6966 = vst [vmem:[%s6801] ss:$4 sm:$0xff] %v6487
        %v6967 = vld.sshfl [vmem:[#allocation1] sm:$0xff pattern:$0x73625140]
        %v6968 = vld.sshfl [vmem:[#allocation1 + $0x20] sm:$0xff pattern:$0x73625140]
        %6969 = vst [vmem:[#allocation1] ss:$4 sm:$0xff] %v6488
        %6970 = vst [vmem:[%s6795] ss:$4 sm:$0xff] %v6489
        %6971 = vst [vmem:[%s6797] ss:$4 sm:$0xff] %v6490
        %6972 = vst [vmem:[%s6799] ss:$4 sm:$0xff] %v6491
        %6973 = vst [vmem:[%s6801] ss:$4 sm:$0xff] %v6492
        %6974 = vst [vmem:[%s6803] ss:$4 sm:$0xff] %v6493
        %6975 = vst [vmem:[%s6805] ss:$4 sm:$0xff] %v6494
        %6976 = vst [vmem:[%s6807] ss:$4 sm:$0xff] %v6495
        %v6977 = vld.sshfl [vmem:[#allocation1] sm:$0xff pattern:$0x73625140]
        %v6978 = vld.sshfl [vmem:[#allocation1 + $0x20] sm:$0xff pattern:$0x73625140]
        %6979 = vst [vmem:[#allocation1] ss:$4 sm:$0xff] %v6496
        %v6980 = vld.sshfl [vmem:[#allocation1] sm:$0xff pattern:$0x73625140]
        %6981 = vst [vmem:[%s6801] ss:$4 sm:$0xff] %v6497
        %6982 = vst [vmem:[%s6803] ss:$4 sm:$0xff] %v6498
        %6983 = vst [vmem:[%s6805] ss:$4 sm:$0xff] %v6499
        %6984 = vst [vmem:[%s6807] ss:$4 sm:$0xff] %v6500
        %v6985 = vld.sshfl [vmem:[#allocation1 + $0x20] sm:$0xff pattern:$0x73625140]
        %6986 = vst [vmem:[#allocation1] ss:$4 sm:$0xff] %v6501
        %6987 = vst [vmem:[%s6795] ss:$4 sm:$0xff] %v6502
        %6988 = vst [vmem:[%s6797] ss:$4 sm:$0xff] %v6503
        %6989 = vst [vmem:[%s6799] ss:$4 sm:$0xff] %v6504
        %6990 = vst [vmem:[%s6801] ss:$4 sm:$0xff] %v6505
        %v6991 = vld.sshfl [vmem:[#allocation1] sm:$0xff pattern:$0x73625140]
        %v6992 = vld.sshfl [vmem:[#allocation1 + $0x20] sm:$0xff pattern:$0x73625140]
        %6993 = vst [vmem:[#allocation1] ss:$4 sm:$0xff] %v6506
        %6994 = vst [vmem:[%s6795] ss:$4 sm:$0xff] %v6507
        %6995 = vst [vmem:[%s6797] ss:$4 sm:$0xff] %v6508
        %6996 = vst [vmem:[%s6799] ss:$4 sm:$0xff] %v6509
        %6997 = vst [vmem:[%s6801] ss:$4 sm:$0xff] %v6510
        %6998 = vst [vmem:[%s6803] ss:$4 sm:$0xff] %v6511
        %6999 = vst [vmem:[%s6805] ss:$4 sm:$0xff] %v6512
        %7000 = vst [vmem:[%s6807] ss:$4 sm:$0xff] %v6513
        %v7001 = vld.sshfl [vmem:[#allocation1] sm:$0xff pattern:$0x73625140]
        %v7002 = vld.sshfl [vmem:[#allocation1 + $0x20] sm:$0xff pattern:$0x73625140]
        %7003 = vst [vmem:[#allocation1] ss:$4 sm:$0xff] %v6514
        %v7004 = vld.sshfl [vmem:[#allocation1] sm:$0xff pattern:$0x73625140]
        %7005 = vst [vmem:[%s6801] ss:$4 sm:$0xff] %v6515
        %7006 = vst [vmem:[%s6803] ss:$4 sm:$0xff] %v6516
        %7007 = vst [vmem:[%s6805] ss:$4 sm:$0xff] %v6517
        %7008 = vst [vmem:[%s6807] ss:$4 sm:$0xff] %v6518
        %v7009 = vld.sshfl [vmem:[#allocation1 + $0x20] sm:$0xff pattern:$0x73625140]
        %7010 = vst [vmem:[#allocation1] ss:$4 sm:$0xff] %v6519
        %7011 = vst [vmem:[%s6795] ss:$4 sm:$0xff] %v6520
        %7012 = vst [vmem:[%s6797] ss:$4 sm:$0xff] %v6521
        %7013 = vst [vmem:[%s6799] ss:$4 sm:$0xff] %v6522
        %7014 = vst [vmem:[%s6801] ss:$4 sm:$0xff] %v6523
        %v7015 = vld.sshfl [vmem:[#allocation1] sm:$0xff pattern:$0x73625140]
        %v7016 = vld.sshfl [vmem:[#allocation1 + $0x20] sm:$0xff pattern:$0x73625140]
        %v7071 = vsel %vm6578, %v6809, 0.0
        %v7072 = vsel %vm6579, %v6810, 0.0
        %v7073 = vsel %vm6580, %v6812, 0.0
        %v7074 = vsel %vm6581, %v6817, 0.0
        %v7075 = vsel %vm6582, %v6823, 0.0
        %v7076 = vsel %vm6583, %v6824, 0.0
        %v7077 = vsel %vm6584, %v6833, 0.0
        %v7078 = vsel %vm6585, %v6834, 0.0
        %v7079 = vsel %vm6586, %v6836, 0.0
        %v7080 = vsel %vm6587, %v6841, 0.0
        %v7081 = vsel %vm6588, %v6847, 0.0
        %v7082 = vsel %vm6589, %v6848, 0.0
        %v7083 = vsel %vm6590, %v6857, 0.0
        %v7084 = vsel %vm6591, %v6858, 0.0
        %v7085 = vsel %vm6592, %v6860, 0.0
        %v7086 = vsel %vm6593, %v6865, 0.0
        %v7087 = vsel %vm6594, %v6871, 0.0
        %v7088 = vsel %vm6595, %v6872, 0.0
        %v7089 = vsel %vm6596, %v6881, 0.0
        %v7090 = vsel %vm6597, %v6882, 0.0
        %v7091 = vsel %vm6598, %v6884, 0.0
        %v7092 = vsel %vm6599, %v6889, 0.0
        %v7093 = vsel %vm6600, %v6895, 0.0
        %v7094 = vsel %vm6601, %v6896, 0.0
        %v7095 = vsel %vm6602, %v6905, 0.0
        %v7096 = vsel %vm6603, %v6906, 0.0
        %v7097 = vsel %vm6604, %v6908, 0.0
        %v7098 = vsel %vm6605, %v6913, 0.0
        %v7099 = vsel %vm6606, %v6919, 0.0
        %v7100 = vsel %vm6607, %v6920, 0.0
        %v7101 = vsel %vm6608, %v6929, 0.0
        %v7102 = vsel %vm6609, %v6930, 0.0
        %v7103 = vsel %vm6610, %v6932, 0.0
        %v7104 = vsel %vm6611, %v6937, 0.0
        %v7105 = vsel %vm6612, %v6943, 0.0
        %v7106 = vsel %vm6613, %v6944, 0.0
        %v7107 = vsel %vm6614, %v6953, 0.0
        %v7108 = vsel %vm6615, %v6954, 0.0
        %v7109 = vsel %vm6616, %v6956, 0.0
        %v7110 = vsel %vm6617, %v6961, 0.0
        %v7111 = vsel %vm6618, %v6967, 0.0
        %v7112 = vsel %vm6619, %v6968, 0.0
        %v7113 = vsel %vm6620, %v6977, 0.0
        %v7114 = vsel %vm6621, %v6978, 0.0
        %v7115 = vsel %vm6622, %v6980, 0.0
        %v7116 = vsel %vm6623, %v6985, 0.0
        %v7117 = vsel %vm6624, %v6991, 0.0
        %v7118 = vsel %vm6625, %v6992, 0.0
        %v7119 = vsel %vm6626, %v7001, 0.0
        %v7120 = vsel %vm6627, %v7002, 0.0
        %v7121 = vsel %vm6628, %v7004, 0.0
        %v7122 = vsel %vm6629, %v7009, 0.0
        %v7123 = vsel %vm6630, %v7015, 0.0
        %v7124 = vsel %vm6631, %v7016, 0.0
        %v7125 = vld [vmem:[#allocation2] sm:$0xff]
        %v7126 = vld [vmem:[#allocation2 + $0x8] sm:$0xff]
        %v7127 = vld [vmem:[#allocation2 + $0x10] sm:$0xff]
        %v7128 = vld [vmem:[#allocation2 + $0x18] sm:$0xff]
        %v7129 = vld [vmem:[#allocation2 + $0x20] sm:$0xff]
        %v7130 = vld [vmem:[#allocation2 + $0x28] sm:$0xff]
        %v7131 = vld [vmem:[#allocation2 + $0x30] sm:$0xff]
        %v7132 = vld [vmem:[#allocation2 + $0x38] sm:$0xff]
        %v7133 = vld [vmem:[#allocation2 + $0x40] sm:$0xff]
        %v7134 = vld [vmem:[#allocation2 + $0x48] sm:$0xff]
        %v7135 = vld [vmem:[#allocation2 + $0x50] sm:$0xff]
        %v7136 = vld [vmem:[#allocation2 + $0x58] sm:$0xff]
        %v7137 = vld [vmem:[#allocation2 + $0x60] sm:$0xff]
        %v7138 = vld [vmem:[#allocation2 + $0x68] sm:$0xff]
        %v7139 = vld [vmem:[#allocation2 + $0x70] sm:$0xff]
        %v7140 = vld [vmem:[#allocation2 + $0x78] sm:$0xff]
        %vm7189 = vcmask 1046528
        %v7190 = vrot.slane %v7071, 1
        %v7191 = vrot.slane %v7072, 1
        %v7192 = vsel %vm7189, %v7190, %v7191
        %v7193 = vrot.slane %v7073, 1
        %v7194 = vsel %vm7189, %v7191, %v7193
        %v7195 = vrot.slane %v7074, 1
        %v7196 = vrot.slane %v7075, 1
        %v7197 = vsel %vm7189, %v7195, %v7196
        %v7198 = vrot.slane %v7076, 1
        %v7199 = vsel %vm7189, %v7196, %v7198
        %v7200 = vrot.slane %v7077, 1
        %v7201 = vrot.slane %v7078, 1
        %v7202 = vsel %vm7189, %v7200, %v7201
        %v7203 = vrot.slane %v7079, 1
        %v7204 = vsel %vm7189, %v7201, %v7203
        %v7205 = vrot.slane %v7080, 1
        %v7206 = vrot.slane %v7081, 1
        %v7207 = vsel %vm7189, %v7205, %v7206
        %v7208 = vrot.slane %v7082, 1
        %v7209 = vsel %vm7189, %v7206, %v7208
        %v7210 = vrot.slane %v7083, 1
        %v7211 = vrot.slane %v7084, 1
        %v7212 = vsel %vm7189, %v7210, %v7211
        %v7213 = vrot.slane %v7085, 1
        %v7214 = vsel %vm7189, %v7211, %v7213
        %v7215 = vrot.slane %v7086, 1
        %v7216 = vrot.slane %v7087, 1
        %v7217 = vsel %vm7189, %v7215, %v7216
        %v7218 = vrot.slane %v7088, 1
        %v7219 = vsel %vm7189, %v7216, %v7218
        %v7220 = vrot.slane %v7089, 1
        %v7221 = vrot.slane %v7090, 1
        %v7222 = vsel %vm7189, %v7220, %v7221
        %v7223 = vrot.slane %v7091, 1
        %v7224 = vsel %vm7189, %v7221, %v7223
        %v7225 = vrot.slane %v7092, 1
        %v7226 = vrot.slane %v7093, 1
        %v7227 = vsel %vm7189, %v7225, %v7226
        %v7228 = vrot.slane %v7094, 1
        %v7229 = vsel %vm7189, %v7226, %v7228
        %v7230 = vrot.slane %v7095, 1
        %v7231 = vrot.slane %v7096, 1
        %v7232 = vsel %vm7189, %v7230, %v7231
        %v7233 = vrot.slane %v7097, 1
        %v7234 = vsel %vm7189, %v7231, %v7233
        %v7235 = vrot.slane %v7098, 1
        %v7236 = vrot.slane %v7099, 1
        %v7237 = vsel %vm7189, %v7235, %v7236
        %v7238 = vrot.slane %v7100, 1
        %v7239 = vsel %vm7189, %v7236, %v7238
        %v7240 = vrot.slane %v7101, 1
        %v7241 = vrot.slane %v7102, 1
        %v7242 = vsel %vm7189, %v7240, %v7241
        %v7243 = vrot.slane %v7103, 1
        %v7244 = vsel %vm7189, %v7241, %v7243
        %v7245 = vrot.slane %v7104, 1
        %v7246 = vrot.slane %v7105, 1
        %v7247 = vsel %vm7189, %v7245, %v7246
        %v7248 = vrot.slane %v7106, 1
        %v7249 = vsel %vm7189, %v7246, %v7248
        %v7250 = vrot.slane %v7107, 1
        %v7251 = vrot.slane %v7108, 1
        %v7252 = vsel %vm7189, %v7250, %v7251
        %v7253 = vrot.slane %v7109, 1
        %v7254 = vsel %vm7189, %v7251, %v7253
        %v7255 = vrot.slane %v7110, 1
        %v7256 = vrot.slane %v7111, 1
        %v7257 = vsel %vm7189, %v7255, %v7256
        %v7258 = vrot.slane %v7112, 1
        %v7259 = vsel %vm7189, %v7256, %v7258
        %v7260 = vrot.slane %v7113, 1
        %v7261 = vrot.slane %v7114, 1
        %v7262 = vsel %vm7189, %v7260, %v7261
        %v7263 = vrot.slane %v7115, 1
        %v7264 = vsel %vm7189, %v7261, %v7263
        %v7265 = vrot.slane %v7116, 1
        %v7266 = vrot.slane %v7117, 1
        %v7267 = vsel %vm7189, %v7265, %v7266
        %v7268 = vrot.slane %v7118, 1
        %v7269 = vsel %vm7189, %v7266, %v7268
        %s7302 = scalar_lea.vmem [#allocation2], 128
        %v7303 = vld [vmem:[%s7302] sm:$0xff]
        %v7304 = vld [vmem:[%s7302 + $0x8] sm:$0xff]
        %v7305 = vld [vmem:[%s7302 + $0x10] sm:$0xff]
        %v7306 = vld [vmem:[%s7302 + $0x18] sm:$0xff]
        %v7307 = vld [vmem:[%s7302 + $0x20] sm:$0xff]
        %v7308 = vld [vmem:[%s7302 + $0x28] sm:$0xff]
        %v7309 = vld [vmem:[%s7302 + $0x30] sm:$0xff]
        %v7310 = vld [vmem:[%s7302 + $0x38] sm:$0xff]
        %v7311 = vld [vmem:[%s7302 + $0x40] sm:$0xff]
        %v7312 = vld [vmem:[%s7302 + $0x48] sm:$0xff]
        %v7313 = vld [vmem:[%s7302 + $0x50] sm:$0xff]
        %v7314 = vld [vmem:[%s7302 + $0x58] sm:$0xff]
        %v7315 = vld [vmem:[%s7302 + $0x60] sm:$0xff]
        %v7316 = vld [vmem:[%s7302 + $0x68] sm:$0xff]
        %v7317 = vld [vmem:[%s7302 + $0x70] sm:$0xff]
        %v7318 = vld [vmem:[%s7302 + $0x78] sm:$0xff]
        %7319 = vmatpush.msra.mxu0 %v7318
        %7320 = vmatpush.msra.mxu0 %v7317
        %7321 = vmatpush.msra.mxu0 %v7316
        %7322 = vmatpush.msra.mxu0 %v7315
        %7323 = vmatpush.msra.mxu0 %v7314
        %7324 = vmatpush.msra.mxu0 %v7313
        %7325 = vmatpush.msra.mxu0 %v7312
        %7326 = vmatpush.msra.mxu0 %v7311
        %7327 = vmatpush.msra.mxu0 %v7310
        %7328 = vmatpush.msra.mxu0 %v7309
        %7329 = vmatpush.msra.mxu0 %v7308
        %7330 = vmatpush.msra.mxu0 %v7307
        %7331 = vmatpush.msra.mxu0 %v7306
        %7332 = vmatpush.msra.mxu0 %v7305
        %7333 = vmatpush.msra.mxu0 %v7304
        %7334 = vmatpush.msra.mxu0 %v7303
        %7335 = vmatmul.f32.gmra.mxu0 %v7192
        %v7336 = vpop.f32.mrf.mxu0
        %v7337 = vadd.f32 0.0, %v7336
        %7338 = vmatmul.f32.gmra.mxu0 %v7194
        %v7339 = vpop.f32.mrf.mxu0
        %v7340 = vadd.f32 0.0, %v7339
        %7341 = vmatmul.f32.gmra.mxu0 %v7197
        %v7342 = vpop.f32.mrf.mxu0
        %v7343 = vadd.f32 0.0, %v7342
        %7344 = vmatmul.f32.gmra.mxu0 %v7199
        %v7345 = vpop.f32.mrf.mxu0
        %v7346 = vadd.f32 0.0, %v7345
        %7347 = vmatmul.f32.gmra.mxu0 %v7202
        %v7348 = vpop.f32.mrf.mxu0
        %v7349 = vadd.f32 0.0, %v7348
        %7350 = vmatmul.f32.gmra.mxu0 %v7204
        %v7351 = vpop.f32.mrf.mxu0
        %v7352 = vadd.f32 0.0, %v7351
        %7353 = vmatmul.f32.gmra.mxu0 %v7207
        %v7354 = vpop.f32.mrf.mxu0
        %v7355 = vadd.f32 0.0, %v7354
        %7356 = vmatmul.f32.gmra.mxu0 %v7209
        %v7357 = vpop.f32.mrf.mxu0
        %v7358 = vadd.f32 0.0, %v7357
        %7359 = vmatmul.f32.gmra.mxu0 %v7212
        %v7360 = vpop.f32.mrf.mxu0
        %v7361 = vadd.f32 0.0, %v7360
        %7362 = vmatmul.f32.gmra.mxu0 %v7214
        %v7363 = vpop.f32.mrf.mxu0
        %v7364 = vadd.f32 0.0, %v7363
        %7365 = vmatmul.f32.gmra.mxu0 %v7217
        %v7366 = vpop.f32.mrf.mxu0
        %v7367 = vadd.f32 0.0, %v7366
        %7368 = vmatmul.f32.gmra.mxu0 %v7219
        %v7369 = vpop.f32.mrf.mxu0
        %v7370 = vadd.f32 0.0, %v7369
        %7371 = vmatmul.f32.gmra.mxu0 %v7222
        %v7372 = vpop.f32.mrf.mxu0
        %v7373 = vadd.f32 0.0, %v7372
        %7374 = vmatmul.f32.gmra.mxu0 %v7224
        %v7375 = vpop.f32.mrf.mxu0
        %v7376 = vadd.f32 0.0, %v7375
        %7377 = vmatmul.f32.gmra.mxu0 %v7227
        %v7378 = vpop.f32.mrf.mxu0
        %v7379 = vadd.f32 0.0, %v7378
        %7380 = vmatmul.f32.gmra.mxu0 %v7229
        %v7381 = vpop.f32.mrf.mxu0
        %v7382 = vadd.f32 0.0, %v7381
        %7383 = vmatmul.f32.gmra.mxu0 %v7232
        %v7384 = vpop.f32.mrf.mxu0
        %v7385 = vadd.f32 0.0, %v7384
        %7386 = vmatmul.f32.gmra.mxu0 %v7234
        %v7387 = vpop.f32.mrf.mxu0
        %v7388 = vadd.f32 0.0, %v7387
        %7389 = vmatmul.f32.gmra.mxu0 %v7237
        %v7390 = vpop.f32.mrf.mxu0
        %v7391 = vadd.f32 0.0, %v7390
        %7392 = vmatmul.f32.gmra.mxu0 %v7239
        %v7393 = vpop.f32.mrf.mxu0
        %v7394 = vadd.f32 0.0, %v7393
        %7395 = vmatmul.f32.gmra.mxu0 %v7242
        %v7396 = vpop.f32.mrf.mxu0
        %v7397 = vadd.f32 0.0, %v7396
        %7398 = vmatmul.f32.gmra.mxu0 %v7244
        %v7399 = vpop.f32.mrf.mxu0
        %v7400 = vadd.f32 0.0, %v7399
        %7401 = vmatmul.f32.gmra.mxu0 %v7247
        %v7402 = vpop.f32.mrf.mxu0
        %v7403 = vadd.f32 0.0, %v7402
        %7404 = vmatmul.f32.gmra.mxu0 %v7249
        %v7405 = vpop.f32.mrf.mxu0
        %v7406 = vadd.f32 0.0, %v7405
        %7407 = vmatmul.f32.gmra.mxu0 %v7252
        %v7408 = vpop.f32.mrf.mxu0
        %v7409 = vadd.f32 0.0, %v7408
        %7410 = vmatmul.f32.gmra.mxu0 %v7254
        %v7411 = vpop.f32.mrf.mxu0
        %v7412 = vadd.f32 0.0, %v7411
        %7413 = vmatmul.f32.gmra.mxu0 %v7257
        %v7414 = vpop.f32.mrf.mxu0
        %v7415 = vadd.f32 0.0, %v7414
        %7416 = vmatmul.f32.gmra.mxu0 %v7259
        %v7417 = vpop.f32.mrf.mxu0
        %v7418 = vadd.f32 0.0, %v7417
        %7419 = vmatmul.f32.gmra.mxu0 %v7262
        %v7420 = vpop.f32.mrf.mxu0
        %v7421 = vadd.f32 0.0, %v7420
        %7422 = vmatmul.f32.gmra.mxu0 %v7264
        %v7423 = vpop.f32.mrf.mxu0
        %v7424 = vadd.f32 0.0, %v7423
        %7425 = vmatmul.f32.gmra.mxu0 %v7267
        %v7426 = vpop.f32.mrf.mxu0
        %v7427 = vadd.f32 0.0, %v7426
        %7428 = vmatmul.f32.gmra.mxu0 %v7269
        %v7429 = vpop.f32.mrf.mxu0
        %v7430 = vadd.f32 0.0, %v7429
        %7431 = vdwg.mxu0
        %7432 = vmatpush.msra.mxu0 %v7140
        %7433 = vmatpush.msra.mxu0 %v7139
        %7434 = vmatpush.msra.mxu0 %v7138
        %7435 = vmatpush.msra.mxu0 %v7137
        %7436 = vmatpush.msra.mxu0 %v7136
        %7437 = vmatpush.msra.mxu0 %v7135
        %7438 = vmatpush.msra.mxu0 %v7134
        %7439 = vmatpush.msra.mxu0 %v7133
        %7440 = vmatpush.msra.mxu0 %v7132
        %7441 = vmatpush.msra.mxu0 %v7131
        %7442 = vmatpush.msra.mxu0 %v7130
        %7443 = vmatpush.msra.mxu0 %v7129
        %7444 = vmatpush.msra.mxu0 %v7128
        %7445 = vmatpush.msra.mxu0 %v7127
        %7446 = vmatpush.msra.mxu0 %v7126
        %7447 = vmatpush.msra.mxu0 %v7125
        %7448 = vmatmul.f32.gmra.mxu0 %v7071
        %v7449 = vpop.f32.mrf.mxu0
        %v7450 = vadd.f32 %v7337, %v7449
        %7451 = vmatmul.f32.gmra.mxu0 %v7072
        %v7452 = vpop.f32.mrf.mxu0
        %v7453 = vadd.f32 %v7340, %v7452
        %7454 = vmatmul.f32.gmra.mxu0 %v7074
        %v7455 = vpop.f32.mrf.mxu0
        %v7456 = vadd.f32 %v7343, %v7455
        %7457 = vmatmul.f32.gmra.mxu0 %v7075
        %v7458 = vpop.f32.mrf.mxu0
        %v7459 = vadd.f32 %v7346, %v7458
        %7460 = vmatmul.f32.gmra.mxu0 %v7077
        %v7461 = vpop.f32.mrf.mxu0
        %v7462 = vadd.f32 %v7349, %v7461
        %7463 = vmatmul.f32.gmra.mxu0 %v7078
        %v7464 = vpop.f32.mrf.mxu0
        %v7465 = vadd.f32 %v7352, %v7464
        %7466 = vmatmul.f32.gmra.mxu0 %v7080
        %v7467 = vpop.f32.mrf.mxu0
        %v7468 = vadd.f32 %v7355, %v7467
        %7469 = vmatmul.f32.gmra.mxu0 %v7081
        %v7470 = vpop.f32.mrf.mxu0
        %v7471 = vadd.f32 %v7358, %v7470
        %7472 = vmatmul.f32.gmra.mxu0 %v7083
        %v7473 = vpop.f32.mrf.mxu0
        %v7474 = vadd.f32 %v7361, %v7473
        %7475 = vmatmul.f32.gmra.mxu0 %v7084
        %v7476 = vpop.f32.mrf.mxu0
        %v7477 = vadd.f32 %v7364, %v7476
        %7478 = vmatmul.f32.gmra.mxu0 %v7086
        %v7479 = vpop.f32.mrf.mxu0
        %v7480 = vadd.f32 %v7367, %v7479
        %7481 = vmatmul.f32.gmra.mxu0 %v7087
        %v7482 = vpop.f32.mrf.mxu0
        %v7483 = vadd.f32 %v7370, %v7482
        %7484 = vmatmul.f32.gmra.mxu0 %v7089
        %v7485 = vpop.f32.mrf.mxu0
        %v7486 = vadd.f32 %v7373, %v7485
        %7487 = vmatmul.f32.gmra.mxu0 %v7090
        %v7488 = vpop.f32.mrf.mxu0
        %v7489 = vadd.f32 %v7376, %v7488
        %7490 = vmatmul.f32.gmra.mxu0 %v7092
        %v7491 = vpop.f32.mrf.mxu0
        %v7492 = vadd.f32 %v7379, %v7491
        %7493 = vmatmul.f32.gmra.mxu0 %v7093
        %v7494 = vpop.f32.mrf.mxu0
        %v7495 = vadd.f32 %v7382, %v7494
        %7496 = vmatmul.f32.gmra.mxu0 %v7095
        %v7497 = vpop.f32.mrf.mxu0
        %v7498 = vadd.f32 %v7385, %v7497
        %7499 = vmatmul.f32.gmra.mxu0 %v7096
        %v7500 = vpop.f32.mrf.mxu0
        %v7501 = vadd.f32 %v7388, %v7500
        %7502 = vmatmul.f32.gmra.mxu0 %v7098
        %v7503 = vpop.f32.mrf.mxu0
        %v7504 = vadd.f32 %v7391, %v7503
        %7505 = vmatmul.f32.gmra.mxu0 %v7099
        %v7506 = vpop.f32.mrf.mxu0
        %v7507 = vadd.f32 %v7394, %v7506
        %7508 = vmatmul.f32.gmra.mxu0 %v7101
        %v7509 = vpop.f32.mrf.mxu0
        %v7510 = vadd.f32 %v7397, %v7509
        %7511 = vmatmul.f32.gmra.mxu0 %v7102
        %v7512 = vpop.f32.mrf.mxu0
        %v7513 = vadd.f32 %v7400, %v7512
        %7514 = vmatmul.f32.gmra.mxu0 %v7104
        %v7515 = vpop.f32.mrf.mxu0
        %v7516 = vadd.f32 %v7403, %v7515
        %7517 = vmatmul.f32.gmra.mxu0 %v7105
        %v7518 = vpop.f32.mrf.mxu0
        %v7519 = vadd.f32 %v7406, %v7518
        %7520 = vmatmul.f32.gmra.mxu0 %v7107
        %v7521 = vpop.f32.mrf.mxu0
        %v7522 = vadd.f32 %v7409, %v7521
        %7523 = vmatmul.f32.gmra.mxu0 %v7108
        %v7524 = vpop.f32.mrf.mxu0
        %v7525 = vadd.f32 %v7412, %v7524
        %7526 = vmatmul.f32.gmra.mxu0 %v7110
        %v7527 = vpop.f32.mrf.mxu0
        %v7528 = vadd.f32 %v7415, %v7527
        %7529 = vmatmul.f32.gmra.mxu0 %v7111
        %v7530 = vpop.f32.mrf.mxu0
        %v7531 = vadd.f32 %v7418, %v7530
        %7532 = vmatmul.f32.gmra.mxu0 %v7113
        %v7533 = vpop.f32.mrf.mxu0
        %v7534 = vadd.f32 %v7421, %v7533
        %7535 = vmatmul.f32.gmra.mxu0 %v7114
        %v7536 = vpop.f32.mrf.mxu0
        %v7537 = vadd.f32 %v7424, %v7536
        %7538 = vmatmul.f32.gmra.mxu0 %v7116
        %v7539 = vpop.f32.mrf.mxu0
        %v7540 = vadd.f32 %v7427, %v7539
        %7541 = vmatmul.f32.gmra.mxu0 %v7117
        %v7542 = vpop.f32.mrf.mxu0
        %v7543 = vadd.f32 %v7430, %v7542
        %7544 = vdwg.mxu0
        %vm7545 = vcmask 1045504
        %v7546 = vrot.slane %v7071, 2
        %v7547 = vrot.slane %v7072, 2
        %v7548 = vsel %vm7545, %v7546, %v7547
        %v7549 = vrot.slane %v7073, 2
        %v7550 = vsel %vm7545, %v7547, %v7549
        %v7551 = vrot.slane %v7074, 2
        %v7552 = vrot.slane %v7075, 2
        %v7553 = vsel %vm7545, %v7551, %v7552
        %v7554 = vrot.slane %v7076, 2
        %v7555 = vsel %vm7545, %v7552, %v7554
        %v7556 = vrot.slane %v7077, 2
        %v7557 = vrot.slane %v7078, 2
        %v7558 = vsel %vm7545, %v7556, %v7557
        %v7559 = vrot.slane %v7079, 2
        %v7560 = vsel %vm7545, %v7557, %v7559
        %v7561 = vrot.slane %v7080, 2
        %v7562 = vrot.slane %v7081, 2
        %v7563 = vsel %vm7545, %v7561, %v7562
        %v7564 = vrot.slane %v7082, 2
        %v7565 = vsel %vm7545, %v7562, %v7564
        %v7566 = vrot.slane %v7083, 2
        %v7567 = vrot.slane %v7084, 2
        %v7568 = vsel %vm7545, %v7566, %v7567
        %v7569 = vrot.slane %v7085, 2
        %v7570 = vsel %vm7545, %v7567, %v7569
        %v7571 = vrot.slane %v7086, 2
        %v7572 = vrot.slane %v7087, 2
        %v7573 = vsel %vm7545, %v7571, %v7572
        %v7574 = vrot.slane %v7088, 2
        %v7575 = vsel %vm7545, %v7572, %v7574
        %v7576 = vrot.slane %v7089, 2
        %v7577 = vrot.slane %v7090, 2
        %v7578 = vsel %vm7545, %v7576, %v7577
        %v7579 = vrot.slane %v7091, 2
        %v7580 = vsel %vm7545, %v7577, %v7579
        %v7581 = vrot.slane %v7092, 2
        %v7582 = vrot.slane %v7093, 2
        %v7583 = vsel %vm7545, %v7581, %v7582
        %v7584 = vrot.slane %v7094, 2
        %v7585 = vsel %vm7545, %v7582, %v7584
        %v7586 = vrot.slane %v7095, 2
        %v7587 = vrot.slane %v7096, 2
        %v7588 = vsel %vm7545, %v7586, %v7587
        %v7589 = vrot.slane %v7097, 2
        %v7590 = vsel %vm7545, %v7587, %v7589
        %v7591 = vrot.slane %v7098, 2
        %v7592 = vrot.slane %v7099, 2
        %v7593 = vsel %vm7545, %v7591, %v7592
        %v7594 = vrot.slane %v7100, 2
        %v7595 = vsel %vm7545, %v7592, %v7594
        %v7596 = vrot.slane %v7101, 2
        %v7597 = vrot.slane %v7102, 2
        %v7598 = vsel %vm7545, %v7596, %v7597
        %v7599 = vrot.slane %v7103, 2
        %v7600 = vsel %vm7545, %v7597, %v7599
        %v7601 = vrot.slane %v7104, 2
        %v7602 = vrot.slane %v7105, 2
        %v7603 = vsel %vm7545, %v7601, %v7602
        %v7604 = vrot.slane %v7106, 2
        %v7605 = vsel %vm7545, %v7602, %v7604
        %v7606 = vrot.slane %v7107, 2
        %v7607 = vrot.slane %v7108, 2
        %v7608 = vsel %vm7545, %v7606, %v7607
        %v7609 = vrot.slane %v7109, 2
        %v7610 = vsel %vm7545, %v7607, %v7609
        %v7611 = vrot.slane %v7110, 2
        %v7612 = vrot.slane %v7111, 2
        %v7613 = vsel %vm7545, %v7611, %v7612
        %v7614 = vrot.slane %v7112, 2
        %v7615 = vsel %vm7545, %v7612, %v7614
        %v7616 = vrot.slane %v7113, 2
        %v7617 = vrot.slane %v7114, 2
        %v7618 = vsel %vm7545, %v7616, %v7617
        %v7619 = vrot.slane %v7115, 2
        %v7620 = vsel %vm7545, %v7617, %v7619
        %v7621 = vrot.slane %v7116, 2
        %v7622 = vrot.slane %v7117, 2
        %v7623 = vsel %vm7545, %v7621, %v7622
        %v7624 = vrot.slane %v7118, 2
        %v7625 = vsel %vm7545, %v7622, %v7624
        %s7658 = scalar_lea.vmem [#allocation2], 256
        %v7659 = vld [vmem:[%s7658] sm:$0xff]
        %v7660 = vld [vmem:[%s7658 + $0x8] sm:$0xff]
        %v7661 = vld [vmem:[%s7658 + $0x10] sm:$0xff]
        %v7662 = vld [vmem:[%s7658 + $0x18] sm:$0xff]
        %v7663 = vld [vmem:[%s7658 + $0x20] sm:$0xff]
        %v7664 = vld [vmem:[%s7658 + $0x28] sm:$0xff]
        %v7665 = vld [vmem:[%s7658 + $0x30] sm:$0xff]
        %v7666 = vld [vmem:[%s7658 + $0x38] sm:$0xff]
        %v7667 = vld [vmem:[%s7658 + $0x40] sm:$0xff]
        %v7668 = vld [vmem:[%s7658 + $0x48] sm:$0xff]
        %v7669 = vld [vmem:[%s7658 + $0x50] sm:$0xff]
        %v7670 = vld [vmem:[%s7658 + $0x58] sm:$0xff]
        %v7671 = vld [vmem:[%s7658 + $0x60] sm:$0xff]
        %v7672 = vld [vmem:[%s7658 + $0x68] sm:$0xff]
        %v7673 = vld [vmem:[%s7658 + $0x70] sm:$0xff]
        %v7674 = vld [vmem:[%s7658 + $0x78] sm:$0xff]
        %7675 = vmatpush.msra.mxu0 %v7674
        %7676 = vmatpush.msra.mxu0 %v7673
        %7677 = vmatpush.msra.mxu0 %v7672
        %7678 = vmatpush.msra.mxu0 %v7671
        %7679 = vmatpush.msra.mxu0 %v7670
        %7680 = vmatpush.msra.mxu0 %v7669
        %7681 = vmatpush.msra.mxu0 %v7668
        %7682 = vmatpush.msra.mxu0 %v7667
        %7683 = vmatpush.msra.mxu0 %v7666
        %7684 = vmatpush.msra.mxu0 %v7665
        %7685 = vmatpush.msra.mxu0 %v7664
        %7686 = vmatpush.msra.mxu0 %v7663
        %7687 = vmatpush.msra.mxu0 %v7662
        %7688 = vmatpush.msra.mxu0 %v7661
        %7689 = vmatpush.msra.mxu0 %v7660
        %7690 = vmatpush.msra.mxu0 %v7659
        %7691 = vmatmul.f32.gmra.mxu0 %v7548
        %v7692 = vpop.f32.mrf.mxu0
        %v7693 = vadd.f32 0.0, %v7692
        %7694 = vmatmul.f32.gmra.mxu0 %v7550
        %v7695 = vpop.f32.mrf.mxu0
        %v7696 = vadd.f32 0.0, %v7695
        %7697 = vmatmul.f32.gmra.mxu0 %v7553
        %v7698 = vpop.f32.mrf.mxu0
        %v7699 = vadd.f32 0.0, %v7698
        %7700 = vmatmul.f32.gmra.mxu0 %v7555
        %v7701 = vpop.f32.mrf.mxu0
        %v7702 = vadd.f32 0.0, %v7701
        %7703 = vmatmul.f32.gmra.mxu0 %v7558
        %v7704 = vpop.f32.mrf.mxu0
        %v7705 = vadd.f32 0.0, %v7704
        %7706 = vmatmul.f32.gmra.mxu0 %v7560
        %v7707 = vpop.f32.mrf.mxu0
        %v7708 = vadd.f32 0.0, %v7707
        %7709 = vmatmul.f32.gmra.mxu0 %v7563
        %v7710 = vpop.f32.mrf.mxu0
        %v7711 = vadd.f32 0.0, %v7710
        %7712 = vmatmul.f32.gmra.mxu0 %v7565
        %v7713 = vpop.f32.mrf.mxu0
        %v7714 = vadd.f32 0.0, %v7713
        %7715 = vmatmul.f32.gmra.mxu0 %v7568
        %v7716 = vpop.f32.mrf.mxu0
        %v7717 = vadd.f32 0.0, %v7716
        %7718 = vmatmul.f32.gmra.mxu0 %v7570
        %v7719 = vpop.f32.mrf.mxu0
        %v7720 = vadd.f32 0.0, %v7719
        %7721 = vmatmul.f32.gmra.mxu0 %v7573
        %v7722 = vpop.f32.mrf.mxu0
        %v7723 = vadd.f32 0.0, %v7722
        %7724 = vmatmul.f32.gmra.mxu0 %v7575
        %v7725 = vpop.f32.mrf.mxu0
        %v7726 = vadd.f32 0.0, %v7725
        %7727 = vmatmul.f32.gmra.mxu0 %v7578
        %v7728 = vpop.f32.mrf.mxu0
        %v7729 = vadd.f32 0.0, %v7728
        %7730 = vmatmul.f32.gmra.mxu0 %v7580
        %v7731 = vpop.f32.mrf.mxu0
        %v7732 = vadd.f32 0.0, %v7731
        %7733 = vmatmul.f32.gmra.mxu0 %v7583
        %v7734 = vpop.f32.mrf.mxu0
        %v7735 = vadd.f32 0.0, %v7734
        %7736 = vmatmul.f32.gmra.mxu0 %v7585
        %v7737 = vpop.f32.mrf.mxu0
        %v7738 = vadd.f32 0.0, %v7737
        %7739 = vmatmul.f32.gmra.mxu0 %v7588
        %v7740 = vpop.f32.mrf.mxu0
        %v7741 = vadd.f32 0.0, %v7740
        %7742 = vmatmul.f32.gmra.mxu0 %v7590
        %v7743 = vpop.f32.mrf.mxu0
        %v7744 = vadd.f32 0.0, %v7743
        %7745 = vmatmul.f32.gmra.mxu0 %v7593
        %v7746 = vpop.f32.mrf.mxu0
        %v7747 = vadd.f32 0.0, %v7746
        %7748 = vmatmul.f32.gmra.mxu0 %v7595
        %v7749 = vpop.f32.mrf.mxu0
        %v7750 = vadd.f32 0.0, %v7749
        %7751 = vmatmul.f32.gmra.mxu0 %v7598
        %v7752 = vpop.f32.mrf.mxu0
        %v7753 = vadd.f32 0.0, %v7752
        %7754 = vmatmul.f32.gmra.mxu0 %v7600
        %v7755 = vpop.f32.mrf.mxu0
        %v7756 = vadd.f32 0.0, %v7755
        %7757 = vmatmul.f32.gmra.mxu0 %v7603
        %v7758 = vpop.f32.mrf.mxu0
        %v7759 = vadd.f32 0.0, %v7758
        %7760 = vmatmul.f32.gmra.mxu0 %v7605
        %v7761 = vpop.f32.mrf.mxu0
        %v7762 = vadd.f32 0.0, %v7761
        %7763 = vmatmul.f32.gmra.mxu0 %v7608
        %v7764 = vpop.f32.mrf.mxu0
        %v7765 = vadd.f32 0.0, %v7764
        %7766 = vmatmul.f32.gmra.mxu0 %v7610
        %v7767 = vpop.f32.mrf.mxu0
        %v7768 = vadd.f32 0.0, %v7767
        %7769 = vmatmul.f32.gmra.mxu0 %v7613
        %v7770 = vpop.f32.mrf.mxu0
        %v7771 = vadd.f32 0.0, %v7770
        %7772 = vmatmul.f32.gmra.mxu0 %v7615
        %v7773 = vpop.f32.mrf.mxu0
        %v7774 = vadd.f32 0.0, %v7773
        %7775 = vmatmul.f32.gmra.mxu0 %v7618
        %v7776 = vpop.f32.mrf.mxu0
        %v7777 = vadd.f32 0.0, %v7776
        %7778 = vmatmul.f32.gmra.mxu0 %v7620
        %v7779 = vpop.f32.mrf.mxu0
        %v7780 = vadd.f32 0.0, %v7779
        %7781 = vmatmul.f32.gmra.mxu0 %v7623
        %v7782 = vpop.f32.mrf.mxu0
        %v7783 = vadd.f32 0.0, %v7782
        %7784 = vmatmul.f32.gmra.mxu0 %v7625
        %v7785 = vpop.f32.mrf.mxu0
        %v7786 = vadd.f32 0.0, %v7785
        %7787 = vdwg.mxu0
        %v7788 = vadd.f32 %v7450, %v7693
        %v7789 = vadd.f32 %v7453, %v7696
        %v7790 = vadd.f32 %v7456, %v7699
        %v7791 = vadd.f32 %v7459, %v7702
        %v7792 = vadd.f32 %v7462, %v7705
        %v7793 = vadd.f32 %v7465, %v7708
        %v7794 = vadd.f32 %v7468, %v7711
        %v7795 = vadd.f32 %v7471, %v7714
        %v7796 = vadd.f32 %v7474, %v7717
        %v7797 = vadd.f32 %v7477, %v7720
        %v7798 = vadd.f32 %v7480, %v7723
        %v7799 = vadd.f32 %v7483, %v7726
        %v7800 = vadd.f32 %v7486, %v7729
        %v7801 = vadd.f32 %v7489, %v7732
        %v7802 = vadd.f32 %v7492, %v7735
        %v7803 = vadd.f32 %v7495, %v7738
        %v7804 = vadd.f32 %v7498, %v7741
        %v7805 = vadd.f32 %v7501, %v7744
        %v7806 = vadd.f32 %v7504, %v7747
        %v7807 = vadd.f32 %v7507, %v7750
        %v7808 = vadd.f32 %v7510, %v7753
        %v7809 = vadd.f32 %v7513, %v7756
        %v7810 = vadd.f32 %v7516, %v7759
        %v7811 = vadd.f32 %v7519, %v7762
        %v7812 = vadd.f32 %v7522, %v7765
        %v7813 = vadd.f32 %v7525, %v7768
        %v7814 = vadd.f32 %v7528, %v7771
        %v7815 = vadd.f32 %v7531, %v7774
        %v7816 = vadd.f32 %v7534, %v7777
        %v7817 = vadd.f32 %v7537, %v7780
        %v7818 = vadd.f32 %v7540, %v7783
        %v7819 = vadd.f32 %v7543, %v7786
        %s7820 = scalar_lea.vmem [#allocation2], 384
        %v7821 = vld [vmem:[%s7820] sm:$0xff]
        %v7822 = vld [vmem:[%s7820 + $0x8] sm:$0xff]
        %v7823 = vld [vmem:[%s7820 + $0x10] sm:$0xff]
        %v7824 = vld [vmem:[%s7820 + $0x18] sm:$0xff]
        %v7825 = vld [vmem:[%s7820 + $0x20] sm:$0xff]
        %v7826 = vld [vmem:[%s7820 + $0x28] sm:$0xff]
        %v7827 = vld [vmem:[%s7820 + $0x30] sm:$0xff]
        %v7828 = vld [vmem:[%s7820 + $0x38] sm:$0xff]
        %v7829 = vld [vmem:[%s7820 + $0x40] sm:$0xff]
        %v7830 = vld [vmem:[%s7820 + $0x48] sm:$0xff]
        %v7831 = vld [vmem:[%s7820 + $0x50] sm:$0xff]
        %v7832 = vld [vmem:[%s7820 + $0x58] sm:$0xff]
        %v7833 = vld [vmem:[%s7820 + $0x60] sm:$0xff]
        %v7834 = vld [vmem:[%s7820 + $0x68] sm:$0xff]
        %v7835 = vld [vmem:[%s7820 + $0x70] sm:$0xff]
        %v7836 = vld [vmem:[%s7820 + $0x78] sm:$0xff]
        %7837 = vmatpush.msra.mxu0 %v7836
        %7838 = vmatpush.msra.mxu0 %v7835
        %7839 = vmatpush.msra.mxu0 %v7834
        %7840 = vmatpush.msra.mxu0 %v7833
        %7841 = vmatpush.msra.mxu0 %v7832
        %7842 = vmatpush.msra.mxu0 %v7831
        %7843 = vmatpush.msra.mxu0 %v7830
        %7844 = vmatpush.msra.mxu0 %v7829
        %7845 = vmatpush.msra.mxu0 %v7828
        %7846 = vmatpush.msra.mxu0 %v7827
        %7847 = vmatpush.msra.mxu0 %v7826
        %7848 = vmatpush.msra.mxu0 %v7825
        %7849 = vmatpush.msra.mxu0 %v7824
        %7850 = vmatpush.msra.mxu0 %v7823
        %7851 = vmatpush.msra.mxu0 %v7822
        %7852 = vmatpush.msra.mxu0 %v7821
        %7853 = vmatmul.f32.gmra.mxu0 %v7074
        %v7854 = vpop.f32.mrf.mxu0
        %v7855 = vadd.f32 0.0, %v7854
        %7856 = vmatmul.f32.gmra.mxu0 %v7075
        %v7857 = vpop.f32.mrf.mxu0
        %v7858 = vadd.f32 0.0, %v7857
        %7859 = vmatmul.f32.gmra.mxu0 %v7077
        %v7860 = vpop.f32.mrf.mxu0
        %v7861 = vadd.f32 0.0, %v7860
        %7862 = vmatmul.f32.gmra.mxu0 %v7078
        %v7863 = vpop.f32.mrf.mxu0
        %v7864 = vadd.f32 0.0, %v7863
        %7865 = vmatmul.f32.gmra.mxu0 %v7080
        %v7866 = vpop.f32.mrf.mxu0
        %v7867 = vadd.f32 0.0, %v7866
        %7868 = vmatmul.f32.gmra.mxu0 %v7081
        %v7869 = vpop.f32.mrf.mxu0
        %v7870 = vadd.f32 0.0, %v7869
        %7871 = vmatmul.f32.gmra.mxu0 %v7083
        %v7872 = vpop.f32.mrf.mxu0
        %v7873 = vadd.f32 0.0, %v7872
        %7874 = vmatmul.f32.gmra.mxu0 %v7084
        %v7875 = vpop.f32.mrf.mxu0
        %v7876 = vadd.f32 0.0, %v7875
        %7877 = vmatmul.f32.gmra.mxu0 %v7086
        %v7878 = vpop.f32.mrf.mxu0
        %v7879 = vadd.f32 0.0, %v7878
        %7880 = vmatmul.f32.gmra.mxu0 %v7087
        %v7881 = vpop.f32.mrf.mxu0
        %v7882 = vadd.f32 0.0, %v7881
        %7883 = vmatmul.f32.gmra.mxu0 %v7089
        %v7884 = vpop.f32.mrf.mxu0
        %v7885 = vadd.f32 0.0, %v7884
        %7886 = vmatmul.f32.gmra.mxu0 %v7090
        %v7887 = vpop.f32.mrf.mxu0
        %v7888 = vadd.f32 0.0, %v7887
        %7889 = vmatmul.f32.gmra.mxu0 %v7092
        %v7890 = vpop.f32.mrf.mxu0
        %v7891 = vadd.f32 0.0, %v7890
        %7892 = vmatmul.f32.gmra.mxu0 %v7093
        %v7893 = vpop.f32.mrf.mxu0
        %v7894 = vadd.f32 0.0, %v7893
        %7895 = vmatmul.f32.gmra.mxu0 %v7095
        %v7896 = vpop.f32.mrf.mxu0
        %v7897 = vadd.f32 0.0, %v7896
        %7898 = vmatmul.f32.gmra.mxu0 %v7096
        %v7899 = vpop.f32.mrf.mxu0
        %v7900 = vadd.f32 0.0, %v7899
        %7901 = vmatmul.f32.gmra.mxu0 %v7098
        %v7902 = vpop.f32.mrf.mxu0
        %v7903 = vadd.f32 0.0, %v7902
        %7904 = vmatmul.f32.gmra.mxu0 %v7099
        %v7905 = vpop.f32.mrf.mxu0
        %v7906 = vadd.f32 0.0, %v7905
        %7907 = vmatmul.f32.gmra.mxu0 %v7101
        %v7908 = vpop.f32.mrf.mxu0
        %v7909 = vadd.f32 0.0, %v7908
        %7910 = vmatmul.f32.gmra.mxu0 %v7102
        %v7911 = vpop.f32.mrf.mxu0
        %v7912 = vadd.f32 0.0, %v7911
        %7913 = vmatmul.f32.gmra.mxu0 %v7104
        %v7914 = vpop.f32.mrf.mxu0
        %v7915 = vadd.f32 0.0, %v7914
        %7916 = vmatmul.f32.gmra.mxu0 %v7105
        %v7917 = vpop.f32.mrf.mxu0
        %v7918 = vadd.f32 0.0, %v7917
        %7919 = vmatmul.f32.gmra.mxu0 %v7107
        %v7920 = vpop.f32.mrf.mxu0
        %v7921 = vadd.f32 0.0, %v7920
        %7922 = vmatmul.f32.gmra.mxu0 %v7108
        %v7923 = vpop.f32.mrf.mxu0
        %v7924 = vadd.f32 0.0, %v7923
        %7925 = vmatmul.f32.gmra.mxu0 %v7110
        %v7926 = vpop.f32.mrf.mxu0
        %v7927 = vadd.f32 0.0, %v7926
        %7928 = vmatmul.f32.gmra.mxu0 %v7111
        %v7929 = vpop.f32.mrf.mxu0
        %v7930 = vadd.f32 0.0, %v7929
        %7931 = vmatmul.f32.gmra.mxu0 %v7113
        %v7932 = vpop.f32.mrf.mxu0
        %v7933 = vadd.f32 0.0, %v7932
        %7934 = vmatmul.f32.gmra.mxu0 %v7114
        %v7935 = vpop.f32.mrf.mxu0
        %v7936 = vadd.f32 0.0, %v7935
        %7937 = vmatmul.f32.gmra.mxu0 %v7116
        %v7938 = vpop.f32.mrf.mxu0
        %v7939 = vadd.f32 0.0, %v7938
        %7940 = vmatmul.f32.gmra.mxu0 %v7117
        %v7941 = vpop.f32.mrf.mxu0
        %v7942 = vadd.f32 0.0, %v7941
        %7943 = vmatmul.f32.gmra.mxu0 %v7119
        %v7944 = vpop.f32.mrf.mxu0
        %v7945 = vadd.f32 0.0, %v7944
        %7946 = vmatmul.f32.gmra.mxu0 %v7120
        %v7947 = vpop.f32.mrf.mxu0
        %v7948 = vadd.f32 0.0, %v7947
        %7949 = vdwg.mxu0
        %v7950 = vadd.f32 %v7788, %v7855
        %v7951 = vadd.f32 %v7789, %v7858
        %v7952 = vadd.f32 %v7790, %v7861
        %v7953 = vadd.f32 %v7791, %v7864
        %v7954 = vadd.f32 %v7792, %v7867
        %v7955 = vadd.f32 %v7793, %v7870
        %v7956 = vadd.f32 %v7794, %v7873
        %v7957 = vadd.f32 %v7795, %v7876
        %v7958 = vadd.f32 %v7796, %v7879
        %v7959 = vadd.f32 %v7797, %v7882
        %v7960 = vadd.f32 %v7798, %v7885
        %v7961 = vadd.f32 %v7799, %v7888
        %v7962 = vadd.f32 %v7800, %v7891
        %v7963 = vadd.f32 %v7801, %v7894
        %v7964 = vadd.f32 %v7802, %v7897
        %v7965 = vadd.f32 %v7803, %v7900
        %v7966 = vadd.f32 %v7804, %v7903
        %v7967 = vadd.f32 %v7805, %v7906
        %v7968 = vadd.f32 %v7806, %v7909
        %v7969 = vadd.f32 %v7807, %v7912
        %v7970 = vadd.f32 %v7808, %v7915
        %v7971 = vadd.f32 %v7809, %v7918
        %v7972 = vadd.f32 %v7810, %v7921
        %v7973 = vadd.f32 %v7811, %v7924
        %v7974 = vadd.f32 %v7812, %v7927
        %v7975 = vadd.f32 %v7813, %v7930
        %v7976 = vadd.f32 %v7814, %v7933
        %v7977 = vadd.f32 %v7815, %v7936
        %v7978 = vadd.f32 %v7816, %v7939
        %v7979 = vadd.f32 %v7817, %v7942
        %v7980 = vadd.f32 %v7818, %v7945
        %v7981 = vadd.f32 %v7819, %v7948
        %v7985 = vrot.slane %v7119, 1
        %v7986 = vrot.slane %v7120, 1
        %v7987 = vsel %vm7189, %v7985, %v7986
        %v7988 = vrot.slane %v7121, 1
        %v7989 = vsel %vm7189, %v7986, %v7988
        %s7992 = scalar_lea.vmem [#allocation2], 512
        %v7993 = vld [vmem:[%s7992] sm:$0xff]
        %v7994 = vld [vmem:[%s7992 + $0x8] sm:$0xff]
        %v7995 = vld [vmem:[%s7992 + $0x10] sm:$0xff]
        %v7996 = vld [vmem:[%s7992 + $0x18] sm:$0xff]
        %v7997 = vld [vmem:[%s7992 + $0x20] sm:$0xff]
        %v7998 = vld [vmem:[%s7992 + $0x28] sm:$0xff]
        %v7999 = vld [vmem:[%s7992 + $0x30] sm:$0xff]
        %v8000 = vld [vmem:[%s7992 + $0x38] sm:$0xff]
        %v8001 = vld [vmem:[%s7992 + $0x40] sm:$0xff]
        %v8002 = vld [vmem:[%s7992 + $0x48] sm:$0xff]
        %v8003 = vld [vmem:[%s7992 + $0x50] sm:$0xff]
        %v8004 = vld [vmem:[%s7992 + $0x58] sm:$0xff]
        %v8005 = vld [vmem:[%s7992 + $0x60] sm:$0xff]
        %v8006 = vld [vmem:[%s7992 + $0x68] sm:$0xff]
        %v8007 = vld [vmem:[%s7992 + $0x70] sm:$0xff]
        %v8008 = vld [vmem:[%s7992 + $0x78] sm:$0xff]
        %8009 = vmatpush.msra.mxu0 %v8008
        %8010 = vmatpush.msra.mxu0 %v8007
        %8011 = vmatpush.msra.mxu0 %v8006
        %8012 = vmatpush.msra.mxu0 %v8005
        %8013 = vmatpush.msra.mxu0 %v8004
        %8014 = vmatpush.msra.mxu0 %v8003
        %8015 = vmatpush.msra.mxu0 %v8002
        %8016 = vmatpush.msra.mxu0 %v8001
        %8017 = vmatpush.msra.mxu0 %v8000
        %8018 = vmatpush.msra.mxu0 %v7999
        %8019 = vmatpush.msra.mxu0 %v7998
        %8020 = vmatpush.msra.mxu0 %v7997
        %8021 = vmatpush.msra.mxu0 %v7996
        %8022 = vmatpush.msra.mxu0 %v7995
        %8023 = vmatpush.msra.mxu0 %v7994
        %8024 = vmatpush.msra.mxu0 %v7993
        %8025 = vmatmul.f32.gmra.mxu0 %v7197
        %v8026 = vpop.f32.mrf.mxu0
        %v8027 = vadd.f32 0.0, %v8026
        %8028 = vmatmul.f32.gmra.mxu0 %v7199
        %v8029 = vpop.f32.mrf.mxu0
        %v8030 = vadd.f32 0.0, %v8029
        %8031 = vmatmul.f32.gmra.mxu0 %v7202
        %v8032 = vpop.f32.mrf.mxu0
        %v8033 = vadd.f32 0.0, %v8032
        %8034 = vmatmul.f32.gmra.mxu0 %v7204
        %v8035 = vpop.f32.mrf.mxu0
        %v8036 = vadd.f32 0.0, %v8035
        %8037 = vmatmul.f32.gmra.mxu0 %v7207
        %v8038 = vpop.f32.mrf.mxu0
        %v8039 = vadd.f32 0.0, %v8038
        %8040 = vmatmul.f32.gmra.mxu0 %v7209
        %v8041 = vpop.f32.mrf.mxu0
        %v8042 = vadd.f32 0.0, %v8041
        %8043 = vmatmul.f32.gmra.mxu0 %v7212
        %v8044 = vpop.f32.mrf.mxu0
        %v8045 = vadd.f32 0.0, %v8044
        %8046 = vmatmul.f32.gmra.mxu0 %v7214
        %v8047 = vpop.f32.mrf.mxu0
        %v8048 = vadd.f32 0.0, %v8047
        %8049 = vmatmul.f32.gmra.mxu0 %v7217
        %v8050 = vpop.f32.mrf.mxu0
        %v8051 = vadd.f32 0.0, %v8050
        %8052 = vmatmul.f32.gmra.mxu0 %v7219
        %v8053 = vpop.f32.mrf.mxu0
        %v8054 = vadd.f32 0.0, %v8053
        %8055 = vmatmul.f32.gmra.mxu0 %v7222
        %v8056 = vpop.f32.mrf.mxu0
        %v8057 = vadd.f32 0.0, %v8056
        %8058 = vmatmul.f32.gmra.mxu0 %v7224
        %v8059 = vpop.f32.mrf.mxu0
        %v8060 = vadd.f32 0.0, %v8059
        %8061 = vmatmul.f32.gmra.mxu0 %v7227
        %v8062 = vpop.f32.mrf.mxu0
        %v8063 = vadd.f32 0.0, %v8062
        %8064 = vmatmul.f32.gmra.mxu0 %v7229
        %v8065 = vpop.f32.mrf.mxu0
        %v8066 = vadd.f32 0.0, %v8065
        %8067 = vmatmul.f32.gmra.mxu0 %v7232
        %v8068 = vpop.f32.mrf.mxu0
        %v8069 = vadd.f32 0.0, %v8068
        %8070 = vmatmul.f32.gmra.mxu0 %v7234
        %v8071 = vpop.f32.mrf.mxu0
        %v8072 = vadd.f32 0.0, %v8071
        %8073 = vmatmul.f32.gmra.mxu0 %v7237
        %v8074 = vpop.f32.mrf.mxu0
        %v8075 = vadd.f32 0.0, %v8074
        %8076 = vmatmul.f32.gmra.mxu0 %v7239
        %v8077 = vpop.f32.mrf.mxu0
        %v8078 = vadd.f32 0.0, %v8077
        %8079 = vmatmul.f32.gmra.mxu0 %v7242
        %v8080 = vpop.f32.mrf.mxu0
        %v8081 = vadd.f32 0.0, %v8080
        %8082 = vmatmul.f32.gmra.mxu0 %v7244
        %v8083 = vpop.f32.mrf.mxu0
        %v8084 = vadd.f32 0.0, %v8083
        %8085 = vmatmul.f32.gmra.mxu0 %v7247
        %v8086 = vpop.f32.mrf.mxu0
        %v8087 = vadd.f32 0.0, %v8086
        %8088 = vmatmul.f32.gmra.mxu0 %v7249
        %v8089 = vpop.f32.mrf.mxu0
        %v8090 = vadd.f32 0.0, %v8089
        %8091 = vmatmul.f32.gmra.mxu0 %v7252
        %v8092 = vpop.f32.mrf.mxu0
        %v8093 = vadd.f32 0.0, %v8092
        %8094 = vmatmul.f32.gmra.mxu0 %v7254
        %v8095 = vpop.f32.mrf.mxu0
        %v8096 = vadd.f32 0.0, %v8095
        %8097 = vmatmul.f32.gmra.mxu0 %v7257
        %v8098 = vpop.f32.mrf.mxu0
        %v8099 = vadd.f32 0.0, %v8098
        %8100 = vmatmul.f32.gmra.mxu0 %v7259
        %v8101 = vpop.f32.mrf.mxu0
        %v8102 = vadd.f32 0.0, %v8101
        %8103 = vmatmul.f32.gmra.mxu0 %v7262
        %v8104 = vpop.f32.mrf.mxu0
        %v8105 = vadd.f32 0.0, %v8104
        %8106 = vmatmul.f32.gmra.mxu0 %v7264
        %v8107 = vpop.f32.mrf.mxu0
        %v8108 = vadd.f32 0.0, %v8107
        %8109 = vmatmul.f32.gmra.mxu0 %v7267
        %v8110 = vpop.f32.mrf.mxu0
        %v8111 = vadd.f32 0.0, %v8110
        %8112 = vmatmul.f32.gmra.mxu0 %v7269
        %v8113 = vpop.f32.mrf.mxu0
        %v8114 = vadd.f32 0.0, %v8113
        %8115 = vmatmul.f32.gmra.mxu0 %v7987
        %v8116 = vpop.f32.mrf.mxu0
        %v8117 = vadd.f32 0.0, %v8116
        %8118 = vmatmul.f32.gmra.mxu0 %v7989
        %v8119 = vpop.f32.mrf.mxu0
        %v8120 = vadd.f32 0.0, %v8119
        %8121 = vdwg.mxu0
        %v8122 = vadd.f32 %v7950, %v8027
        %v8123 = vadd.f32 %v7951, %v8030
        %v8124 = vadd.f32 %v7952, %v8033
        %v8125 = vadd.f32 %v7953, %v8036
        %v8126 = vadd.f32 %v7954, %v8039
        %v8127 = vadd.f32 %v7955, %v8042
        %v8128 = vadd.f32 %v7956, %v8045
        %v8129 = vadd.f32 %v7957, %v8048
        %v8130 = vadd.f32 %v7958, %v8051
        %v8131 = vadd.f32 %v7959, %v8054
        %v8132 = vadd.f32 %v7960, %v8057
        %v8133 = vadd.f32 %v7961, %v8060
        %v8134 = vadd.f32 %v7962, %v8063
        %v8135 = vadd.f32 %v7963, %v8066
        %v8136 = vadd.f32 %v7964, %v8069
        %v8137 = vadd.f32 %v7965, %v8072
        %v8138 = vadd.f32 %v7966, %v8075
        %v8139 = vadd.f32 %v7967, %v8078
        %v8140 = vadd.f32 %v7968, %v8081
        %v8141 = vadd.f32 %v7969, %v8084
        %v8142 = vadd.f32 %v7970, %v8087
        %v8143 = vadd.f32 %v7971, %v8090
        %v8144 = vadd.f32 %v7972, %v8093
        %v8145 = vadd.f32 %v7973, %v8096
        %v8146 = vadd.f32 %v7974, %v8099
        %v8147 = vadd.f32 %v7975, %v8102
        %v8148 = vadd.f32 %v7976, %v8105
        %v8149 = vadd.f32 %v7977, %v8108
        %v8150 = vadd.f32 %v7978, %v8111
        %v8151 = vadd.f32 %v7979, %v8114
        %v8152 = vadd.f32 %v7980, %v8117
        %v8153 = vadd.f32 %v7981, %v8120
        %v8154 = vrot.slane %v7119, 2
        %v8155 = vrot.slane %v7120, 2
        %v8156 = vsel %vm7545, %v8154, %v8155
        %v8157 = vrot.slane %v7121, 2
        %v8158 = vsel %vm7545, %v8155, %v8157
        %s8161 = scalar_lea.vmem [#allocation2], 640
        %v8162 = vld [vmem:[%s8161] sm:$0xff]
        %v8163 = vld [vmem:[%s8161 + $0x8] sm:$0xff]
        %v8164 = vld [vmem:[%s8161 + $0x10] sm:$0xff]
        %v8165 = vld [vmem:[%s8161 + $0x18] sm:$0xff]
        %v8166 = vld [vmem:[%s8161 + $0x20] sm:$0xff]
        %v8167 = vld [vmem:[%s8161 + $0x28] sm:$0xff]
        %v8168 = vld [vmem:[%s8161 + $0x30] sm:$0xff]
        %v8169 = vld [vmem:[%s8161 + $0x38] sm:$0xff]
        %v8170 = vld [vmem:[%s8161 + $0x40] sm:$0xff]
        %v8171 = vld [vmem:[%s8161 + $0x48] sm:$0xff]
        %v8172 = vld [vmem:[%s8161 + $0x50] sm:$0xff]
        %v8173 = vld [vmem:[%s8161 + $0x58] sm:$0xff]
        %v8174 = vld [vmem:[%s8161 + $0x60] sm:$0xff]
        %v8175 = vld [vmem:[%s8161 + $0x68] sm:$0xff]
        %v8176 = vld [vmem:[%s8161 + $0x70] sm:$0xff]
        %v8177 = vld [vmem:[%s8161 + $0x78] sm:$0xff]
        %8178 = vmatpush.msra.mxu0 %v8177
        %8179 = vmatpush.msra.mxu0 %v8176
        %8180 = vmatpush.msra.mxu0 %v8175
        %8181 = vmatpush.msra.mxu0 %v8174
        %8182 = vmatpush.msra.mxu0 %v8173
        %8183 = vmatpush.msra.mxu0 %v8172
        %8184 = vmatpush.msra.mxu0 %v8171
        %8185 = vmatpush.msra.mxu0 %v8170
        %8186 = vmatpush.msra.mxu0 %v8169
        %8187 = vmatpush.msra.mxu0 %v8168
        %8188 = vmatpush.msra.mxu0 %v8167
        %8189 = vmatpush.msra.mxu0 %v8166
        %8190 = vmatpush.msra.mxu0 %v8165
        %8191 = vmatpush.msra.mxu0 %v8164
        %8192 = vmatpush.msra.mxu0 %v8163
        %8193 = vmatpush.msra.mxu0 %v8162
        %8194 = vmatmul.f32.gmra.mxu0 %v7553
        %v8195 = vpop.f32.mrf.mxu0
        %v8196 = vadd.f32 0.0, %v8195
        %8197 = vmatmul.f32.gmra.mxu0 %v7555
        %v8198 = vpop.f32.mrf.mxu0
        %v8199 = vadd.f32 0.0, %v8198
        %8200 = vmatmul.f32.gmra.mxu0 %v7558
        %v8201 = vpop.f32.mrf.mxu0
        %v8202 = vadd.f32 0.0, %v8201
        %8203 = vmatmul.f32.gmra.mxu0 %v7560
        %v8204 = vpop.f32.mrf.mxu0
        %v8205 = vadd.f32 0.0, %v8204
        %8206 = vmatmul.f32.gmra.mxu0 %v7563
        %v8207 = vpop.f32.mrf.mxu0
        %v8208 = vadd.f32 0.0, %v8207
        %8209 = vmatmul.f32.gmra.mxu0 %v7565
        %v8210 = vpop.f32.mrf.mxu0
        %v8211 = vadd.f32 0.0, %v8210
        %8212 = vmatmul.f32.gmra.mxu0 %v7568
        %v8213 = vpop.f32.mrf.mxu0
        %v8214 = vadd.f32 0.0, %v8213
        %8215 = vmatmul.f32.gmra.mxu0 %v7570
        %v8216 = vpop.f32.mrf.mxu0
        %v8217 = vadd.f32 0.0, %v8216
        %8218 = vmatmul.f32.gmra.mxu0 %v7573
        %v8219 = vpop.f32.mrf.mxu0
        %v8220 = vadd.f32 0.0, %v8219
        %8221 = vmatmul.f32.gmra.mxu0 %v7575
        %v8222 = vpop.f32.mrf.mxu0
        %v8223 = vadd.f32 0.0, %v8222
        %8224 = vmatmul.f32.gmra.mxu0 %v7578
        %v8225 = vpop.f32.mrf.mxu0
        %v8226 = vadd.f32 0.0, %v8225
        %8227 = vmatmul.f32.gmra.mxu0 %v7580
        %v8228 = vpop.f32.mrf.mxu0
        %v8229 = vadd.f32 0.0, %v8228
        %8230 = vmatmul.f32.gmra.mxu0 %v7583
        %v8231 = vpop.f32.mrf.mxu0
        %v8232 = vadd.f32 0.0, %v8231
        %8233 = vmatmul.f32.gmra.mxu0 %v7585
        %v8234 = vpop.f32.mrf.mxu0
        %v8235 = vadd.f32 0.0, %v8234
        %8236 = vmatmul.f32.gmra.mxu0 %v7588
        %v8237 = vpop.f32.mrf.mxu0
        %v8238 = vadd.f32 0.0, %v8237
        %8239 = vmatmul.f32.gmra.mxu0 %v7590
        %v8240 = vpop.f32.mrf.mxu0
        %v8241 = vadd.f32 0.0, %v8240
        %8242 = vmatmul.f32.gmra.mxu0 %v7593
        %v8243 = vpop.f32.mrf.mxu0
        %v8244 = vadd.f32 0.0, %v8243
        %8245 = vmatmul.f32.gmra.mxu0 %v7595
        %v8246 = vpop.f32.mrf.mxu0
        %v8247 = vadd.f32 0.0, %v8246
        %8248 = vmatmul.f32.gmra.mxu0 %v7598
        %v8249 = vpop.f32.mrf.mxu0
        %v8250 = vadd.f32 0.0, %v8249
        %8251 = vmatmul.f32.gmra.mxu0 %v7600
        %v8252 = vpop.f32.mrf.mxu0
        %v8253 = vadd.f32 0.0, %v8252
        %8254 = vmatmul.f32.gmra.mxu0 %v7603
        %v8255 = vpop.f32.mrf.mxu0
        %v8256 = vadd.f32 0.0, %v8255
        %8257 = vmatmul.f32.gmra.mxu0 %v7605
        %v8258 = vpop.f32.mrf.mxu0
        %v8259 = vadd.f32 0.0, %v8258
        %8260 = vmatmul.f32.gmra.mxu0 %v7608
        %v8261 = vpop.f32.mrf.mxu0
        %v8262 = vadd.f32 0.0, %v8261
        %8263 = vmatmul.f32.gmra.mxu0 %v7610
        %v8264 = vpop.f32.mrf.mxu0
        %v8265 = vadd.f32 0.0, %v8264
        %8266 = vmatmul.f32.gmra.mxu0 %v7613
        %v8267 = vpop.f32.mrf.mxu0
        %v8268 = vadd.f32 0.0, %v8267
        %8269 = vmatmul.f32.gmra.mxu0 %v7615
        %v8270 = vpop.f32.mrf.mxu0
        %v8271 = vadd.f32 0.0, %v8270
        %8272 = vmatmul.f32.gmra.mxu0 %v7618
        %v8273 = vpop.f32.mrf.mxu0
        %v8274 = vadd.f32 0.0, %v8273
        %8275 = vmatmul.f32.gmra.mxu0 %v7620
        %v8276 = vpop.f32.mrf.mxu0
        %v8277 = vadd.f32 0.0, %v8276
        %8278 = vmatmul.f32.gmra.mxu0 %v7623
        %v8279 = vpop.f32.mrf.mxu0
        %v8280 = vadd.f32 0.0, %v8279
        %8281 = vmatmul.f32.gmra.mxu0 %v7625
        %v8282 = vpop.f32.mrf.mxu0
        %v8283 = vadd.f32 0.0, %v8282
        %8284 = vmatmul.f32.gmra.mxu0 %v8156
        %v8285 = vpop.f32.mrf.mxu0
        %v8286 = vadd.f32 0.0, %v8285
        %8287 = vmatmul.f32.gmra.mxu0 %v8158
        %v8288 = vpop.f32.mrf.mxu0
        %v8289 = vadd.f32 0.0, %v8288
        %8290 = vdwg.mxu0
        %v8291 = vadd.f32 %v8122, %v8196
        %v8292 = vadd.f32 %v8123, %v8199
        %v8293 = vadd.f32 %v8124, %v8202
        %v8294 = vadd.f32 %v8125, %v8205
        %v8295 = vadd.f32 %v8126, %v8208
        %v8296 = vadd.f32 %v8127, %v8211
        %v8297 = vadd.f32 %v8128, %v8214
        %v8298 = vadd.f32 %v8129, %v8217
        %v8299 = vadd.f32 %v8130, %v8220
        %v8300 = vadd.f32 %v8131, %v8223
        %v8301 = vadd.f32 %v8132, %v8226
        %v8302 = vadd.f32 %v8133, %v8229
        %v8303 = vadd.f32 %v8134, %v8232
        %v8304 = vadd.f32 %v8135, %v8235
        %v8305 = vadd.f32 %v8136, %v8238
        %v8306 = vadd.f32 %v8137, %v8241
        %v8307 = vadd.f32 %v8138, %v8244
        %v8308 = vadd.f32 %v8139, %v8247
        %v8309 = vadd.f32 %v8140, %v8250
        %v8310 = vadd.f32 %v8141, %v8253
        %v8311 = vadd.f32 %v8142, %v8256
        %v8312 = vadd.f32 %v8143, %v8259
        %v8313 = vadd.f32 %v8144, %v8262
        %v8314 = vadd.f32 %v8145, %v8265
        %v8315 = vadd.f32 %v8146, %v8268
        %v8316 = vadd.f32 %v8147, %v8271
        %v8317 = vadd.f32 %v8148, %v8274
        %v8318 = vadd.f32 %v8149, %v8277
        %v8319 = vadd.f32 %v8150, %v8280
        %v8320 = vadd.f32 %v8151, %v8283
        %v8321 = vadd.f32 %v8152, %v8286
        %v8322 = vadd.f32 %v8153, %v8289
        %s8323 = scalar_lea.vmem [#allocation2], 768
        %v8324 = vld [vmem:[%s8323] sm:$0xff]
        %v8325 = vld [vmem:[%s8323 + $0x8] sm:$0xff]
        %v8326 = vld [vmem:[%s8323 + $0x10] sm:$0xff]
        %v8327 = vld [vmem:[%s8323 + $0x18] sm:$0xff]
        %v8328 = vld [vmem:[%s8323 + $0x20] sm:$0xff]
        %v8329 = vld [vmem:[%s8323 + $0x28] sm:$0xff]
        %v8330 = vld [vmem:[%s8323 + $0x30] sm:$0xff]
        %v8331 = vld [vmem:[%s8323 + $0x38] sm:$0xff]
        %v8332 = vld [vmem:[%s8323 + $0x40] sm:$0xff]
        %v8333 = vld [vmem:[%s8323 + $0x48] sm:$0xff]
        %v8334 = vld [vmem:[%s8323 + $0x50] sm:$0xff]
        %v8335 = vld [vmem:[%s8323 + $0x58] sm:$0xff]
        %v8336 = vld [vmem:[%s8323 + $0x60] sm:$0xff]
        %v8337 = vld [vmem:[%s8323 + $0x68] sm:$0xff]
        %v8338 = vld [vmem:[%s8323 + $0x70] sm:$0xff]
        %v8339 = vld [vmem:[%s8323 + $0x78] sm:$0xff]
        %8340 = vmatpush.msra.mxu0 %v8339
        %8341 = vmatpush.msra.mxu0 %v8338
        %8342 = vmatpush.msra.mxu0 %v8337
        %8343 = vmatpush.msra.mxu0 %v8336
        %8344 = vmatpush.msra.mxu0 %v8335
        %8345 = vmatpush.msra.mxu0 %v8334
        %8346 = vmatpush.msra.mxu0 %v8333
        %8347 = vmatpush.msra.mxu0 %v8332
        %8348 = vmatpush.msra.mxu0 %v8331
        %8349 = vmatpush.msra.mxu0 %v8330
        %8350 = vmatpush.msra.mxu0 %v8329
        %8351 = vmatpush.msra.mxu0 %v8328
        %8352 = vmatpush.msra.mxu0 %v8327
        %8353 = vmatpush.msra.mxu0 %v8326
        %8354 = vmatpush.msra.mxu0 %v8325
        %8355 = vmatpush.msra.mxu0 %v8324
        %8356 = vmatmul.f32.gmra.mxu0 %v7077
        %v8357 = vpop.f32.mrf.mxu0
        %v8358 = vadd.f32 0.0, %v8357
        %8359 = vmatmul.f32.gmra.mxu0 %v7078
        %v8360 = vpop.f32.mrf.mxu0
        %v8361 = vadd.f32 0.0, %v8360
        %8362 = vmatmul.f32.gmra.mxu0 %v7080
        %v8363 = vpop.f32.mrf.mxu0
        %v8364 = vadd.f32 0.0, %v8363
        %8365 = vmatmul.f32.gmra.mxu0 %v7081
        %v8366 = vpop.f32.mrf.mxu0
        %v8367 = vadd.f32 0.0, %v8366
        %8368 = vmatmul.f32.gmra.mxu0 %v7083
        %v8369 = vpop.f32.mrf.mxu0
        %v8370 = vadd.f32 0.0, %v8369
        %8371 = vmatmul.f32.gmra.mxu0 %v7084
        %v8372 = vpop.f32.mrf.mxu0
        %v8373 = vadd.f32 0.0, %v8372
        %8374 = vmatmul.f32.gmra.mxu0 %v7086
        %v8375 = vpop.f32.mrf.mxu0
        %v8376 = vadd.f32 0.0, %v8375
        %8377 = vmatmul.f32.gmra.mxu0 %v7087
        %v8378 = vpop.f32.mrf.mxu0
        %v8379 = vadd.f32 0.0, %v8378
        %8380 = vmatmul.f32.gmra.mxu0 %v7089
        %v8381 = vpop.f32.mrf.mxu0
        %v8382 = vadd.f32 0.0, %v8381
        %8383 = vmatmul.f32.gmra.mxu0 %v7090
        %v8384 = vpop.f32.mrf.mxu0
        %v8385 = vadd.f32 0.0, %v8384
        %8386 = vmatmul.f32.gmra.mxu0 %v7092
        %v8387 = vpop.f32.mrf.mxu0
        %v8388 = vadd.f32 0.0, %v8387
        %8389 = vmatmul.f32.gmra.mxu0 %v7093
        %v8390 = vpop.f32.mrf.mxu0
        %v8391 = vadd.f32 0.0, %v8390
        %8392 = vmatmul.f32.gmra.mxu0 %v7095
        %v8393 = vpop.f32.mrf.mxu0
        %v8394 = vadd.f32 0.0, %v8393
        %8395 = vmatmul.f32.gmra.mxu0 %v7096
        %v8396 = vpop.f32.mrf.mxu0
        %v8397 = vadd.f32 0.0, %v8396
        %8398 = vmatmul.f32.gmra.mxu0 %v7098
        %v8399 = vpop.f32.mrf.mxu0
        %v8400 = vadd.f32 0.0, %v8399
        %8401 = vmatmul.f32.gmra.mxu0 %v7099
        %v8402 = vpop.f32.mrf.mxu0
        %v8403 = vadd.f32 0.0, %v8402
        %8404 = vmatmul.f32.gmra.mxu0 %v7101
        %v8405 = vpop.f32.mrf.mxu0
        %v8406 = vadd.f32 0.0, %v8405
        %8407 = vmatmul.f32.gmra.mxu0 %v7102
        %v8408 = vpop.f32.mrf.mxu0
        %v8409 = vadd.f32 0.0, %v8408
        %8410 = vmatmul.f32.gmra.mxu0 %v7104
        %v8411 = vpop.f32.mrf.mxu0
        %v8412 = vadd.f32 0.0, %v8411
        %8413 = vmatmul.f32.gmra.mxu0 %v7105
        %v8414 = vpop.f32.mrf.mxu0
        %v8415 = vadd.f32 0.0, %v8414
        %8416 = vmatmul.f32.gmra.mxu0 %v7107
        %v8417 = vpop.f32.mrf.mxu0
        %v8418 = vadd.f32 0.0, %v8417
        %8419 = vmatmul.f32.gmra.mxu0 %v7108
        %v8420 = vpop.f32.mrf.mxu0
        %v8421 = vadd.f32 0.0, %v8420
        %8422 = vmatmul.f32.gmra.mxu0 %v7110
        %v8423 = vpop.f32.mrf.mxu0
        %v8424 = vadd.f32 0.0, %v8423
        %8425 = vmatmul.f32.gmra.mxu0 %v7111
        %v8426 = vpop.f32.mrf.mxu0
        %v8427 = vadd.f32 0.0, %v8426
        %8428 = vmatmul.f32.gmra.mxu0 %v7113
        %v8429 = vpop.f32.mrf.mxu0
        %v8430 = vadd.f32 0.0, %v8429
        %8431 = vmatmul.f32.gmra.mxu0 %v7114
        %v8432 = vpop.f32.mrf.mxu0
        %v8433 = vadd.f32 0.0, %v8432
        %8434 = vmatmul.f32.gmra.mxu0 %v7116
        %v8435 = vpop.f32.mrf.mxu0
        %v8436 = vadd.f32 0.0, %v8435
        %8437 = vmatmul.f32.gmra.mxu0 %v7117
        %v8438 = vpop.f32.mrf.mxu0
        %v8439 = vadd.f32 0.0, %v8438
        %8440 = vmatmul.f32.gmra.mxu0 %v7119
        %v8441 = vpop.f32.mrf.mxu0
        %v8442 = vadd.f32 0.0, %v8441
        %8443 = vmatmul.f32.gmra.mxu0 %v7120
        %v8444 = vpop.f32.mrf.mxu0
        %v8445 = vadd.f32 0.0, %v8444
        %8446 = vmatmul.f32.gmra.mxu0 %v7122
        %v8447 = vpop.f32.mrf.mxu0
        %v8448 = vadd.f32 0.0, %v8447
        %8449 = vmatmul.f32.gmra.mxu0 %v7123
        %v8450 = vpop.f32.mrf.mxu0
        %v8451 = vadd.f32 0.0, %v8450
        %8452 = vdwg.mxu0
        %v8453 = vadd.f32 %v8291, %v8358
        %v8454 = vadd.f32 %v8292, %v8361
        %v8455 = vadd.f32 %v8293, %v8364
        %v8456 = vadd.f32 %v8294, %v8367
        %v8457 = vadd.f32 %v8295, %v8370
        %v8458 = vadd.f32 %v8296, %v8373
        %v8459 = vadd.f32 %v8297, %v8376
        %v8460 = vadd.f32 %v8298, %v8379
        %v8461 = vadd.f32 %v8299, %v8382
        %v8462 = vadd.f32 %v8300, %v8385
        %v8463 = vadd.f32 %v8301, %v8388
        %v8464 = vadd.f32 %v8302, %v8391
        %v8465 = vadd.f32 %v8303, %v8394
        %v8466 = vadd.f32 %v8304, %v8397
        %v8467 = vadd.f32 %v8305, %v8400
        %v8468 = vadd.f32 %v8306, %v8403
        %v8469 = vadd.f32 %v8307, %v8406
        %v8470 = vadd.f32 %v8308, %v8409
        %v8471 = vadd.f32 %v8309, %v8412
        %v8472 = vadd.f32 %v8310, %v8415
        %v8473 = vadd.f32 %v8311, %v8418
        %v8474 = vadd.f32 %v8312, %v8421
        %v8475 = vadd.f32 %v8313, %v8424
        %v8476 = vadd.f32 %v8314, %v8427
        %v8477 = vadd.f32 %v8315, %v8430
        %v8478 = vadd.f32 %v8316, %v8433
        %v8479 = vadd.f32 %v8317, %v8436
        %v8480 = vadd.f32 %v8318, %v8439
        %v8481 = vadd.f32 %v8319, %v8442
        %v8482 = vadd.f32 %v8320, %v8445
        %v8483 = vadd.f32 %v8321, %v8448
        %v8484 = vadd.f32 %v8322, %v8451
        %v8488 = vrot.slane %v7122, 1
        %v8489 = vrot.slane %v7123, 1
        %v8490 = vsel %vm7189, %v8488, %v8489
        %v8491 = vrot.slane %v7124, 1
        %v8492 = vsel %vm7189, %v8489, %v8491
        %s8495 = scalar_lea.vmem [#allocation2], 896
        %v8496 = vld [vmem:[%s8495] sm:$0xff]
        %v8497 = vld [vmem:[%s8495 + $0x8] sm:$0xff]
        %v8498 = vld [vmem:[%s8495 + $0x10] sm:$0xff]
        %v8499 = vld [vmem:[%s8495 + $0x18] sm:$0xff]
        %v8500 = vld [vmem:[%s8495 + $0x20] sm:$0xff]
        %v8501 = vld [vmem:[%s8495 + $0x28] sm:$0xff]
        %v8502 = vld [vmem:[%s8495 + $0x30] sm:$0xff]
        %v8503 = vld [vmem:[%s8495 + $0x38] sm:$0xff]
        %v8504 = vld [vmem:[%s8495 + $0x40] sm:$0xff]
        %v8505 = vld [vmem:[%s8495 + $0x48] sm:$0xff]
        %v8506 = vld [vmem:[%s8495 + $0x50] sm:$0xff]
        %v8507 = vld [vmem:[%s8495 + $0x58] sm:$0xff]
        %v8508 = vld [vmem:[%s8495 + $0x60] sm:$0xff]
        %v8509 = vld [vmem:[%s8495 + $0x68] sm:$0xff]
        %v8510 = vld [vmem:[%s8495 + $0x70] sm:$0xff]
        %v8511 = vld [vmem:[%s8495 + $0x78] sm:$0xff]
        %8512 = vmatpush.msra.mxu0 %v8511
        %8513 = vmatpush.msra.mxu0 %v8510
        %8514 = vmatpush.msra.mxu0 %v8509
        %8515 = vmatpush.msra.mxu0 %v8508
        %8516 = vmatpush.msra.mxu0 %v8507
        %8517 = vmatpush.msra.mxu0 %v8506
        %8518 = vmatpush.msra.mxu0 %v8505
        %8519 = vmatpush.msra.mxu0 %v8504
        %8520 = vmatpush.msra.mxu0 %v8503
        %8521 = vmatpush.msra.mxu0 %v8502
        %8522 = vmatpush.msra.mxu0 %v8501
        %8523 = vmatpush.msra.mxu0 %v8500
        %8524 = vmatpush.msra.mxu0 %v8499
        %8525 = vmatpush.msra.mxu0 %v8498
        %8526 = vmatpush.msra.mxu0 %v8497
        %8527 = vmatpush.msra.mxu0 %v8496
        %8528 = vmatmul.f32.gmra.mxu0 %v7202
        %v8529 = vpop.f32.mrf.mxu0
        %v8530 = vadd.f32 0.0, %v8529
        %8531 = vmatmul.f32.gmra.mxu0 %v7204
        %v8532 = vpop.f32.mrf.mxu0
        %v8533 = vadd.f32 0.0, %v8532
        %8534 = vmatmul.f32.gmra.mxu0 %v7207
        %v8535 = vpop.f32.mrf.mxu0
        %v8536 = vadd.f32 0.0, %v8535
        %8537 = vmatmul.f32.gmra.mxu0 %v7209
        %v8538 = vpop.f32.mrf.mxu0
        %v8539 = vadd.f32 0.0, %v8538
        %8540 = vmatmul.f32.gmra.mxu0 %v7212
        %v8541 = vpop.f32.mrf.mxu0
        %v8542 = vadd.f32 0.0, %v8541
        %8543 = vmatmul.f32.gmra.mxu0 %v7214
        %v8544 = vpop.f32.mrf.mxu0
        %v8545 = vadd.f32 0.0, %v8544
        %8546 = vmatmul.f32.gmra.mxu0 %v7217
        %v8547 = vpop.f32.mrf.mxu0
        %v8548 = vadd.f32 0.0, %v8547
        %8549 = vmatmul.f32.gmra.mxu0 %v7219
        %v8550 = vpop.f32.mrf.mxu0
        %v8551 = vadd.f32 0.0, %v8550
        %8552 = vmatmul.f32.gmra.mxu0 %v7222
        %v8553 = vpop.f32.mrf.mxu0
        %v8554 = vadd.f32 0.0, %v8553
        %8555 = vmatmul.f32.gmra.mxu0 %v7224
        %v8556 = vpop.f32.mrf.mxu0
        %v8557 = vadd.f32 0.0, %v8556
        %8558 = vmatmul.f32.gmra.mxu0 %v7227
        %v8559 = vpop.f32.mrf.mxu0
        %v8560 = vadd.f32 0.0, %v8559
        %8561 = vmatmul.f32.gmra.mxu0 %v7229
        %v8562 = vpop.f32.mrf.mxu0
        %v8563 = vadd.f32 0.0, %v8562
        %8564 = vmatmul.f32.gmra.mxu0 %v7232
        %v8565 = vpop.f32.mrf.mxu0
        %v8566 = vadd.f32 0.0, %v8565
        %8567 = vmatmul.f32.gmra.mxu0 %v7234
        %v8568 = vpop.f32.mrf.mxu0
        %v8569 = vadd.f32 0.0, %v8568
        %8570 = vmatmul.f32.gmra.mxu0 %v7237
        %v8571 = vpop.f32.mrf.mxu0
        %v8572 = vadd.f32 0.0, %v8571
        %8573 = vmatmul.f32.gmra.mxu0 %v7239
        %v8574 = vpop.f32.mrf.mxu0
        %v8575 = vadd.f32 0.0, %v8574
        %8576 = vmatmul.f32.gmra.mxu0 %v7242
        %v8577 = vpop.f32.mrf.mxu0
        %v8578 = vadd.f32 0.0, %v8577
        %8579 = vmatmul.f32.gmra.mxu0 %v7244
        %v8580 = vpop.f32.mrf.mxu0
        %v8581 = vadd.f32 0.0, %v8580
        %8582 = vmatmul.f32.gmra.mxu0 %v7247
        %v8583 = vpop.f32.mrf.mxu0
        %v8584 = vadd.f32 0.0, %v8583
        %8585 = vmatmul.f32.gmra.mxu0 %v7249
        %v8586 = vpop.f32.mrf.mxu0
        %v8587 = vadd.f32 0.0, %v8586
        %8588 = vmatmul.f32.gmra.mxu0 %v7252
        %v8589 = vpop.f32.mrf.mxu0
        %v8590 = vadd.f32 0.0, %v8589
        %8591 = vmatmul.f32.gmra.mxu0 %v7254
        %v8592 = vpop.f32.mrf.mxu0
        %v8593 = vadd.f32 0.0, %v8592
        %8594 = vmatmul.f32.gmra.mxu0 %v7257
        %v8595 = vpop.f32.mrf.mxu0
        %v8596 = vadd.f32 0.0, %v8595
        %8597 = vmatmul.f32.gmra.mxu0 %v7259
        %v8598 = vpop.f32.mrf.mxu0
        %v8599 = vadd.f32 0.0, %v8598
        %8600 = vmatmul.f32.gmra.mxu0 %v7262
        %v8601 = vpop.f32.mrf.mxu0
        %v8602 = vadd.f32 0.0, %v8601
        %8603 = vmatmul.f32.gmra.mxu0 %v7264
        %v8604 = vpop.f32.mrf.mxu0
        %v8605 = vadd.f32 0.0, %v8604
        %8606 = vmatmul.f32.gmra.mxu0 %v7267
        %v8607 = vpop.f32.mrf.mxu0
        %v8608 = vadd.f32 0.0, %v8607
        %8609 = vmatmul.f32.gmra.mxu0 %v7269
        %v8610 = vpop.f32.mrf.mxu0
        %v8611 = vadd.f32 0.0, %v8610
        %8612 = vmatmul.f32.gmra.mxu0 %v7987
        %v8613 = vpop.f32.mrf.mxu0
        %v8614 = vadd.f32 0.0, %v8613
        %8615 = vmatmul.f32.gmra.mxu0 %v7989
        %v8616 = vpop.f32.mrf.mxu0
        %v8617 = vadd.f32 0.0, %v8616
        %8618 = vmatmul.f32.gmra.mxu0 %v8490
        %v8619 = vpop.f32.mrf.mxu0
        %v8620 = vadd.f32 0.0, %v8619
        %8621 = vmatmul.f32.gmra.mxu0 %v8492
        %v8622 = vpop.f32.mrf.mxu0
        %v8623 = vadd.f32 0.0, %v8622
        %8624 = vdwg.mxu0
        %v8625 = vadd.f32 %v8453, %v8530
        %v8626 = vadd.f32 %v8454, %v8533
        %v8627 = vadd.f32 %v8455, %v8536
        %v8628 = vadd.f32 %v8456, %v8539
        %v8629 = vadd.f32 %v8457, %v8542
        %v8630 = vadd.f32 %v8458, %v8545
        %v8631 = vadd.f32 %v8459, %v8548
        %v8632 = vadd.f32 %v8460, %v8551
        %v8633 = vadd.f32 %v8461, %v8554
        %v8634 = vadd.f32 %v8462, %v8557
        %v8635 = vadd.f32 %v8463, %v8560
        %v8636 = vadd.f32 %v8464, %v8563
        %v8637 = vadd.f32 %v8465, %v8566
        %v8638 = vadd.f32 %v8466, %v8569
        %v8639 = vadd.f32 %v8467, %v8572
        %v8640 = vadd.f32 %v8468, %v8575
        %v8641 = vadd.f32 %v8469, %v8578
        %v8642 = vadd.f32 %v8470, %v8581
        %v8643 = vadd.f32 %v8471, %v8584
        %v8644 = vadd.f32 %v8472, %v8587
        %v8645 = vadd.f32 %v8473, %v8590
        %v8646 = vadd.f32 %v8474, %v8593
        %v8647 = vadd.f32 %v8475, %v8596
        %v8648 = vadd.f32 %v8476, %v8599
        %v8649 = vadd.f32 %v8477, %v8602
        %v8650 = vadd.f32 %v8478, %v8605
        %v8651 = vadd.f32 %v8479, %v8608
        %v8652 = vadd.f32 %v8480, %v8611
        %v8653 = vadd.f32 %v8481, %v8614
        %v8654 = vadd.f32 %v8482, %v8617
        %v8655 = vadd.f32 %v8483, %v8620
        %v8656 = vadd.f32 %v8484, %v8623
        %v8657 = vrot.slane %v7122, 2
        %v8658 = vrot.slane %v7123, 2
        %v8659 = vsel %vm7545, %v8657, %v8658
        %v8660 = vrot.slane %v7124, 2
        %v8661 = vsel %vm7545, %v8658, %v8660
        %s8664 = scalar_lea.vmem [#allocation2], 1024
        %v8665 = vld [vmem:[%s8664] sm:$0xff]
        %v8666 = vld [vmem:[%s8664 + $0x8] sm:$0xff]
        %v8667 = vld [vmem:[%s8664 + $0x10] sm:$0xff]
        %v8668 = vld [vmem:[%s8664 + $0x18] sm:$0xff]
        %v8669 = vld [vmem:[%s8664 + $0x20] sm:$0xff]
        %v8670 = vld [vmem:[%s8664 + $0x28] sm:$0xff]
        %v8671 = vld [vmem:[%s8664 + $0x30] sm:$0xff]
        %v8672 = vld [vmem:[%s8664 + $0x38] sm:$0xff]
        %v8673 = vld [vmem:[%s8664 + $0x40] sm:$0xff]
        %v8674 = vld [vmem:[%s8664 + $0x48] sm:$0xff]
        %v8675 = vld [vmem:[%s8664 + $0x50] sm:$0xff]
        %v8676 = vld [vmem:[%s8664 + $0x58] sm:$0xff]
        %v8677 = vld [vmem:[%s8664 + $0x60] sm:$0xff]
        %v8678 = vld [vmem:[%s8664 + $0x68] sm:$0xff]
        %v8679 = vld [vmem:[%s8664 + $0x70] sm:$0xff]
        %v8680 = vld [vmem:[%s8664 + $0x78] sm:$0xff]
        %8681 = vmatpush.msra.mxu0 %v8680
        %8682 = vmatpush.msra.mxu0 %v8679
        %8683 = vmatpush.msra.mxu0 %v8678
        %8684 = vmatpush.msra.mxu0 %v8677
        %8685 = vmatpush.msra.mxu0 %v8676
        %8686 = vmatpush.msra.mxu0 %v8675
        %8687 = vmatpush.msra.mxu0 %v8674
        %8688 = vmatpush.msra.mxu0 %v8673
        %8689 = vmatpush.msra.mxu0 %v8672
        %8690 = vmatpush.msra.mxu0 %v8671
        %8691 = vmatpush.msra.mxu0 %v8670
        %8692 = vmatpush.msra.mxu0 %v8669
        %8693 = vmatpush.msra.mxu0 %v8668
        %8694 = vmatpush.msra.mxu0 %v8667
        %8695 = vmatpush.msra.mxu0 %v8666
        %8696 = vmatpush.msra.mxu0 %v8665
        %8697 = vmatmul.f32.gmra.mxu0 %v7558
        %v8698 = vpop.f32.mrf.mxu0
        %v8699 = vadd.f32 0.0, %v8698
        %8700 = vmatmul.f32.gmra.mxu0 %v7560
        %v8701 = vpop.f32.mrf.mxu0
        %v8702 = vadd.f32 0.0, %v8701
        %8703 = vmatmul.f32.gmra.mxu0 %v7563
        %v8704 = vpop.f32.mrf.mxu0
        %v8705 = vadd.f32 0.0, %v8704
        %8706 = vmatmul.f32.gmra.mxu0 %v7565
        %v8707 = vpop.f32.mrf.mxu0
        %v8708 = vadd.f32 0.0, %v8707
        %8709 = vmatmul.f32.gmra.mxu0 %v7568
        %v8710 = vpop.f32.mrf.mxu0
        %v8711 = vadd.f32 0.0, %v8710
        %8712 = vmatmul.f32.gmra.mxu0 %v7570
        %v8713 = vpop.f32.mrf.mxu0
        %v8714 = vadd.f32 0.0, %v8713
        %8715 = vmatmul.f32.gmra.mxu0 %v7573
        %v8716 = vpop.f32.mrf.mxu0
        %v8717 = vadd.f32 0.0, %v8716
        %8718 = vmatmul.f32.gmra.mxu0 %v7575
        %v8719 = vpop.f32.mrf.mxu0
        %v8720 = vadd.f32 0.0, %v8719
        %8721 = vmatmul.f32.gmra.mxu0 %v7578
        %v8722 = vpop.f32.mrf.mxu0
        %v8723 = vadd.f32 0.0, %v8722
        %8724 = vmatmul.f32.gmra.mxu0 %v7580
        %v8725 = vpop.f32.mrf.mxu0
        %v8726 = vadd.f32 0.0, %v8725
        %8727 = vmatmul.f32.gmra.mxu0 %v7583
        %v8728 = vpop.f32.mrf.mxu0
        %v8729 = vadd.f32 0.0, %v8728
        %8730 = vmatmul.f32.gmra.mxu0 %v7585
        %v8731 = vpop.f32.mrf.mxu0
        %v8732 = vadd.f32 0.0, %v8731
        %8733 = vmatmul.f32.gmra.mxu0 %v7588
        %v8734 = vpop.f32.mrf.mxu0
        %v8735 = vadd.f32 0.0, %v8734
        %8736 = vmatmul.f32.gmra.mxu0 %v7590
        %v8737 = vpop.f32.mrf.mxu0
        %v8738 = vadd.f32 0.0, %v8737
        %8739 = vmatmul.f32.gmra.mxu0 %v7593
        %v8740 = vpop.f32.mrf.mxu0
        %v8741 = vadd.f32 0.0, %v8740
        %8742 = vmatmul.f32.gmra.mxu0 %v7595
        %v8743 = vpop.f32.mrf.mxu0
        %v8744 = vadd.f32 0.0, %v8743
        %8745 = vmatmul.f32.gmra.mxu0 %v7598
        %v8746 = vpop.f32.mrf.mxu0
        %v8747 = vadd.f32 0.0, %v8746
        %8748 = vmatmul.f32.gmra.mxu0 %v7600
        %v8749 = vpop.f32.mrf.mxu0
        %v8750 = vadd.f32 0.0, %v8749
        %8751 = vmatmul.f32.gmra.mxu0 %v7603
        %v8752 = vpop.f32.mrf.mxu0
        %v8753 = vadd.f32 0.0, %v8752
        %8754 = vmatmul.f32.gmra.mxu0 %v7605
        %v8755 = vpop.f32.mrf.mxu0
        %v8756 = vadd.f32 0.0, %v8755
        %8757 = vmatmul.f32.gmra.mxu0 %v7608
        %v8758 = vpop.f32.mrf.mxu0
        %v8759 = vadd.f32 0.0, %v8758
        %8760 = vmatmul.f32.gmra.mxu0 %v7610
        %v8761 = vpop.f32.mrf.mxu0
        %v8762 = vadd.f32 0.0, %v8761
        %8763 = vmatmul.f32.gmra.mxu0 %v7613
        %v8764 = vpop.f32.mrf.mxu0
        %v8765 = vadd.f32 0.0, %v8764
        %8766 = vmatmul.f32.gmra.mxu0 %v7615
        %v8767 = vpop.f32.mrf.mxu0
        %v8768 = vadd.f32 0.0, %v8767
        %8769 = vmatmul.f32.gmra.mxu0 %v7618
        %v8770 = vpop.f32.mrf.mxu0
        %v8771 = vadd.f32 0.0, %v8770
        %8772 = vmatmul.f32.gmra.mxu0 %v7620
        %v8773 = vpop.f32.mrf.mxu0
        %v8774 = vadd.f32 0.0, %v8773
        %8775 = vmatmul.f32.gmra.mxu0 %v7623
        %v8776 = vpop.f32.mrf.mxu0
        %v8777 = vadd.f32 0.0, %v8776
        %8778 = vmatmul.f32.gmra.mxu0 %v7625
        %v8779 = vpop.f32.mrf.mxu0
        %v8780 = vadd.f32 0.0, %v8779
        %8781 = vmatmul.f32.gmra.mxu0 %v8156
        %v8782 = vpop.f32.mrf.mxu0
        %v8783 = vadd.f32 0.0, %v8782
        %8784 = vmatmul.f32.gmra.mxu0 %v8158
        %v8785 = vpop.f32.mrf.mxu0
        %v8786 = vadd.f32 0.0, %v8785
        %8787 = vmatmul.f32.gmra.mxu0 %v8659
        %v8788 = vpop.f32.mrf.mxu0
        %v8789 = vadd.f32 0.0, %v8788
        %8790 = vmatmul.f32.gmra.mxu0 %v8661
        %v8791 = vpop.f32.mrf.mxu0
        %v8792 = vadd.f32 0.0, %v8791
        %8793 = vdwg.mxu0
        %v8794 = vadd.f32 %v8625, %v8699
        %v8795 = vadd.f32 %v8626, %v8702
        %v8796 = vadd.f32 %v8627, %v8705
        %v8797 = vadd.f32 %v8628, %v8708
        %v8798 = vadd.f32 %v8629, %v8711
        %v8799 = vadd.f32 %v8630, %v8714
        %v8800 = vadd.f32 %v8631, %v8717
        %v8801 = vadd.f32 %v8632, %v8720
        %v8802 = vadd.f32 %v8633, %v8723
        %v8803 = vadd.f32 %v8634, %v8726
        %v8804 = vadd.f32 %v8635, %v8729
        %v8805 = vadd.f32 %v8636, %v8732
        %v8806 = vadd.f32 %v8637, %v8735
        %v8807 = vadd.f32 %v8638, %v8738
        %v8808 = vadd.f32 %v8639, %v8741
        %v8809 = vadd.f32 %v8640, %v8744
        %v8810 = vadd.f32 %v8641, %v8747
        %v8811 = vadd.f32 %v8642, %v8750
        %v8812 = vadd.f32 %v8643, %v8753
        %v8813 = vadd.f32 %v8644, %v8756
        %v8814 = vadd.f32 %v8645, %v8759
        %v8815 = vadd.f32 %v8646, %v8762
        %v8816 = vadd.f32 %v8647, %v8765
        %v8817 = vadd.f32 %v8648, %v8768
        %v8818 = vadd.f32 %v8649, %v8771
        %v8819 = vadd.f32 %v8650, %v8774
        %v8820 = vadd.f32 %v8651, %v8777
        %v8821 = vadd.f32 %v8652, %v8780
        %v8822 = vadd.f32 %v8653, %v8783
        %v8823 = vadd.f32 %v8654, %v8786
        %v8824 = vadd.f32 %v8655, %v8789
        %v8825 = vadd.f32 %v8656, %v8792
        %v8827 = vperm.slane %v319, 0
        %v8829 = vadd.f32 %v8794, %v8827
        %v8830 = vadd.f32 %v8795, %v8827
        %v8831 = vadd.f32 %v8796, %v8827
        %v8832 = vadd.f32 %v8797, %v8827
        %v8833 = vadd.f32 %v8798, %v8827
        %v8834 = vadd.f32 %v8799, %v8827
        %v8835 = vadd.f32 %v8800, %v8827
        %v8836 = vadd.f32 %v8801, %v8827
        %v8837 = vadd.f32 %v8802, %v8827
        %v8838 = vadd.f32 %v8803, %v8827
        %v8839 = vadd.f32 %v8804, %v8827
        %v8840 = vadd.f32 %v8805, %v8827
        %v8841 = vadd.f32 %v8806, %v8827
        %v8842 = vadd.f32 %v8807, %v8827
        %v8843 = vadd.f32 %v8808, %v8827
        %v8844 = vadd.f32 %v8809, %v8827
        %v8845 = vadd.f32 %v8810, %v8827
        %v8846 = vadd.f32 %v8811, %v8827
        %v8847 = vadd.f32 %v8812, %v8827
        %v8848 = vadd.f32 %v8813, %v8827
        %v8849 = vadd.f32 %v8814, %v8827
        %v8850 = vadd.f32 %v8815, %v8827
        %v8851 = vadd.f32 %v8816, %v8827
        %v8852 = vadd.f32 %v8817, %v8827
        %v8853 = vadd.f32 %v8818, %v8827
        %v8854 = vadd.f32 %v8819, %v8827
        %v8855 = vadd.f32 %v8820, %v8827
        %v8856 = vadd.f32 %v8821, %v8827
        %v8857 = vadd.f32 %v8822, %v8827
        %v8858 = vadd.f32 %v8823, %v8827
        %v8859 = vadd.f32 %v8824, %v8827
        %v8860 = vadd.f32 %v8825, %v8827
        %v8861 = vsel %vm7545, %v386, %v389
        %v8862 = vsel %vm7545, %v389, %v500
        %v8863 = vsel %vm7545, %v392, %v395
        %v8864 = vsel %vm7545, %v395, %v501
        %v8865 = vsel %vm7545, %v398, %v401
        %v8866 = vsel %vm7545, %v401, %v502
        %v8867 = vsel %vm7545, %v404, %v407
        %v8868 = vsel %vm7545, %v407, %v503
        %v8869 = vsel %vm7545, %v410, %v413
        %v8870 = vsel %vm7545, %v413, %v504
        %v8871 = vsel %vm7545, %v416, %v419
        %v8872 = vsel %vm7545, %v419, %v505
        %v8873 = vsel %vm7545, %v422, %v425
        %v8874 = vsel %vm7545, %v425, %v506
        %v8875 = vsel %vm7545, %v428, %v431
        %v8876 = vsel %vm7545, %v431, %v507
        %v8877 = vsel %vm7545, %v434, %v437
        %v8878 = vsel %vm7545, %v437, %v508
        %v8879 = vsel %vm7545, %v440, %v443
        %v8880 = vsel %vm7545, %v443, %v509
        %v8881 = vsel %vm7545, %v446, %v449
        %v8882 = vsel %vm7545, %v449, %v510
        %v8883 = vsel %vm7545, %v452, %v455
        %v8884 = vsel %vm7545, %v455, %v511
        %v8885 = vsel %vm7545, %v458, %v461
        %v8886 = vsel %vm7545, %v461, %v512
        %v8887 = vsel %vm7545, %v464, %v467
        %v8888 = vsel %vm7545, %v467, %v513
        %v8889 = vsel %vm7545, %v470, %v473
        %v8890 = vsel %vm7545, %v473, %v514
        %v8891 = vsel %vm7545, %v476, %v479
        %v8892 = vsel %vm7545, %v479, %v515
        %v8925 = vadd.f32 %v8829, %v8861
        %v8926 = vadd.f32 %v8830, %v8862
        %v8927 = vadd.f32 %v8831, %v8863
        %v8928 = vadd.f32 %v8832, %v8864
        %v8929 = vadd.f32 %v8833, %v8865
        %v8930 = vadd.f32 %v8834, %v8866
        %v8931 = vadd.f32 %v8835, %v8867
        %v8932 = vadd.f32 %v8836, %v8868
        %v8933 = vadd.f32 %v8837, %v8869
        %v8934 = vadd.f32 %v8838, %v8870
        %v8935 = vadd.f32 %v8839, %v8871
        %v8936 = vadd.f32 %v8840, %v8872
        %v8937 = vadd.f32 %v8841, %v8873
        %v8938 = vadd.f32 %v8842, %v8874
        %v8939 = vadd.f32 %v8843, %v8875
        %v8940 = vadd.f32 %v8844, %v8876
        %v8941 = vadd.f32 %v8845, %v8877
        %v8942 = vadd.f32 %v8846, %v8878
        %v8943 = vadd.f32 %v8847, %v8879
        %v8944 = vadd.f32 %v8848, %v8880
        %v8945 = vadd.f32 %v8849, %v8881
        %v8946 = vadd.f32 %v8850, %v8882
        %v8947 = vadd.f32 %v8851, %v8883
        %v8948 = vadd.f32 %v8852, %v8884
        %v8949 = vadd.f32 %v8853, %v8885
        %v8950 = vadd.f32 %v8854, %v8886
        %v8951 = vadd.f32 %v8855, %v8887
        %v8952 = vadd.f32 %v8856, %v8888
        %v8953 = vadd.f32 %v8857, %v8889
        %v8954 = vadd.f32 %v8858, %v8890
        %v8955 = vadd.f32 %v8859, %v8891
        %v8956 = vadd.f32 %v8860, %v8892
        %8957 = vst [vmem:[%s248] sm:$0xff] %v8925
        %8958 = vst [vmem:[%s248 + $0x8] sm:$0xff] %v8926
        %8959 = vst [vmem:[%s248 + $0x10] sm:$0xff] %v8927
        %8960 = vst [vmem:[%s248 + $0x18] sm:$0xff] %v8928
        %8961 = vst [vmem:[%s248 + $0x20] sm:$0xff] %v8929
        %8962 = vst [vmem:[%s248 + $0x28] sm:$0xff] %v8930
        %8963 = vst [vmem:[%s248 + $0x30] sm:$0xff] %v8931
        %8964 = vst [vmem:[%s248 + $0x38] sm:$0xff] %v8932
        %8965 = vst [vmem:[%s248 + $0x40] sm:$0xff] %v8933
        %8966 = vst [vmem:[%s248 + $0x48] sm:$0xff] %v8934
        %8967 = vst [vmem:[%s248 + $0x50] sm:$0xff] %v8935
        %8968 = vst [vmem:[%s248 + $0x58] sm:$0xff] %v8936
        %8969 = vst [vmem:[%s248 + $0x60] sm:$0xff] %v8937
        %8970 = vst [vmem:[%s248 + $0x68] sm:$0xff] %v8938
        %8971 = vst [vmem:[%s248 + $0x70] sm:$0xff] %v8939
        %8972 = vst [vmem:[%s248 + $0x78] sm:$0xff] %v8940
        %8973 = vst [vmem:[%s248 + $0x80] sm:$0xff] %v8941
        %8974 = vst [vmem:[%s248 + $0x88] sm:$0xff] %v8942
        %8975 = vst [vmem:[%s248 + $0x90] sm:$0xff] %v8943
        %8976 = vst [vmem:[%s248 + $0x98] sm:$0xff] %v8944
        %8977 = vst [vmem:[%s248 + $0xa0] sm:$0xff] %v8945
        %8978 = vst [vmem:[%s248 + $0xa8] sm:$0xff] %v8946
        %8979 = vst [vmem:[%s248 + $0xb0] sm:$0xff] %v8947
        %8980 = vst [vmem:[%s248 + $0xb8] sm:$0xff] %v8948
        %8981 = vst [vmem:[%s248 + $0xc0] sm:$0xff] %v8949
        %8982 = vst [vmem:[%s248 + $0xc8] sm:$0xff] %v8950
        %8983 = vst [vmem:[%s248 + $0xd0] sm:$0xff] %v8951
        %8984 = vst [vmem:[%s248 + $0xd8] sm:$0xff] %v8952
        %8985 = vst [vmem:[%s248 + $0xe0] sm:$0xff] %v8953
        %8986 = vst [vmem:[%s248 + $0xe8] sm:$0xff] %v8954
        %8987 = vst [vmem:[%s248 + $0xf0] sm:$0xff] %v8955
        %8988 = vst [vmem:[%s248 + $0xf8] sm:$0xff] %v8956
        %s8989 = sand.u32 %s152, 1
        %s8990 = scalar_lea.sflag [#allocation4], %s8989
        %s8991 = sand.u32 %s152, 1
        %s8992 = smul.addr %s8991, 256
        %s8993 = scalar_lea.vmem [#allocation5], %s8992
        // Predicated region
        $region45: #{tpu_custom_call.1} parent=39 // pred_check
          %p8994 = pneg %p162
        $region46: #{tpu_custom_call.1} parent=39 // pred_check_branch
          %8996 = sbr.rel (%p8994) target = $region48
        $region47: #{tpu_custom_call.1} parent=39 // pred_region
          %s8997 = smul.u32 16, %s25
          %8999 = vsyncadd %s8990, 0
          %s9000 = smul.addr %s8997, 2
          %s9001 = smul.addr %s24, 32
          %s9002 = sadd.s32 %s9000, %s9001
          %s9003 = smul.addr %s9002, 8
          %s9004 = scalar_lea.hbm %s5, %s9003
          %s9005 = sshll.u32 %s8993, 4
          %s9006 = int_to_ptr.vmem [resolvable:$true] %s9005
          %s9007 = sshll.u32 %s9004, 4
          %s9008 = int_to_ptr.hbm [resolvable:$true] %s9007
          %9013 = dma.vmem_to_hbm [thread:$0]  %s9006, 4096, %s9008, %s8990, 128, 128, 8
        $region48: #{tpu_custom_call.1} parent=39 // pred_fallthru
          _
      $region40: #{tpu_custom_call.1} parent=5 // pred_fallthru
        _
      %p9014 = scmp.le.s32.totalorder 2, %s15
      // Predicated region
      $region49: #{tpu_custom_call.1} parent=5 // pred_check
        %p9015 = pneg %p9014
      $region50: #{tpu_custom_call.1} parent=5 // pred_check_branch
        %9017 = sbr.rel (%p9015) target = $region52
      $region51: #{tpu_custom_call.1} parent=5 // pred_region
        %s9018 = ssub.s32 %s15, 2
        // Predicated region
        $region53: #{tpu_custom_call.1} parent=51 // pred_check
          %p9019 = pneg %p168
        $region54: #{tpu_custom_call.1} parent=51 // pred_check_branch
          %9021 = sbr.rel (%p9019) target = $region56
        $region55: #{tpu_custom_call.1} parent=51 // pred_region
          %s9022 = sand.u32 %s153, 1
          %s9023 = scalar_lea.sflag [#allocation4], %s9022
          %s9024 = sand.u32 %s153, 1
          %s9025 = smul.addr %s9024, 256
          %s9026 = scalar_lea.vmem [#allocation5], %s9025
          %9028 = dma.done %s9023, 4096
        $region56: #{tpu_custom_call.1} parent=51 // pred_fallthru
          _
      $region52: #{tpu_custom_call.1} parent=5 // pred_fallthru
        _
    $region6: #{tpu_custom_call.1} parent=1 // loop_footer
      %s19 = sadd.s32 1, %s15
    $region7: #{tpu_custom_call.1} parent=1 // loop_footer_branch
      %14 = sbr.rel target = $region3
    $region8: #{tpu_custom_call.1} parent=1 // loop_exit
      _
    %9029 = vsyncpa [#allocation3], 1
    %s9030 = scalar_lea.sflag [#allocation3], 1
    %9031 = vsyncpa %s9030, 1
    %9032 = vsyncpa [#allocation4], 1
    %s9033 = scalar_lea.sflag [#allocation4], 1
    %9034 = vsyncpa %s9033, 1

</llo_original>
